<compile_context>
chip_gen: v7x
topology: tpu7x:2x2x1
jax: 0.10.0
libtpu: 0.0.40
codegen_flags: <defaults>
</compile_context>

<pallas_src>
import jax
import jax.numpy as jnp
from jax.experimental import pallas as pl
from jax.experimental.pallas import tpu as pltpu

BN_EPS = 1e-5
RRELU_SLOPE = (1.0 / 8.0 + 1.0 / 3.0) / 2.0  # F.rrelu eval-mode slope = 11/48
VMEM_LIMIT = 48 * 1024 * 1024


def _ceil_to(x, m):
    return (x + m - 1) // m * m


def _apply_act(y, act):
    if act == "relu":
        return jnp.maximum(y, 0.0)
    if act == "rrelu":
        return jnp.where(y >= 0.0, y, y * RRELU_SLOPE)
    if act == "sigmoid":
        return 1.0 / (1.0 + jnp.exp(-y))
    return y


def _bn_fold(p):
    """Eval-mode BN folded with the preceding conv/linear bias."""
    scale = p["gamma"] / jnp.sqrt(p["var"] + BN_EPS)
    shift = p["beta"] - p["mean"] * scale + p["b"] * scale
    return scale, shift


# ---------------------------------------------------------------------------
# Pallas kernels
# ---------------------------------------------------------------------------
def _plain_kernel(act, has_res):
    """Single full-K matmul + shift + act (+ residual add + ReLU) epilogue."""

    def kernel(a_ref, b_ref, sh_ref, *rest):
        if has_res:
            r_ref, o_ref = rest
        else:
            (o_ref,) = rest
        y = jnp.dot(a_ref[...], b_ref[...], preferred_element_type=jnp.float32)
        y = y + sh_ref[...]
        y = _apply_act(y, act)
        if has_res:
            y = jnp.maximum(y + r_ref[...].astype(jnp.float32), 0.0)
        o_ref[...] = y.astype(o_ref.dtype)

    return kernel


def matmul_shift_act(a, w, shift, *, act="none", residual=None,
                     out_dtype=jnp.bfloat16):
    """out = act(a @ w + shift) [then relu(. + residual)]; bf16 in, f32 acc."""
    M, K = a.shape
    N = w.shape[1]
    # N tiling: keep the (double-buffered) weight block to a few MB; prefer
    # 256-wide tiles to match the 256-wide MXU on v6e/v7x.
    if K * N * 2 <= (6 << 20) or N % 128 != 0:
        tn = N
    elif N % 256 == 0:
        tn = 256
    else:
        tn = 128
    nt = N // tn
    # M tiling: multiples of 256 rows, sized against a ~24 MB working set.
    row_bytes = 4 * K + 12 * tn + (4 * tn if residual is not None else 0)
    tm = ((24 << 20) // row_bytes) // 256 * 256
    tm = max(256, min(tm, 32768, _ceil_to(M, 256)))
    mt = pl.cdiv(M, tm)

    in_specs = [
        pl.BlockSpec((tm, K), lambda i, j: (i, 0)),
        pl.BlockSpec((K, tn), lambda i, j: (0, j)),
        pl.BlockSpec((1, tn), lambda i, j: (0, j)),
    ]
    args = [a, w, shift]
    if residual is not None:
        in_specs.append(pl.BlockSpec((tm, tn), lambda i, j: (i, j)))
        args.append(residual)

    return pl.pallas_call(
        _plain_kernel(act, residual is not None),
        out_shape=jax.ShapeDtypeStruct((M, N), out_dtype),
        grid=(mt, nt),
        in_specs=in_specs,
        out_specs=pl.BlockSpec((tm, tn), lambda i, j: (i, j)),
        compiler_params=pltpu.CompilerParams(
            dimension_semantics=("parallel", "parallel"),
            vmem_limit_bytes=VMEM_LIMIT),
    )(*args)


def _fused_conv_kernel(act, offs, kc, tm):
    """Fused stride-1 3x3x3 conv: 9 (kd,kh) tap dots (K = 3*Cin each) over
    sublane-aligned row-shifted windows of [tile ; small halo]."""
    n_taps = len(offs)

    def kernel(a_ref, h_ref, w_ref, sh_ref, o_ref):
        x01 = jnp.concatenate([a_ref[...], h_ref[...]], axis=0)  # (tm+halo, kc)
        part0 = None
        part1 = None
        for t in range(n_taps):
            off = offs[t]
            d = jnp.dot(x01[off:off + tm, :],
                        w_ref[t * kc:(t + 1) * kc, :],
                        preferred_element_type=jnp.float32)
            if t % 2 == 0:
                part0 = d if part0 is None else part0 + d
            else:
                part1 = d if part1 is None else part1 + d
        y = part0 + part1 + sh_ref[...]
        y = _apply_act(y, act)
        o_ref[...] = y.astype(o_ref.dtype)

    return kernel


# ---------------------------------------------------------------------------
# Conv / pooling / linear wrappers
# ---------------------------------------------------------------------------
def conv3x3_s1_fused(x, p, *, act="none"):
    """3x3x3 stride-1 pad-1 conv + BN (+act) via the fused row-offset kernel.

    kw taps pre-unrolled into channels (3x activation in HBM); 9 remaining
    (kd,kh) taps accumulated in-kernel over offsets that are multiples of the
    16-aligned padded width Wq (sublane-aligned bf16 slices).
    """
    N, D, H, W, Cin = x.shape
    O = p["w"].shape[0]
    Dg, Hg = D + 2, H + 2
    Wq = _ceil_to(W, 16)
    kc = 3 * Cin

    # xk[n,d',h',w, kw*C+c] = xpad1[n, d', h', w+kw, c]   (zero padded)
    xp = jnp.pad(x, ((0, 0), (1, 1), (1, 1), (1, Wq - W + 1), (0, 0)))
    xk = jnp.concatenate([xp[:, :, :, kw:kw + Wq, :] for kw in range(3)],
                         axis=-1)
    Mg = N * Dg * Hg * Wq
    xflat = xk.reshape(Mg, kc).astype(jnp.bfloat16)

    offs = tuple((kd * Hg + kh) * Wq for kd in range(3) for kh in range(3))
    halo = offs[-1]                      # 2*(Hg+1)*Wq, multiple of 16

    # Row tile = r * halo so the halo tile's start (i+1)*tm is a whole number
    # of halo-sized blocks; target ~4 MB of activation per tile.
    r = max(1, ((4 << 20) // (kc * 2)) // halo)
    r = min(r, pl.cdiv(Mg, halo))
    tm = r * halo
    mt = pl.cdiv(Mg, tm)
    total = mt * tm + halo
    xflat = jnp.pad(xflat, ((0, total - Mg), (0, 0)))

    scale, shift = _bn_fold(p)
    wt = jnp.transpose(p["w"], (2, 3, 4, 1, 0)).reshape(9, kc, O)
    w2 = (wt * scale[None, None, :]).reshape(9 * kc, O).astype(jnp.bfloat16)
    sh = shift.reshape(1, O).astype(jnp.float32)

    if 9 * kc * O * 2 <= (8 << 20) or O % 128 != 0:
        tn = O
    elif O % 256 == 0:
        tn = 256
    else:
        tn = 128
    nt = O // tn

    out = pl.pallas_call(
        _fused_conv_kernel(act, offs, kc, tm),
        out_shape=jax.ShapeDtypeStruct((mt * tm, O), jnp.bfloat16),
        grid=(mt, nt),
        in_specs=[
            pl.BlockSpec((tm, kc), lambda i, j: (i, 0)),
            pl.BlockSpec((halo, kc), lambda i, j: ((i + 1) * r, 0)),
            pl.BlockSpec((9 * kc, tn), lambda i, j: (0, j)),
            pl.BlockSpec((1, tn), lambda i, j: (0, j)),
        ],
        out_specs=pl.BlockSpec((tm, tn), lambda i, j: (i, j)),
        compiler_params=pltpu.CompilerParams(
            dimension_semantics=("parallel", "parallel"),
            vmem_limit_bytes=VMEM_LIMIT),
    )(xflat, xflat, w2, sh)

    # Drop alignment/halo rows and columns.
    y = out[:Mg].reshape(N, Dg, Hg, Wq, O)[:, :D, :H, :W, :]
    return y


def _im2col_3d(x, ksize, stride, padding):
    """x: (N,D,H,W,C) -> ((N,Do,Ho,Wo,k^3,C), (Do,Ho,Wo)). bf16, zero pad."""
    N, D, H, W, C = x.shape
    Do = (D + 2 * padding - ksize) // stride + 1
    Ho = (H + 2 * padding - ksize) // stride + 1
    Wo = (W + 2 * padding - ksize) // stride + 1
    if padding:
        x = jnp.pad(x, ((0, 0), (padding, padding), (padding, padding),
                        (padding, padding), (0, 0)))
    slices = []
    for kd in range(ksize):
        for kh in range(ksize):
            for kw in range(ksize):
                slices.append(x[:, kd:kd + stride * (Do - 1) + 1:stride,
                                kh:kh + stride * (Ho - 1) + 1:stride,
                                kw:kw + stride * (Wo - 1) + 1:stride, :])
    patches = jnp.stack(slices, axis=4)  # (N,Do,Ho,Wo,T,C)
    return patches, (Do, Ho, Wo)


def conv3d_plain(x, p, *, stride, act="none", residual=None):
    """Conv as bf16 im2col + one full-K Pallas matmul (+fused residual/ReLU)."""
    w = p["w"]                                   # (O, I, k, k, k) PyTorch layout
    O, I, k = w.shape[0], w.shape[1], w.shape[2]
    padding = (k - 1) // 2
    patches, dims = _im2col_3d(x.astype(jnp.bfloat16), k, stride, padding)
    M = x.shape[0] * dims[0] * dims[1] * dims[2]
    K = (k ** 3) * I
    a = patches.reshape(M, K)
    scale, shift = _bn_fold(p)
    w2 = jnp.transpose(w, (2, 3, 4, 1, 0)).reshape(K, O) * scale[None, :]
    sh = shift.reshape(1, O)

    # Lane-dense outputs for O=64 (the stem): fold 2 adjacent rows into lanes
    # with a block-diagonal weight -> 128-wide unmasked stores (reshapes free).
    fold = 2 if (O == 64 and M % 2 == 0 and residual is None) else 1
    if fold == 2:
        a = a.reshape(M // 2, 2 * K)
        wz = jnp.zeros((2 * K, 2 * O), jnp.float32)
        w2 = wz.at[:K, :O].set(w2).at[K:, O:].set(w2)
        sh = jnp.concatenate([sh, sh], axis=1)

    res_flat = None
    if residual is not None:
        res_flat = residual.reshape(M, O).astype(jnp.bfloat16)

    y = matmul_shift_act(a, w2.astype(jnp.bfloat16), sh.astype(jnp.float32),
                         act=act, residual=res_flat)
    if fold == 2:
        y = y.reshape(M, O)
    return y.reshape((x.shape[0],) + dims + (O,))


def _pool_axis(x, axis, k, stride, pad, pad_value, op):
    if pad:
        widths = [(0, 0)] * x.ndim
        widths[axis] = (pad, pad)
        x = jnp.pad(x, widths, constant_values=pad_value)
    size = x.shape[axis]
    out_len = (size - k) // stride + 1
    acc = None
    for i in range(k):
        s = jax.lax.slice_in_dim(x, i, i + stride * (out_len - 1) + 1, stride, axis)
        acc = s if acc is None else op(acc, s)
    return acc


def maxpool3d_k3_s2_p1(x):
    for ax in (1, 2, 3):
        x = _pool_axis(x, ax, 3, 2, 1, -jnp.inf, jnp.maximum)
    return x


def avgpool3d_k4_s1(x):
    x = x.astype(jnp.float32)
    for ax in (1, 2, 3):
        x = _pool_axis(x, ax, 4, 1, 0, 0.0, jnp.add)
    return x / 64.0


def linear_bn_act(x, p, act):
    # Tiny FC head (M = batch): left to XLA per the perf review — a Pallas grid
    # of 1 step per call buys nothing and wastes the second v7x TensorCore.
    scale, shift = _bn_fold(p)
    y = x.astype(jnp.float32) @ (p["w"].T * scale[None, :]) + shift[None, :]
    return _apply_act(y, act)


def basic_block(x, bp, stride):
    planes = bp["conv1"]["w"].shape[0]
    # conv1 + BN + ReLU
    if stride == 1 and x.shape[-1] <= 128:
        out = conv3x3_s1_fused(x, bp["conv1"], act="relu")
    else:
        out = conv3d_plain(x, bp["conv1"], stride=stride, act="relu")
    # residual branch
    if bp["ds"] is None:
        res = x
    else:
        res = conv3d_plain(x, bp["ds"], stride=stride, act="none")
    # conv2 + BN, then residual add + ReLU
    if planes <= 128:
        out = conv3x3_s1_fused(out, bp["conv2"], act="none")
        out = jnp.maximum(out + res, 0.0).astype(jnp.bfloat16)
    else:
        # layer2/3: small spatial dims -> im2col path with fused residual+ReLU.
        out = conv3d_plain(out, bp["conv2"], stride=1, act="none", residual=res)
    return out


# ---------------------------------------------------------------------------
# Parameters (deterministic, shapes exactly as the module's __init__ implies)
# ---------------------------------------------------------------------------
def _conv_bn_init(key, cin, cout, k):
    ks = jax.random.split(key, 6)
    fan_in = cin * k * k * k
    return dict(
        w=jax.random.normal(ks[0], (cout, cin, k, k, k), jnp.float32)
          * jnp.sqrt(2.0 / fan_in),
        b=0.01 * jax.random.normal(ks[1], (cout,), jnp.float32),
        gamma=1.0 + 0.1 * jax.random.normal(ks[2], (cout,), jnp.float32),
        beta=0.05 * jax.random.normal(ks[3], (cout,), jnp.float32),
        mean=0.05 * jax.random.normal(ks[4], (cout,), jnp.float32),
        var=1.0 + 0.1 * jax.random.uniform(ks[5], (cout,), jnp.float32),
    )


def _linear_bn_init(key, fin, fout):
    ks = jax.random.split(key, 6)
    return dict(
        w=jax.random.normal(ks[0], (fout, fin), jnp.float32)
          * jnp.sqrt(2.0 / fin),
        b=0.01 * jax.random.normal(ks[1], (fout,), jnp.float32),
        gamma=1.0 + 0.1 * jax.random.normal(ks[2], (fout,), jnp.float32),
        beta=0.05 * jax.random.normal(ks[3], (fout,), jnp.float32),
        mean=0.05 * jax.random.normal(ks[4], (fout,), jnp.float32),
        var=1.0 + 0.1 * jax.random.uniform(ks[5], (fout,), jnp.float32),
    )


def init_params(key, n_cln, layers=(1, 1, 1, 1)):
    keys = iter(jax.random.split(key, 64))
    params = {"conv1": _conv_bn_init(next(keys), 2, 64, 3)}
    inplanes = 64
    for li, (planes, blocks, stride) in enumerate(
            zip((64, 128, 256, 512), layers, (1, 2, 2, 2))):
        blist = []
        for bi in range(blocks):
            s = stride if bi == 0 else 1
            needs_ds = (s != 1) or (inplanes != planes)
            blist.append(dict(
                conv1=_conv_bn_init(next(keys), inplanes, planes, 3),
                conv2=_conv_bn_init(next(keys), planes, planes, 3),
                ds=_conv_bn_init(next(keys), inplanes, planes, 1) if needs_ds else None,
            ))
            inplanes = planes
        params[f"layer{li}"] = blist
    params["fc1"] = _linear_bn_init(next(keys), 3072, n_cln)
    params["fc2"] = _linear_bn_init(next(keys), 2 * n_cln, 2 * n_cln)
    params["fc3"] = _linear_bn_init(next(keys), 2 * n_cln, 1)
    return params


# ---------------------------------------------------------------------------
# Forward pass (mirrors ResNet.forward, eval mode)
# ---------------------------------------------------------------------------
def resnet_forward(params, x_dos, x_cts, x_cln):
    x = jnp.concatenate([x_dos, x_cts], axis=1)                   # (N,2,D,H,W)
    x = jnp.transpose(x, (0, 2, 3, 4, 1)).astype(jnp.bfloat16)    # NDHWC bf16
    x = conv3d_plain(x, params["conv1"], stride=2, act="relu")
    x = maxpool3d_k3_s2_p1(x)
    strides = (1, 2, 2, 2)
    for li in range(4):
        for bi, bp in enumerate(params[f"layer{li}"]):
            x = basic_block(x, bp, strides[li] if bi == 0 else 1)
    x = avgpool3d_k4_s1(x)
    n = x.shape[0]
    # Flatten in PyTorch NCDHW order so fc1 sees the same feature layout.
    x = jnp.transpose(x, (0, 4, 1, 2, 3)).reshape(n, -1)          # (N, 3072)
    x = linear_bn_act(x, params["fc1"], "rrelu")
    x_cln = jnp.squeeze(x_cln, axis=1)
    xf = jnp.concatenate([x, x_cln.astype(jnp.float32)], axis=1)
    xf = linear_bn_act(xf, params["fc2"], "rrelu")
    xf = linear_bn_act(xf, params["fc3"], "sigmoid")
    return jnp.squeeze(xf).astype(jnp.float32)


if __name__ == "__main__":
    # ---- small self-check of the two conv kernels against lax.conv ---------
    def _conv_bn_ref(x, p, stride):
        k = p["w"].shape[2]
        pad = (k - 1) // 2
        wref = jnp.transpose(p["w"], (2, 3, 4, 1, 0)).astype(jnp.float32)
        y = jax.lax.conv_general_dilated(
            x.astype(jnp.float32), wref, (stride,) * 3, ((pad, pad),) * 3,
            dimension_numbers=("NDHWC", "DHWIO", "NDHWC"))
        scale, shift = _bn_fold(p)
        return y * scale + shift

    kt1, kt2, kt3, kt4 = jax.random.split(jax.random.PRNGKey(7), 4)
    xt = jax.random.normal(kt1, (1, 5, 6, 7, 16), jnp.float32).astype(jnp.bfloat16)
    pt = _conv_bn_init(kt2, 16, 32, 3)
    got = jax.jit(lambda a, q: conv3x3_s1_fused(a, q, act="none"))(xt, pt)
    want = _conv_bn_ref(xt.astype(jnp.float32), pt, 1)
    err = float(jnp.max(jnp.abs(got.astype(jnp.float32) - want)))
    assert err < 0.15, ("fused conv mismatch", err)

    xt2 = jax.random.normal(kt3, (2, 6, 7, 9, 4), jnp.float32).astype(jnp.bfloat16)
    pt2 = _conv_bn_init(kt4, 4, 64, 3)
    got2 = jax.jit(lambda a, q: conv3d_plain(a, q, stride=2, act="none"))(xt2, pt2)
    want2 = _conv_bn_ref(xt2.astype(jnp.float32), pt2, 2)
    err2 = float(jnp.max(jnp.abs(got2.astype(jnp.float32) - want2)))
    assert err2 < 0.15, ("plain conv mismatch", err2)

    # ---- full network ------------------------------------------------------
    # Smallest input compatible with the module's hardcoded fc1(3072, n_cln)
    # and AvgPool3d(4, stride=1): after /32 downsampling the spatial dims are
    # (4, 5, 6), avg-pooled to (1, 2, 3), so 512 * 6 = 3072 flattened features.
    D1, D2, D3 = 97, 129, 161
    n_cln = 8
    batch = 2

    key = jax.random.PRNGKey(0)
    kp, k1, k2, k3 = jax.random.split(key, 4)
    params = init_params(kp, n_cln, layers=(1, 1, 1, 1))

    x_dos = jax.random.normal(k1, (batch, 1, D1, D2, D3), jnp.float32)
    x_cts = jax.random.normal(k2, (batch, 1, D1, D2, D3), jnp.float32)
    x_cln = jax.random.normal(k3, (batch, 1, n_cln), jnp.float32)

    fwd = jax.jit(resnet_forward)
    out = jax.block_until_ready(fwd(params, x_dos, x_cts, x_cln))

    assert out.shape == (batch,), out.shape
    assert bool(jnp.all(jnp.isfinite(out)))
    print("KERNEL_OK")
</pallas_src>

<mosaic_0001>
module attributes {stable_mosaic.version = 11 : i64} {
  func.func @kernel(%arg0: i32, %arg1: i32, %arg2: memref<1152x48xbf16, #tpu.memory_space<vmem>>, %arg3: memref<288x48xbf16, #tpu.memory_space<vmem>>, %arg4: memref<432x32xbf16, #tpu.memory_space<vmem>>, %arg5: memref<1x32xf32, #tpu.memory_space<vmem>>, %arg6: memref<1152x32xbf16, #tpu.memory_space<vmem>>) attributes {dimension_semantics = [#tpu.dimension_semantics<parallel>, #tpu.dimension_semantics<parallel>], iteration_bounds = array<i64: 1, 1>, scalar_prefetch = 0 : i64, scratch_operands = 0 : i64, tpu.core_type = #tpu.core_type<tc>, window_params = [{transform_indices = @transform_0, window_bounds = array<i64: 1152, 48>}, {transform_indices = @transform_1, window_bounds = array<i64: 288, 48>}, {transform_indices = @transform_2, window_bounds = array<i64: 432, 32>}, {transform_indices = @transform_3, window_bounds = array<i64: 1, 32>}, {transform_indices = @transform_4, window_bounds = array<i64: 1152, 32>}]} {
    %c0 = arith.constant 0 : index
    %c0_0 = arith.constant 0 : index
    %0 = vector.load %arg2[%c0, %c0_0] : memref<1152x48xbf16, #tpu.memory_space<vmem>>, vector<1152x48xbf16>
    %c0_1 = arith.constant 0 : index
    %c0_2 = arith.constant 0 : index
    %1 = vector.load %arg3[%c0_1, %c0_2] : memref<288x48xbf16, #tpu.memory_space<vmem>>, vector<288x48xbf16>
    %2 = tpu.concatenate %0, %1 in 0 : vector<1152x48xbf16>, vector<288x48xbf16> -> vector<1440x48xbf16>
    %3 = vector.extract_strided_slice %2 {offsets = [0, 0], sizes = [1152, 48], strides = [1, 1]} : vector<1440x48xbf16> to vector<1152x48xbf16>
    %c0_3 = arith.constant 0 : index
    %c0_4 = arith.constant 0 : index
    %4 = vector.load %arg4[%c0_3, %c0_4] : memref<432x32xbf16, #tpu.memory_space<vmem>>, vector<48x32xbf16>
    %cst = arith.constant dense<0.000000e+00> : vector<1152x32xf32>
    %5 = tpu.matmul %3, %4, %cst {dimension_numbers = #tpu.dot_dimension_numbers<[1], [0], [0], [1], [0, 0, 1, 1], [], []>} : vector<1152x48xbf16>, vector<48x32xbf16>, vector<1152x32xf32> -> vector<1152x32xf32>
    %6 = vector.extract_strided_slice %2 {offsets = [16, 0], sizes = [1152, 48], strides = [1, 1]} : vector<1440x48xbf16> to vector<1152x48xbf16>
    %c48 = arith.constant 48 : index
    %c0_5 = arith.constant 0 : index
    %7 = vector.load %arg4[%c48, %c0_5] : memref<432x32xbf16, #tpu.memory_space<vmem>>, vector<48x32xbf16>
    %cst_6 = arith.constant dense<0.000000e+00> : vector<1152x32xf32>
    %8 = tpu.matmul %6, %7, %cst_6 {dimension_numbers = #tpu.dot_dimension_numbers<[1], [0], [0], [1], [0, 0, 1, 1], [], []>} : vector<1152x48xbf16>, vector<48x32xbf16>, vector<1152x32xf32> -> vector<1152x32xf32>
    %9 = vector.extract_strided_slice %2 {offsets = [32, 0], sizes = [1152, 48], strides = [1, 1]} : vector<1440x48xbf16> to vector<1152x48xbf16>
    %c96 = arith.constant 96 : index
    %c0_7 = arith.constant 0 : index
    %10 = vector.load %arg4[%c96, %c0_7] : memref<432x32xbf16, #tpu.memory_space<vmem>>, vector<48x32xbf16>
    %cst_8 = arith.constant dense<0.000000e+00> : vector<1152x32xf32>
    %11 = tpu.matmul %9, %10, %cst_8 {dimension_numbers = #tpu.dot_dimension_numbers<[1], [0], [0], [1], [0, 0, 1, 1], [], []>} : vector<1152x48xbf16>, vector<48x32xbf16>, vector<1152x32xf32> -> vector<1152x32xf32>
    %12 = arith.addf %5, %11 : vector<1152x32xf32>
    %13 = vector.extract_strided_slice %2 {offsets = [128, 0], sizes = [1152, 48], strides = [1, 1]} : vector<1440x48xbf16> to vector<1152x48xbf16>
    %c144 = arith.constant 144 : index
    %c0_9 = arith.constant 0 : index
    %14 = vector.load %arg4[%c144, %c0_9] : memref<432x32xbf16, #tpu.memory_space<vmem>>, vector<48x32xbf16>
    %cst_10 = arith.constant dense<0.000000e+00> : vector<1152x32xf32>
    %15 = tpu.matmul %13, %14, %cst_10 {dimension_numbers = #tpu.dot_dimension_numbers<[1], [0], [0], [1], [0, 0, 1, 1], [], []>} : vector<1152x48xbf16>, vector<48x32xbf16>, vector<1152x32xf32> -> vector<1152x32xf32>
    %16 = arith.addf %8, %15 : vector<1152x32xf32>
    %17 = vector.extract_strided_slice %2 {offsets = [144, 0], sizes = [1152, 48], strides = [1, 1]} : vector<1440x48xbf16> to vector<1152x48xbf16>
    %c192 = arith.constant 192 : index
    %c0_11 = arith.constant 0 : index
    %18 = vector.load %arg4[%c192, %c0_11] : memref<432x32xbf16, #tpu.memory_space<vmem>>, vector<48x32xbf16>
    %cst_12 = arith.constant dense<0.000000e+00> : vector<1152x32xf32>
    %19 = tpu.matmul %17, %18, %cst_12 {dimension_numbers = #tpu.dot_dimension_numbers<[1], [0], [0], [1], [0, 0, 1, 1], [], []>} : vector<1152x48xbf16>, vector<48x32xbf16>, vector<1152x32xf32> -> vector<1152x32xf32>
    %20 = arith.addf %12, %19 : vector<1152x32xf32>
    %21 = vector.extract_strided_slice %2 {offsets = [160, 0], sizes = [1152, 48], strides = [1, 1]} : vector<1440x48xbf16> to vector<1152x48xbf16>
    %c240 = arith.constant 240 : index
    %c0_13 = arith.constant 0 : index
    %22 = vector.load %arg4[%c240, %c0_13] : memref<432x32xbf16, #tpu.memory_space<vmem>>, vector<48x32xbf16>
    %cst_14 = arith.constant dense<0.000000e+00> : vector<1152x32xf32>
    %23 = tpu.matmul %21, %22, %cst_14 {dimension_numbers = #tpu.dot_dimension_numbers<[1], [0], [0], [1], [0, 0, 1, 1], [], []>} : vector<1152x48xbf16>, vector<48x32xbf16>, vector<1152x32xf32> -> vector<1152x32xf32>
    %24 = arith.addf %16, %23 : vector<1152x32xf32>
    %25 = vector.extract_strided_slice %2 {offsets = [256, 0], sizes = [1152, 48], strides = [1, 1]} : vector<1440x48xbf16> to vector<1152x48xbf16>
    %c288 = arith.constant 288 : index
    %c0_15 = arith.constant 0 : index
    %26 = vector.load %arg4[%c288, %c0_15] : memref<432x32xbf16, #tpu.memory_space<vmem>>, vector<48x32xbf16>
    %cst_16 = arith.constant dense<0.000000e+00> : vector<1152x32xf32>
    %27 = tpu.matmul %25, %26, %cst_16 {dimension_numbers = #tpu.dot_dimension_numbers<[1], [0], [0], [1], [0, 0, 1, 1], [], []>} : vector<1152x48xbf16>, vector<48x32xbf16>, vector<1152x32xf32> -> vector<1152x32xf32>
    %28 = arith.addf %20, %27 : vector<1152x32xf32>
    %29 = vector.extract_strided_slice %2 {offsets = [272, 0], sizes = [1152, 48], strides = [1, 1]} : vector<1440x48xbf16> to vector<1152x48xbf16>
    %c336 = arith.constant 336 : index
    %c0_17 = arith.constant 0 : index
    %30 = vector.load %arg4[%c336, %c0_17] : memref<432x32xbf16, #tpu.memory_space<vmem>>, vector<48x32xbf16>
    %cst_18 = arith.constant dense<0.000000e+00> : vector<1152x32xf32>
    %31 = tpu.matmul %29, %30, %cst_18 {dimension_numbers = #tpu.dot_dimension_numbers<[1], [0], [0], [1], [0, 0, 1, 1], [], []>} : vector<1152x48xbf16>, vector<48x32xbf16>, vector<1152x32xf32> -> vector<1152x32xf32>
    %32 = arith.addf %24, %31 : vector<1152x32xf32>
    %33 = vector.extract_strided_slice %2 {offsets = [288, 0], sizes = [1152, 48], strides = [1, 1]} : vector<1440x48xbf16> to vector<1152x48xbf16>
    %c384 = arith.constant 384 : index
    %c0_19 = arith.constant 0 : index
    %34 = vector.load %arg4[%c384, %c0_19] : memref<432x32xbf16, #tpu.memory_space<vmem>>, vector<48x32xbf16>
    %cst_20 = arith.constant dense<0.000000e+00> : vector<1152x32xf32>
    %35 = tpu.matmul %33, %34, %cst_20 {dimension_numbers = #tpu.dot_dimension_numbers<[1], [0], [0], [1], [0, 0, 1, 1], [], []>} : vector<1152x48xbf16>, vector<48x32xbf16>, vector<1152x32xf32> -> vector<1152x32xf32>
    %36 = arith.addf %28, %35 : vector<1152x32xf32>
    %37 = arith.addf %36, %32 : vector<1152x32xf32>
    %c0_21 = arith.constant 0 : index
    %c0_22 = arith.constant 0 : index
    %38 = vector.load %arg5[%c0_21, %c0_22] : memref<1x32xf32, #tpu.memory_space<vmem>>, vector<1x32xf32>
    %39 = vector.broadcast %38 : vector<1x32xf32> to vector<1152x32xf32>
    %40 = arith.addf %37, %39 : vector<1152x32xf32>
    %41 = arith.truncf %40 : vector<1152x32xf32> to vector<1152x32xbf16>
    %c0_23 = arith.constant 0 : index
    %c0_24 = arith.constant 0 : index
    %42 = vector.load %arg6[%c0_23, %c0_24] : memref<1152x32xbf16, #tpu.memory_space<vmem>>, vector<1152x32xbf16>
    tpu.vector_store %arg6[%c0_23, %c0_24], %41 {strides = array<i32>} : memref<1152x32xbf16, #tpu.memory_space<vmem>>, vector<1152x32xbf16>,
    return
  }
  func.func @transform_0(%arg0: i32, %arg1: i32) -> (i32, i32) {
    %c0_i32 = arith.constant 0 : i32
    %c0_i32_0 = arith.constant 0 : i32
    return %arg0, %c0_i32 : i32, i32
  }
  func.func @transform_1(%arg0: i32, %arg1: i32) -> (i32, i32) {
    %c1_i32 = arith.constant 1 : i32
    %0 = arith.addi %arg0, %c1_i32 : i32
    %c4_i32 = arith.constant 4 : i32
    %1 = arith.muli %0, %c4_i32 : i32
    %c0_i32 = arith.constant 0 : i32
    %c0_i32_0 = arith.constant 0 : i32
    return %1, %c0_i32 : i32, i32
  }
  func.func @transform_2(%arg0: i32, %arg1: i32) -> (i32, i32) {
    %c0_i32 = arith.constant 0 : i32
    %c0_i32_0 = arith.constant 0 : i32
    return %c0_i32, %arg1 : i32, i32
  }
  func.func @transform_3(%arg0: i32, %arg1: i32) -> (i32, i32) {
    %c0_i32 = arith.constant 0 : i32
    %c0_i32_0 = arith.constant 0 : i32
    return %c0_i32, %arg1 : i32, i32
  }
  func.func @transform_4(%arg0: i32, %arg1: i32) -> (i32, i32) {
    %c0_i32 = arith.constant 0 : i32
    return %arg0, %arg1 : i32, i32
  }
}

</mosaic_0001>

<llo_original>
// kernel: _lambda_.1
$region0: #{_lambda_.1}
  #allocation0 [shape = 'u32[]', space=smem, size = 0x4, offset = 0x4, fixed_abs, tag = 'smem constant byte address 0x4 - core index']
  #allocation1 [shape = 'u32[144,128]{1,0:T(1,128)}', space=vmem, size = 0x12000, scoped, tag = 'internal scratch']
  %s0 = inlined_call_operand.vmem [shape: bf16[1440,48], index: 0, kind: input, shape index: {}, may-alias: {0,1}]
  %s1 = inlined_call_operand.vmem [shape: bf16[1440,48], index: 1, kind: input, shape index: {}, may-alias: {0,1}]
  %s2 = inlined_call_operand.vmem [shape: bf16[432,32], index: 2, kind: input, shape index: {}]
  %s3 = inlined_call_operand.vmem [shape: f32[1,32], index: 3, kind: input, shape index: {}]
  %s4 = inlined_call_operand.vmem [shape: bf16[1152,32], index: 4, kind: output, shape index: {}]
  %s5 = sld [smem:[#allocation0]]
  $region26: #{_lambda_.1} parent=0
    _
  %s7 = ssub.s32 1, %s5
  %s8 = scalar_select 0, %s7, %s5
  // Predicated region
  $region2: #{_lambda_.1} parent=0 // pred_check
    _
  $region3: #{_lambda_.1} parent=0 // pred_check_branch
    %10 = sbr.rel (0) target = $region5
  $region4: #{_lambda_.1} parent=0 // pred_region
    _
  $region5: #{_lambda_.1} parent=0 // pred_fallthru
    _
  // Predicated region
  $region6: #{_lambda_.1} parent=0 // pred_check
    _
  $region7: #{_lambda_.1} parent=0 // pred_check_branch
    %12 = sbr.rel (0) target = $region9
  $region8: #{_lambda_.1} parent=0 // pred_region
    %s13 = sadd.s32 0, 1
    %s14 = smul.u32 %s13, 4
    %s15 = smul.u32 36, %s14
    %p16 = scmp.lt.s32.totalorder %s15, 179
    %s17 = scalar_select %p16, %s15, 179
    %s18 = smul.addr %s17, 4
    %s19 = scalar_lea.vmem %s1, %s18
    %s20 = sadd.s32 0, 1
    %s21 = smul.u32 %s20, 4
    %s22 = smul.u32 36, %s21
  $region9: #{_lambda_.1} parent=0 // pred_fallthru
    _
  // Predicated region
  $region10: #{_lambda_.1} parent=0 // pred_check
    _
  $region11: #{_lambda_.1} parent=0 // pred_check_branch
    %24 = sbr.rel (0) target = $region13
  $region12: #{_lambda_.1} parent=0 // pred_region
    _
  $region13: #{_lambda_.1} parent=0 // pred_fallthru
    _
  // Predicated region
  $region14: #{_lambda_.1} parent=0 // pred_check
    _
  $region15: #{_lambda_.1} parent=0 // pred_check_branch
    %26 = sbr.rel (0) target = $region17
  $region16: #{_lambda_.1} parent=0 // pred_region
    _
  $region17: #{_lambda_.1} parent=0 // pred_fallthru
    _
  %s27 = sadd.s32 0, 1
  %s28 = smul.u32 %s27, 4
  %s29 = smul.u32 36, %s28
  %p30 = scmp.lt.s32.totalorder %s29, 179
  %s31 = scalar_select %p30, %s29, 179
  %s32 = smul.addr %s31, 4
  %s33 = scalar_lea.vmem %s1, %s32
  %s34 = sadd.s32 0, 1
  %s35 = smul.u32 %s34, 4
  %s36 = smul.u32 36, %s35
  %p37 = scmp.lt.s32.totalorder %s36, 179
  %s38 = scalar_select %p37, %s36, 179
  %s39 = smul.addr %s38, 4
  %s40 = scalar_lea.vmem %s1, %s39
  %s41 = sadd.s32 0, 1
  %s42 = smul.u32 %s41, 4
  %s43 = smul.u32 36, %s42
  %v45 = vld [vmem:[%s0] sm:$0xf]
  %v46 = vld [vmem:[%s0 + $0x4] sm:$0xf]
  %v47 = vld [vmem:[%s0 + $0x8] sm:$0xf]
  %v48 = vld [vmem:[%s0 + $0xc] sm:$0xf]
  %v49 = vld [vmem:[%s0 + $0x10] sm:$0xf]
  %v50 = vld [vmem:[%s0 + $0x14] sm:$0xf]
  %v51 = vld [vmem:[%s0 + $0x18] sm:$0xf]
  %v52 = vld [vmem:[%s0 + $0x1c] sm:$0xf]
  %v53 = vld [vmem:[%s0 + $0x20] sm:$0xf]
  %v54 = vld [vmem:[%s0 + $0x24] sm:$0xf]
  %v55 = vld [vmem:[%s0 + $0x28] sm:$0xf]
  %v56 = vld [vmem:[%s0 + $0x2c] sm:$0xf]
  %v57 = vld [vmem:[%s0 + $0x30] sm:$0xf]
  %v58 = vld [vmem:[%s0 + $0x34] sm:$0xf]
  %v59 = vld [vmem:[%s0 + $0x38] sm:$0xf]
  %v60 = vld [vmem:[%s0 + $0x3c] sm:$0xf]
  %v61 = vld [vmem:[%s0 + $0x40] sm:$0xf]
  %v62 = vld [vmem:[%s0 + $0x44] sm:$0xf]
  %v63 = vld [vmem:[%s0 + $0x48] sm:$0xf]
  %v64 = vld [vmem:[%s0 + $0x4c] sm:$0xf]
  %v65 = vld [vmem:[%s0 + $0x50] sm:$0xf]
  %v66 = vld [vmem:[%s0 + $0x54] sm:$0xf]
  %v67 = vld [vmem:[%s0 + $0x58] sm:$0xf]
  %v68 = vld [vmem:[%s0 + $0x5c] sm:$0xf]
  %v69 = vld [vmem:[%s0 + $0x60] sm:$0xf]
  %v70 = vld [vmem:[%s0 + $0x64] sm:$0xf]
  %v71 = vld [vmem:[%s0 + $0x68] sm:$0xf]
  %v72 = vld [vmem:[%s0 + $0x6c] sm:$0xf]
  %v73 = vld [vmem:[%s0 + $0x70] sm:$0xf]
  %v74 = vld [vmem:[%s0 + $0x74] sm:$0xf]
  %v75 = vld [vmem:[%s0 + $0x78] sm:$0xf]
  %v76 = vld [vmem:[%s0 + $0x7c] sm:$0xf]
  %v77 = vld [vmem:[%s0 + $0x80] sm:$0xf]
  %v78 = vld [vmem:[%s0 + $0x84] sm:$0xf]
  %v79 = vld [vmem:[%s0 + $0x88] sm:$0xf]
  %v80 = vld [vmem:[%s0 + $0x8c] sm:$0xf]
  %v81 = vld [vmem:[%s0 + $0x90] sm:$0xf]
  %v82 = vld [vmem:[%s0 + $0x94] sm:$0xf]
  %v83 = vld [vmem:[%s0 + $0x98] sm:$0xf]
  %v84 = vld [vmem:[%s0 + $0x9c] sm:$0xf]
  %v85 = vld [vmem:[%s0 + $0xa0] sm:$0xf]
  %v86 = vld [vmem:[%s0 + $0xa4] sm:$0xf]
  %v87 = vld [vmem:[%s0 + $0xa8] sm:$0xf]
  %v88 = vld [vmem:[%s0 + $0xac] sm:$0xf]
  %v89 = vld [vmem:[%s0 + $0xb0] sm:$0xf]
  %v90 = vld [vmem:[%s0 + $0xb4] sm:$0xf]
  %v91 = vld [vmem:[%s0 + $0xb8] sm:$0xf]
  %v92 = vld [vmem:[%s0 + $0xbc] sm:$0xf]
  %v93 = vld [vmem:[%s0 + $0xc0] sm:$0xf]
  %v94 = vld [vmem:[%s0 + $0xc4] sm:$0xf]
  %v95 = vld [vmem:[%s0 + $0xc8] sm:$0xf]
  %v96 = vld [vmem:[%s0 + $0xcc] sm:$0xf]
  %v97 = vld [vmem:[%s0 + $0xd0] sm:$0xf]
  %v98 = vld [vmem:[%s0 + $0xd4] sm:$0xf]
  %v99 = vld [vmem:[%s0 + $0xd8] sm:$0xf]
  %v100 = vld [vmem:[%s0 + $0xdc] sm:$0xf]
  %v101 = vld [vmem:[%s0 + $0xe0] sm:$0xf]
  %v102 = vld [vmem:[%s0 + $0xe4] sm:$0xf]
  %v103 = vld [vmem:[%s0 + $0xe8] sm:$0xf]
  %v104 = vld [vmem:[%s0 + $0xec] sm:$0xf]
  %v105 = vld [vmem:[%s0 + $0xf0] sm:$0xf]
  %v106 = vld [vmem:[%s0 + $0xf4] sm:$0xf]
  %v107 = vld [vmem:[%s0 + $0xf8] sm:$0xf]
  %v108 = vld [vmem:[%s0 + $0xfc] sm:$0xf]
  %v109 = vld [vmem:[%s0 + $0x100] sm:$0xf]
  %v110 = vld [vmem:[%s0 + $0x104] sm:$0xf]
  %v111 = vld [vmem:[%s0 + $0x108] sm:$0xf]
  %v112 = vld [vmem:[%s0 + $0x10c] sm:$0xf]
  %v113 = vld [vmem:[%s0 + $0x110] sm:$0xf]
  %v114 = vld [vmem:[%s0 + $0x114] sm:$0xf]
  %v115 = vld [vmem:[%s0 + $0x118] sm:$0xf]
  %v116 = vld [vmem:[%s0 + $0x11c] sm:$0xf]
  %v117 = vld [vmem:[%s0 + $0x120] sm:$0xf]
  %v118 = vld [vmem:[%s0 + $0x124] sm:$0xf]
  %v119 = vld [vmem:[%s0 + $0x128] sm:$0xf]
  %v120 = vld [vmem:[%s0 + $0x12c] sm:$0xf]
  %v121 = vld [vmem:[%s0 + $0x130] sm:$0xf]
  %v122 = vld [vmem:[%s0 + $0x134] sm:$0xf]
  %v123 = vld [vmem:[%s0 + $0x138] sm:$0xf]
  %v124 = vld [vmem:[%s0 + $0x13c] sm:$0xf]
  %v125 = vld [vmem:[%s0 + $0x140] sm:$0xf]
  %v126 = vld [vmem:[%s0 + $0x144] sm:$0xf]
  %v127 = vld [vmem:[%s0 + $0x148] sm:$0xf]
  %v128 = vld [vmem:[%s0 + $0x14c] sm:$0xf]
  %v129 = vld [vmem:[%s0 + $0x150] sm:$0xf]
  %v130 = vld [vmem:[%s0 + $0x154] sm:$0xf]
  %v131 = vld [vmem:[%s0 + $0x158] sm:$0xf]
  %v132 = vld [vmem:[%s0 + $0x15c] sm:$0xf]
  %v133 = vld [vmem:[%s0 + $0x160] sm:$0xf]
  %v134 = vld [vmem:[%s0 + $0x164] sm:$0xf]
  %v135 = vld [vmem:[%s0 + $0x168] sm:$0xf]
  %v136 = vld [vmem:[%s0 + $0x16c] sm:$0xf]
  %v137 = vld [vmem:[%s0 + $0x170] sm:$0xf]
  %v138 = vld [vmem:[%s0 + $0x174] sm:$0xf]
  %v139 = vld [vmem:[%s0 + $0x178] sm:$0xf]
  %v140 = vld [vmem:[%s0 + $0x17c] sm:$0xf]
  %v141 = vld [vmem:[%s0 + $0x180] sm:$0xf]
  %v142 = vld [vmem:[%s0 + $0x184] sm:$0xf]
  %v143 = vld [vmem:[%s0 + $0x188] sm:$0xf]
  %v144 = vld [vmem:[%s0 + $0x18c] sm:$0xf]
  %v145 = vld [vmem:[%s0 + $0x190] sm:$0xf]
  %v146 = vld [vmem:[%s0 + $0x194] sm:$0xf]
  %v147 = vld [vmem:[%s0 + $0x198] sm:$0xf]
  %v148 = vld [vmem:[%s0 + $0x19c] sm:$0xf]
  %v149 = vld [vmem:[%s0 + $0x1a0] sm:$0xf]
  %v150 = vld [vmem:[%s0 + $0x1a4] sm:$0xf]
  %v151 = vld [vmem:[%s0 + $0x1a8] sm:$0xf]
  %v152 = vld [vmem:[%s0 + $0x1ac] sm:$0xf]
  %v153 = vld [vmem:[%s0 + $0x1b0] sm:$0xf]
  %v154 = vld [vmem:[%s0 + $0x1b4] sm:$0xf]
  %v155 = vld [vmem:[%s0 + $0x1b8] sm:$0xf]
  %v156 = vld [vmem:[%s0 + $0x1bc] sm:$0xf]
  %v157 = vld [vmem:[%s0 + $0x1c0] sm:$0xf]
  %v158 = vld [vmem:[%s0 + $0x1c4] sm:$0xf]
  %v159 = vld [vmem:[%s0 + $0x1c8] sm:$0xf]
  %v160 = vld [vmem:[%s0 + $0x1cc] sm:$0xf]
  %v161 = vld [vmem:[%s0 + $0x1d0] sm:$0xf]
  %v162 = vld [vmem:[%s0 + $0x1d4] sm:$0xf]
  %v163 = vld [vmem:[%s0 + $0x1d8] sm:$0xf]
  %v164 = vld [vmem:[%s0 + $0x1dc] sm:$0xf]
  %v165 = vld [vmem:[%s0 + $0x1e0] sm:$0xf]
  %v166 = vld [vmem:[%s0 + $0x1e4] sm:$0xf]
  %v167 = vld [vmem:[%s0 + $0x1e8] sm:$0xf]
  %v168 = vld [vmem:[%s0 + $0x1ec] sm:$0xf]
  %v169 = vld [vmem:[%s0 + $0x1f0] sm:$0xf]
  %v170 = vld [vmem:[%s0 + $0x1f4] sm:$0xf]
  %v171 = vld [vmem:[%s0 + $0x1f8] sm:$0xf]
  %v172 = vld [vmem:[%s0 + $0x1fc] sm:$0xf]
  %v173 = vld [vmem:[%s0 + $0x200] sm:$0xf]
  %v174 = vld [vmem:[%s0 + $0x204] sm:$0xf]
  %v175 = vld [vmem:[%s0 + $0x208] sm:$0xf]
  %v176 = vld [vmem:[%s0 + $0x20c] sm:$0xf]
  %v177 = vld [vmem:[%s0 + $0x210] sm:$0xf]
  %v178 = vld [vmem:[%s0 + $0x214] sm:$0xf]
  %v179 = vld [vmem:[%s0 + $0x218] sm:$0xf]
  %v180 = vld [vmem:[%s0 + $0x21c] sm:$0xf]
  %v181 = vld [vmem:[%s0 + $0x220] sm:$0xf]
  %v182 = vld [vmem:[%s0 + $0x224] sm:$0xf]
  %v183 = vld [vmem:[%s0 + $0x228] sm:$0xf]
  %v184 = vld [vmem:[%s0 + $0x22c] sm:$0xf]
  %v185 = vld [vmem:[%s0 + $0x230] sm:$0xf]
  %v186 = vld [vmem:[%s0 + $0x234] sm:$0xf]
  %v187 = vld [vmem:[%s0 + $0x238] sm:$0xf]
  %v188 = vld [vmem:[%s0 + $0x23c] sm:$0xf]
  %v189 = vld [vmem:[%s40] sm:$0xf]
  %v190 = vld [vmem:[%s40 + $0x4] sm:$0xf]
  %v191 = vld [vmem:[%s40 + $0x8] sm:$0xf]
  %v192 = vld [vmem:[%s40 + $0xc] sm:$0xf]
  %v193 = vld [vmem:[%s40 + $0x10] sm:$0xf]
  %v194 = vld [vmem:[%s40 + $0x14] sm:$0xf]
  %v195 = vld [vmem:[%s40 + $0x18] sm:$0xf]
  %v196 = vld [vmem:[%s40 + $0x1c] sm:$0xf]
  %v197 = vld [vmem:[%s40 + $0x20] sm:$0xf]
  %v198 = vld [vmem:[%s40 + $0x24] sm:$0xf]
  %v199 = vld [vmem:[%s40 + $0x28] sm:$0xf]
  %v200 = vld [vmem:[%s40 + $0x2c] sm:$0xf]
  %v201 = vld [vmem:[%s40 + $0x30] sm:$0xf]
  %v202 = vld [vmem:[%s40 + $0x34] sm:$0xf]
  %v203 = vld [vmem:[%s40 + $0x38] sm:$0xf]
  %v204 = vld [vmem:[%s40 + $0x3c] sm:$0xf]
  %v205 = vld [vmem:[%s40 + $0x40] sm:$0xf]
  %v206 = vld [vmem:[%s40 + $0x44] sm:$0xf]
  %v207 = vld [vmem:[%s40 + $0x48] sm:$0xf]
  %v208 = vld [vmem:[%s40 + $0x4c] sm:$0xf]
  %v209 = vld [vmem:[%s40 + $0x50] sm:$0xf]
  %v210 = vld [vmem:[%s40 + $0x54] sm:$0xf]
  %v211 = vld [vmem:[%s40 + $0x58] sm:$0xf]
  %v212 = vld [vmem:[%s40 + $0x5c] sm:$0xf]
  %v213 = vld [vmem:[%s40 + $0x60] sm:$0xf]
  %v214 = vld [vmem:[%s40 + $0x64] sm:$0xf]
  %v215 = vld [vmem:[%s40 + $0x68] sm:$0xf]
  %v216 = vld [vmem:[%s40 + $0x6c] sm:$0xf]
  %v217 = vld [vmem:[%s40 + $0x70] sm:$0xf]
  %v218 = vld [vmem:[%s40 + $0x74] sm:$0xf]
  %v219 = vld [vmem:[%s40 + $0x78] sm:$0xf]
  %v220 = vld [vmem:[%s40 + $0x7c] sm:$0xf]
  %v221 = vld [vmem:[%s40 + $0x80] sm:$0xf]
  %v222 = vld [vmem:[%s40 + $0x84] sm:$0xf]
  %v223 = vld [vmem:[%s40 + $0x88] sm:$0xf]
  %v224 = vld [vmem:[%s40 + $0x8c] sm:$0xf]
  %v369 = vunpack.c.l.b16 %v45
  %v370 = vunpack.c.l.b16 %v46
  %v371 = vunpack.c.l.b16 %v47
  %v372 = vunpack.c.l.b16 %v48
  %v373 = vunpack.c.l.b16 %v49
  %v374 = vunpack.c.l.b16 %v50
  %v375 = vunpack.c.l.b16 %v51
  %v376 = vunpack.c.l.b16 %v52
  %v377 = vunpack.c.l.b16 %v53
  %v378 = vunpack.c.l.b16 %v54
  %v379 = vunpack.c.l.b16 %v55
  %v380 = vunpack.c.l.b16 %v56
  %v381 = vunpack.c.l.b16 %v57
  %v382 = vunpack.c.l.b16 %v58
  %v383 = vunpack.c.l.b16 %v59
  %v384 = vunpack.c.l.b16 %v60
  %v385 = vunpack.c.l.b16 %v61
  %v386 = vunpack.c.l.b16 %v62
  %v387 = vunpack.c.l.b16 %v63
  %v388 = vunpack.c.l.b16 %v64
  %v389 = vunpack.c.l.b16 %v65
  %v390 = vunpack.c.l.b16 %v66
  %v391 = vunpack.c.l.b16 %v67
  %v392 = vunpack.c.l.b16 %v68
  %v393 = vunpack.c.l.b16 %v69
  %v394 = vunpack.c.l.b16 %v70
  %v395 = vunpack.c.l.b16 %v71
  %v396 = vunpack.c.l.b16 %v72
  %v397 = vunpack.c.l.b16 %v73
  %v398 = vunpack.c.l.b16 %v74
  %v399 = vunpack.c.l.b16 %v75
  %v400 = vunpack.c.l.b16 %v76
  %v401 = vunpack.c.l.b16 %v77
  %v402 = vunpack.c.l.b16 %v78
  %v403 = vunpack.c.l.b16 %v79
  %v404 = vunpack.c.l.b16 %v80
  %v405 = vunpack.c.l.b16 %v81
  %v406 = vunpack.c.l.b16 %v82
  %v407 = vunpack.c.l.b16 %v83
  %v408 = vunpack.c.l.b16 %v84
  %v409 = vunpack.c.l.b16 %v85
  %v410 = vunpack.c.l.b16 %v86
  %v411 = vunpack.c.l.b16 %v87
  %v412 = vunpack.c.l.b16 %v88
  %v413 = vunpack.c.l.b16 %v89
  %v414 = vunpack.c.l.b16 %v90
  %v415 = vunpack.c.l.b16 %v91
  %v416 = vunpack.c.l.b16 %v92
  %v417 = vunpack.c.l.b16 %v93
  %v418 = vunpack.c.l.b16 %v94
  %v419 = vunpack.c.l.b16 %v95
  %v420 = vunpack.c.l.b16 %v96
  %v421 = vunpack.c.l.b16 %v97
  %v422 = vunpack.c.l.b16 %v98
  %v423 = vunpack.c.l.b16 %v99
  %v424 = vunpack.c.l.b16 %v100
  %v425 = vunpack.c.l.b16 %v101
  %v426 = vunpack.c.l.b16 %v102
  %v427 = vunpack.c.l.b16 %v103
  %v428 = vunpack.c.l.b16 %v104
  %v429 = vunpack.c.l.b16 %v105
  %v430 = vunpack.c.l.b16 %v106
  %v431 = vunpack.c.l.b16 %v107
  %v432 = vunpack.c.l.b16 %v108
  %v433 = vunpack.c.l.b16 %v109
  %v434 = vunpack.c.l.b16 %v110
  %v435 = vunpack.c.l.b16 %v111
  %v436 = vunpack.c.l.b16 %v112
  %v437 = vunpack.c.l.b16 %v113
  %v438 = vunpack.c.l.b16 %v114
  %v439 = vunpack.c.l.b16 %v115
  %v440 = vunpack.c.l.b16 %v116
  %v441 = vunpack.c.l.b16 %v117
  %v442 = vunpack.c.l.b16 %v118
  %v443 = vunpack.c.l.b16 %v119
  %v444 = vunpack.c.l.b16 %v120
  %v445 = vunpack.c.l.b16 %v121
  %v446 = vunpack.c.l.b16 %v122
  %v447 = vunpack.c.l.b16 %v123
  %v448 = vunpack.c.l.b16 %v124
  %v449 = vunpack.c.l.b16 %v125
  %v450 = vunpack.c.l.b16 %v126
  %v451 = vunpack.c.l.b16 %v127
  %v452 = vunpack.c.l.b16 %v128
  %v453 = vunpack.c.l.b16 %v129
  %v454 = vunpack.c.l.b16 %v130
  %v455 = vunpack.c.l.b16 %v131
  %v456 = vunpack.c.l.b16 %v132
  %v457 = vunpack.c.l.b16 %v133
  %v458 = vunpack.c.l.b16 %v134
  %v459 = vunpack.c.l.b16 %v135
  %v460 = vunpack.c.l.b16 %v136
  %v461 = vunpack.c.l.b16 %v137
  %v462 = vunpack.c.l.b16 %v138
  %v463 = vunpack.c.l.b16 %v139
  %v464 = vunpack.c.l.b16 %v140
  %v465 = vunpack.c.l.b16 %v141
  %v466 = vunpack.c.l.b16 %v142
  %v467 = vunpack.c.l.b16 %v143
  %v468 = vunpack.c.l.b16 %v144
  %v469 = vunpack.c.l.b16 %v145
  %v470 = vunpack.c.l.b16 %v146
  %v471 = vunpack.c.l.b16 %v147
  %v472 = vunpack.c.l.b16 %v148
  %v473 = vunpack.c.l.b16 %v149
  %v474 = vunpack.c.l.b16 %v150
  %v475 = vunpack.c.l.b16 %v151
  %v476 = vunpack.c.l.b16 %v152
  %v477 = vunpack.c.l.b16 %v153
  %v478 = vunpack.c.l.b16 %v154
  %v479 = vunpack.c.l.b16 %v155
  %v480 = vunpack.c.l.b16 %v156
  %v481 = vunpack.c.l.b16 %v157
  %v482 = vunpack.c.l.b16 %v158
  %v483 = vunpack.c.l.b16 %v159
  %v484 = vunpack.c.l.b16 %v160
  %v485 = vunpack.c.l.b16 %v161
  %v486 = vunpack.c.l.b16 %v162
  %v487 = vunpack.c.l.b16 %v163
  %v488 = vunpack.c.l.b16 %v164
  %v489 = vunpack.c.l.b16 %v165
  %v490 = vunpack.c.l.b16 %v166
  %v491 = vunpack.c.l.b16 %v167
  %v492 = vunpack.c.l.b16 %v168
  %v493 = vunpack.c.l.b16 %v169
  %v494 = vunpack.c.l.b16 %v170
  %v495 = vunpack.c.l.b16 %v171
  %v496 = vunpack.c.l.b16 %v172
  %v497 = vunpack.c.l.b16 %v173
  %v498 = vunpack.c.l.b16 %v174
  %v499 = vunpack.c.l.b16 %v175
  %v500 = vunpack.c.l.b16 %v176
  %v501 = vunpack.c.l.b16 %v177
  %v502 = vunpack.c.l.b16 %v178
  %v503 = vunpack.c.l.b16 %v179
  %v504 = vunpack.c.l.b16 %v180
  %v505 = vunpack.c.l.b16 %v181
  %v506 = vunpack.c.l.b16 %v182
  %v507 = vunpack.c.l.b16 %v183
  %v508 = vunpack.c.l.b16 %v184
  %v509 = vunpack.c.l.b16 %v185
  %v510 = vunpack.c.l.b16 %v186
  %v511 = vunpack.c.l.b16 %v187
  %v512 = vunpack.c.l.b16 %v188
  %v513 = vpack.c.b16 %v370, %v369
  %v514 = vpack.c.b16 %v372, %v371
  %v515 = vpack.c.b16 %v374, %v373
  %v516 = vpack.c.b16 %v376, %v375
  %v517 = vpack.c.b16 %v378, %v377
  %v518 = vpack.c.b16 %v380, %v379
  %v519 = vpack.c.b16 %v382, %v381
  %v520 = vpack.c.b16 %v384, %v383
  %v521 = vpack.c.b16 %v386, %v385
  %v522 = vpack.c.b16 %v388, %v387
  %v523 = vpack.c.b16 %v390, %v389
  %v524 = vpack.c.b16 %v392, %v391
  %v525 = vpack.c.b16 %v394, %v393
  %v526 = vpack.c.b16 %v396, %v395
  %v527 = vpack.c.b16 %v398, %v397
  %v528 = vpack.c.b16 %v400, %v399
  %v529 = vpack.c.b16 %v402, %v401
  %v530 = vpack.c.b16 %v404, %v403
  %v531 = vpack.c.b16 %v406, %v405
  %v532 = vpack.c.b16 %v408, %v407
  %v533 = vpack.c.b16 %v410, %v409
  %v534 = vpack.c.b16 %v412, %v411
  %v535 = vpack.c.b16 %v414, %v413
  %v536 = vpack.c.b16 %v416, %v415
  %v537 = vpack.c.b16 %v418, %v417
  %v538 = vpack.c.b16 %v420, %v419
  %v539 = vpack.c.b16 %v422, %v421
  %v540 = vpack.c.b16 %v424, %v423
  %v541 = vpack.c.b16 %v426, %v425
  %v542 = vpack.c.b16 %v428, %v427
  %v543 = vpack.c.b16 %v430, %v429
  %v544 = vpack.c.b16 %v432, %v431
  %v545 = vpack.c.b16 %v434, %v433
  %v546 = vpack.c.b16 %v436, %v435
  %v547 = vpack.c.b16 %v438, %v437
  %v548 = vpack.c.b16 %v440, %v439
  %v549 = vpack.c.b16 %v442, %v441
  %v550 = vpack.c.b16 %v444, %v443
  %v551 = vpack.c.b16 %v446, %v445
  %v552 = vpack.c.b16 %v448, %v447
  %v553 = vpack.c.b16 %v450, %v449
  %v554 = vpack.c.b16 %v452, %v451
  %v555 = vpack.c.b16 %v454, %v453
  %v556 = vpack.c.b16 %v456, %v455
  %v557 = vpack.c.b16 %v458, %v457
  %v558 = vpack.c.b16 %v460, %v459
  %v559 = vpack.c.b16 %v462, %v461
  %v560 = vpack.c.b16 %v464, %v463
  %v561 = vpack.c.b16 %v466, %v465
  %v562 = vpack.c.b16 %v468, %v467
  %v563 = vpack.c.b16 %v470, %v469
  %v564 = vpack.c.b16 %v472, %v471
  %v565 = vpack.c.b16 %v474, %v473
  %v566 = vpack.c.b16 %v476, %v475
  %v567 = vpack.c.b16 %v478, %v477
  %v568 = vpack.c.b16 %v480, %v479
  %v569 = vpack.c.b16 %v482, %v481
  %v570 = vpack.c.b16 %v484, %v483
  %v571 = vpack.c.b16 %v486, %v485
  %v572 = vpack.c.b16 %v488, %v487
  %v573 = vpack.c.b16 %v490, %v489
  %v574 = vpack.c.b16 %v492, %v491
  %v575 = vpack.c.b16 %v494, %v493
  %v576 = vpack.c.b16 %v496, %v495
  %v577 = vpack.c.b16 %v498, %v497
  %v578 = vpack.c.b16 %v500, %v499
  %v579 = vpack.c.b16 %v502, %v501
  %v580 = vpack.c.b16 %v504, %v503
  %v581 = vpack.c.b16 %v506, %v505
  %v582 = vpack.c.b16 %v508, %v507
  %v583 = vpack.c.b16 %v510, %v509
  %v584 = vpack.c.b16 %v512, %v511
  %v621 = vunpack.c.l.b16 %v189
  %v622 = vunpack.c.l.b16 %v190
  %v623 = vunpack.c.l.b16 %v191
  %v624 = vunpack.c.l.b16 %v192
  %v625 = vunpack.c.l.b16 %v193
  %v626 = vunpack.c.l.b16 %v194
  %v627 = vunpack.c.l.b16 %v195
  %v628 = vunpack.c.l.b16 %v196
  %v629 = vunpack.c.l.b16 %v197
  %v630 = vunpack.c.l.b16 %v198
  %v631 = vunpack.c.l.b16 %v199
  %v632 = vunpack.c.l.b16 %v200
  %v633 = vunpack.c.l.b16 %v201
  %v634 = vunpack.c.l.b16 %v202
  %v635 = vunpack.c.l.b16 %v203
  %v636 = vunpack.c.l.b16 %v204
  %v637 = vunpack.c.l.b16 %v205
  %v638 = vunpack.c.l.b16 %v206
  %v639 = vunpack.c.l.b16 %v207
  %v640 = vunpack.c.l.b16 %v208
  %v641 = vunpack.c.l.b16 %v209
  %v642 = vunpack.c.l.b16 %v210
  %v643 = vunpack.c.l.b16 %v211
  %v644 = vunpack.c.l.b16 %v212
  %v645 = vunpack.c.l.b16 %v213
  %v646 = vunpack.c.l.b16 %v214
  %v647 = vunpack.c.l.b16 %v215
  %v648 = vunpack.c.l.b16 %v216
  %v649 = vunpack.c.l.b16 %v217
  %v650 = vunpack.c.l.b16 %v218
  %v651 = vunpack.c.l.b16 %v219
  %v652 = vunpack.c.l.b16 %v220
  %v653 = vunpack.c.l.b16 %v221
  %v654 = vunpack.c.l.b16 %v222
  %v655 = vunpack.c.l.b16 %v223
  %v656 = vunpack.c.l.b16 %v224
  %v657 = vpack.c.b16 %v622, %v621
  %v658 = vpack.c.b16 %v624, %v623
  %v659 = vpack.c.b16 %v626, %v625
  %v660 = vpack.c.b16 %v628, %v627
  %v661 = vpack.c.b16 %v630, %v629
  %v662 = vpack.c.b16 %v632, %v631
  %v663 = vpack.c.b16 %v634, %v633
  %v664 = vpack.c.b16 %v636, %v635
  %v665 = vpack.c.b16 %v638, %v637
  %v666 = vpack.c.b16 %v640, %v639
  %v667 = vpack.c.b16 %v642, %v641
  %v668 = vpack.c.b16 %v644, %v643
  %v669 = vpack.c.b16 %v646, %v645
  %v670 = vpack.c.b16 %v648, %v647
  %v671 = vpack.c.b16 %v650, %v649
  %v672 = vpack.c.b16 %v652, %v651
  %v673 = vpack.c.b16 %v654, %v653
  %v674 = vpack.c.b16 %v656, %v655
  %v675 = vld [vmem:[%s2] sm:$0xf]
  %v676 = vld [vmem:[%s2 + $0x4] sm:$0xf]
  %v677 = vld [vmem:[%s2 + $0x8] sm:$0xf]
  %v678 = vld [vmem:[%s2 + $0xc] sm:$0xf]
  %v679 = vld [vmem:[%s2 + $0x10] sm:$0xf]
  %v680 = vld [vmem:[%s2 + $0x14] sm:$0xf]
  %v681 = vld [vmem:[%s2 + $0x18] sm:$0xf]
  %v682 = vld [vmem:[%s2 + $0x1c] sm:$0xf]
  %v683 = vld [vmem:[%s2 + $0x20] sm:$0xf]
  %v684 = vld [vmem:[%s2 + $0x24] sm:$0xf]
  %v685 = vld [vmem:[%s2 + $0x28] sm:$0xf]
  %v686 = vld [vmem:[%s2 + $0x2c] sm:$0xf]
  %v687 = vld [vmem:[%s2 + $0x30] sm:$0xf]
  %v688 = vld [vmem:[%s2 + $0x34] sm:$0xf]
  %v689 = vld [vmem:[%s2 + $0x38] sm:$0xf]
  %v690 = vld [vmem:[%s2 + $0x3c] sm:$0xf]
  %v691 = vld [vmem:[%s2 + $0x40] sm:$0xf]
  %v692 = vld [vmem:[%s2 + $0x44] sm:$0xf]
  %v699 = vunpack.c.l.b16 %v687
  %v700 = vunpack.c.l.b16 %v688
  %v701 = vunpack.c.l.b16 %v689
  %v702 = vunpack.c.l.b16 %v690
  %v703 = vunpack.c.l.b16 %v691
  %v704 = vunpack.c.l.b16 %v692
  %v705 = vpack.c.b16 %v700, %v699
  %v706 = vpack.c.b16 %v702, %v701
  %v707 = vpack.c.b16 %v704, %v703
  %vm711 = vcmask 392192
  %v713 = vsel %vm711, %v515, 0
  %v716 = vsel %vm711, %v516, 0
  %v719 = vsel %vm711, %v517, 0
  %v722 = vsel %vm711, %v518, 0
  %v725 = vsel %vm711, %v519, 0
  %v728 = vsel %vm711, %v520, 0
  %v731 = vsel %vm711, %v521, 0
  %v734 = vsel %vm711, %v522, 0
  %v737 = vsel %vm711, %v523, 0
  %v740 = vsel %vm711, %v524, 0
  %v743 = vsel %vm711, %v525, 0
  %v746 = vsel %vm711, %v526, 0
  %v749 = vsel %vm711, %v527, 0
  %v752 = vsel %vm711, %v528, 0
  %v755 = vsel %vm711, %v529, 0
  %v758 = vsel %vm711, %v530, 0
  %v761 = vsel %vm711, %v531, 0
  %v764 = vsel %vm711, %v532, 0
  %v767 = vsel %vm711, %v533, 0
  %v770 = vsel %vm711, %v534, 0
  %v773 = vsel %vm711, %v535, 0
  %v776 = vsel %vm711, %v536, 0
  %v779 = vsel %vm711, %v537, 0
  %v782 = vsel %vm711, %v538, 0
  %v785 = vsel %vm711, %v539, 0
  %v788 = vsel %vm711, %v540, 0
  %v791 = vsel %vm711, %v541, 0
  %v794 = vsel %vm711, %v542, 0
  %v797 = vsel %vm711, %v543, 0
  %v800 = vsel %vm711, %v544, 0
  %v803 = vsel %vm711, %v545, 0
  %v806 = vsel %vm711, %v546, 0
  %v809 = vsel %vm711, %v547, 0
  %v812 = vsel %vm711, %v548, 0
  %v815 = vsel %vm711, %v549, 0
  %v818 = vsel %vm711, %v550, 0
  %v821 = vsel %vm711, %v551, 0
  %v824 = vsel %vm711, %v552, 0
  %v827 = vsel %vm711, %v553, 0
  %v830 = vsel %vm711, %v554, 0
  %v833 = vsel %vm711, %v555, 0
  %v836 = vsel %vm711, %v556, 0
  %v839 = vsel %vm711, %v557, 0
  %v842 = vsel %vm711, %v558, 0
  %v845 = vsel %vm711, %v559, 0
  %v848 = vsel %vm711, %v560, 0
  %v851 = vsel %vm711, %v561, 0
  %v854 = vsel %vm711, %v562, 0
  %v857 = vsel %vm711, %v563, 0
  %v860 = vsel %vm711, %v564, 0
  %v863 = vsel %vm711, %v565, 0
  %v866 = vsel %vm711, %v566, 0
  %v869 = vsel %vm711, %v567, 0
  %v872 = vsel %vm711, %v568, 0
  %v875 = vsel %vm711, %v569, 0
  %v878 = vsel %vm711, %v570, 0
  %v881 = vsel %vm711, %v571, 0
  %v884 = vsel %vm711, %v572, 0
  %v887 = vsel %vm711, %v573, 0
  %v890 = vsel %vm711, %v574, 0
  %v893 = vsel %vm711, %v575, 0
  %v896 = vsel %vm711, %v576, 0
  %v899 = vsel %vm711, %v577, 0
  %v902 = vsel %vm711, %v578, 0
  %v905 = vsel %vm711, %v579, 0
  %v908 = vsel %vm711, %v580, 0
  %v911 = vsel %vm711, %v581, 0
  %v914 = vsel %vm711, %v582, 0
  %v917 = vsel %vm711, %v583, 0
  %v920 = vsel %vm711, %v584, 0
  %v923 = vsel %vm711, %v657, 0
  %v926 = vsel %vm711, %v658, 0
  %928 = vmatprep.subr.bf16.mxu0 0
  %929 = vmatpush1.bf16.msra.mxu0 %v705
  %930 = vmatprep.subr.bf16.mxu0 0
  %931 = vmatpush1.bf16.msra.mxu0 %v706
  %932 = vmatprep.subr.bf16.mxu0 0
  %933 = vmatpush1.bf16.msra.mxu0 %v707
  %934 = vmatprep.subr.bf16.mxu0 0
  %935 = vmatpush1.bf16.msra.mxu0 0
  %936 = vmatprep.subr.bf16.mxu0 0
  %937 = vmatpush1.bf16.msra.mxu0 0
  %938 = vmatprep.subr.bf16.mxu0 0
  %939 = vmatpush1.bf16.msra.mxu0 0
  %940 = vmatprep.subr.bf16.mxu0 0
  %941 = vmatpush1.bf16.msra.mxu0 0
  %942 = vmatprep.subr.bf16.mxu0 0
  %943 = vmatpush1.bf16.msra.mxu0 0
  %944 = vmatprep.subr.bf16.mxu0 0
  %945 = vmatpush1.bf16.msra.mxu0 0
  %946 = vmatprep.subr.bf16.mxu0 0
  %947 = vmatpush1.bf16.msra.mxu0 0
  %948 = vmatprep.subr.bf16.mxu0 0
  %949 = vmatpush1.bf16.msra.mxu0 0
  %950 = vmatprep.subr.bf16.mxu0 0
  %951 = vmatpush1.bf16.msra.mxu0 0
  %952 = vmatprep.subr.bf16.mxu0 0
  %953 = vmatpush1.bf16.msra.mxu0 0
  %954 = vmatprep.subr.bf16.mxu0 0
  %955 = vmatpush1.bf16.msra.mxu0 0
  %956 = vmatprep.subr.bf16.mxu0 0
  %957 = vmatpush1.bf16.msra.mxu0 0
  %958 = vmatprep.subr.bf16.mxu0 0
  %959 = vmatpush1.bf16.msra.mxu0 0
  %960 = vmatprep.mubr.bf16.mxu0 0
  %961 = vmatmul.mubr.bf16.gmra.mrb[0].mxu0 %v713
  %v962 = vpop.f32.mrb[0].mxu0
  %v963 = vadd.f32 0.0, %v962
  %v964 = vpop.f32.mrb[0].mxu0
  %v965 = vpop.f32.mrb[0].mxu0
  %v966 = vadd.f32 0.0, %v965
  %v967 = vpop.f32.mrb[0].mxu0
  %968 = vmatprep.mubr.bf16.mxu0 0
  %969 = vmatmul.mubr.bf16.gmra.mrb[0].mxu0 %v716
  %v970 = vpop.f32.mrb[0].mxu0
  %v971 = vadd.f32 0.0, %v970
  %v972 = vpop.f32.mrb[0].mxu0
  %v973 = vpop.f32.mrb[0].mxu0
  %v974 = vadd.f32 0.0, %v973
  %v975 = vpop.f32.mrb[0].mxu0
  %976 = vmatprep.mubr.bf16.mxu0 0
  %977 = vmatmul.mubr.bf16.gmra.mrb[0].mxu0 %v719
  %v978 = vpop.f32.mrb[0].mxu0
  %v979 = vadd.f32 0.0, %v978
  %v980 = vpop.f32.mrb[0].mxu0
  %v981 = vpop.f32.mrb[0].mxu0
  %v982 = vadd.f32 0.0, %v981
  %v983 = vpop.f32.mrb[0].mxu0
  %984 = vmatprep.mubr.bf16.mxu0 0
  %985 = vmatmul.mubr.bf16.gmra.mrb[0].mxu0 %v722
  %v986 = vpop.f32.mrb[0].mxu0
  %v987 = vadd.f32 0.0, %v986
  %v988 = vpop.f32.mrb[0].mxu0
  %v989 = vpop.f32.mrb[0].mxu0
  %v990 = vadd.f32 0.0, %v989
  %v991 = vpop.f32.mrb[0].mxu0
  %992 = vmatprep.mubr.bf16.mxu0 0
  %993 = vmatmul.mubr.bf16.gmra.mrb[0].mxu0 %v725
  %v994 = vpop.f32.mrb[0].mxu0
  %v995 = vadd.f32 0.0, %v994
  %v996 = vpop.f32.mrb[0].mxu0
  %v997 = vpop.f32.mrb[0].mxu0
  %v998 = vadd.f32 0.0, %v997
  %v999 = vpop.f32.mrb[0].mxu0
  %1000 = vmatprep.mubr.bf16.mxu0 0
  %1001 = vmatmul.mubr.bf16.gmra.mrb[0].mxu0 %v728
  %v1002 = vpop.f32.mrb[0].mxu0
  %v1003 = vadd.f32 0.0, %v1002
  %v1004 = vpop.f32.mrb[0].mxu0
  %v1005 = vpop.f32.mrb[0].mxu0
  %v1006 = vadd.f32 0.0, %v1005
  %v1007 = vpop.f32.mrb[0].mxu0
  %1008 = vmatprep.mubr.bf16.mxu0 0
  %1009 = vmatmul.mubr.bf16.gmra.mrb[0].mxu0 %v731
  %v1010 = vpop.f32.mrb[0].mxu0
  %v1011 = vadd.f32 0.0, %v1010
  %v1012 = vpop.f32.mrb[0].mxu0
  %v1013 = vpop.f32.mrb[0].mxu0
  %v1014 = vadd.f32 0.0, %v1013
  %v1015 = vpop.f32.mrb[0].mxu0
  %1016 = vmatprep.mubr.bf16.mxu0 0
  %1017 = vmatmul.mubr.bf16.gmra.mrb[0].mxu0 %v734
  %v1018 = vpop.f32.mrb[0].mxu0
  %v1019 = vadd.f32 0.0, %v1018
  %v1020 = vpop.f32.mrb[0].mxu0
  %v1021 = vpop.f32.mrb[0].mxu0
  %v1022 = vadd.f32 0.0, %v1021
  %v1023 = vpop.f32.mrb[0].mxu0
  %1024 = vmatprep.mubr.bf16.mxu0 0
  %1025 = vmatmul.mubr.bf16.gmra.mrb[0].mxu0 %v737
  %v1026 = vpop.f32.mrb[0].mxu0
  %v1027 = vadd.f32 0.0, %v1026
  %v1028 = vpop.f32.mrb[0].mxu0
  %v1029 = vpop.f32.mrb[0].mxu0
  %v1030 = vadd.f32 0.0, %v1029
  %v1031 = vpop.f32.mrb[0].mxu0
  %1032 = vmatprep.mubr.bf16.mxu0 0
  %1033 = vmatmul.mubr.bf16.gmra.mrb[0].mxu0 %v740
  %v1034 = vpop.f32.mrb[0].mxu0
  %v1035 = vadd.f32 0.0, %v1034
  %v1036 = vpop.f32.mrb[0].mxu0
  %v1037 = vpop.f32.mrb[0].mxu0
  %v1038 = vadd.f32 0.0, %v1037
  %v1039 = vpop.f32.mrb[0].mxu0
  %1040 = vmatprep.mubr.bf16.mxu0 0
  %1041 = vmatmul.mubr.bf16.gmra.mrb[0].mxu0 %v743
  %v1042 = vpop.f32.mrb[0].mxu0
  %v1043 = vadd.f32 0.0, %v1042
  %v1044 = vpop.f32.mrb[0].mxu0
  %v1045 = vpop.f32.mrb[0].mxu0
  %v1046 = vadd.f32 0.0, %v1045
  %v1047 = vpop.f32.mrb[0].mxu0
  %1048 = vmatprep.mubr.bf16.mxu0 0
  %1049 = vmatmul.mubr.bf16.gmra.mrb[0].mxu0 %v746
  %v1050 = vpop.f32.mrb[0].mxu0
  %v1051 = vadd.f32 0.0, %v1050
  %v1052 = vpop.f32.mrb[0].mxu0
  %v1053 = vpop.f32.mrb[0].mxu0
  %v1054 = vadd.f32 0.0, %v1053
  %v1055 = vpop.f32.mrb[0].mxu0
  %1056 = vmatprep.mubr.bf16.mxu0 0
  %1057 = vmatmul.mubr.bf16.gmra.mrb[0].mxu0 %v749
  %v1058 = vpop.f32.mrb[0].mxu0
  %v1059 = vadd.f32 0.0, %v1058
  %v1060 = vpop.f32.mrb[0].mxu0
  %v1061 = vpop.f32.mrb[0].mxu0
  %v1062 = vadd.f32 0.0, %v1061
  %v1063 = vpop.f32.mrb[0].mxu0
  %1064 = vmatprep.mubr.bf16.mxu0 0
  %1065 = vmatmul.mubr.bf16.gmra.mrb[0].mxu0 %v752
  %v1066 = vpop.f32.mrb[0].mxu0
  %v1067 = vadd.f32 0.0, %v1066
  %v1068 = vpop.f32.mrb[0].mxu0
  %v1069 = vpop.f32.mrb[0].mxu0
  %v1070 = vadd.f32 0.0, %v1069
  %v1071 = vpop.f32.mrb[0].mxu0
  %1072 = vmatprep.mubr.bf16.mxu0 0
  %1073 = vmatmul.mubr.bf16.gmra.mrb[0].mxu0 %v755
  %v1074 = vpop.f32.mrb[0].mxu0
  %v1075 = vadd.f32 0.0, %v1074
  %v1076 = vpop.f32.mrb[0].mxu0
  %v1077 = vpop.f32.mrb[0].mxu0
  %v1078 = vadd.f32 0.0, %v1077
  %v1079 = vpop.f32.mrb[0].mxu0
  %1080 = vmatprep.mubr.bf16.mxu0 0
  %1081 = vmatmul.mubr.bf16.gmra.mrb[0].mxu0 %v758
  %v1082 = vpop.f32.mrb[0].mxu0
  %v1083 = vadd.f32 0.0, %v1082
  %v1084 = vpop.f32.mrb[0].mxu0
  %v1085 = vpop.f32.mrb[0].mxu0
  %v1086 = vadd.f32 0.0, %v1085
  %v1087 = vpop.f32.mrb[0].mxu0
  %1088 = vmatprep.mubr.bf16.mxu0 0
  %1089 = vmatmul.mubr.bf16.gmra.mrb[0].mxu0 %v761
  %v1090 = vpop.f32.mrb[0].mxu0
  %v1091 = vadd.f32 0.0, %v1090
  %v1092 = vpop.f32.mrb[0].mxu0
  %v1093 = vpop.f32.mrb[0].mxu0
  %v1094 = vadd.f32 0.0, %v1093
  %v1095 = vpop.f32.mrb[0].mxu0
  %1096 = vmatprep.mubr.bf16.mxu0 0
  %1097 = vmatmul.mubr.bf16.gmra.mrb[0].mxu0 %v764
  %v1098 = vpop.f32.mrb[0].mxu0
  %v1099 = vadd.f32 0.0, %v1098
  %v1100 = vpop.f32.mrb[0].mxu0
  %v1101 = vpop.f32.mrb[0].mxu0
  %v1102 = vadd.f32 0.0, %v1101
  %v1103 = vpop.f32.mrb[0].mxu0
  %1104 = vmatprep.mubr.bf16.mxu0 0
  %1105 = vmatmul.mubr.bf16.gmra.mrb[0].mxu0 %v767
  %v1106 = vpop.f32.mrb[0].mxu0
  %v1107 = vadd.f32 0.0, %v1106
  %v1108 = vpop.f32.mrb[0].mxu0
  %v1109 = vpop.f32.mrb[0].mxu0
  %v1110 = vadd.f32 0.0, %v1109
  %v1111 = vpop.f32.mrb[0].mxu0
  %1112 = vmatprep.mubr.bf16.mxu0 0
  %1113 = vmatmul.mubr.bf16.gmra.mrb[0].mxu0 %v770
  %v1114 = vpop.f32.mrb[0].mxu0
  %v1115 = vadd.f32 0.0, %v1114
  %v1116 = vpop.f32.mrb[0].mxu0
  %v1117 = vpop.f32.mrb[0].mxu0
  %v1118 = vadd.f32 0.0, %v1117
  %v1119 = vpop.f32.mrb[0].mxu0
  %1120 = vmatprep.mubr.bf16.mxu0 0
  %1121 = vmatmul.mubr.bf16.gmra.mrb[0].mxu0 %v773
  %v1122 = vpop.f32.mrb[0].mxu0
  %v1123 = vadd.f32 0.0, %v1122
  %v1124 = vpop.f32.mrb[0].mxu0
  %v1125 = vpop.f32.mrb[0].mxu0
  %v1126 = vadd.f32 0.0, %v1125
  %v1127 = vpop.f32.mrb[0].mxu0
  %1128 = vmatprep.mubr.bf16.mxu0 0
  %1129 = vmatmul.mubr.bf16.gmra.mrb[0].mxu0 %v776
  %v1130 = vpop.f32.mrb[0].mxu0
  %v1131 = vadd.f32 0.0, %v1130
  %v1132 = vpop.f32.mrb[0].mxu0
  %v1133 = vpop.f32.mrb[0].mxu0
  %v1134 = vadd.f32 0.0, %v1133
  %v1135 = vpop.f32.mrb[0].mxu0
  %1136 = vmatprep.mubr.bf16.mxu0 0
  %1137 = vmatmul.mubr.bf16.gmra.mrb[0].mxu0 %v779
  %v1138 = vpop.f32.mrb[0].mxu0
  %v1139 = vadd.f32 0.0, %v1138
  %v1140 = vpop.f32.mrb[0].mxu0
  %v1141 = vpop.f32.mrb[0].mxu0
  %v1142 = vadd.f32 0.0, %v1141
  %v1143 = vpop.f32.mrb[0].mxu0
  %1144 = vmatprep.mubr.bf16.mxu0 0
  %1145 = vmatmul.mubr.bf16.gmra.mrb[0].mxu0 %v782
  %v1146 = vpop.f32.mrb[0].mxu0
  %v1147 = vadd.f32 0.0, %v1146
  %v1148 = vpop.f32.mrb[0].mxu0
  %v1149 = vpop.f32.mrb[0].mxu0
  %v1150 = vadd.f32 0.0, %v1149
  %v1151 = vpop.f32.mrb[0].mxu0
  %1152 = vmatprep.mubr.bf16.mxu0 0
  %1153 = vmatmul.mubr.bf16.gmra.mrb[0].mxu0 %v785
  %v1154 = vpop.f32.mrb[0].mxu0
  %v1155 = vadd.f32 0.0, %v1154
  %v1156 = vpop.f32.mrb[0].mxu0
  %v1157 = vpop.f32.mrb[0].mxu0
  %v1158 = vadd.f32 0.0, %v1157
  %v1159 = vpop.f32.mrb[0].mxu0
  %1160 = vmatprep.mubr.bf16.mxu0 0
  %1161 = vmatmul.mubr.bf16.gmra.mrb[0].mxu0 %v788
  %v1162 = vpop.f32.mrb[0].mxu0
  %v1163 = vadd.f32 0.0, %v1162
  %v1164 = vpop.f32.mrb[0].mxu0
  %v1165 = vpop.f32.mrb[0].mxu0
  %v1166 = vadd.f32 0.0, %v1165
  %v1167 = vpop.f32.mrb[0].mxu0
  %1168 = vmatprep.mubr.bf16.mxu0 0
  %1169 = vmatmul.mubr.bf16.gmra.mrb[0].mxu0 %v791
  %v1170 = vpop.f32.mrb[0].mxu0
  %v1171 = vadd.f32 0.0, %v1170
  %v1172 = vpop.f32.mrb[0].mxu0
  %v1173 = vpop.f32.mrb[0].mxu0
  %v1174 = vadd.f32 0.0, %v1173
  %v1175 = vpop.f32.mrb[0].mxu0
  %1176 = vmatprep.mubr.bf16.mxu0 0
  %1177 = vmatmul.mubr.bf16.gmra.mrb[0].mxu0 %v794
  %v1178 = vpop.f32.mrb[0].mxu0
  %v1179 = vadd.f32 0.0, %v1178
  %v1180 = vpop.f32.mrb[0].mxu0
  %v1181 = vpop.f32.mrb[0].mxu0
  %v1182 = vadd.f32 0.0, %v1181
  %v1183 = vpop.f32.mrb[0].mxu0
  %1184 = vmatprep.mubr.bf16.mxu0 0
  %1185 = vmatmul.mubr.bf16.gmra.mrb[0].mxu0 %v797
  %v1186 = vpop.f32.mrb[0].mxu0
  %v1187 = vadd.f32 0.0, %v1186
  %v1188 = vpop.f32.mrb[0].mxu0
  %v1189 = vpop.f32.mrb[0].mxu0
  %v1190 = vadd.f32 0.0, %v1189
  %v1191 = vpop.f32.mrb[0].mxu0
  %1192 = vmatprep.mubr.bf16.mxu0 0
  %1193 = vmatmul.mubr.bf16.gmra.mrb[0].mxu0 %v800
  %v1194 = vpop.f32.mrb[0].mxu0
  %v1195 = vadd.f32 0.0, %v1194
  %v1196 = vpop.f32.mrb[0].mxu0
  %v1197 = vpop.f32.mrb[0].mxu0
  %v1198 = vadd.f32 0.0, %v1197
  %v1199 = vpop.f32.mrb[0].mxu0
  %1200 = vmatprep.mubr.bf16.mxu0 0
  %1201 = vmatmul.mubr.bf16.gmra.mrb[0].mxu0 %v803
  %v1202 = vpop.f32.mrb[0].mxu0
  %v1203 = vadd.f32 0.0, %v1202
  %v1204 = vpop.f32.mrb[0].mxu0
  %v1205 = vpop.f32.mrb[0].mxu0
  %v1206 = vadd.f32 0.0, %v1205
  %v1207 = vpop.f32.mrb[0].mxu0
  %1208 = vmatprep.mubr.bf16.mxu0 0
  %1209 = vmatmul.mubr.bf16.gmra.mrb[0].mxu0 %v806
  %v1210 = vpop.f32.mrb[0].mxu0
  %v1211 = vadd.f32 0.0, %v1210
  %v1212 = vpop.f32.mrb[0].mxu0
  %v1213 = vpop.f32.mrb[0].mxu0
  %v1214 = vadd.f32 0.0, %v1213
  %v1215 = vpop.f32.mrb[0].mxu0
  %1216 = vmatprep.mubr.bf16.mxu0 0
  %1217 = vmatmul.mubr.bf16.gmra.mrb[0].mxu0 %v809
  %v1218 = vpop.f32.mrb[0].mxu0
  %v1219 = vadd.f32 0.0, %v1218
  %v1220 = vpop.f32.mrb[0].mxu0
  %v1221 = vpop.f32.mrb[0].mxu0
  %v1222 = vadd.f32 0.0, %v1221
  %v1223 = vpop.f32.mrb[0].mxu0
  %1224 = vmatprep.mubr.bf16.mxu0 0
  %1225 = vmatmul.mubr.bf16.gmra.mrb[0].mxu0 %v812
  %v1226 = vpop.f32.mrb[0].mxu0
  %v1227 = vadd.f32 0.0, %v1226
  %v1228 = vpop.f32.mrb[0].mxu0
  %v1229 = vpop.f32.mrb[0].mxu0
  %v1230 = vadd.f32 0.0, %v1229
  %v1231 = vpop.f32.mrb[0].mxu0
  %1232 = vmatprep.mubr.bf16.mxu0 0
  %1233 = vmatmul.mubr.bf16.gmra.mrb[0].mxu0 %v815
  %v1234 = vpop.f32.mrb[0].mxu0
  %v1235 = vadd.f32 0.0, %v1234
  %v1236 = vpop.f32.mrb[0].mxu0
  %v1237 = vpop.f32.mrb[0].mxu0
  %v1238 = vadd.f32 0.0, %v1237
  %v1239 = vpop.f32.mrb[0].mxu0
  %1240 = vmatprep.mubr.bf16.mxu0 0
  %1241 = vmatmul.mubr.bf16.gmra.mrb[0].mxu0 %v818
  %v1242 = vpop.f32.mrb[0].mxu0
  %v1243 = vadd.f32 0.0, %v1242
  %v1244 = vpop.f32.mrb[0].mxu0
  %v1245 = vpop.f32.mrb[0].mxu0
  %v1246 = vadd.f32 0.0, %v1245
  %v1247 = vpop.f32.mrb[0].mxu0
  %1248 = vmatprep.mubr.bf16.mxu0 0
  %1249 = vmatmul.mubr.bf16.gmra.mrb[0].mxu0 %v821
  %v1250 = vpop.f32.mrb[0].mxu0
  %v1251 = vadd.f32 0.0, %v1250
  %v1252 = vpop.f32.mrb[0].mxu0
  %v1253 = vpop.f32.mrb[0].mxu0
  %v1254 = vadd.f32 0.0, %v1253
  %v1255 = vpop.f32.mrb[0].mxu0
  %1256 = vmatprep.mubr.bf16.mxu0 0
  %1257 = vmatmul.mubr.bf16.gmra.mrb[0].mxu0 %v824
  %v1258 = vpop.f32.mrb[0].mxu0
  %v1259 = vadd.f32 0.0, %v1258
  %v1260 = vpop.f32.mrb[0].mxu0
  %v1261 = vpop.f32.mrb[0].mxu0
  %v1262 = vadd.f32 0.0, %v1261
  %v1263 = vpop.f32.mrb[0].mxu0
  %1264 = vmatprep.mubr.bf16.mxu0 0
  %1265 = vmatmul.mubr.bf16.gmra.mrb[0].mxu0 %v827
  %v1266 = vpop.f32.mrb[0].mxu0
  %v1267 = vadd.f32 0.0, %v1266
  %v1268 = vpop.f32.mrb[0].mxu0
  %v1269 = vpop.f32.mrb[0].mxu0
  %v1270 = vadd.f32 0.0, %v1269
  %v1271 = vpop.f32.mrb[0].mxu0
  %1272 = vmatprep.mubr.bf16.mxu0 0
  %1273 = vmatmul.mubr.bf16.gmra.mrb[0].mxu0 %v830
  %v1274 = vpop.f32.mrb[0].mxu0
  %v1275 = vadd.f32 0.0, %v1274
  %v1276 = vpop.f32.mrb[0].mxu0
  %v1277 = vpop.f32.mrb[0].mxu0
  %v1278 = vadd.f32 0.0, %v1277
  %v1279 = vpop.f32.mrb[0].mxu0
  %1280 = vmatprep.mubr.bf16.mxu0 0
  %1281 = vmatmul.mubr.bf16.gmra.mrb[0].mxu0 %v833
  %v1282 = vpop.f32.mrb[0].mxu0
  %v1283 = vadd.f32 0.0, %v1282
  %v1284 = vpop.f32.mrb[0].mxu0
  %v1285 = vpop.f32.mrb[0].mxu0
  %v1286 = vadd.f32 0.0, %v1285
  %v1287 = vpop.f32.mrb[0].mxu0
  %1288 = vmatprep.mubr.bf16.mxu0 0
  %1289 = vmatmul.mubr.bf16.gmra.mrb[0].mxu0 %v836
  %v1290 = vpop.f32.mrb[0].mxu0
  %v1291 = vadd.f32 0.0, %v1290
  %v1292 = vpop.f32.mrb[0].mxu0
  %v1293 = vpop.f32.mrb[0].mxu0
  %v1294 = vadd.f32 0.0, %v1293
  %v1295 = vpop.f32.mrb[0].mxu0
  %1296 = vmatprep.mubr.bf16.mxu0 0
  %1297 = vmatmul.mubr.bf16.gmra.mrb[0].mxu0 %v839
  %v1298 = vpop.f32.mrb[0].mxu0
  %v1299 = vadd.f32 0.0, %v1298
  %v1300 = vpop.f32.mrb[0].mxu0
  %v1301 = vpop.f32.mrb[0].mxu0
  %v1302 = vadd.f32 0.0, %v1301
  %v1303 = vpop.f32.mrb[0].mxu0
  %1304 = vmatprep.mubr.bf16.mxu0 0
  %1305 = vmatmul.mubr.bf16.gmra.mrb[0].mxu0 %v842
  %v1306 = vpop.f32.mrb[0].mxu0
  %v1307 = vadd.f32 0.0, %v1306
  %v1308 = vpop.f32.mrb[0].mxu0
  %v1309 = vpop.f32.mrb[0].mxu0
  %v1310 = vadd.f32 0.0, %v1309
  %v1311 = vpop.f32.mrb[0].mxu0
  %1312 = vmatprep.mubr.bf16.mxu0 0
  %1313 = vmatmul.mubr.bf16.gmra.mrb[0].mxu0 %v845
  %v1314 = vpop.f32.mrb[0].mxu0
  %v1315 = vadd.f32 0.0, %v1314
  %v1316 = vpop.f32.mrb[0].mxu0
  %v1317 = vpop.f32.mrb[0].mxu0
  %v1318 = vadd.f32 0.0, %v1317
  %v1319 = vpop.f32.mrb[0].mxu0
  %1320 = vmatprep.mubr.bf16.mxu0 0
  %1321 = vmatmul.mubr.bf16.gmra.mrb[0].mxu0 %v848
  %v1322 = vpop.f32.mrb[0].mxu0
  %v1323 = vadd.f32 0.0, %v1322
  %v1324 = vpop.f32.mrb[0].mxu0
  %v1325 = vpop.f32.mrb[0].mxu0
  %v1326 = vadd.f32 0.0, %v1325
  %v1327 = vpop.f32.mrb[0].mxu0
  %1328 = vmatprep.mubr.bf16.mxu0 0
  %1329 = vmatmul.mubr.bf16.gmra.mrb[0].mxu0 %v851
  %v1330 = vpop.f32.mrb[0].mxu0
  %v1331 = vadd.f32 0.0, %v1330
  %v1332 = vpop.f32.mrb[0].mxu0
  %v1333 = vpop.f32.mrb[0].mxu0
  %v1334 = vadd.f32 0.0, %v1333
  %v1335 = vpop.f32.mrb[0].mxu0
  %1336 = vmatprep.mubr.bf16.mxu0 0
  %1337 = vmatmul.mubr.bf16.gmra.mrb[0].mxu0 %v854
  %v1338 = vpop.f32.mrb[0].mxu0
  %v1339 = vadd.f32 0.0, %v1338
  %v1340 = vpop.f32.mrb[0].mxu0
  %v1341 = vpop.f32.mrb[0].mxu0
  %v1342 = vadd.f32 0.0, %v1341
  %v1343 = vpop.f32.mrb[0].mxu0
  %1344 = vmatprep.mubr.bf16.mxu0 0
  %1345 = vmatmul.mubr.bf16.gmra.mrb[0].mxu0 %v857
  %v1346 = vpop.f32.mrb[0].mxu0
  %v1347 = vadd.f32 0.0, %v1346
  %v1348 = vpop.f32.mrb[0].mxu0
  %v1349 = vpop.f32.mrb[0].mxu0
  %v1350 = vadd.f32 0.0, %v1349
  %v1351 = vpop.f32.mrb[0].mxu0
  %1352 = vmatprep.mubr.bf16.mxu0 0
  %1353 = vmatmul.mubr.bf16.gmra.mrb[0].mxu0 %v860
  %v1354 = vpop.f32.mrb[0].mxu0
  %v1355 = vadd.f32 0.0, %v1354
  %v1356 = vpop.f32.mrb[0].mxu0
  %v1357 = vpop.f32.mrb[0].mxu0
  %v1358 = vadd.f32 0.0, %v1357
  %v1359 = vpop.f32.mrb[0].mxu0
  %1360 = vmatprep.mubr.bf16.mxu0 0
  %1361 = vmatmul.mubr.bf16.gmra.mrb[0].mxu0 %v863
  %v1362 = vpop.f32.mrb[0].mxu0
  %v1363 = vadd.f32 0.0, %v1362
  %v1364 = vpop.f32.mrb[0].mxu0
  %v1365 = vpop.f32.mrb[0].mxu0
  %v1366 = vadd.f32 0.0, %v1365
  %v1367 = vpop.f32.mrb[0].mxu0
  %1368 = vmatprep.mubr.bf16.mxu0 0
  %1369 = vmatmul.mubr.bf16.gmra.mrb[0].mxu0 %v866
  %v1370 = vpop.f32.mrb[0].mxu0
  %v1371 = vadd.f32 0.0, %v1370
  %v1372 = vpop.f32.mrb[0].mxu0
  %v1373 = vpop.f32.mrb[0].mxu0
  %v1374 = vadd.f32 0.0, %v1373
  %v1375 = vpop.f32.mrb[0].mxu0
  %1376 = vmatprep.mubr.bf16.mxu0 0
  %1377 = vmatmul.mubr.bf16.gmra.mrb[0].mxu0 %v869
  %v1378 = vpop.f32.mrb[0].mxu0
  %v1379 = vadd.f32 0.0, %v1378
  %v1380 = vpop.f32.mrb[0].mxu0
  %v1381 = vpop.f32.mrb[0].mxu0
  %v1382 = vadd.f32 0.0, %v1381
  %v1383 = vpop.f32.mrb[0].mxu0
  %1384 = vmatprep.mubr.bf16.mxu0 0
  %1385 = vmatmul.mubr.bf16.gmra.mrb[0].mxu0 %v872
  %v1386 = vpop.f32.mrb[0].mxu0
  %v1387 = vadd.f32 0.0, %v1386
  %v1388 = vpop.f32.mrb[0].mxu0
  %v1389 = vpop.f32.mrb[0].mxu0
  %v1390 = vadd.f32 0.0, %v1389
  %v1391 = vpop.f32.mrb[0].mxu0
  %1392 = vmatprep.mubr.bf16.mxu0 0
  %1393 = vmatmul.mubr.bf16.gmra.mrb[0].mxu0 %v875
  %v1394 = vpop.f32.mrb[0].mxu0
  %v1395 = vadd.f32 0.0, %v1394
  %v1396 = vpop.f32.mrb[0].mxu0
  %v1397 = vpop.f32.mrb[0].mxu0
  %v1398 = vadd.f32 0.0, %v1397
  %v1399 = vpop.f32.mrb[0].mxu0
  %1400 = vmatprep.mubr.bf16.mxu0 0
  %1401 = vmatmul.mubr.bf16.gmra.mrb[0].mxu0 %v878
  %v1402 = vpop.f32.mrb[0].mxu0
  %v1403 = vadd.f32 0.0, %v1402
  %v1404 = vpop.f32.mrb[0].mxu0
  %v1405 = vpop.f32.mrb[0].mxu0
  %v1406 = vadd.f32 0.0, %v1405
  %v1407 = vpop.f32.mrb[0].mxu0
  %1408 = vmatprep.mubr.bf16.mxu0 0
  %1409 = vmatmul.mubr.bf16.gmra.mrb[0].mxu0 %v881
  %v1410 = vpop.f32.mrb[0].mxu0
  %v1411 = vadd.f32 0.0, %v1410
  %v1412 = vpop.f32.mrb[0].mxu0
  %v1413 = vpop.f32.mrb[0].mxu0
  %v1414 = vadd.f32 0.0, %v1413
  %v1415 = vpop.f32.mrb[0].mxu0
  %1416 = vmatprep.mubr.bf16.mxu0 0
  %1417 = vmatmul.mubr.bf16.gmra.mrb[0].mxu0 %v884
  %v1418 = vpop.f32.mrb[0].mxu0
  %v1419 = vadd.f32 0.0, %v1418
  %v1420 = vpop.f32.mrb[0].mxu0
  %v1421 = vpop.f32.mrb[0].mxu0
  %v1422 = vadd.f32 0.0, %v1421
  %v1423 = vpop.f32.mrb[0].mxu0
  %1424 = vmatprep.mubr.bf16.mxu0 0
  %1425 = vmatmul.mubr.bf16.gmra.mrb[0].mxu0 %v887
  %v1426 = vpop.f32.mrb[0].mxu0
  %v1427 = vadd.f32 0.0, %v1426
  %v1428 = vpop.f32.mrb[0].mxu0
  %v1429 = vpop.f32.mrb[0].mxu0
  %v1430 = vadd.f32 0.0, %v1429
  %v1431 = vpop.f32.mrb[0].mxu0
  %1432 = vmatprep.mubr.bf16.mxu0 0
  %1433 = vmatmul.mubr.bf16.gmra.mrb[0].mxu0 %v890
  %v1434 = vpop.f32.mrb[0].mxu0
  %v1435 = vadd.f32 0.0, %v1434
  %v1436 = vpop.f32.mrb[0].mxu0
  %v1437 = vpop.f32.mrb[0].mxu0
  %v1438 = vadd.f32 0.0, %v1437
  %v1439 = vpop.f32.mrb[0].mxu0
  %1440 = vmatprep.mubr.bf16.mxu0 0
  %1441 = vmatmul.mubr.bf16.gmra.mrb[0].mxu0 %v893
  %v1442 = vpop.f32.mrb[0].mxu0
  %v1443 = vadd.f32 0.0, %v1442
  %v1444 = vpop.f32.mrb[0].mxu0
  %v1445 = vpop.f32.mrb[0].mxu0
  %v1446 = vadd.f32 0.0, %v1445
  %v1447 = vpop.f32.mrb[0].mxu0
  %1448 = vmatprep.mubr.bf16.mxu0 0
  %1449 = vmatmul.mubr.bf16.gmra.mrb[0].mxu0 %v896
  %v1450 = vpop.f32.mrb[0].mxu0
  %v1451 = vadd.f32 0.0, %v1450
  %v1452 = vpop.f32.mrb[0].mxu0
  %v1453 = vpop.f32.mrb[0].mxu0
  %v1454 = vadd.f32 0.0, %v1453
  %v1455 = vpop.f32.mrb[0].mxu0
  %1456 = vmatprep.mubr.bf16.mxu0 0
  %1457 = vmatmul.mubr.bf16.gmra.mrb[0].mxu0 %v899
  %v1458 = vpop.f32.mrb[0].mxu0
  %v1459 = vadd.f32 0.0, %v1458
  %v1460 = vpop.f32.mrb[0].mxu0
  %v1461 = vpop.f32.mrb[0].mxu0
  %v1462 = vadd.f32 0.0, %v1461
  %v1463 = vpop.f32.mrb[0].mxu0
  %1464 = vmatprep.mubr.bf16.mxu0 0
  %1465 = vmatmul.mubr.bf16.gmra.mrb[0].mxu0 %v902
  %v1466 = vpop.f32.mrb[0].mxu0
  %v1467 = vadd.f32 0.0, %v1466
  %v1468 = vpop.f32.mrb[0].mxu0
  %v1469 = vpop.f32.mrb[0].mxu0
  %v1470 = vadd.f32 0.0, %v1469
  %v1471 = vpop.f32.mrb[0].mxu0
  %1472 = vmatprep.mubr.bf16.mxu0 0
  %1473 = vmatmul.mubr.bf16.gmra.mrb[0].mxu0 %v905
  %v1474 = vpop.f32.mrb[0].mxu0
  %v1475 = vadd.f32 0.0, %v1474
  %v1476 = vpop.f32.mrb[0].mxu0
  %v1477 = vpop.f32.mrb[0].mxu0
  %v1478 = vadd.f32 0.0, %v1477
  %v1479 = vpop.f32.mrb[0].mxu0
  %1480 = vmatprep.mubr.bf16.mxu0 0
  %1481 = vmatmul.mubr.bf16.gmra.mrb[0].mxu0 %v908
  %v1482 = vpop.f32.mrb[0].mxu0
  %v1483 = vadd.f32 0.0, %v1482
  %v1484 = vpop.f32.mrb[0].mxu0
  %v1485 = vpop.f32.mrb[0].mxu0
  %v1486 = vadd.f32 0.0, %v1485
  %v1487 = vpop.f32.mrb[0].mxu0
  %1488 = vmatprep.mubr.bf16.mxu0 0
  %1489 = vmatmul.mubr.bf16.gmra.mrb[0].mxu0 %v911
  %v1490 = vpop.f32.mrb[0].mxu0
  %v1491 = vadd.f32 0.0, %v1490
  %v1492 = vpop.f32.mrb[0].mxu0
  %v1493 = vpop.f32.mrb[0].mxu0
  %v1494 = vadd.f32 0.0, %v1493
  %v1495 = vpop.f32.mrb[0].mxu0
  %1496 = vmatprep.mubr.bf16.mxu0 0
  %1497 = vmatmul.mubr.bf16.gmra.mrb[0].mxu0 %v914
  %v1498 = vpop.f32.mrb[0].mxu0
  %v1499 = vadd.f32 0.0, %v1498
  %v1500 = vpop.f32.mrb[0].mxu0
  %v1501 = vpop.f32.mrb[0].mxu0
  %v1502 = vadd.f32 0.0, %v1501
  %v1503 = vpop.f32.mrb[0].mxu0
  %1504 = vmatprep.mubr.bf16.mxu0 0
  %1505 = vmatmul.mubr.bf16.gmra.mrb[0].mxu0 %v917
  %v1506 = vpop.f32.mrb[0].mxu0
  %v1507 = vadd.f32 0.0, %v1506
  %v1508 = vpop.f32.mrb[0].mxu0
  %v1509 = vpop.f32.mrb[0].mxu0
  %v1510 = vadd.f32 0.0, %v1509
  %v1511 = vpop.f32.mrb[0].mxu0
  %1512 = vmatprep.mubr.bf16.mxu0 0
  %1513 = vmatmul.mubr.bf16.gmra.mrb[0].mxu0 %v920
  %v1514 = vpop.f32.mrb[0].mxu0
  %v1515 = vadd.f32 0.0, %v1514
  %v1516 = vpop.f32.mrb[0].mxu0
  %v1517 = vpop.f32.mrb[0].mxu0
  %v1518 = vadd.f32 0.0, %v1517
  %v1519 = vpop.f32.mrb[0].mxu0
  %1520 = vmatprep.mubr.bf16.mxu0 0
  %1521 = vmatmul.mubr.bf16.gmra.mrb[0].mxu0 %v923
  %v1522 = vpop.f32.mrb[0].mxu0
  %v1523 = vadd.f32 0.0, %v1522
  %v1524 = vpop.f32.mrb[0].mxu0
  %v1525 = vpop.f32.mrb[0].mxu0
  %v1526 = vadd.f32 0.0, %v1525
  %v1527 = vpop.f32.mrb[0].mxu0
  %1528 = vmatprep.mubr.bf16.mxu0 0
  %1529 = vmatmul.mubr.bf16.gmra.mrb[0].mxu0 %v926
  %v1530 = vpop.f32.mrb[0].mxu0
  %v1531 = vadd.f32 0.0, %v1530
  %v1532 = vpop.f32.mrb[0].mxu0
  %v1533 = vpop.f32.mrb[0].mxu0
  %v1534 = vadd.f32 0.0, %v1533
  %v1535 = vpop.f32.mrb[0].mxu0
  %1536 = vdwg.mxu0
  %v1543 = vunpack.c.l.b16 %v675
  %v1544 = vunpack.c.l.b16 %v676
  %v1545 = vunpack.c.l.b16 %v677
  %v1546 = vunpack.c.l.b16 %v678
  %v1547 = vunpack.c.l.b16 %v679
  %v1548 = vunpack.c.l.b16 %v680
  %v1549 = vpack.c.b16 %v1544, %v1543
  %v1550 = vpack.c.b16 %v1546, %v1545
  %v1551 = vpack.c.b16 %v1548, %v1547
  %v1556 = vsel %vm711, %v513, 0
  %v1559 = vsel %vm711, %v514, 0
  %1561 = vmatprep.subr.bf16.mxu0 0
  %1562 = vmatpush1.bf16.msra.mxu0 %v1549
  %1563 = vmatprep.subr.bf16.mxu0 0
  %1564 = vmatpush1.bf16.msra.mxu0 %v1550
  %1565 = vmatprep.subr.bf16.mxu0 0
  %1566 = vmatpush1.bf16.msra.mxu0 %v1551
  %1567 = vmatprep.subr.bf16.mxu0 0
  %1568 = vmatpush1.bf16.msra.mxu0 0
  %1569 = vmatprep.subr.bf16.mxu0 0
  %1570 = vmatpush1.bf16.msra.mxu0 0
  %1571 = vmatprep.subr.bf16.mxu0 0
  %1572 = vmatpush1.bf16.msra.mxu0 0
  %1573 = vmatprep.subr.bf16.mxu0 0
  %1574 = vmatpush1.bf16.msra.mxu0 0
  %1575 = vmatprep.subr.bf16.mxu0 0
  %1576 = vmatpush1.bf16.msra.mxu0 0
  %1577 = vmatprep.subr.bf16.mxu0 0
  %1578 = vmatpush1.bf16.msra.mxu0 0
  %1579 = vmatprep.subr.bf16.mxu0 0
  %1580 = vmatpush1.bf16.msra.mxu0 0
  %1581 = vmatprep.subr.bf16.mxu0 0
  %1582 = vmatpush1.bf16.msra.mxu0 0
  %1583 = vmatprep.subr.bf16.mxu0 0
  %1584 = vmatpush1.bf16.msra.mxu0 0
  %1585 = vmatprep.subr.bf16.mxu0 0
  %1586 = vmatpush1.bf16.msra.mxu0 0
  %1587 = vmatprep.subr.bf16.mxu0 0
  %1588 = vmatpush1.bf16.msra.mxu0 0
  %1589 = vmatprep.subr.bf16.mxu0 0
  %1590 = vmatpush1.bf16.msra.mxu0 0
  %1591 = vmatprep.subr.bf16.mxu0 0
  %1592 = vmatpush1.bf16.msra.mxu0 0
  %1593 = vmatprep.mubr.bf16.mxu0 0
  %1594 = vmatmul.mubr.bf16.gmra.mrb[0].mxu0 %v1556
  %v1595 = vpop.f32.mrb[0].mxu0
  %v1596 = vadd.f32 %v963, %v1595
  %v1597 = vpop.f32.mrb[0].mxu0
  %v1598 = vpop.f32.mrb[0].mxu0
  %v1599 = vadd.f32 %v966, %v1598
  %v1600 = vpop.f32.mrb[0].mxu0
  %1601 = vmatprep.mubr.bf16.mxu0 0
  %1602 = vmatmul.mubr.bf16.gmra.mrb[0].mxu0 %v1559
  %v1603 = vpop.f32.mrb[0].mxu0
  %v1604 = vadd.f32 %v971, %v1603
  %v1605 = vpop.f32.mrb[0].mxu0
  %v1606 = vpop.f32.mrb[0].mxu0
  %v1607 = vadd.f32 %v974, %v1606
  %v1608 = vpop.f32.mrb[0].mxu0
  %1609 = vmatprep.mubr.bf16.mxu0 0
  %1610 = vmatmul.mubr.bf16.gmra.mrb[0].mxu0 %v713
  %v1611 = vpop.f32.mrb[0].mxu0
  %v1612 = vadd.f32 %v979, %v1611
  %v1613 = vpop.f32.mrb[0].mxu0
  %v1614 = vpop.f32.mrb[0].mxu0
  %v1615 = vadd.f32 %v982, %v1614
  %v1616 = vpop.f32.mrb[0].mxu0
  %1617 = vmatprep.mubr.bf16.mxu0 0
  %1618 = vmatmul.mubr.bf16.gmra.mrb[0].mxu0 %v716
  %v1619 = vpop.f32.mrb[0].mxu0
  %v1620 = vadd.f32 %v987, %v1619
  %v1621 = vpop.f32.mrb[0].mxu0
  %v1622 = vpop.f32.mrb[0].mxu0
  %v1623 = vadd.f32 %v990, %v1622
  %v1624 = vpop.f32.mrb[0].mxu0
  %1625 = vmatprep.mubr.bf16.mxu0 0
  %1626 = vmatmul.mubr.bf16.gmra.mrb[0].mxu0 %v719
  %v1627 = vpop.f32.mrb[0].mxu0
  %v1628 = vadd.f32 %v995, %v1627
  %v1629 = vpop.f32.mrb[0].mxu0
  %v1630 = vpop.f32.mrb[0].mxu0
  %v1631 = vadd.f32 %v998, %v1630
  %v1632 = vpop.f32.mrb[0].mxu0
  %1633 = vmatprep.mubr.bf16.mxu0 0
  %1634 = vmatmul.mubr.bf16.gmra.mrb[0].mxu0 %v722
  %v1635 = vpop.f32.mrb[0].mxu0
  %v1636 = vadd.f32 %v1003, %v1635
  %v1637 = vpop.f32.mrb[0].mxu0
  %v1638 = vpop.f32.mrb[0].mxu0
  %v1639 = vadd.f32 %v1006, %v1638
  %v1640 = vpop.f32.mrb[0].mxu0
  %1641 = vmatprep.mubr.bf16.mxu0 0
  %1642 = vmatmul.mubr.bf16.gmra.mrb[0].mxu0 %v725
  %v1643 = vpop.f32.mrb[0].mxu0
  %v1644 = vadd.f32 %v1011, %v1643
  %v1645 = vpop.f32.mrb[0].mxu0
  %v1646 = vpop.f32.mrb[0].mxu0
  %v1647 = vadd.f32 %v1014, %v1646
  %v1648 = vpop.f32.mrb[0].mxu0
  %1649 = vmatprep.mubr.bf16.mxu0 0
  %1650 = vmatmul.mubr.bf16.gmra.mrb[0].mxu0 %v728
  %v1651 = vpop.f32.mrb[0].mxu0
  %v1652 = vadd.f32 %v1019, %v1651
  %v1653 = vpop.f32.mrb[0].mxu0
  %v1654 = vpop.f32.mrb[0].mxu0
  %v1655 = vadd.f32 %v1022, %v1654
  %v1656 = vpop.f32.mrb[0].mxu0
  %1657 = vmatprep.mubr.bf16.mxu0 0
  %1658 = vmatmul.mubr.bf16.gmra.mrb[0].mxu0 %v731
  %v1659 = vpop.f32.mrb[0].mxu0
  %v1660 = vadd.f32 %v1027, %v1659
  %v1661 = vpop.f32.mrb[0].mxu0
  %v1662 = vpop.f32.mrb[0].mxu0
  %v1663 = vadd.f32 %v1030, %v1662
  %v1664 = vpop.f32.mrb[0].mxu0
  %1665 = vmatprep.mubr.bf16.mxu0 0
  %1666 = vmatmul.mubr.bf16.gmra.mrb[0].mxu0 %v734
  %v1667 = vpop.f32.mrb[0].mxu0
  %v1668 = vadd.f32 %v1035, %v1667
  %v1669 = vpop.f32.mrb[0].mxu0
  %v1670 = vpop.f32.mrb[0].mxu0
  %v1671 = vadd.f32 %v1038, %v1670
  %v1672 = vpop.f32.mrb[0].mxu0
  %1673 = vmatprep.mubr.bf16.mxu0 0
  %1674 = vmatmul.mubr.bf16.gmra.mrb[0].mxu0 %v737
  %v1675 = vpop.f32.mrb[0].mxu0
  %v1676 = vadd.f32 %v1043, %v1675
  %v1677 = vpop.f32.mrb[0].mxu0
  %v1678 = vpop.f32.mrb[0].mxu0
  %v1679 = vadd.f32 %v1046, %v1678
  %v1680 = vpop.f32.mrb[0].mxu0
  %1681 = vmatprep.mubr.bf16.mxu0 0
  %1682 = vmatmul.mubr.bf16.gmra.mrb[0].mxu0 %v740
  %v1683 = vpop.f32.mrb[0].mxu0
  %v1684 = vadd.f32 %v1051, %v1683
  %v1685 = vpop.f32.mrb[0].mxu0
  %v1686 = vpop.f32.mrb[0].mxu0
  %v1687 = vadd.f32 %v1054, %v1686
  %v1688 = vpop.f32.mrb[0].mxu0
  %1689 = vmatprep.mubr.bf16.mxu0 0
  %1690 = vmatmul.mubr.bf16.gmra.mrb[0].mxu0 %v743
  %v1691 = vpop.f32.mrb[0].mxu0
  %v1692 = vadd.f32 %v1059, %v1691
  %v1693 = vpop.f32.mrb[0].mxu0
  %v1694 = vpop.f32.mrb[0].mxu0
  %v1695 = vadd.f32 %v1062, %v1694
  %v1696 = vpop.f32.mrb[0].mxu0
  %1697 = vmatprep.mubr.bf16.mxu0 0
  %1698 = vmatmul.mubr.bf16.gmra.mrb[0].mxu0 %v746
  %v1699 = vpop.f32.mrb[0].mxu0
  %v1700 = vadd.f32 %v1067, %v1699
  %v1701 = vpop.f32.mrb[0].mxu0
  %v1702 = vpop.f32.mrb[0].mxu0
  %v1703 = vadd.f32 %v1070, %v1702
  %v1704 = vpop.f32.mrb[0].mxu0
  %1705 = vmatprep.mubr.bf16.mxu0 0
  %1706 = vmatmul.mubr.bf16.gmra.mrb[0].mxu0 %v749
  %v1707 = vpop.f32.mrb[0].mxu0
  %v1708 = vadd.f32 %v1075, %v1707
  %v1709 = vpop.f32.mrb[0].mxu0
  %v1710 = vpop.f32.mrb[0].mxu0
  %v1711 = vadd.f32 %v1078, %v1710
  %v1712 = vpop.f32.mrb[0].mxu0
  %1713 = vmatprep.mubr.bf16.mxu0 0
  %1714 = vmatmul.mubr.bf16.gmra.mrb[0].mxu0 %v752
  %v1715 = vpop.f32.mrb[0].mxu0
  %v1716 = vadd.f32 %v1083, %v1715
  %v1717 = vpop.f32.mrb[0].mxu0
  %v1718 = vpop.f32.mrb[0].mxu0
  %v1719 = vadd.f32 %v1086, %v1718
  %v1720 = vpop.f32.mrb[0].mxu0
  %1721 = vmatprep.mubr.bf16.mxu0 0
  %1722 = vmatmul.mubr.bf16.gmra.mrb[0].mxu0 %v755
  %v1723 = vpop.f32.mrb[0].mxu0
  %v1724 = vadd.f32 %v1091, %v1723
  %v1725 = vpop.f32.mrb[0].mxu0
  %v1726 = vpop.f32.mrb[0].mxu0
  %v1727 = vadd.f32 %v1094, %v1726
  %v1728 = vpop.f32.mrb[0].mxu0
  %1729 = vmatprep.mubr.bf16.mxu0 0
  %1730 = vmatmul.mubr.bf16.gmra.mrb[0].mxu0 %v758
  %v1731 = vpop.f32.mrb[0].mxu0
  %v1732 = vadd.f32 %v1099, %v1731
  %v1733 = vpop.f32.mrb[0].mxu0
  %v1734 = vpop.f32.mrb[0].mxu0
  %v1735 = vadd.f32 %v1102, %v1734
  %v1736 = vpop.f32.mrb[0].mxu0
  %1737 = vmatprep.mubr.bf16.mxu0 0
  %1738 = vmatmul.mubr.bf16.gmra.mrb[0].mxu0 %v761
  %v1739 = vpop.f32.mrb[0].mxu0
  %v1740 = vadd.f32 %v1107, %v1739
  %v1741 = vpop.f32.mrb[0].mxu0
  %v1742 = vpop.f32.mrb[0].mxu0
  %v1743 = vadd.f32 %v1110, %v1742
  %v1744 = vpop.f32.mrb[0].mxu0
  %1745 = vmatprep.mubr.bf16.mxu0 0
  %1746 = vmatmul.mubr.bf16.gmra.mrb[0].mxu0 %v764
  %v1747 = vpop.f32.mrb[0].mxu0
  %v1748 = vadd.f32 %v1115, %v1747
  %v1749 = vpop.f32.mrb[0].mxu0
  %v1750 = vpop.f32.mrb[0].mxu0
  %v1751 = vadd.f32 %v1118, %v1750
  %v1752 = vpop.f32.mrb[0].mxu0
  %1753 = vmatprep.mubr.bf16.mxu0 0
  %1754 = vmatmul.mubr.bf16.gmra.mrb[0].mxu0 %v767
  %v1755 = vpop.f32.mrb[0].mxu0
  %v1756 = vadd.f32 %v1123, %v1755
  %v1757 = vpop.f32.mrb[0].mxu0
  %v1758 = vpop.f32.mrb[0].mxu0
  %v1759 = vadd.f32 %v1126, %v1758
  %v1760 = vpop.f32.mrb[0].mxu0
  %1761 = vmatprep.mubr.bf16.mxu0 0
  %1762 = vmatmul.mubr.bf16.gmra.mrb[0].mxu0 %v770
  %v1763 = vpop.f32.mrb[0].mxu0
  %v1764 = vadd.f32 %v1131, %v1763
  %v1765 = vpop.f32.mrb[0].mxu0
  %v1766 = vpop.f32.mrb[0].mxu0
  %v1767 = vadd.f32 %v1134, %v1766
  %v1768 = vpop.f32.mrb[0].mxu0
  %1769 = vmatprep.mubr.bf16.mxu0 0
  %1770 = vmatmul.mubr.bf16.gmra.mrb[0].mxu0 %v773
  %v1771 = vpop.f32.mrb[0].mxu0
  %v1772 = vadd.f32 %v1139, %v1771
  %v1773 = vpop.f32.mrb[0].mxu0
  %v1774 = vpop.f32.mrb[0].mxu0
  %v1775 = vadd.f32 %v1142, %v1774
  %v1776 = vpop.f32.mrb[0].mxu0
  %1777 = vmatprep.mubr.bf16.mxu0 0
  %1778 = vmatmul.mubr.bf16.gmra.mrb[0].mxu0 %v776
  %v1779 = vpop.f32.mrb[0].mxu0
  %v1780 = vadd.f32 %v1147, %v1779
  %v1781 = vpop.f32.mrb[0].mxu0
  %v1782 = vpop.f32.mrb[0].mxu0
  %v1783 = vadd.f32 %v1150, %v1782
  %v1784 = vpop.f32.mrb[0].mxu0
  %1785 = vmatprep.mubr.bf16.mxu0 0
  %1786 = vmatmul.mubr.bf16.gmra.mrb[0].mxu0 %v779
  %v1787 = vpop.f32.mrb[0].mxu0
  %v1788 = vadd.f32 %v1155, %v1787
  %v1789 = vpop.f32.mrb[0].mxu0
  %v1790 = vpop.f32.mrb[0].mxu0
  %v1791 = vadd.f32 %v1158, %v1790
  %v1792 = vpop.f32.mrb[0].mxu0
  %1793 = vmatprep.mubr.bf16.mxu0 0
  %1794 = vmatmul.mubr.bf16.gmra.mrb[0].mxu0 %v782
  %v1795 = vpop.f32.mrb[0].mxu0
  %v1796 = vadd.f32 %v1163, %v1795
  %v1797 = vpop.f32.mrb[0].mxu0
  %v1798 = vpop.f32.mrb[0].mxu0
  %v1799 = vadd.f32 %v1166, %v1798
  %v1800 = vpop.f32.mrb[0].mxu0
  %1801 = vmatprep.mubr.bf16.mxu0 0
  %1802 = vmatmul.mubr.bf16.gmra.mrb[0].mxu0 %v785
  %v1803 = vpop.f32.mrb[0].mxu0
  %v1804 = vadd.f32 %v1171, %v1803
  %v1805 = vpop.f32.mrb[0].mxu0
  %v1806 = vpop.f32.mrb[0].mxu0
  %v1807 = vadd.f32 %v1174, %v1806
  %v1808 = vpop.f32.mrb[0].mxu0
  %1809 = vmatprep.mubr.bf16.mxu0 0
  %1810 = vmatmul.mubr.bf16.gmra.mrb[0].mxu0 %v788
  %v1811 = vpop.f32.mrb[0].mxu0
  %v1812 = vadd.f32 %v1179, %v1811
  %v1813 = vpop.f32.mrb[0].mxu0
  %v1814 = vpop.f32.mrb[0].mxu0
  %v1815 = vadd.f32 %v1182, %v1814
  %v1816 = vpop.f32.mrb[0].mxu0
  %1817 = vmatprep.mubr.bf16.mxu0 0
  %1818 = vmatmul.mubr.bf16.gmra.mrb[0].mxu0 %v791
  %v1819 = vpop.f32.mrb[0].mxu0
  %v1820 = vadd.f32 %v1187, %v1819
  %v1821 = vpop.f32.mrb[0].mxu0
  %v1822 = vpop.f32.mrb[0].mxu0
  %v1823 = vadd.f32 %v1190, %v1822
  %v1824 = vpop.f32.mrb[0].mxu0
  %1825 = vmatprep.mubr.bf16.mxu0 0
  %1826 = vmatmul.mubr.bf16.gmra.mrb[0].mxu0 %v794
  %v1827 = vpop.f32.mrb[0].mxu0
  %v1828 = vadd.f32 %v1195, %v1827
  %v1829 = vpop.f32.mrb[0].mxu0
  %v1830 = vpop.f32.mrb[0].mxu0
  %v1831 = vadd.f32 %v1198, %v1830
  %v1832 = vpop.f32.mrb[0].mxu0
  %1833 = vmatprep.mubr.bf16.mxu0 0
  %1834 = vmatmul.mubr.bf16.gmra.mrb[0].mxu0 %v797
  %v1835 = vpop.f32.mrb[0].mxu0
  %v1836 = vadd.f32 %v1203, %v1835
  %v1837 = vpop.f32.mrb[0].mxu0
  %v1838 = vpop.f32.mrb[0].mxu0
  %v1839 = vadd.f32 %v1206, %v1838
  %v1840 = vpop.f32.mrb[0].mxu0
  %1841 = vmatprep.mubr.bf16.mxu0 0
  %1842 = vmatmul.mubr.bf16.gmra.mrb[0].mxu0 %v800
  %v1843 = vpop.f32.mrb[0].mxu0
  %v1844 = vadd.f32 %v1211, %v1843
  %v1845 = vpop.f32.mrb[0].mxu0
  %v1846 = vpop.f32.mrb[0].mxu0
  %v1847 = vadd.f32 %v1214, %v1846
  %v1848 = vpop.f32.mrb[0].mxu0
  %1849 = vmatprep.mubr.bf16.mxu0 0
  %1850 = vmatmul.mubr.bf16.gmra.mrb[0].mxu0 %v803
  %v1851 = vpop.f32.mrb[0].mxu0
  %v1852 = vadd.f32 %v1219, %v1851
  %v1853 = vpop.f32.mrb[0].mxu0
  %v1854 = vpop.f32.mrb[0].mxu0
  %v1855 = vadd.f32 %v1222, %v1854
  %v1856 = vpop.f32.mrb[0].mxu0
  %1857 = vmatprep.mubr.bf16.mxu0 0
  %1858 = vmatmul.mubr.bf16.gmra.mrb[0].mxu0 %v806
  %v1859 = vpop.f32.mrb[0].mxu0
  %v1860 = vadd.f32 %v1227, %v1859
  %v1861 = vpop.f32.mrb[0].mxu0
  %v1862 = vpop.f32.mrb[0].mxu0
  %v1863 = vadd.f32 %v1230, %v1862
  %v1864 = vpop.f32.mrb[0].mxu0
  %1865 = vmatprep.mubr.bf16.mxu0 0
  %1866 = vmatmul.mubr.bf16.gmra.mrb[0].mxu0 %v809
  %v1867 = vpop.f32.mrb[0].mxu0
  %v1868 = vadd.f32 %v1235, %v1867
  %v1869 = vpop.f32.mrb[0].mxu0
  %v1870 = vpop.f32.mrb[0].mxu0
  %v1871 = vadd.f32 %v1238, %v1870
  %v1872 = vpop.f32.mrb[0].mxu0
  %1873 = vmatprep.mubr.bf16.mxu0 0
  %1874 = vmatmul.mubr.bf16.gmra.mrb[0].mxu0 %v812
  %v1875 = vpop.f32.mrb[0].mxu0
  %v1876 = vadd.f32 %v1243, %v1875
  %v1877 = vpop.f32.mrb[0].mxu0
  %v1878 = vpop.f32.mrb[0].mxu0
  %v1879 = vadd.f32 %v1246, %v1878
  %v1880 = vpop.f32.mrb[0].mxu0
  %1881 = vmatprep.mubr.bf16.mxu0 0
  %1882 = vmatmul.mubr.bf16.gmra.mrb[0].mxu0 %v815
  %v1883 = vpop.f32.mrb[0].mxu0
  %v1884 = vadd.f32 %v1251, %v1883
  %v1885 = vpop.f32.mrb[0].mxu0
  %v1886 = vpop.f32.mrb[0].mxu0
  %v1887 = vadd.f32 %v1254, %v1886
  %v1888 = vpop.f32.mrb[0].mxu0
  %1889 = vmatprep.mubr.bf16.mxu0 0
  %1890 = vmatmul.mubr.bf16.gmra.mrb[0].mxu0 %v818
  %v1891 = vpop.f32.mrb[0].mxu0
  %v1892 = vadd.f32 %v1259, %v1891
  %v1893 = vpop.f32.mrb[0].mxu0
  %v1894 = vpop.f32.mrb[0].mxu0
  %v1895 = vadd.f32 %v1262, %v1894
  %v1896 = vpop.f32.mrb[0].mxu0
  %1897 = vmatprep.mubr.bf16.mxu0 0
  %1898 = vmatmul.mubr.bf16.gmra.mrb[0].mxu0 %v821
  %v1899 = vpop.f32.mrb[0].mxu0
  %v1900 = vadd.f32 %v1267, %v1899
  %v1901 = vpop.f32.mrb[0].mxu0
  %v1902 = vpop.f32.mrb[0].mxu0
  %v1903 = vadd.f32 %v1270, %v1902
  %v1904 = vpop.f32.mrb[0].mxu0
  %1905 = vmatprep.mubr.bf16.mxu0 0
  %1906 = vmatmul.mubr.bf16.gmra.mrb[0].mxu0 %v824
  %v1907 = vpop.f32.mrb[0].mxu0
  %v1908 = vadd.f32 %v1275, %v1907
  %v1909 = vpop.f32.mrb[0].mxu0
  %v1910 = vpop.f32.mrb[0].mxu0
  %v1911 = vadd.f32 %v1278, %v1910
  %v1912 = vpop.f32.mrb[0].mxu0
  %1913 = vmatprep.mubr.bf16.mxu0 0
  %1914 = vmatmul.mubr.bf16.gmra.mrb[0].mxu0 %v827
  %v1915 = vpop.f32.mrb[0].mxu0
  %v1916 = vadd.f32 %v1283, %v1915
  %v1917 = vpop.f32.mrb[0].mxu0
  %v1918 = vpop.f32.mrb[0].mxu0
  %v1919 = vadd.f32 %v1286, %v1918
  %v1920 = vpop.f32.mrb[0].mxu0
  %1921 = vmatprep.mubr.bf16.mxu0 0
  %1922 = vmatmul.mubr.bf16.gmra.mrb[0].mxu0 %v830
  %v1923 = vpop.f32.mrb[0].mxu0
  %v1924 = vadd.f32 %v1291, %v1923
  %v1925 = vpop.f32.mrb[0].mxu0
  %v1926 = vpop.f32.mrb[0].mxu0
  %v1927 = vadd.f32 %v1294, %v1926
  %v1928 = vpop.f32.mrb[0].mxu0
  %1929 = vmatprep.mubr.bf16.mxu0 0
  %1930 = vmatmul.mubr.bf16.gmra.mrb[0].mxu0 %v833
  %v1931 = vpop.f32.mrb[0].mxu0
  %v1932 = vadd.f32 %v1299, %v1931
  %v1933 = vpop.f32.mrb[0].mxu0
  %v1934 = vpop.f32.mrb[0].mxu0
  %v1935 = vadd.f32 %v1302, %v1934
  %v1936 = vpop.f32.mrb[0].mxu0
  %1937 = vmatprep.mubr.bf16.mxu0 0
  %1938 = vmatmul.mubr.bf16.gmra.mrb[0].mxu0 %v836
  %v1939 = vpop.f32.mrb[0].mxu0
  %v1940 = vadd.f32 %v1307, %v1939
  %v1941 = vpop.f32.mrb[0].mxu0
  %v1942 = vpop.f32.mrb[0].mxu0
  %v1943 = vadd.f32 %v1310, %v1942
  %v1944 = vpop.f32.mrb[0].mxu0
  %1945 = vmatprep.mubr.bf16.mxu0 0
  %1946 = vmatmul.mubr.bf16.gmra.mrb[0].mxu0 %v839
  %v1947 = vpop.f32.mrb[0].mxu0
  %v1948 = vadd.f32 %v1315, %v1947
  %v1949 = vpop.f32.mrb[0].mxu0
  %v1950 = vpop.f32.mrb[0].mxu0
  %v1951 = vadd.f32 %v1318, %v1950
  %v1952 = vpop.f32.mrb[0].mxu0
  %1953 = vmatprep.mubr.bf16.mxu0 0
  %1954 = vmatmul.mubr.bf16.gmra.mrb[0].mxu0 %v842
  %v1955 = vpop.f32.mrb[0].mxu0
  %v1956 = vadd.f32 %v1323, %v1955
  %v1957 = vpop.f32.mrb[0].mxu0
  %v1958 = vpop.f32.mrb[0].mxu0
  %v1959 = vadd.f32 %v1326, %v1958
  %v1960 = vpop.f32.mrb[0].mxu0
  %1961 = vmatprep.mubr.bf16.mxu0 0
  %1962 = vmatmul.mubr.bf16.gmra.mrb[0].mxu0 %v845
  %v1963 = vpop.f32.mrb[0].mxu0
  %v1964 = vadd.f32 %v1331, %v1963
  %v1965 = vpop.f32.mrb[0].mxu0
  %v1966 = vpop.f32.mrb[0].mxu0
  %v1967 = vadd.f32 %v1334, %v1966
  %v1968 = vpop.f32.mrb[0].mxu0
  %1969 = vmatprep.mubr.bf16.mxu0 0
  %1970 = vmatmul.mubr.bf16.gmra.mrb[0].mxu0 %v848
  %v1971 = vpop.f32.mrb[0].mxu0
  %v1972 = vadd.f32 %v1339, %v1971
  %v1973 = vpop.f32.mrb[0].mxu0
  %v1974 = vpop.f32.mrb[0].mxu0
  %v1975 = vadd.f32 %v1342, %v1974
  %v1976 = vpop.f32.mrb[0].mxu0
  %1977 = vmatprep.mubr.bf16.mxu0 0
  %1978 = vmatmul.mubr.bf16.gmra.mrb[0].mxu0 %v851
  %v1979 = vpop.f32.mrb[0].mxu0
  %v1980 = vadd.f32 %v1347, %v1979
  %v1981 = vpop.f32.mrb[0].mxu0
  %v1982 = vpop.f32.mrb[0].mxu0
  %v1983 = vadd.f32 %v1350, %v1982
  %v1984 = vpop.f32.mrb[0].mxu0
  %1985 = vmatprep.mubr.bf16.mxu0 0
  %1986 = vmatmul.mubr.bf16.gmra.mrb[0].mxu0 %v854
  %v1987 = vpop.f32.mrb[0].mxu0
  %v1988 = vadd.f32 %v1355, %v1987
  %v1989 = vpop.f32.mrb[0].mxu0
  %v1990 = vpop.f32.mrb[0].mxu0
  %v1991 = vadd.f32 %v1358, %v1990
  %v1992 = vpop.f32.mrb[0].mxu0
  %1993 = vmatprep.mubr.bf16.mxu0 0
  %1994 = vmatmul.mubr.bf16.gmra.mrb[0].mxu0 %v857
  %v1995 = vpop.f32.mrb[0].mxu0
  %v1996 = vadd.f32 %v1363, %v1995
  %v1997 = vpop.f32.mrb[0].mxu0
  %v1998 = vpop.f32.mrb[0].mxu0
  %v1999 = vadd.f32 %v1366, %v1998
  %v2000 = vpop.f32.mrb[0].mxu0
  %2001 = vmatprep.mubr.bf16.mxu0 0
  %2002 = vmatmul.mubr.bf16.gmra.mrb[0].mxu0 %v860
  %v2003 = vpop.f32.mrb[0].mxu0
  %v2004 = vadd.f32 %v1371, %v2003
  %v2005 = vpop.f32.mrb[0].mxu0
  %v2006 = vpop.f32.mrb[0].mxu0
  %v2007 = vadd.f32 %v1374, %v2006
  %v2008 = vpop.f32.mrb[0].mxu0
  %2009 = vmatprep.mubr.bf16.mxu0 0
  %2010 = vmatmul.mubr.bf16.gmra.mrb[0].mxu0 %v863
  %v2011 = vpop.f32.mrb[0].mxu0
  %v2012 = vadd.f32 %v1379, %v2011
  %v2013 = vpop.f32.mrb[0].mxu0
  %v2014 = vpop.f32.mrb[0].mxu0
  %v2015 = vadd.f32 %v1382, %v2014
  %v2016 = vpop.f32.mrb[0].mxu0
  %2017 = vmatprep.mubr.bf16.mxu0 0
  %2018 = vmatmul.mubr.bf16.gmra.mrb[0].mxu0 %v866
  %v2019 = vpop.f32.mrb[0].mxu0
  %v2020 = vadd.f32 %v1387, %v2019
  %v2021 = vpop.f32.mrb[0].mxu0
  %v2022 = vpop.f32.mrb[0].mxu0
  %v2023 = vadd.f32 %v1390, %v2022
  %v2024 = vpop.f32.mrb[0].mxu0
  %2025 = vmatprep.mubr.bf16.mxu0 0
  %2026 = vmatmul.mubr.bf16.gmra.mrb[0].mxu0 %v869
  %v2027 = vpop.f32.mrb[0].mxu0
  %v2028 = vadd.f32 %v1395, %v2027
  %v2029 = vpop.f32.mrb[0].mxu0
  %v2030 = vpop.f32.mrb[0].mxu0
  %v2031 = vadd.f32 %v1398, %v2030
  %v2032 = vpop.f32.mrb[0].mxu0
  %2033 = vmatprep.mubr.bf16.mxu0 0
  %2034 = vmatmul.mubr.bf16.gmra.mrb[0].mxu0 %v872
  %v2035 = vpop.f32.mrb[0].mxu0
  %v2036 = vadd.f32 %v1403, %v2035
  %v2037 = vpop.f32.mrb[0].mxu0
  %v2038 = vpop.f32.mrb[0].mxu0
  %v2039 = vadd.f32 %v1406, %v2038
  %v2040 = vpop.f32.mrb[0].mxu0
  %2041 = vmatprep.mubr.bf16.mxu0 0
  %2042 = vmatmul.mubr.bf16.gmra.mrb[0].mxu0 %v875
  %v2043 = vpop.f32.mrb[0].mxu0
  %v2044 = vadd.f32 %v1411, %v2043
  %v2045 = vpop.f32.mrb[0].mxu0
  %v2046 = vpop.f32.mrb[0].mxu0
  %v2047 = vadd.f32 %v1414, %v2046
  %v2048 = vpop.f32.mrb[0].mxu0
  %2049 = vmatprep.mubr.bf16.mxu0 0
  %2050 = vmatmul.mubr.bf16.gmra.mrb[0].mxu0 %v878
  %v2051 = vpop.f32.mrb[0].mxu0
  %v2052 = vadd.f32 %v1419, %v2051
  %v2053 = vpop.f32.mrb[0].mxu0
  %v2054 = vpop.f32.mrb[0].mxu0
  %v2055 = vadd.f32 %v1422, %v2054
  %v2056 = vpop.f32.mrb[0].mxu0
  %2057 = vmatprep.mubr.bf16.mxu0 0
  %2058 = vmatmul.mubr.bf16.gmra.mrb[0].mxu0 %v881
  %v2059 = vpop.f32.mrb[0].mxu0
  %v2060 = vadd.f32 %v1427, %v2059
  %v2061 = vpop.f32.mrb[0].mxu0
  %v2062 = vpop.f32.mrb[0].mxu0
  %v2063 = vadd.f32 %v1430, %v2062
  %v2064 = vpop.f32.mrb[0].mxu0
  %2065 = vmatprep.mubr.bf16.mxu0 0
  %2066 = vmatmul.mubr.bf16.gmra.mrb[0].mxu0 %v884
  %v2067 = vpop.f32.mrb[0].mxu0
  %v2068 = vadd.f32 %v1435, %v2067
  %v2069 = vpop.f32.mrb[0].mxu0
  %v2070 = vpop.f32.mrb[0].mxu0
  %v2071 = vadd.f32 %v1438, %v2070
  %v2072 = vpop.f32.mrb[0].mxu0
  %2073 = vmatprep.mubr.bf16.mxu0 0
  %2074 = vmatmul.mubr.bf16.gmra.mrb[0].mxu0 %v887
  %v2075 = vpop.f32.mrb[0].mxu0
  %v2076 = vadd.f32 %v1443, %v2075
  %v2077 = vpop.f32.mrb[0].mxu0
  %v2078 = vpop.f32.mrb[0].mxu0
  %v2079 = vadd.f32 %v1446, %v2078
  %v2080 = vpop.f32.mrb[0].mxu0
  %2081 = vmatprep.mubr.bf16.mxu0 0
  %2082 = vmatmul.mubr.bf16.gmra.mrb[0].mxu0 %v890
  %v2083 = vpop.f32.mrb[0].mxu0
  %v2084 = vadd.f32 %v1451, %v2083
  %v2085 = vpop.f32.mrb[0].mxu0
  %v2086 = vpop.f32.mrb[0].mxu0
  %v2087 = vadd.f32 %v1454, %v2086
  %v2088 = vpop.f32.mrb[0].mxu0
  %2089 = vmatprep.mubr.bf16.mxu0 0
  %2090 = vmatmul.mubr.bf16.gmra.mrb[0].mxu0 %v893
  %v2091 = vpop.f32.mrb[0].mxu0
  %v2092 = vadd.f32 %v1459, %v2091
  %v2093 = vpop.f32.mrb[0].mxu0
  %v2094 = vpop.f32.mrb[0].mxu0
  %v2095 = vadd.f32 %v1462, %v2094
  %v2096 = vpop.f32.mrb[0].mxu0
  %2097 = vmatprep.mubr.bf16.mxu0 0
  %2098 = vmatmul.mubr.bf16.gmra.mrb[0].mxu0 %v896
  %v2099 = vpop.f32.mrb[0].mxu0
  %v2100 = vadd.f32 %v1467, %v2099
  %v2101 = vpop.f32.mrb[0].mxu0
  %v2102 = vpop.f32.mrb[0].mxu0
  %v2103 = vadd.f32 %v1470, %v2102
  %v2104 = vpop.f32.mrb[0].mxu0
  %2105 = vmatprep.mubr.bf16.mxu0 0
  %2106 = vmatmul.mubr.bf16.gmra.mrb[0].mxu0 %v899
  %v2107 = vpop.f32.mrb[0].mxu0
  %v2108 = vadd.f32 %v1475, %v2107
  %v2109 = vpop.f32.mrb[0].mxu0
  %v2110 = vpop.f32.mrb[0].mxu0
  %v2111 = vadd.f32 %v1478, %v2110
  %v2112 = vpop.f32.mrb[0].mxu0
  %2113 = vmatprep.mubr.bf16.mxu0 0
  %2114 = vmatmul.mubr.bf16.gmra.mrb[0].mxu0 %v902
  %v2115 = vpop.f32.mrb[0].mxu0
  %v2116 = vadd.f32 %v1483, %v2115
  %v2117 = vpop.f32.mrb[0].mxu0
  %v2118 = vpop.f32.mrb[0].mxu0
  %v2119 = vadd.f32 %v1486, %v2118
  %v2120 = vpop.f32.mrb[0].mxu0
  %2121 = vmatprep.mubr.bf16.mxu0 0
  %2122 = vmatmul.mubr.bf16.gmra.mrb[0].mxu0 %v905
  %v2123 = vpop.f32.mrb[0].mxu0
  %v2124 = vadd.f32 %v1491, %v2123
  %v2125 = vpop.f32.mrb[0].mxu0
  %v2126 = vpop.f32.mrb[0].mxu0
  %v2127 = vadd.f32 %v1494, %v2126
  %v2128 = vpop.f32.mrb[0].mxu0
  %2129 = vmatprep.mubr.bf16.mxu0 0
  %2130 = vmatmul.mubr.bf16.gmra.mrb[0].mxu0 %v908
  %v2131 = vpop.f32.mrb[0].mxu0
  %v2132 = vadd.f32 %v1499, %v2131
  %v2133 = vpop.f32.mrb[0].mxu0
  %v2134 = vpop.f32.mrb[0].mxu0
  %v2135 = vadd.f32 %v1502, %v2134
  %v2136 = vpop.f32.mrb[0].mxu0
  %2137 = vmatprep.mubr.bf16.mxu0 0
  %2138 = vmatmul.mubr.bf16.gmra.mrb[0].mxu0 %v911
  %v2139 = vpop.f32.mrb[0].mxu0
  %v2140 = vadd.f32 %v1507, %v2139
  %v2141 = vpop.f32.mrb[0].mxu0
  %v2142 = vpop.f32.mrb[0].mxu0
  %v2143 = vadd.f32 %v1510, %v2142
  %v2144 = vpop.f32.mrb[0].mxu0
  %2145 = vmatprep.mubr.bf16.mxu0 0
  %2146 = vmatmul.mubr.bf16.gmra.mrb[0].mxu0 %v914
  %v2147 = vpop.f32.mrb[0].mxu0
  %v2148 = vadd.f32 %v1515, %v2147
  %v2149 = vpop.f32.mrb[0].mxu0
  %v2150 = vpop.f32.mrb[0].mxu0
  %v2151 = vadd.f32 %v1518, %v2150
  %v2152 = vpop.f32.mrb[0].mxu0
  %2153 = vmatprep.mubr.bf16.mxu0 0
  %2154 = vmatmul.mubr.bf16.gmra.mrb[0].mxu0 %v917
  %v2155 = vpop.f32.mrb[0].mxu0
  %v2156 = vadd.f32 %v1523, %v2155
  %v2157 = vpop.f32.mrb[0].mxu0
  %v2158 = vpop.f32.mrb[0].mxu0
  %v2159 = vadd.f32 %v1526, %v2158
  %v2160 = vpop.f32.mrb[0].mxu0
  %2161 = vmatprep.mubr.bf16.mxu0 0
  %2162 = vmatmul.mubr.bf16.gmra.mrb[0].mxu0 %v920
  %v2163 = vpop.f32.mrb[0].mxu0
  %v2164 = vadd.f32 %v1531, %v2163
  %v2165 = vpop.f32.mrb[0].mxu0
  %v2166 = vpop.f32.mrb[0].mxu0
  %v2167 = vadd.f32 %v1534, %v2166
  %v2168 = vpop.f32.mrb[0].mxu0
  %2169 = vdwg.mxu0
  %v2170 = vld [vmem:[%s2 + $0x48] sm:$0xf]
  %v2171 = vld [vmem:[%s2 + $0x4c] sm:$0xf]
  %v2172 = vld [vmem:[%s2 + $0x50] sm:$0xf]
  %v2173 = vld [vmem:[%s2 + $0x54] sm:$0xf]
  %v2174 = vld [vmem:[%s2 + $0x58] sm:$0xf]
  %v2175 = vld [vmem:[%s2 + $0x5c] sm:$0xf]
  %v2182 = vunpack.c.l.b16 %v2170
  %v2183 = vunpack.c.l.b16 %v2171
  %v2184 = vunpack.c.l.b16 %v2172
  %v2185 = vunpack.c.l.b16 %v2173
  %v2186 = vunpack.c.l.b16 %v2174
  %v2187 = vunpack.c.l.b16 %v2175
  %v2188 = vpack.c.b16 %v2183, %v2182
  %v2189 = vpack.c.b16 %v2185, %v2184
  %v2190 = vpack.c.b16 %v2187, %v2186
  %v2195 = vsel %vm711, %v659, 0
  %v2198 = vsel %vm711, %v660, 0
  %v2201 = vsel %vm711, %v661, 0
  %v2204 = vsel %vm711, %v662, 0
  %v2207 = vsel %vm711, %v663, 0
  %v2210 = vsel %vm711, %v664, 0
  %2212 = vmatprep.subr.bf16.mxu0 0
  %2213 = vmatpush1.bf16.msra.mxu0 %v2188
  %2214 = vmatprep.subr.bf16.mxu0 0
  %2215 = vmatpush1.bf16.msra.mxu0 %v2189
  %2216 = vmatprep.subr.bf16.mxu0 0
  %2217 = vmatpush1.bf16.msra.mxu0 %v2190
  %2218 = vmatprep.subr.bf16.mxu0 0
  %2219 = vmatpush1.bf16.msra.mxu0 0
  %2220 = vmatprep.subr.bf16.mxu0 0
  %2221 = vmatpush1.bf16.msra.mxu0 0
  %2222 = vmatprep.subr.bf16.mxu0 0
  %2223 = vmatpush1.bf16.msra.mxu0 0
  %2224 = vmatprep.subr.bf16.mxu0 0
  %2225 = vmatpush1.bf16.msra.mxu0 0
  %2226 = vmatprep.subr.bf16.mxu0 0
  %2227 = vmatpush1.bf16.msra.mxu0 0
  %2228 = vmatprep.subr.bf16.mxu0 0
  %2229 = vmatpush1.bf16.msra.mxu0 0
  %2230 = vmatprep.subr.bf16.mxu0 0
  %2231 = vmatpush1.bf16.msra.mxu0 0
  %2232 = vmatprep.subr.bf16.mxu0 0
  %2233 = vmatpush1.bf16.msra.mxu0 0
  %2234 = vmatprep.subr.bf16.mxu0 0
  %2235 = vmatpush1.bf16.msra.mxu0 0
  %2236 = vmatprep.subr.bf16.mxu0 0
  %2237 = vmatpush1.bf16.msra.mxu0 0
  %2238 = vmatprep.subr.bf16.mxu0 0
  %2239 = vmatpush1.bf16.msra.mxu0 0
  %2240 = vmatprep.subr.bf16.mxu0 0
  %2241 = vmatpush1.bf16.msra.mxu0 0
  %2242 = vmatprep.subr.bf16.mxu0 0
  %2243 = vmatpush1.bf16.msra.mxu0 0
  %2244 = vmatprep.mubr.bf16.mxu0 0
  %2245 = vmatmul.mubr.bf16.gmra.mrb[0].mxu0 %v731
  %v2246 = vpop.f32.mrb[0].mxu0
  %v2247 = vadd.f32 0.0, %v2246
  %v2248 = vpop.f32.mrb[0].mxu0
  %v2249 = vpop.f32.mrb[0].mxu0
  %v2250 = vadd.f32 0.0, %v2249
  %v2251 = vpop.f32.mrb[0].mxu0
  %2252 = vmatprep.mubr.bf16.mxu0 0
  %2253 = vmatmul.mubr.bf16.gmra.mrb[0].mxu0 %v734
  %v2254 = vpop.f32.mrb[0].mxu0
  %v2255 = vadd.f32 0.0, %v2254
  %v2256 = vpop.f32.mrb[0].mxu0
  %v2257 = vpop.f32.mrb[0].mxu0
  %v2258 = vadd.f32 0.0, %v2257
  %v2259 = vpop.f32.mrb[0].mxu0
  %2260 = vmatprep.mubr.bf16.mxu0 0
  %2261 = vmatmul.mubr.bf16.gmra.mrb[0].mxu0 %v737
  %v2262 = vpop.f32.mrb[0].mxu0
  %v2263 = vadd.f32 0.0, %v2262
  %v2264 = vpop.f32.mrb[0].mxu0
  %v2265 = vpop.f32.mrb[0].mxu0
  %v2266 = vadd.f32 0.0, %v2265
  %v2267 = vpop.f32.mrb[0].mxu0
  %2268 = vmatprep.mubr.bf16.mxu0 0
  %2269 = vmatmul.mubr.bf16.gmra.mrb[0].mxu0 %v740
  %v2270 = vpop.f32.mrb[0].mxu0
  %v2271 = vadd.f32 0.0, %v2270
  %v2272 = vpop.f32.mrb[0].mxu0
  %v2273 = vpop.f32.mrb[0].mxu0
  %v2274 = vadd.f32 0.0, %v2273
  %v2275 = vpop.f32.mrb[0].mxu0
  %2276 = vmatprep.mubr.bf16.mxu0 0
  %2277 = vmatmul.mubr.bf16.gmra.mrb[0].mxu0 %v743
  %v2278 = vpop.f32.mrb[0].mxu0
  %v2279 = vadd.f32 0.0, %v2278
  %v2280 = vpop.f32.mrb[0].mxu0
  %v2281 = vpop.f32.mrb[0].mxu0
  %v2282 = vadd.f32 0.0, %v2281
  %v2283 = vpop.f32.mrb[0].mxu0
  %2284 = vmatprep.mubr.bf16.mxu0 0
  %2285 = vmatmul.mubr.bf16.gmra.mrb[0].mxu0 %v746
  %v2286 = vpop.f32.mrb[0].mxu0
  %v2287 = vadd.f32 0.0, %v2286
  %v2288 = vpop.f32.mrb[0].mxu0
  %v2289 = vpop.f32.mrb[0].mxu0
  %v2290 = vadd.f32 0.0, %v2289
  %v2291 = vpop.f32.mrb[0].mxu0
  %2292 = vmatprep.mubr.bf16.mxu0 0
  %2293 = vmatmul.mubr.bf16.gmra.mrb[0].mxu0 %v749
  %v2294 = vpop.f32.mrb[0].mxu0
  %v2295 = vadd.f32 0.0, %v2294
  %v2296 = vpop.f32.mrb[0].mxu0
  %v2297 = vpop.f32.mrb[0].mxu0
  %v2298 = vadd.f32 0.0, %v2297
  %v2299 = vpop.f32.mrb[0].mxu0
  %2300 = vmatprep.mubr.bf16.mxu0 0
  %2301 = vmatmul.mubr.bf16.gmra.mrb[0].mxu0 %v752
  %v2302 = vpop.f32.mrb[0].mxu0
  %v2303 = vadd.f32 0.0, %v2302
  %v2304 = vpop.f32.mrb[0].mxu0
  %v2305 = vpop.f32.mrb[0].mxu0
  %v2306 = vadd.f32 0.0, %v2305
  %v2307 = vpop.f32.mrb[0].mxu0
  %2308 = vmatprep.mubr.bf16.mxu0 0
  %2309 = vmatmul.mubr.bf16.gmra.mrb[0].mxu0 %v755
  %v2310 = vpop.f32.mrb[0].mxu0
  %v2311 = vadd.f32 0.0, %v2310
  %v2312 = vpop.f32.mrb[0].mxu0
  %v2313 = vpop.f32.mrb[0].mxu0
  %v2314 = vadd.f32 0.0, %v2313
  %v2315 = vpop.f32.mrb[0].mxu0
  %2316 = vmatprep.mubr.bf16.mxu0 0
  %2317 = vmatmul.mubr.bf16.gmra.mrb[0].mxu0 %v758
  %v2318 = vpop.f32.mrb[0].mxu0
  %v2319 = vadd.f32 0.0, %v2318
  %v2320 = vpop.f32.mrb[0].mxu0
  %v2321 = vpop.f32.mrb[0].mxu0
  %v2322 = vadd.f32 0.0, %v2321
  %v2323 = vpop.f32.mrb[0].mxu0
  %2324 = vmatprep.mubr.bf16.mxu0 0
  %2325 = vmatmul.mubr.bf16.gmra.mrb[0].mxu0 %v761
  %v2326 = vpop.f32.mrb[0].mxu0
  %v2327 = vadd.f32 0.0, %v2326
  %v2328 = vpop.f32.mrb[0].mxu0
  %v2329 = vpop.f32.mrb[0].mxu0
  %v2330 = vadd.f32 0.0, %v2329
  %v2331 = vpop.f32.mrb[0].mxu0
  %2332 = vmatprep.mubr.bf16.mxu0 0
  %2333 = vmatmul.mubr.bf16.gmra.mrb[0].mxu0 %v764
  %v2334 = vpop.f32.mrb[0].mxu0
  %v2335 = vadd.f32 0.0, %v2334
  %v2336 = vpop.f32.mrb[0].mxu0
  %v2337 = vpop.f32.mrb[0].mxu0
  %v2338 = vadd.f32 0.0, %v2337
  %v2339 = vpop.f32.mrb[0].mxu0
  %2340 = vmatprep.mubr.bf16.mxu0 0
  %2341 = vmatmul.mubr.bf16.gmra.mrb[0].mxu0 %v767
  %v2342 = vpop.f32.mrb[0].mxu0
  %v2343 = vadd.f32 0.0, %v2342
  %v2344 = vpop.f32.mrb[0].mxu0
  %v2345 = vpop.f32.mrb[0].mxu0
  %v2346 = vadd.f32 0.0, %v2345
  %v2347 = vpop.f32.mrb[0].mxu0
  %2348 = vmatprep.mubr.bf16.mxu0 0
  %2349 = vmatmul.mubr.bf16.gmra.mrb[0].mxu0 %v770
  %v2350 = vpop.f32.mrb[0].mxu0
  %v2351 = vadd.f32 0.0, %v2350
  %v2352 = vpop.f32.mrb[0].mxu0
  %v2353 = vpop.f32.mrb[0].mxu0
  %v2354 = vadd.f32 0.0, %v2353
  %v2355 = vpop.f32.mrb[0].mxu0
  %2356 = vmatprep.mubr.bf16.mxu0 0
  %2357 = vmatmul.mubr.bf16.gmra.mrb[0].mxu0 %v773
  %v2358 = vpop.f32.mrb[0].mxu0
  %v2359 = vadd.f32 0.0, %v2358
  %v2360 = vpop.f32.mrb[0].mxu0
  %v2361 = vpop.f32.mrb[0].mxu0
  %v2362 = vadd.f32 0.0, %v2361
  %v2363 = vpop.f32.mrb[0].mxu0
  %2364 = vmatprep.mubr.bf16.mxu0 0
  %2365 = vmatmul.mubr.bf16.gmra.mrb[0].mxu0 %v776
  %v2366 = vpop.f32.mrb[0].mxu0
  %v2367 = vadd.f32 0.0, %v2366
  %v2368 = vpop.f32.mrb[0].mxu0
  %v2369 = vpop.f32.mrb[0].mxu0
  %v2370 = vadd.f32 0.0, %v2369
  %v2371 = vpop.f32.mrb[0].mxu0
  %2372 = vmatprep.mubr.bf16.mxu0 0
  %2373 = vmatmul.mubr.bf16.gmra.mrb[0].mxu0 %v779
  %v2374 = vpop.f32.mrb[0].mxu0
  %v2375 = vadd.f32 0.0, %v2374
  %v2376 = vpop.f32.mrb[0].mxu0
  %v2377 = vpop.f32.mrb[0].mxu0
  %v2378 = vadd.f32 0.0, %v2377
  %v2379 = vpop.f32.mrb[0].mxu0
  %2380 = vmatprep.mubr.bf16.mxu0 0
  %2381 = vmatmul.mubr.bf16.gmra.mrb[0].mxu0 %v782
  %v2382 = vpop.f32.mrb[0].mxu0
  %v2383 = vadd.f32 0.0, %v2382
  %v2384 = vpop.f32.mrb[0].mxu0
  %v2385 = vpop.f32.mrb[0].mxu0
  %v2386 = vadd.f32 0.0, %v2385
  %v2387 = vpop.f32.mrb[0].mxu0
  %2388 = vmatprep.mubr.bf16.mxu0 0
  %2389 = vmatmul.mubr.bf16.gmra.mrb[0].mxu0 %v785
  %v2390 = vpop.f32.mrb[0].mxu0
  %v2391 = vadd.f32 0.0, %v2390
  %v2392 = vpop.f32.mrb[0].mxu0
  %v2393 = vpop.f32.mrb[0].mxu0
  %v2394 = vadd.f32 0.0, %v2393
  %v2395 = vpop.f32.mrb[0].mxu0
  %2396 = vmatprep.mubr.bf16.mxu0 0
  %2397 = vmatmul.mubr.bf16.gmra.mrb[0].mxu0 %v788
  %v2398 = vpop.f32.mrb[0].mxu0
  %v2399 = vadd.f32 0.0, %v2398
  %v2400 = vpop.f32.mrb[0].mxu0
  %v2401 = vpop.f32.mrb[0].mxu0
  %v2402 = vadd.f32 0.0, %v2401
  %v2403 = vpop.f32.mrb[0].mxu0
  %2404 = vmatprep.mubr.bf16.mxu0 0
  %2405 = vmatmul.mubr.bf16.gmra.mrb[0].mxu0 %v791
  %v2406 = vpop.f32.mrb[0].mxu0
  %v2407 = vadd.f32 0.0, %v2406
  %v2408 = vpop.f32.mrb[0].mxu0
  %v2409 = vpop.f32.mrb[0].mxu0
  %v2410 = vadd.f32 0.0, %v2409
  %v2411 = vpop.f32.mrb[0].mxu0
  %2412 = vmatprep.mubr.bf16.mxu0 0
  %2413 = vmatmul.mubr.bf16.gmra.mrb[0].mxu0 %v794
  %v2414 = vpop.f32.mrb[0].mxu0
  %v2415 = vadd.f32 0.0, %v2414
  %v2416 = vpop.f32.mrb[0].mxu0
  %v2417 = vpop.f32.mrb[0].mxu0
  %v2418 = vadd.f32 0.0, %v2417
  %v2419 = vpop.f32.mrb[0].mxu0
  %2420 = vmatprep.mubr.bf16.mxu0 0
  %2421 = vmatmul.mubr.bf16.gmra.mrb[0].mxu0 %v797
  %v2422 = vpop.f32.mrb[0].mxu0
  %v2423 = vadd.f32 0.0, %v2422
  %v2424 = vpop.f32.mrb[0].mxu0
  %v2425 = vpop.f32.mrb[0].mxu0
  %v2426 = vadd.f32 0.0, %v2425
  %v2427 = vpop.f32.mrb[0].mxu0
  %2428 = vmatprep.mubr.bf16.mxu0 0
  %2429 = vmatmul.mubr.bf16.gmra.mrb[0].mxu0 %v800
  %v2430 = vpop.f32.mrb[0].mxu0
  %v2431 = vadd.f32 0.0, %v2430
  %v2432 = vpop.f32.mrb[0].mxu0
  %v2433 = vpop.f32.mrb[0].mxu0
  %v2434 = vadd.f32 0.0, %v2433
  %v2435 = vpop.f32.mrb[0].mxu0
  %2436 = vmatprep.mubr.bf16.mxu0 0
  %2437 = vmatmul.mubr.bf16.gmra.mrb[0].mxu0 %v803
  %v2438 = vpop.f32.mrb[0].mxu0
  %v2439 = vadd.f32 0.0, %v2438
  %v2440 = vpop.f32.mrb[0].mxu0
  %v2441 = vpop.f32.mrb[0].mxu0
  %v2442 = vadd.f32 0.0, %v2441
  %v2443 = vpop.f32.mrb[0].mxu0
  %2444 = vmatprep.mubr.bf16.mxu0 0
  %2445 = vmatmul.mubr.bf16.gmra.mrb[0].mxu0 %v806
  %v2446 = vpop.f32.mrb[0].mxu0
  %v2447 = vadd.f32 0.0, %v2446
  %v2448 = vpop.f32.mrb[0].mxu0
  %v2449 = vpop.f32.mrb[0].mxu0
  %v2450 = vadd.f32 0.0, %v2449
  %v2451 = vpop.f32.mrb[0].mxu0
  %2452 = vmatprep.mubr.bf16.mxu0 0
  %2453 = vmatmul.mubr.bf16.gmra.mrb[0].mxu0 %v809
  %v2454 = vpop.f32.mrb[0].mxu0
  %v2455 = vadd.f32 0.0, %v2454
  %v2456 = vpop.f32.mrb[0].mxu0
  %v2457 = vpop.f32.mrb[0].mxu0
  %v2458 = vadd.f32 0.0, %v2457
  %v2459 = vpop.f32.mrb[0].mxu0
  %2460 = vmatprep.mubr.bf16.mxu0 0
  %2461 = vmatmul.mubr.bf16.gmra.mrb[0].mxu0 %v812
  %v2462 = vpop.f32.mrb[0].mxu0
  %v2463 = vadd.f32 0.0, %v2462
  %v2464 = vpop.f32.mrb[0].mxu0
  %v2465 = vpop.f32.mrb[0].mxu0
  %v2466 = vadd.f32 0.0, %v2465
  %v2467 = vpop.f32.mrb[0].mxu0
  %2468 = vmatprep.mubr.bf16.mxu0 0
  %2469 = vmatmul.mubr.bf16.gmra.mrb[0].mxu0 %v815
  %v2470 = vpop.f32.mrb[0].mxu0
  %v2471 = vadd.f32 0.0, %v2470
  %v2472 = vpop.f32.mrb[0].mxu0
  %v2473 = vpop.f32.mrb[0].mxu0
  %v2474 = vadd.f32 0.0, %v2473
  %v2475 = vpop.f32.mrb[0].mxu0
  %2476 = vmatprep.mubr.bf16.mxu0 0
  %2477 = vmatmul.mubr.bf16.gmra.mrb[0].mxu0 %v818
  %v2478 = vpop.f32.mrb[0].mxu0
  %v2479 = vadd.f32 0.0, %v2478
  %v2480 = vpop.f32.mrb[0].mxu0
  %v2481 = vpop.f32.mrb[0].mxu0
  %v2482 = vadd.f32 0.0, %v2481
  %v2483 = vpop.f32.mrb[0].mxu0
  %2484 = vmatprep.mubr.bf16.mxu0 0
  %2485 = vmatmul.mubr.bf16.gmra.mrb[0].mxu0 %v821
  %v2486 = vpop.f32.mrb[0].mxu0
  %v2487 = vadd.f32 0.0, %v2486
  %v2488 = vpop.f32.mrb[0].mxu0
  %v2489 = vpop.f32.mrb[0].mxu0
  %v2490 = vadd.f32 0.0, %v2489
  %v2491 = vpop.f32.mrb[0].mxu0
  %2492 = vmatprep.mubr.bf16.mxu0 0
  %2493 = vmatmul.mubr.bf16.gmra.mrb[0].mxu0 %v824
  %v2494 = vpop.f32.mrb[0].mxu0
  %v2495 = vadd.f32 0.0, %v2494
  %v2496 = vpop.f32.mrb[0].mxu0
  %v2497 = vpop.f32.mrb[0].mxu0
  %v2498 = vadd.f32 0.0, %v2497
  %v2499 = vpop.f32.mrb[0].mxu0
  %2500 = vmatprep.mubr.bf16.mxu0 0
  %2501 = vmatmul.mubr.bf16.gmra.mrb[0].mxu0 %v827
  %v2502 = vpop.f32.mrb[0].mxu0
  %v2503 = vadd.f32 0.0, %v2502
  %v2504 = vpop.f32.mrb[0].mxu0
  %v2505 = vpop.f32.mrb[0].mxu0
  %v2506 = vadd.f32 0.0, %v2505
  %v2507 = vpop.f32.mrb[0].mxu0
  %2508 = vmatprep.mubr.bf16.mxu0 0
  %2509 = vmatmul.mubr.bf16.gmra.mrb[0].mxu0 %v830
  %v2510 = vpop.f32.mrb[0].mxu0
  %v2511 = vadd.f32 0.0, %v2510
  %v2512 = vpop.f32.mrb[0].mxu0
  %v2513 = vpop.f32.mrb[0].mxu0
  %v2514 = vadd.f32 0.0, %v2513
  %v2515 = vpop.f32.mrb[0].mxu0
  %2516 = vmatprep.mubr.bf16.mxu0 0
  %2517 = vmatmul.mubr.bf16.gmra.mrb[0].mxu0 %v833
  %v2518 = vpop.f32.mrb[0].mxu0
  %v2519 = vadd.f32 0.0, %v2518
  %v2520 = vpop.f32.mrb[0].mxu0
  %v2521 = vpop.f32.mrb[0].mxu0
  %v2522 = vadd.f32 0.0, %v2521
  %v2523 = vpop.f32.mrb[0].mxu0
  %2524 = vmatprep.mubr.bf16.mxu0 0
  %2525 = vmatmul.mubr.bf16.gmra.mrb[0].mxu0 %v836
  %v2526 = vpop.f32.mrb[0].mxu0
  %v2527 = vadd.f32 0.0, %v2526
  %v2528 = vpop.f32.mrb[0].mxu0
  %v2529 = vpop.f32.mrb[0].mxu0
  %v2530 = vadd.f32 0.0, %v2529
  %v2531 = vpop.f32.mrb[0].mxu0
  %2532 = vmatprep.mubr.bf16.mxu0 0
  %2533 = vmatmul.mubr.bf16.gmra.mrb[0].mxu0 %v839
  %v2534 = vpop.f32.mrb[0].mxu0
  %v2535 = vadd.f32 0.0, %v2534
  %v2536 = vpop.f32.mrb[0].mxu0
  %v2537 = vpop.f32.mrb[0].mxu0
  %v2538 = vadd.f32 0.0, %v2537
  %v2539 = vpop.f32.mrb[0].mxu0
  %2540 = vmatprep.mubr.bf16.mxu0 0
  %2541 = vmatmul.mubr.bf16.gmra.mrb[0].mxu0 %v842
  %v2542 = vpop.f32.mrb[0].mxu0
  %v2543 = vadd.f32 0.0, %v2542
  %v2544 = vpop.f32.mrb[0].mxu0
  %v2545 = vpop.f32.mrb[0].mxu0
  %v2546 = vadd.f32 0.0, %v2545
  %v2547 = vpop.f32.mrb[0].mxu0
  %2548 = vmatprep.mubr.bf16.mxu0 0
  %2549 = vmatmul.mubr.bf16.gmra.mrb[0].mxu0 %v845
  %v2550 = vpop.f32.mrb[0].mxu0
  %v2551 = vadd.f32 0.0, %v2550
  %v2552 = vpop.f32.mrb[0].mxu0
  %v2553 = vpop.f32.mrb[0].mxu0
  %v2554 = vadd.f32 0.0, %v2553
  %v2555 = vpop.f32.mrb[0].mxu0
  %2556 = vmatprep.mubr.bf16.mxu0 0
  %2557 = vmatmul.mubr.bf16.gmra.mrb[0].mxu0 %v848
  %v2558 = vpop.f32.mrb[0].mxu0
  %v2559 = vadd.f32 0.0, %v2558
  %v2560 = vpop.f32.mrb[0].mxu0
  %v2561 = vpop.f32.mrb[0].mxu0
  %v2562 = vadd.f32 0.0, %v2561
  %v2563 = vpop.f32.mrb[0].mxu0
  %2564 = vmatprep.mubr.bf16.mxu0 0
  %2565 = vmatmul.mubr.bf16.gmra.mrb[0].mxu0 %v851
  %v2566 = vpop.f32.mrb[0].mxu0
  %v2567 = vadd.f32 0.0, %v2566
  %v2568 = vpop.f32.mrb[0].mxu0
  %v2569 = vpop.f32.mrb[0].mxu0
  %v2570 = vadd.f32 0.0, %v2569
  %v2571 = vpop.f32.mrb[0].mxu0
  %2572 = vmatprep.mubr.bf16.mxu0 0
  %2573 = vmatmul.mubr.bf16.gmra.mrb[0].mxu0 %v854
  %v2574 = vpop.f32.mrb[0].mxu0
  %v2575 = vadd.f32 0.0, %v2574
  %v2576 = vpop.f32.mrb[0].mxu0
  %v2577 = vpop.f32.mrb[0].mxu0
  %v2578 = vadd.f32 0.0, %v2577
  %v2579 = vpop.f32.mrb[0].mxu0
  %2580 = vmatprep.mubr.bf16.mxu0 0
  %2581 = vmatmul.mubr.bf16.gmra.mrb[0].mxu0 %v857
  %v2582 = vpop.f32.mrb[0].mxu0
  %v2583 = vadd.f32 0.0, %v2582
  %v2584 = vpop.f32.mrb[0].mxu0
  %v2585 = vpop.f32.mrb[0].mxu0
  %v2586 = vadd.f32 0.0, %v2585
  %v2587 = vpop.f32.mrb[0].mxu0
  %2588 = vmatprep.mubr.bf16.mxu0 0
  %2589 = vmatmul.mubr.bf16.gmra.mrb[0].mxu0 %v860
  %v2590 = vpop.f32.mrb[0].mxu0
  %v2591 = vadd.f32 0.0, %v2590
  %v2592 = vpop.f32.mrb[0].mxu0
  %v2593 = vpop.f32.mrb[0].mxu0
  %v2594 = vadd.f32 0.0, %v2593
  %v2595 = vpop.f32.mrb[0].mxu0
  %2596 = vmatprep.mubr.bf16.mxu0 0
  %2597 = vmatmul.mubr.bf16.gmra.mrb[0].mxu0 %v863
  %v2598 = vpop.f32.mrb[0].mxu0
  %v2599 = vadd.f32 0.0, %v2598
  %v2600 = vpop.f32.mrb[0].mxu0
  %v2601 = vpop.f32.mrb[0].mxu0
  %v2602 = vadd.f32 0.0, %v2601
  %v2603 = vpop.f32.mrb[0].mxu0
  %2604 = vmatprep.mubr.bf16.mxu0 0
  %2605 = vmatmul.mubr.bf16.gmra.mrb[0].mxu0 %v866
  %v2606 = vpop.f32.mrb[0].mxu0
  %v2607 = vadd.f32 0.0, %v2606
  %v2608 = vpop.f32.mrb[0].mxu0
  %v2609 = vpop.f32.mrb[0].mxu0
  %v2610 = vadd.f32 0.0, %v2609
  %v2611 = vpop.f32.mrb[0].mxu0
  %2612 = vmatprep.mubr.bf16.mxu0 0
  %2613 = vmatmul.mubr.bf16.gmra.mrb[0].mxu0 %v869
  %v2614 = vpop.f32.mrb[0].mxu0
  %v2615 = vadd.f32 0.0, %v2614
  %v2616 = vpop.f32.mrb[0].mxu0
  %v2617 = vpop.f32.mrb[0].mxu0
  %v2618 = vadd.f32 0.0, %v2617
  %v2619 = vpop.f32.mrb[0].mxu0
  %2620 = vmatprep.mubr.bf16.mxu0 0
  %2621 = vmatmul.mubr.bf16.gmra.mrb[0].mxu0 %v872
  %v2622 = vpop.f32.mrb[0].mxu0
  %v2623 = vadd.f32 0.0, %v2622
  %v2624 = vpop.f32.mrb[0].mxu0
  %v2625 = vpop.f32.mrb[0].mxu0
  %v2626 = vadd.f32 0.0, %v2625
  %v2627 = vpop.f32.mrb[0].mxu0
  %2628 = vmatprep.mubr.bf16.mxu0 0
  %2629 = vmatmul.mubr.bf16.gmra.mrb[0].mxu0 %v875
  %v2630 = vpop.f32.mrb[0].mxu0
  %v2631 = vadd.f32 0.0, %v2630
  %v2632 = vpop.f32.mrb[0].mxu0
  %v2633 = vpop.f32.mrb[0].mxu0
  %v2634 = vadd.f32 0.0, %v2633
  %v2635 = vpop.f32.mrb[0].mxu0
  %2636 = vmatprep.mubr.bf16.mxu0 0
  %2637 = vmatmul.mubr.bf16.gmra.mrb[0].mxu0 %v878
  %v2638 = vpop.f32.mrb[0].mxu0
  %v2639 = vadd.f32 0.0, %v2638
  %v2640 = vpop.f32.mrb[0].mxu0
  %v2641 = vpop.f32.mrb[0].mxu0
  %v2642 = vadd.f32 0.0, %v2641
  %v2643 = vpop.f32.mrb[0].mxu0
  %2644 = vmatprep.mubr.bf16.mxu0 0
  %2645 = vmatmul.mubr.bf16.gmra.mrb[0].mxu0 %v881
  %v2646 = vpop.f32.mrb[0].mxu0
  %v2647 = vadd.f32 0.0, %v2646
  %v2648 = vpop.f32.mrb[0].mxu0
  %v2649 = vpop.f32.mrb[0].mxu0
  %v2650 = vadd.f32 0.0, %v2649
  %v2651 = vpop.f32.mrb[0].mxu0
  %2652 = vmatprep.mubr.bf16.mxu0 0
  %2653 = vmatmul.mubr.bf16.gmra.mrb[0].mxu0 %v884
  %v2654 = vpop.f32.mrb[0].mxu0
  %v2655 = vadd.f32 0.0, %v2654
  %v2656 = vpop.f32.mrb[0].mxu0
  %v2657 = vpop.f32.mrb[0].mxu0
  %v2658 = vadd.f32 0.0, %v2657
  %v2659 = vpop.f32.mrb[0].mxu0
  %2660 = vmatprep.mubr.bf16.mxu0 0
  %2661 = vmatmul.mubr.bf16.gmra.mrb[0].mxu0 %v887
  %v2662 = vpop.f32.mrb[0].mxu0
  %v2663 = vadd.f32 0.0, %v2662
  %v2664 = vpop.f32.mrb[0].mxu0
  %v2665 = vpop.f32.mrb[0].mxu0
  %v2666 = vadd.f32 0.0, %v2665
  %v2667 = vpop.f32.mrb[0].mxu0
  %2668 = vmatprep.mubr.bf16.mxu0 0
  %2669 = vmatmul.mubr.bf16.gmra.mrb[0].mxu0 %v890
  %v2670 = vpop.f32.mrb[0].mxu0
  %v2671 = vadd.f32 0.0, %v2670
  %v2672 = vpop.f32.mrb[0].mxu0
  %v2673 = vpop.f32.mrb[0].mxu0
  %v2674 = vadd.f32 0.0, %v2673
  %v2675 = vpop.f32.mrb[0].mxu0
  %2676 = vmatprep.mubr.bf16.mxu0 0
  %2677 = vmatmul.mubr.bf16.gmra.mrb[0].mxu0 %v893
  %v2678 = vpop.f32.mrb[0].mxu0
  %v2679 = vadd.f32 0.0, %v2678
  %v2680 = vpop.f32.mrb[0].mxu0
  %v2681 = vpop.f32.mrb[0].mxu0
  %v2682 = vadd.f32 0.0, %v2681
  %v2683 = vpop.f32.mrb[0].mxu0
  %2684 = vmatprep.mubr.bf16.mxu0 0
  %2685 = vmatmul.mubr.bf16.gmra.mrb[0].mxu0 %v896
  %v2686 = vpop.f32.mrb[0].mxu0
  %v2687 = vadd.f32 0.0, %v2686
  %v2688 = vpop.f32.mrb[0].mxu0
  %v2689 = vpop.f32.mrb[0].mxu0
  %v2690 = vadd.f32 0.0, %v2689
  %v2691 = vpop.f32.mrb[0].mxu0
  %2692 = vmatprep.mubr.bf16.mxu0 0
  %2693 = vmatmul.mubr.bf16.gmra.mrb[0].mxu0 %v899
  %v2694 = vpop.f32.mrb[0].mxu0
  %v2695 = vadd.f32 0.0, %v2694
  %v2696 = vpop.f32.mrb[0].mxu0
  %v2697 = vpop.f32.mrb[0].mxu0
  %v2698 = vadd.f32 0.0, %v2697
  %v2699 = vpop.f32.mrb[0].mxu0
  %2700 = vmatprep.mubr.bf16.mxu0 0
  %2701 = vmatmul.mubr.bf16.gmra.mrb[0].mxu0 %v902
  %v2702 = vpop.f32.mrb[0].mxu0
  %v2703 = vadd.f32 0.0, %v2702
  %v2704 = vpop.f32.mrb[0].mxu0
  %v2705 = vpop.f32.mrb[0].mxu0
  %v2706 = vadd.f32 0.0, %v2705
  %v2707 = vpop.f32.mrb[0].mxu0
  %2708 = vmatprep.mubr.bf16.mxu0 0
  %2709 = vmatmul.mubr.bf16.gmra.mrb[0].mxu0 %v905
  %v2710 = vpop.f32.mrb[0].mxu0
  %v2711 = vadd.f32 0.0, %v2710
  %v2712 = vpop.f32.mrb[0].mxu0
  %v2713 = vpop.f32.mrb[0].mxu0
  %v2714 = vadd.f32 0.0, %v2713
  %v2715 = vpop.f32.mrb[0].mxu0
  %2716 = vmatprep.mubr.bf16.mxu0 0
  %2717 = vmatmul.mubr.bf16.gmra.mrb[0].mxu0 %v908
  %v2718 = vpop.f32.mrb[0].mxu0
  %v2719 = vadd.f32 0.0, %v2718
  %v2720 = vpop.f32.mrb[0].mxu0
  %v2721 = vpop.f32.mrb[0].mxu0
  %v2722 = vadd.f32 0.0, %v2721
  %v2723 = vpop.f32.mrb[0].mxu0
  %2724 = vmatprep.mubr.bf16.mxu0 0
  %2725 = vmatmul.mubr.bf16.gmra.mrb[0].mxu0 %v911
  %v2726 = vpop.f32.mrb[0].mxu0
  %v2727 = vadd.f32 0.0, %v2726
  %v2728 = vpop.f32.mrb[0].mxu0
  %v2729 = vpop.f32.mrb[0].mxu0
  %v2730 = vadd.f32 0.0, %v2729
  %v2731 = vpop.f32.mrb[0].mxu0
  %2732 = vmatprep.mubr.bf16.mxu0 0
  %2733 = vmatmul.mubr.bf16.gmra.mrb[0].mxu0 %v914
  %v2734 = vpop.f32.mrb[0].mxu0
  %v2735 = vadd.f32 0.0, %v2734
  %v2736 = vpop.f32.mrb[0].mxu0
  %v2737 = vpop.f32.mrb[0].mxu0
  %v2738 = vadd.f32 0.0, %v2737
  %v2739 = vpop.f32.mrb[0].mxu0
  %2740 = vmatprep.mubr.bf16.mxu0 0
  %2741 = vmatmul.mubr.bf16.gmra.mrb[0].mxu0 %v917
  %v2742 = vpop.f32.mrb[0].mxu0
  %v2743 = vadd.f32 0.0, %v2742
  %v2744 = vpop.f32.mrb[0].mxu0
  %v2745 = vpop.f32.mrb[0].mxu0
  %v2746 = vadd.f32 0.0, %v2745
  %v2747 = vpop.f32.mrb[0].mxu0
  %2748 = vmatprep.mubr.bf16.mxu0 0
  %2749 = vmatmul.mubr.bf16.gmra.mrb[0].mxu0 %v920
  %v2750 = vpop.f32.mrb[0].mxu0
  %v2751 = vadd.f32 0.0, %v2750
  %v2752 = vpop.f32.mrb[0].mxu0
  %v2753 = vpop.f32.mrb[0].mxu0
  %v2754 = vadd.f32 0.0, %v2753
  %v2755 = vpop.f32.mrb[0].mxu0
  %2756 = vmatprep.mubr.bf16.mxu0 0
  %2757 = vmatmul.mubr.bf16.gmra.mrb[0].mxu0 %v923
  %v2758 = vpop.f32.mrb[0].mxu0
  %v2759 = vadd.f32 0.0, %v2758
  %v2760 = vpop.f32.mrb[0].mxu0
  %v2761 = vpop.f32.mrb[0].mxu0
  %v2762 = vadd.f32 0.0, %v2761
  %v2763 = vpop.f32.mrb[0].mxu0
  %2764 = vmatprep.mubr.bf16.mxu0 0
  %2765 = vmatmul.mubr.bf16.gmra.mrb[0].mxu0 %v926
  %v2766 = vpop.f32.mrb[0].mxu0
  %v2767 = vadd.f32 0.0, %v2766
  %v2768 = vpop.f32.mrb[0].mxu0
  %v2769 = vpop.f32.mrb[0].mxu0
  %v2770 = vadd.f32 0.0, %v2769
  %v2771 = vpop.f32.mrb[0].mxu0
  %2772 = vmatprep.mubr.bf16.mxu0 0
  %2773 = vmatmul.mubr.bf16.gmra.mrb[0].mxu0 %v2195
  %v2774 = vpop.f32.mrb[0].mxu0
  %v2775 = vadd.f32 0.0, %v2774
  %v2776 = vpop.f32.mrb[0].mxu0
  %v2777 = vpop.f32.mrb[0].mxu0
  %v2778 = vadd.f32 0.0, %v2777
  %v2779 = vpop.f32.mrb[0].mxu0
  %2780 = vmatprep.mubr.bf16.mxu0 0
  %2781 = vmatmul.mubr.bf16.gmra.mrb[0].mxu0 %v2198
  %v2782 = vpop.f32.mrb[0].mxu0
  %v2783 = vadd.f32 0.0, %v2782
  %v2784 = vpop.f32.mrb[0].mxu0
  %v2785 = vpop.f32.mrb[0].mxu0
  %v2786 = vadd.f32 0.0, %v2785
  %v2787 = vpop.f32.mrb[0].mxu0
  %2788 = vmatprep.mubr.bf16.mxu0 0
  %2789 = vmatmul.mubr.bf16.gmra.mrb[0].mxu0 %v2201
  %v2790 = vpop.f32.mrb[0].mxu0
  %v2791 = vadd.f32 0.0, %v2790
  %v2792 = vpop.f32.mrb[0].mxu0
  %v2793 = vpop.f32.mrb[0].mxu0
  %v2794 = vadd.f32 0.0, %v2793
  %v2795 = vpop.f32.mrb[0].mxu0
  %2796 = vmatprep.mubr.bf16.mxu0 0
  %2797 = vmatmul.mubr.bf16.gmra.mrb[0].mxu0 %v2204
  %v2798 = vpop.f32.mrb[0].mxu0
  %v2799 = vadd.f32 0.0, %v2798
  %v2800 = vpop.f32.mrb[0].mxu0
  %v2801 = vpop.f32.mrb[0].mxu0
  %v2802 = vadd.f32 0.0, %v2801
  %v2803 = vpop.f32.mrb[0].mxu0
  %2804 = vmatprep.mubr.bf16.mxu0 0
  %2805 = vmatmul.mubr.bf16.gmra.mrb[0].mxu0 %v2207
  %v2806 = vpop.f32.mrb[0].mxu0
  %v2807 = vadd.f32 0.0, %v2806
  %v2808 = vpop.f32.mrb[0].mxu0
  %v2809 = vpop.f32.mrb[0].mxu0
  %v2810 = vadd.f32 0.0, %v2809
  %v2811 = vpop.f32.mrb[0].mxu0
  %2812 = vmatprep.mubr.bf16.mxu0 0
  %2813 = vmatmul.mubr.bf16.gmra.mrb[0].mxu0 %v2210
  %v2814 = vpop.f32.mrb[0].mxu0
  %v2815 = vadd.f32 0.0, %v2814
  %v2816 = vpop.f32.mrb[0].mxu0
  %v2817 = vpop.f32.mrb[0].mxu0
  %v2818 = vadd.f32 0.0, %v2817
  %v2819 = vpop.f32.mrb[0].mxu0
  %2820 = vdwg.mxu0
  %v2827 = vunpack.c.l.b16 %v681
  %v2828 = vunpack.c.l.b16 %v682
  %v2829 = vunpack.c.l.b16 %v683
  %v2830 = vunpack.c.l.b16 %v684
  %v2831 = vunpack.c.l.b16 %v685
  %v2832 = vunpack.c.l.b16 %v686
  %v2833 = vpack.c.b16 %v2828, %v2827
  %v2834 = vpack.c.b16 %v2830, %v2829
  %v2835 = vpack.c.b16 %v2832, %v2831
  %2839 = vmatprep.subr.bf16.mxu0 0
  %2840 = vmatpush1.bf16.msra.mxu0 %v2833
  %2841 = vmatprep.subr.bf16.mxu0 0
  %2842 = vmatpush1.bf16.msra.mxu0 %v2834
  %2843 = vmatprep.subr.bf16.mxu0 0
  %2844 = vmatpush1.bf16.msra.mxu0 %v2835
  %2845 = vmatprep.subr.bf16.mxu0 0
  %2846 = vmatpush1.bf16.msra.mxu0 0
  %2847 = vmatprep.subr.bf16.mxu0 0
  %2848 = vmatpush1.bf16.msra.mxu0 0
  %2849 = vmatprep.subr.bf16.mxu0 0
  %2850 = vmatpush1.bf16.msra.mxu0 0
  %2851 = vmatprep.subr.bf16.mxu0 0
  %2852 = vmatpush1.bf16.msra.mxu0 0
  %2853 = vmatprep.subr.bf16.mxu0 0
  %2854 = vmatpush1.bf16.msra.mxu0 0
  %2855 = vmatprep.subr.bf16.mxu0 0
  %2856 = vmatpush1.bf16.msra.mxu0 0
  %2857 = vmatprep.subr.bf16.mxu0 0
  %2858 = vmatpush1.bf16.msra.mxu0 0
  %2859 = vmatprep.subr.bf16.mxu0 0
  %2860 = vmatpush1.bf16.msra.mxu0 0
  %2861 = vmatprep.subr.bf16.mxu0 0
  %2862 = vmatpush1.bf16.msra.mxu0 0
  %2863 = vmatprep.subr.bf16.mxu0 0
  %2864 = vmatpush1.bf16.msra.mxu0 0
  %2865 = vmatprep.subr.bf16.mxu0 0
  %2866 = vmatpush1.bf16.msra.mxu0 0
  %2867 = vmatprep.subr.bf16.mxu0 0
  %2868 = vmatpush1.bf16.msra.mxu0 0
  %2869 = vmatprep.subr.bf16.mxu0 0
  %2870 = vmatpush1.bf16.msra.mxu0 0
  %2871 = vmatprep.mubr.bf16.mxu0 0
  %2872 = vmatmul.mubr.bf16.gmra.mrb[0].mxu0 %v1559
  %v2873 = vpop.f32.mrb[0].mxu0
  %v2874 = vadd.f32 %v2247, %v2873
  %v2875 = vpop.f32.mrb[0].mxu0
  %v2876 = vpop.f32.mrb[0].mxu0
  %v2877 = vadd.f32 %v2250, %v2876
  %v2878 = vpop.f32.mrb[0].mxu0
  %2879 = vmatprep.mubr.bf16.mxu0 0
  %2880 = vmatmul.mubr.bf16.gmra.mrb[0].mxu0 %v713
  %v2881 = vpop.f32.mrb[0].mxu0
  %v2882 = vadd.f32 %v2255, %v2881
  %v2883 = vpop.f32.mrb[0].mxu0
  %v2884 = vpop.f32.mrb[0].mxu0
  %v2885 = vadd.f32 %v2258, %v2884
  %v2886 = vpop.f32.mrb[0].mxu0
  %2887 = vmatprep.mubr.bf16.mxu0 0
  %2888 = vmatmul.mubr.bf16.gmra.mrb[0].mxu0 %v716
  %v2889 = vpop.f32.mrb[0].mxu0
  %v2890 = vadd.f32 %v2263, %v2889
  %v2891 = vpop.f32.mrb[0].mxu0
  %v2892 = vpop.f32.mrb[0].mxu0
  %v2893 = vadd.f32 %v2266, %v2892
  %v2894 = vpop.f32.mrb[0].mxu0
  %2895 = vmatprep.mubr.bf16.mxu0 0
  %2896 = vmatmul.mubr.bf16.gmra.mrb[0].mxu0 %v719
  %v2897 = vpop.f32.mrb[0].mxu0
  %v2898 = vadd.f32 %v2271, %v2897
  %v2899 = vpop.f32.mrb[0].mxu0
  %v2900 = vpop.f32.mrb[0].mxu0
  %v2901 = vadd.f32 %v2274, %v2900
  %v2902 = vpop.f32.mrb[0].mxu0
  %2903 = vmatprep.mubr.bf16.mxu0 0
  %2904 = vmatmul.mubr.bf16.gmra.mrb[0].mxu0 %v722
  %v2905 = vpop.f32.mrb[0].mxu0
  %v2906 = vadd.f32 %v2279, %v2905
  %v2907 = vpop.f32.mrb[0].mxu0
  %v2908 = vpop.f32.mrb[0].mxu0
  %v2909 = vadd.f32 %v2282, %v2908
  %v2910 = vpop.f32.mrb[0].mxu0
  %2911 = vmatprep.mubr.bf16.mxu0 0
  %2912 = vmatmul.mubr.bf16.gmra.mrb[0].mxu0 %v725
  %v2913 = vpop.f32.mrb[0].mxu0
  %v2914 = vadd.f32 %v2287, %v2913
  %v2915 = vpop.f32.mrb[0].mxu0
  %v2916 = vpop.f32.mrb[0].mxu0
  %v2917 = vadd.f32 %v2290, %v2916
  %v2918 = vpop.f32.mrb[0].mxu0
  %2919 = vmatprep.mubr.bf16.mxu0 0
  %2920 = vmatmul.mubr.bf16.gmra.mrb[0].mxu0 %v728
  %v2921 = vpop.f32.mrb[0].mxu0
  %v2922 = vadd.f32 %v2295, %v2921
  %v2923 = vpop.f32.mrb[0].mxu0
  %v2924 = vpop.f32.mrb[0].mxu0
  %v2925 = vadd.f32 %v2298, %v2924
  %v2926 = vpop.f32.mrb[0].mxu0
  %2927 = vmatprep.mubr.bf16.mxu0 0
  %2928 = vmatmul.mubr.bf16.gmra.mrb[0].mxu0 %v731
  %v2929 = vpop.f32.mrb[0].mxu0
  %v2930 = vadd.f32 %v2303, %v2929
  %v2931 = vpop.f32.mrb[0].mxu0
  %v2932 = vpop.f32.mrb[0].mxu0
  %v2933 = vadd.f32 %v2306, %v2932
  %v2934 = vpop.f32.mrb[0].mxu0
  %2935 = vmatprep.mubr.bf16.mxu0 0
  %2936 = vmatmul.mubr.bf16.gmra.mrb[0].mxu0 %v734
  %v2937 = vpop.f32.mrb[0].mxu0
  %v2938 = vadd.f32 %v2311, %v2937
  %v2939 = vpop.f32.mrb[0].mxu0
  %v2940 = vpop.f32.mrb[0].mxu0
  %v2941 = vadd.f32 %v2314, %v2940
  %v2942 = vpop.f32.mrb[0].mxu0
  %2943 = vmatprep.mubr.bf16.mxu0 0
  %2944 = vmatmul.mubr.bf16.gmra.mrb[0].mxu0 %v737
  %v2945 = vpop.f32.mrb[0].mxu0
  %v2946 = vadd.f32 %v2319, %v2945
  %v2947 = vpop.f32.mrb[0].mxu0
  %v2948 = vpop.f32.mrb[0].mxu0
  %v2949 = vadd.f32 %v2322, %v2948
  %v2950 = vpop.f32.mrb[0].mxu0
  %2951 = vmatprep.mubr.bf16.mxu0 0
  %2952 = vmatmul.mubr.bf16.gmra.mrb[0].mxu0 %v740
  %v2953 = vpop.f32.mrb[0].mxu0
  %v2954 = vadd.f32 %v2327, %v2953
  %v2955 = vpop.f32.mrb[0].mxu0
  %v2956 = vpop.f32.mrb[0].mxu0
  %v2957 = vadd.f32 %v2330, %v2956
  %v2958 = vpop.f32.mrb[0].mxu0
  %2959 = vmatprep.mubr.bf16.mxu0 0
  %2960 = vmatmul.mubr.bf16.gmra.mrb[0].mxu0 %v743
  %v2961 = vpop.f32.mrb[0].mxu0
  %v2962 = vadd.f32 %v2335, %v2961
  %v2963 = vpop.f32.mrb[0].mxu0
  %v2964 = vpop.f32.mrb[0].mxu0
  %v2965 = vadd.f32 %v2338, %v2964
  %v2966 = vpop.f32.mrb[0].mxu0
  %2967 = vmatprep.mubr.bf16.mxu0 0
  %2968 = vmatmul.mubr.bf16.gmra.mrb[0].mxu0 %v746
  %v2969 = vpop.f32.mrb[0].mxu0
  %v2970 = vadd.f32 %v2343, %v2969
  %v2971 = vpop.f32.mrb[0].mxu0
  %v2972 = vpop.f32.mrb[0].mxu0
  %v2973 = vadd.f32 %v2346, %v2972
  %v2974 = vpop.f32.mrb[0].mxu0
  %2975 = vmatprep.mubr.bf16.mxu0 0
  %2976 = vmatmul.mubr.bf16.gmra.mrb[0].mxu0 %v749
  %v2977 = vpop.f32.mrb[0].mxu0
  %v2978 = vadd.f32 %v2351, %v2977
  %v2979 = vpop.f32.mrb[0].mxu0
  %v2980 = vpop.f32.mrb[0].mxu0
  %v2981 = vadd.f32 %v2354, %v2980
  %v2982 = vpop.f32.mrb[0].mxu0
  %2983 = vmatprep.mubr.bf16.mxu0 0
  %2984 = vmatmul.mubr.bf16.gmra.mrb[0].mxu0 %v752
  %v2985 = vpop.f32.mrb[0].mxu0
  %v2986 = vadd.f32 %v2359, %v2985
  %v2987 = vpop.f32.mrb[0].mxu0
  %v2988 = vpop.f32.mrb[0].mxu0
  %v2989 = vadd.f32 %v2362, %v2988
  %v2990 = vpop.f32.mrb[0].mxu0
  %2991 = vmatprep.mubr.bf16.mxu0 0
  %2992 = vmatmul.mubr.bf16.gmra.mrb[0].mxu0 %v755
  %v2993 = vpop.f32.mrb[0].mxu0
  %v2994 = vadd.f32 %v2367, %v2993
  %v2995 = vpop.f32.mrb[0].mxu0
  %v2996 = vpop.f32.mrb[0].mxu0
  %v2997 = vadd.f32 %v2370, %v2996
  %v2998 = vpop.f32.mrb[0].mxu0
  %2999 = vmatprep.mubr.bf16.mxu0 0
  %3000 = vmatmul.mubr.bf16.gmra.mrb[0].mxu0 %v758
  %v3001 = vpop.f32.mrb[0].mxu0
  %v3002 = vadd.f32 %v2375, %v3001
  %v3003 = vpop.f32.mrb[0].mxu0
  %v3004 = vpop.f32.mrb[0].mxu0
  %v3005 = vadd.f32 %v2378, %v3004
  %v3006 = vpop.f32.mrb[0].mxu0
  %3007 = vmatprep.mubr.bf16.mxu0 0
  %3008 = vmatmul.mubr.bf16.gmra.mrb[0].mxu0 %v761
  %v3009 = vpop.f32.mrb[0].mxu0
  %v3010 = vadd.f32 %v2383, %v3009
  %v3011 = vpop.f32.mrb[0].mxu0
  %v3012 = vpop.f32.mrb[0].mxu0
  %v3013 = vadd.f32 %v2386, %v3012
  %v3014 = vpop.f32.mrb[0].mxu0
  %3015 = vmatprep.mubr.bf16.mxu0 0
  %3016 = vmatmul.mubr.bf16.gmra.mrb[0].mxu0 %v764
  %v3017 = vpop.f32.mrb[0].mxu0
  %v3018 = vadd.f32 %v2391, %v3017
  %v3019 = vpop.f32.mrb[0].mxu0
  %v3020 = vpop.f32.mrb[0].mxu0
  %v3021 = vadd.f32 %v2394, %v3020
  %v3022 = vpop.f32.mrb[0].mxu0
  %3023 = vmatprep.mubr.bf16.mxu0 0
  %3024 = vmatmul.mubr.bf16.gmra.mrb[0].mxu0 %v767
  %v3025 = vpop.f32.mrb[0].mxu0
  %v3026 = vadd.f32 %v2399, %v3025
  %v3027 = vpop.f32.mrb[0].mxu0
  %v3028 = vpop.f32.mrb[0].mxu0
  %v3029 = vadd.f32 %v2402, %v3028
  %v3030 = vpop.f32.mrb[0].mxu0
  %3031 = vmatprep.mubr.bf16.mxu0 0
  %3032 = vmatmul.mubr.bf16.gmra.mrb[0].mxu0 %v770
  %v3033 = vpop.f32.mrb[0].mxu0
  %v3034 = vadd.f32 %v2407, %v3033
  %v3035 = vpop.f32.mrb[0].mxu0
  %v3036 = vpop.f32.mrb[0].mxu0
  %v3037 = vadd.f32 %v2410, %v3036
  %v3038 = vpop.f32.mrb[0].mxu0
  %3039 = vmatprep.mubr.bf16.mxu0 0
  %3040 = vmatmul.mubr.bf16.gmra.mrb[0].mxu0 %v773
  %v3041 = vpop.f32.mrb[0].mxu0
  %v3042 = vadd.f32 %v2415, %v3041
  %v3043 = vpop.f32.mrb[0].mxu0
  %v3044 = vpop.f32.mrb[0].mxu0
  %v3045 = vadd.f32 %v2418, %v3044
  %v3046 = vpop.f32.mrb[0].mxu0
  %3047 = vmatprep.mubr.bf16.mxu0 0
  %3048 = vmatmul.mubr.bf16.gmra.mrb[0].mxu0 %v776
  %v3049 = vpop.f32.mrb[0].mxu0
  %v3050 = vadd.f32 %v2423, %v3049
  %v3051 = vpop.f32.mrb[0].mxu0
  %v3052 = vpop.f32.mrb[0].mxu0
  %v3053 = vadd.f32 %v2426, %v3052
  %v3054 = vpop.f32.mrb[0].mxu0
  %3055 = vmatprep.mubr.bf16.mxu0 0
  %3056 = vmatmul.mubr.bf16.gmra.mrb[0].mxu0 %v779
  %v3057 = vpop.f32.mrb[0].mxu0
  %v3058 = vadd.f32 %v2431, %v3057
  %v3059 = vpop.f32.mrb[0].mxu0
  %v3060 = vpop.f32.mrb[0].mxu0
  %v3061 = vadd.f32 %v2434, %v3060
  %v3062 = vpop.f32.mrb[0].mxu0
  %3063 = vmatprep.mubr.bf16.mxu0 0
  %3064 = vmatmul.mubr.bf16.gmra.mrb[0].mxu0 %v782
  %v3065 = vpop.f32.mrb[0].mxu0
  %v3066 = vadd.f32 %v2439, %v3065
  %v3067 = vpop.f32.mrb[0].mxu0
  %v3068 = vpop.f32.mrb[0].mxu0
  %v3069 = vadd.f32 %v2442, %v3068
  %v3070 = vpop.f32.mrb[0].mxu0
  %3071 = vmatprep.mubr.bf16.mxu0 0
  %3072 = vmatmul.mubr.bf16.gmra.mrb[0].mxu0 %v785
  %v3073 = vpop.f32.mrb[0].mxu0
  %v3074 = vadd.f32 %v2447, %v3073
  %v3075 = vpop.f32.mrb[0].mxu0
  %v3076 = vpop.f32.mrb[0].mxu0
  %v3077 = vadd.f32 %v2450, %v3076
  %v3078 = vpop.f32.mrb[0].mxu0
  %3079 = vmatprep.mubr.bf16.mxu0 0
  %3080 = vmatmul.mubr.bf16.gmra.mrb[0].mxu0 %v788
  %v3081 = vpop.f32.mrb[0].mxu0
  %v3082 = vadd.f32 %v2455, %v3081
  %v3083 = vpop.f32.mrb[0].mxu0
  %v3084 = vpop.f32.mrb[0].mxu0
  %v3085 = vadd.f32 %v2458, %v3084
  %v3086 = vpop.f32.mrb[0].mxu0
  %3087 = vmatprep.mubr.bf16.mxu0 0
  %3088 = vmatmul.mubr.bf16.gmra.mrb[0].mxu0 %v791
  %v3089 = vpop.f32.mrb[0].mxu0
  %v3090 = vadd.f32 %v2463, %v3089
  %v3091 = vpop.f32.mrb[0].mxu0
  %v3092 = vpop.f32.mrb[0].mxu0
  %v3093 = vadd.f32 %v2466, %v3092
  %v3094 = vpop.f32.mrb[0].mxu0
  %3095 = vmatprep.mubr.bf16.mxu0 0
  %3096 = vmatmul.mubr.bf16.gmra.mrb[0].mxu0 %v794
  %v3097 = vpop.f32.mrb[0].mxu0
  %v3098 = vadd.f32 %v2471, %v3097
  %v3099 = vpop.f32.mrb[0].mxu0
  %v3100 = vpop.f32.mrb[0].mxu0
  %v3101 = vadd.f32 %v2474, %v3100
  %v3102 = vpop.f32.mrb[0].mxu0
  %3103 = vmatprep.mubr.bf16.mxu0 0
  %3104 = vmatmul.mubr.bf16.gmra.mrb[0].mxu0 %v797
  %v3105 = vpop.f32.mrb[0].mxu0
  %v3106 = vadd.f32 %v2479, %v3105
  %v3107 = vpop.f32.mrb[0].mxu0
  %v3108 = vpop.f32.mrb[0].mxu0
  %v3109 = vadd.f32 %v2482, %v3108
  %v3110 = vpop.f32.mrb[0].mxu0
  %3111 = vmatprep.mubr.bf16.mxu0 0
  %3112 = vmatmul.mubr.bf16.gmra.mrb[0].mxu0 %v800
  %v3113 = vpop.f32.mrb[0].mxu0
  %v3114 = vadd.f32 %v2487, %v3113
  %v3115 = vpop.f32.mrb[0].mxu0
  %v3116 = vpop.f32.mrb[0].mxu0
  %v3117 = vadd.f32 %v2490, %v3116
  %v3118 = vpop.f32.mrb[0].mxu0
  %3119 = vmatprep.mubr.bf16.mxu0 0
  %3120 = vmatmul.mubr.bf16.gmra.mrb[0].mxu0 %v803
  %v3121 = vpop.f32.mrb[0].mxu0
  %v3122 = vadd.f32 %v2495, %v3121
  %v3123 = vpop.f32.mrb[0].mxu0
  %v3124 = vpop.f32.mrb[0].mxu0
  %v3125 = vadd.f32 %v2498, %v3124
  %v3126 = vpop.f32.mrb[0].mxu0
  %3127 = vmatprep.mubr.bf16.mxu0 0
  %3128 = vmatmul.mubr.bf16.gmra.mrb[0].mxu0 %v806
  %v3129 = vpop.f32.mrb[0].mxu0
  %v3130 = vadd.f32 %v2503, %v3129
  %v3131 = vpop.f32.mrb[0].mxu0
  %v3132 = vpop.f32.mrb[0].mxu0
  %v3133 = vadd.f32 %v2506, %v3132
  %v3134 = vpop.f32.mrb[0].mxu0
  %3135 = vmatprep.mubr.bf16.mxu0 0
  %3136 = vmatmul.mubr.bf16.gmra.mrb[0].mxu0 %v809
  %v3137 = vpop.f32.mrb[0].mxu0
  %v3138 = vadd.f32 %v2511, %v3137
  %v3139 = vpop.f32.mrb[0].mxu0
  %v3140 = vpop.f32.mrb[0].mxu0
  %v3141 = vadd.f32 %v2514, %v3140
  %v3142 = vpop.f32.mrb[0].mxu0
  %3143 = vmatprep.mubr.bf16.mxu0 0
  %3144 = vmatmul.mubr.bf16.gmra.mrb[0].mxu0 %v812
  %v3145 = vpop.f32.mrb[0].mxu0
  %v3146 = vadd.f32 %v2519, %v3145
  %v3147 = vpop.f32.mrb[0].mxu0
  %v3148 = vpop.f32.mrb[0].mxu0
  %v3149 = vadd.f32 %v2522, %v3148
  %v3150 = vpop.f32.mrb[0].mxu0
  %3151 = vmatprep.mubr.bf16.mxu0 0
  %3152 = vmatmul.mubr.bf16.gmra.mrb[0].mxu0 %v815
  %v3153 = vpop.f32.mrb[0].mxu0
  %v3154 = vadd.f32 %v2527, %v3153
  %v3155 = vpop.f32.mrb[0].mxu0
  %v3156 = vpop.f32.mrb[0].mxu0
  %v3157 = vadd.f32 %v2530, %v3156
  %v3158 = vpop.f32.mrb[0].mxu0
  %3159 = vmatprep.mubr.bf16.mxu0 0
  %3160 = vmatmul.mubr.bf16.gmra.mrb[0].mxu0 %v818
  %v3161 = vpop.f32.mrb[0].mxu0
  %v3162 = vadd.f32 %v2535, %v3161
  %v3163 = vpop.f32.mrb[0].mxu0
  %v3164 = vpop.f32.mrb[0].mxu0
  %v3165 = vadd.f32 %v2538, %v3164
  %v3166 = vpop.f32.mrb[0].mxu0
  %3167 = vmatprep.mubr.bf16.mxu0 0
  %3168 = vmatmul.mubr.bf16.gmra.mrb[0].mxu0 %v821
  %v3169 = vpop.f32.mrb[0].mxu0
  %v3170 = vadd.f32 %v2543, %v3169
  %v3171 = vpop.f32.mrb[0].mxu0
  %v3172 = vpop.f32.mrb[0].mxu0
  %v3173 = vadd.f32 %v2546, %v3172
  %v3174 = vpop.f32.mrb[0].mxu0
  %3175 = vmatprep.mubr.bf16.mxu0 0
  %3176 = vmatmul.mubr.bf16.gmra.mrb[0].mxu0 %v824
  %v3177 = vpop.f32.mrb[0].mxu0
  %v3178 = vadd.f32 %v2551, %v3177
  %v3179 = vpop.f32.mrb[0].mxu0
  %v3180 = vpop.f32.mrb[0].mxu0
  %v3181 = vadd.f32 %v2554, %v3180
  %v3182 = vpop.f32.mrb[0].mxu0
  %3183 = vmatprep.mubr.bf16.mxu0 0
  %3184 = vmatmul.mubr.bf16.gmra.mrb[0].mxu0 %v827
  %v3185 = vpop.f32.mrb[0].mxu0
  %v3186 = vadd.f32 %v2559, %v3185
  %v3187 = vpop.f32.mrb[0].mxu0
  %v3188 = vpop.f32.mrb[0].mxu0
  %v3189 = vadd.f32 %v2562, %v3188
  %v3190 = vpop.f32.mrb[0].mxu0
  %3191 = vmatprep.mubr.bf16.mxu0 0
  %3192 = vmatmul.mubr.bf16.gmra.mrb[0].mxu0 %v830
  %v3193 = vpop.f32.mrb[0].mxu0
  %v3194 = vadd.f32 %v2567, %v3193
  %v3195 = vpop.f32.mrb[0].mxu0
  %v3196 = vpop.f32.mrb[0].mxu0
  %v3197 = vadd.f32 %v2570, %v3196
  %v3198 = vpop.f32.mrb[0].mxu0
  %3199 = vmatprep.mubr.bf16.mxu0 0
  %3200 = vmatmul.mubr.bf16.gmra.mrb[0].mxu0 %v833
  %v3201 = vpop.f32.mrb[0].mxu0
  %v3202 = vadd.f32 %v2575, %v3201
  %v3203 = vpop.f32.mrb[0].mxu0
  %v3204 = vpop.f32.mrb[0].mxu0
  %v3205 = vadd.f32 %v2578, %v3204
  %v3206 = vpop.f32.mrb[0].mxu0
  %3207 = vmatprep.mubr.bf16.mxu0 0
  %3208 = vmatmul.mubr.bf16.gmra.mrb[0].mxu0 %v836
  %v3209 = vpop.f32.mrb[0].mxu0
  %v3210 = vadd.f32 %v2583, %v3209
  %v3211 = vpop.f32.mrb[0].mxu0
  %v3212 = vpop.f32.mrb[0].mxu0
  %v3213 = vadd.f32 %v2586, %v3212
  %v3214 = vpop.f32.mrb[0].mxu0
  %3215 = vmatprep.mubr.bf16.mxu0 0
  %3216 = vmatmul.mubr.bf16.gmra.mrb[0].mxu0 %v839
  %v3217 = vpop.f32.mrb[0].mxu0
  %v3218 = vadd.f32 %v2591, %v3217
  %v3219 = vpop.f32.mrb[0].mxu0
  %v3220 = vpop.f32.mrb[0].mxu0
  %v3221 = vadd.f32 %v2594, %v3220
  %v3222 = vpop.f32.mrb[0].mxu0
  %3223 = vmatprep.mubr.bf16.mxu0 0
  %3224 = vmatmul.mubr.bf16.gmra.mrb[0].mxu0 %v842
  %v3225 = vpop.f32.mrb[0].mxu0
  %v3226 = vadd.f32 %v2599, %v3225
  %v3227 = vpop.f32.mrb[0].mxu0
  %v3228 = vpop.f32.mrb[0].mxu0
  %v3229 = vadd.f32 %v2602, %v3228
  %v3230 = vpop.f32.mrb[0].mxu0
  %3231 = vmatprep.mubr.bf16.mxu0 0
  %3232 = vmatmul.mubr.bf16.gmra.mrb[0].mxu0 %v845
  %v3233 = vpop.f32.mrb[0].mxu0
  %v3234 = vadd.f32 %v2607, %v3233
  %v3235 = vpop.f32.mrb[0].mxu0
  %v3236 = vpop.f32.mrb[0].mxu0
  %v3237 = vadd.f32 %v2610, %v3236
  %v3238 = vpop.f32.mrb[0].mxu0
  %3239 = vmatprep.mubr.bf16.mxu0 0
  %3240 = vmatmul.mubr.bf16.gmra.mrb[0].mxu0 %v848
  %v3241 = vpop.f32.mrb[0].mxu0
  %v3242 = vadd.f32 %v2615, %v3241
  %v3243 = vpop.f32.mrb[0].mxu0
  %v3244 = vpop.f32.mrb[0].mxu0
  %v3245 = vadd.f32 %v2618, %v3244
  %v3246 = vpop.f32.mrb[0].mxu0
  %3247 = vmatprep.mubr.bf16.mxu0 0
  %3248 = vmatmul.mubr.bf16.gmra.mrb[0].mxu0 %v851
  %v3249 = vpop.f32.mrb[0].mxu0
  %v3250 = vadd.f32 %v2623, %v3249
  %v3251 = vpop.f32.mrb[0].mxu0
  %v3252 = vpop.f32.mrb[0].mxu0
  %v3253 = vadd.f32 %v2626, %v3252
  %v3254 = vpop.f32.mrb[0].mxu0
  %3255 = vmatprep.mubr.bf16.mxu0 0
  %3256 = vmatmul.mubr.bf16.gmra.mrb[0].mxu0 %v854
  %v3257 = vpop.f32.mrb[0].mxu0
  %v3258 = vadd.f32 %v2631, %v3257
  %v3259 = vpop.f32.mrb[0].mxu0
  %v3260 = vpop.f32.mrb[0].mxu0
  %v3261 = vadd.f32 %v2634, %v3260
  %v3262 = vpop.f32.mrb[0].mxu0
  %3263 = vmatprep.mubr.bf16.mxu0 0
  %3264 = vmatmul.mubr.bf16.gmra.mrb[0].mxu0 %v857
  %v3265 = vpop.f32.mrb[0].mxu0
  %v3266 = vadd.f32 %v2639, %v3265
  %v3267 = vpop.f32.mrb[0].mxu0
  %v3268 = vpop.f32.mrb[0].mxu0
  %v3269 = vadd.f32 %v2642, %v3268
  %v3270 = vpop.f32.mrb[0].mxu0
  %3271 = vmatprep.mubr.bf16.mxu0 0
  %3272 = vmatmul.mubr.bf16.gmra.mrb[0].mxu0 %v860
  %v3273 = vpop.f32.mrb[0].mxu0
  %v3274 = vadd.f32 %v2647, %v3273
  %v3275 = vpop.f32.mrb[0].mxu0
  %v3276 = vpop.f32.mrb[0].mxu0
  %v3277 = vadd.f32 %v2650, %v3276
  %v3278 = vpop.f32.mrb[0].mxu0
  %3279 = vmatprep.mubr.bf16.mxu0 0
  %3280 = vmatmul.mubr.bf16.gmra.mrb[0].mxu0 %v863
  %v3281 = vpop.f32.mrb[0].mxu0
  %v3282 = vadd.f32 %v2655, %v3281
  %v3283 = vpop.f32.mrb[0].mxu0
  %v3284 = vpop.f32.mrb[0].mxu0
  %v3285 = vadd.f32 %v2658, %v3284
  %v3286 = vpop.f32.mrb[0].mxu0
  %3287 = vmatprep.mubr.bf16.mxu0 0
  %3288 = vmatmul.mubr.bf16.gmra.mrb[0].mxu0 %v866
  %v3289 = vpop.f32.mrb[0].mxu0
  %v3290 = vadd.f32 %v2663, %v3289
  %v3291 = vpop.f32.mrb[0].mxu0
  %v3292 = vpop.f32.mrb[0].mxu0
  %v3293 = vadd.f32 %v2666, %v3292
  %v3294 = vpop.f32.mrb[0].mxu0
  %3295 = vmatprep.mubr.bf16.mxu0 0
  %3296 = vmatmul.mubr.bf16.gmra.mrb[0].mxu0 %v869
  %v3297 = vpop.f32.mrb[0].mxu0
  %v3298 = vadd.f32 %v2671, %v3297
  %v3299 = vpop.f32.mrb[0].mxu0
  %v3300 = vpop.f32.mrb[0].mxu0
  %v3301 = vadd.f32 %v2674, %v3300
  %v3302 = vpop.f32.mrb[0].mxu0
  %3303 = vmatprep.mubr.bf16.mxu0 0
  %3304 = vmatmul.mubr.bf16.gmra.mrb[0].mxu0 %v872
  %v3305 = vpop.f32.mrb[0].mxu0
  %v3306 = vadd.f32 %v2679, %v3305
  %v3307 = vpop.f32.mrb[0].mxu0
  %v3308 = vpop.f32.mrb[0].mxu0
  %v3309 = vadd.f32 %v2682, %v3308
  %v3310 = vpop.f32.mrb[0].mxu0
  %3311 = vmatprep.mubr.bf16.mxu0 0
  %3312 = vmatmul.mubr.bf16.gmra.mrb[0].mxu0 %v875
  %v3313 = vpop.f32.mrb[0].mxu0
  %v3314 = vadd.f32 %v2687, %v3313
  %v3315 = vpop.f32.mrb[0].mxu0
  %v3316 = vpop.f32.mrb[0].mxu0
  %v3317 = vadd.f32 %v2690, %v3316
  %v3318 = vpop.f32.mrb[0].mxu0
  %3319 = vmatprep.mubr.bf16.mxu0 0
  %3320 = vmatmul.mubr.bf16.gmra.mrb[0].mxu0 %v878
  %v3321 = vpop.f32.mrb[0].mxu0
  %v3322 = vadd.f32 %v2695, %v3321
  %v3323 = vpop.f32.mrb[0].mxu0
  %v3324 = vpop.f32.mrb[0].mxu0
  %v3325 = vadd.f32 %v2698, %v3324
  %v3326 = vpop.f32.mrb[0].mxu0
  %3327 = vmatprep.mubr.bf16.mxu0 0
  %3328 = vmatmul.mubr.bf16.gmra.mrb[0].mxu0 %v881
  %v3329 = vpop.f32.mrb[0].mxu0
  %v3330 = vadd.f32 %v2703, %v3329
  %v3331 = vpop.f32.mrb[0].mxu0
  %v3332 = vpop.f32.mrb[0].mxu0
  %v3333 = vadd.f32 %v2706, %v3332
  %v3334 = vpop.f32.mrb[0].mxu0
  %3335 = vmatprep.mubr.bf16.mxu0 0
  %3336 = vmatmul.mubr.bf16.gmra.mrb[0].mxu0 %v884
  %v3337 = vpop.f32.mrb[0].mxu0
  %v3338 = vadd.f32 %v2711, %v3337
  %v3339 = vpop.f32.mrb[0].mxu0
  %v3340 = vpop.f32.mrb[0].mxu0
  %v3341 = vadd.f32 %v2714, %v3340
  %v3342 = vpop.f32.mrb[0].mxu0
  %3343 = vmatprep.mubr.bf16.mxu0 0
  %3344 = vmatmul.mubr.bf16.gmra.mrb[0].mxu0 %v887
  %v3345 = vpop.f32.mrb[0].mxu0
  %v3346 = vadd.f32 %v2719, %v3345
  %v3347 = vpop.f32.mrb[0].mxu0
  %v3348 = vpop.f32.mrb[0].mxu0
  %v3349 = vadd.f32 %v2722, %v3348
  %v3350 = vpop.f32.mrb[0].mxu0
  %3351 = vmatprep.mubr.bf16.mxu0 0
  %3352 = vmatmul.mubr.bf16.gmra.mrb[0].mxu0 %v890
  %v3353 = vpop.f32.mrb[0].mxu0
  %v3354 = vadd.f32 %v2727, %v3353
  %v3355 = vpop.f32.mrb[0].mxu0
  %v3356 = vpop.f32.mrb[0].mxu0
  %v3357 = vadd.f32 %v2730, %v3356
  %v3358 = vpop.f32.mrb[0].mxu0
  %3359 = vmatprep.mubr.bf16.mxu0 0
  %3360 = vmatmul.mubr.bf16.gmra.mrb[0].mxu0 %v893
  %v3361 = vpop.f32.mrb[0].mxu0
  %v3362 = vadd.f32 %v2735, %v3361
  %v3363 = vpop.f32.mrb[0].mxu0
  %v3364 = vpop.f32.mrb[0].mxu0
  %v3365 = vadd.f32 %v2738, %v3364
  %v3366 = vpop.f32.mrb[0].mxu0
  %3367 = vmatprep.mubr.bf16.mxu0 0
  %3368 = vmatmul.mubr.bf16.gmra.mrb[0].mxu0 %v896
  %v3369 = vpop.f32.mrb[0].mxu0
  %v3370 = vadd.f32 %v2743, %v3369
  %v3371 = vpop.f32.mrb[0].mxu0
  %v3372 = vpop.f32.mrb[0].mxu0
  %v3373 = vadd.f32 %v2746, %v3372
  %v3374 = vpop.f32.mrb[0].mxu0
  %3375 = vmatprep.mubr.bf16.mxu0 0
  %3376 = vmatmul.mubr.bf16.gmra.mrb[0].mxu0 %v899
  %v3377 = vpop.f32.mrb[0].mxu0
  %v3378 = vadd.f32 %v2751, %v3377
  %v3379 = vpop.f32.mrb[0].mxu0
  %v3380 = vpop.f32.mrb[0].mxu0
  %v3381 = vadd.f32 %v2754, %v3380
  %v3382 = vpop.f32.mrb[0].mxu0
  %3383 = vmatprep.mubr.bf16.mxu0 0
  %3384 = vmatmul.mubr.bf16.gmra.mrb[0].mxu0 %v902
  %v3385 = vpop.f32.mrb[0].mxu0
  %v3386 = vadd.f32 %v2759, %v3385
  %v3387 = vpop.f32.mrb[0].mxu0
  %v3388 = vpop.f32.mrb[0].mxu0
  %v3389 = vadd.f32 %v2762, %v3388
  %v3390 = vpop.f32.mrb[0].mxu0
  %3391 = vmatprep.mubr.bf16.mxu0 0
  %3392 = vmatmul.mubr.bf16.gmra.mrb[0].mxu0 %v905
  %v3393 = vpop.f32.mrb[0].mxu0
  %v3394 = vadd.f32 %v2767, %v3393
  %v3395 = vpop.f32.mrb[0].mxu0
  %v3396 = vpop.f32.mrb[0].mxu0
  %v3397 = vadd.f32 %v2770, %v3396
  %v3398 = vpop.f32.mrb[0].mxu0
  %3399 = vmatprep.mubr.bf16.mxu0 0
  %3400 = vmatmul.mubr.bf16.gmra.mrb[0].mxu0 %v908
  %v3401 = vpop.f32.mrb[0].mxu0
  %v3402 = vadd.f32 %v2775, %v3401
  %v3403 = vpop.f32.mrb[0].mxu0
  %v3404 = vpop.f32.mrb[0].mxu0
  %v3405 = vadd.f32 %v2778, %v3404
  %v3406 = vpop.f32.mrb[0].mxu0
  %3407 = vmatprep.mubr.bf16.mxu0 0
  %3408 = vmatmul.mubr.bf16.gmra.mrb[0].mxu0 %v911
  %v3409 = vpop.f32.mrb[0].mxu0
  %v3410 = vadd.f32 %v2783, %v3409
  %v3411 = vpop.f32.mrb[0].mxu0
  %v3412 = vpop.f32.mrb[0].mxu0
  %v3413 = vadd.f32 %v2786, %v3412
  %v3414 = vpop.f32.mrb[0].mxu0
  %3415 = vmatprep.mubr.bf16.mxu0 0
  %3416 = vmatmul.mubr.bf16.gmra.mrb[0].mxu0 %v914
  %v3417 = vpop.f32.mrb[0].mxu0
  %v3418 = vadd.f32 %v2791, %v3417
  %v3419 = vpop.f32.mrb[0].mxu0
  %v3420 = vpop.f32.mrb[0].mxu0
  %v3421 = vadd.f32 %v2794, %v3420
  %v3422 = vpop.f32.mrb[0].mxu0
  %3423 = vmatprep.mubr.bf16.mxu0 0
  %3424 = vmatmul.mubr.bf16.gmra.mrb[0].mxu0 %v917
  %v3425 = vpop.f32.mrb[0].mxu0
  %v3426 = vadd.f32 %v2799, %v3425
  %v3427 = vpop.f32.mrb[0].mxu0
  %v3428 = vpop.f32.mrb[0].mxu0
  %v3429 = vadd.f32 %v2802, %v3428
  %v3430 = vpop.f32.mrb[0].mxu0
  %3431 = vmatprep.mubr.bf16.mxu0 0
  %3432 = vmatmul.mubr.bf16.gmra.mrb[0].mxu0 %v920
  %v3433 = vpop.f32.mrb[0].mxu0
  %v3434 = vadd.f32 %v2807, %v3433
  %v3435 = vpop.f32.mrb[0].mxu0
  %v3436 = vpop.f32.mrb[0].mxu0
  %v3437 = vadd.f32 %v2810, %v3436
  %v3438 = vpop.f32.mrb[0].mxu0
  %3439 = vmatprep.mubr.bf16.mxu0 0
  %3440 = vmatmul.mubr.bf16.gmra.mrb[0].mxu0 %v923
  %v3441 = vpop.f32.mrb[0].mxu0
  %v3442 = vadd.f32 %v2815, %v3441
  %v3443 = vpop.f32.mrb[0].mxu0
  %v3444 = vpop.f32.mrb[0].mxu0
  %v3445 = vadd.f32 %v2818, %v3444
  %v3446 = vpop.f32.mrb[0].mxu0
  %3447 = vdwg.mxu0
  %v3448 = vld [vmem:[%s2 + $0x60] sm:$0xf]
  %v3449 = vld [vmem:[%s2 + $0x64] sm:$0xf]
  %v3450 = vld [vmem:[%s2 + $0x68] sm:$0xf]
  %v3451 = vld [vmem:[%s2 + $0x6c] sm:$0xf]
  %v3452 = vld [vmem:[%s2 + $0x70] sm:$0xf]
  %v3453 = vld [vmem:[%s2 + $0x74] sm:$0xf]
  %v3460 = vunpack.c.l.b16 %v3448
  %v3461 = vunpack.c.l.b16 %v3449
  %v3462 = vunpack.c.l.b16 %v3450
  %v3463 = vunpack.c.l.b16 %v3451
  %v3464 = vunpack.c.l.b16 %v3452
  %v3465 = vunpack.c.l.b16 %v3453
  %v3466 = vpack.c.b16 %v3461, %v3460
  %v3467 = vpack.c.b16 %v3463, %v3462
  %v3468 = vpack.c.b16 %v3465, %v3464
  %v3473 = vsel %vm711, %v665, 0
  %3475 = vmatprep.subr.bf16.mxu0 0
  %3476 = vmatpush1.bf16.msra.mxu0 %v3466
  %3477 = vmatprep.subr.bf16.mxu0 0
  %3478 = vmatpush1.bf16.msra.mxu0 %v3467
  %3479 = vmatprep.subr.bf16.mxu0 0
  %3480 = vmatpush1.bf16.msra.mxu0 %v3468
  %3481 = vmatprep.subr.bf16.mxu0 0
  %3482 = vmatpush1.bf16.msra.mxu0 0
  %3483 = vmatprep.subr.bf16.mxu0 0
  %3484 = vmatpush1.bf16.msra.mxu0 0
  %3485 = vmatprep.subr.bf16.mxu0 0
  %3486 = vmatpush1.bf16.msra.mxu0 0
  %3487 = vmatprep.subr.bf16.mxu0 0
  %3488 = vmatpush1.bf16.msra.mxu0 0
  %3489 = vmatprep.subr.bf16.mxu0 0
  %3490 = vmatpush1.bf16.msra.mxu0 0
  %3491 = vmatprep.subr.bf16.mxu0 0
  %3492 = vmatpush1.bf16.msra.mxu0 0
  %3493 = vmatprep.subr.bf16.mxu0 0
  %3494 = vmatpush1.bf16.msra.mxu0 0
  %3495 = vmatprep.subr.bf16.mxu0 0
  %3496 = vmatpush1.bf16.msra.mxu0 0
  %3497 = vmatprep.subr.bf16.mxu0 0
  %3498 = vmatpush1.bf16.msra.mxu0 0
  %3499 = vmatprep.subr.bf16.mxu0 0
  %3500 = vmatpush1.bf16.msra.mxu0 0
  %3501 = vmatprep.subr.bf16.mxu0 0
  %3502 = vmatpush1.bf16.msra.mxu0 0
  %3503 = vmatprep.subr.bf16.mxu0 0
  %3504 = vmatpush1.bf16.msra.mxu0 0
  %3505 = vmatprep.subr.bf16.mxu0 0
  %3506 = vmatpush1.bf16.msra.mxu0 0
  %3507 = vmatprep.mubr.bf16.mxu0 0
  %3508 = vmatmul.mubr.bf16.gmra.mrb[0].mxu0 %v734
  %v3509 = vpop.f32.mrb[0].mxu0
  %v3510 = vadd.f32 0.0, %v3509
  %v3511 = vpop.f32.mrb[0].mxu0
  %v3512 = vpop.f32.mrb[0].mxu0
  %v3513 = vadd.f32 0.0, %v3512
  %v3514 = vpop.f32.mrb[0].mxu0
  %3515 = vmatprep.mubr.bf16.mxu0 0
  %3516 = vmatmul.mubr.bf16.gmra.mrb[0].mxu0 %v737
  %v3517 = vpop.f32.mrb[0].mxu0
  %v3518 = vadd.f32 0.0, %v3517
  %v3519 = vpop.f32.mrb[0].mxu0
  %v3520 = vpop.f32.mrb[0].mxu0
  %v3521 = vadd.f32 0.0, %v3520
  %v3522 = vpop.f32.mrb[0].mxu0
  %3523 = vmatprep.mubr.bf16.mxu0 0
  %3524 = vmatmul.mubr.bf16.gmra.mrb[0].mxu0 %v740
  %v3525 = vpop.f32.mrb[0].mxu0
  %v3526 = vadd.f32 0.0, %v3525
  %v3527 = vpop.f32.mrb[0].mxu0
  %v3528 = vpop.f32.mrb[0].mxu0
  %v3529 = vadd.f32 0.0, %v3528
  %v3530 = vpop.f32.mrb[0].mxu0
  %3531 = vmatprep.mubr.bf16.mxu0 0
  %3532 = vmatmul.mubr.bf16.gmra.mrb[0].mxu0 %v743
  %v3533 = vpop.f32.mrb[0].mxu0
  %v3534 = vadd.f32 0.0, %v3533
  %v3535 = vpop.f32.mrb[0].mxu0
  %v3536 = vpop.f32.mrb[0].mxu0
  %v3537 = vadd.f32 0.0, %v3536
  %v3538 = vpop.f32.mrb[0].mxu0
  %3539 = vmatprep.mubr.bf16.mxu0 0
  %3540 = vmatmul.mubr.bf16.gmra.mrb[0].mxu0 %v746
  %v3541 = vpop.f32.mrb[0].mxu0
  %v3542 = vadd.f32 0.0, %v3541
  %v3543 = vpop.f32.mrb[0].mxu0
  %v3544 = vpop.f32.mrb[0].mxu0
  %v3545 = vadd.f32 0.0, %v3544
  %v3546 = vpop.f32.mrb[0].mxu0
  %3547 = vmatprep.mubr.bf16.mxu0 0
  %3548 = vmatmul.mubr.bf16.gmra.mrb[0].mxu0 %v749
  %v3549 = vpop.f32.mrb[0].mxu0
  %v3550 = vadd.f32 0.0, %v3549
  %v3551 = vpop.f32.mrb[0].mxu0
  %v3552 = vpop.f32.mrb[0].mxu0
  %v3553 = vadd.f32 0.0, %v3552
  %v3554 = vpop.f32.mrb[0].mxu0
  %3555 = vmatprep.mubr.bf16.mxu0 0
  %3556 = vmatmul.mubr.bf16.gmra.mrb[0].mxu0 %v752
  %v3557 = vpop.f32.mrb[0].mxu0
  %v3558 = vadd.f32 0.0, %v3557
  %v3559 = vpop.f32.mrb[0].mxu0
  %v3560 = vpop.f32.mrb[0].mxu0
  %v3561 = vadd.f32 0.0, %v3560
  %v3562 = vpop.f32.mrb[0].mxu0
  %3563 = vmatprep.mubr.bf16.mxu0 0
  %3564 = vmatmul.mubr.bf16.gmra.mrb[0].mxu0 %v755
  %v3565 = vpop.f32.mrb[0].mxu0
  %v3566 = vadd.f32 0.0, %v3565
  %v3567 = vpop.f32.mrb[0].mxu0
  %v3568 = vpop.f32.mrb[0].mxu0
  %v3569 = vadd.f32 0.0, %v3568
  %v3570 = vpop.f32.mrb[0].mxu0
  %3571 = vmatprep.mubr.bf16.mxu0 0
  %3572 = vmatmul.mubr.bf16.gmra.mrb[0].mxu0 %v758
  %v3573 = vpop.f32.mrb[0].mxu0
  %v3574 = vadd.f32 0.0, %v3573
  %v3575 = vpop.f32.mrb[0].mxu0
  %v3576 = vpop.f32.mrb[0].mxu0
  %v3577 = vadd.f32 0.0, %v3576
  %v3578 = vpop.f32.mrb[0].mxu0
  %3579 = vmatprep.mubr.bf16.mxu0 0
  %3580 = vmatmul.mubr.bf16.gmra.mrb[0].mxu0 %v761
  %v3581 = vpop.f32.mrb[0].mxu0
  %v3582 = vadd.f32 0.0, %v3581
  %v3583 = vpop.f32.mrb[0].mxu0
  %v3584 = vpop.f32.mrb[0].mxu0
  %v3585 = vadd.f32 0.0, %v3584
  %v3586 = vpop.f32.mrb[0].mxu0
  %3587 = vmatprep.mubr.bf16.mxu0 0
  %3588 = vmatmul.mubr.bf16.gmra.mrb[0].mxu0 %v764
  %v3589 = vpop.f32.mrb[0].mxu0
  %v3590 = vadd.f32 0.0, %v3589
  %v3591 = vpop.f32.mrb[0].mxu0
  %v3592 = vpop.f32.mrb[0].mxu0
  %v3593 = vadd.f32 0.0, %v3592
  %v3594 = vpop.f32.mrb[0].mxu0
  %3595 = vmatprep.mubr.bf16.mxu0 0
  %3596 = vmatmul.mubr.bf16.gmra.mrb[0].mxu0 %v767
  %v3597 = vpop.f32.mrb[0].mxu0
  %v3598 = vadd.f32 0.0, %v3597
  %v3599 = vpop.f32.mrb[0].mxu0
  %v3600 = vpop.f32.mrb[0].mxu0
  %v3601 = vadd.f32 0.0, %v3600
  %v3602 = vpop.f32.mrb[0].mxu0
  %3603 = vmatprep.mubr.bf16.mxu0 0
  %3604 = vmatmul.mubr.bf16.gmra.mrb[0].mxu0 %v770
  %v3605 = vpop.f32.mrb[0].mxu0
  %v3606 = vadd.f32 0.0, %v3605
  %v3607 = vpop.f32.mrb[0].mxu0
  %v3608 = vpop.f32.mrb[0].mxu0
  %v3609 = vadd.f32 0.0, %v3608
  %v3610 = vpop.f32.mrb[0].mxu0
  %3611 = vmatprep.mubr.bf16.mxu0 0
  %3612 = vmatmul.mubr.bf16.gmra.mrb[0].mxu0 %v773
  %v3613 = vpop.f32.mrb[0].mxu0
  %v3614 = vadd.f32 0.0, %v3613
  %v3615 = vpop.f32.mrb[0].mxu0
  %v3616 = vpop.f32.mrb[0].mxu0
  %v3617 = vadd.f32 0.0, %v3616
  %v3618 = vpop.f32.mrb[0].mxu0
  %3619 = vmatprep.mubr.bf16.mxu0 0
  %3620 = vmatmul.mubr.bf16.gmra.mrb[0].mxu0 %v776
  %v3621 = vpop.f32.mrb[0].mxu0
  %v3622 = vadd.f32 0.0, %v3621
  %v3623 = vpop.f32.mrb[0].mxu0
  %v3624 = vpop.f32.mrb[0].mxu0
  %v3625 = vadd.f32 0.0, %v3624
  %v3626 = vpop.f32.mrb[0].mxu0
  %3627 = vmatprep.mubr.bf16.mxu0 0
  %3628 = vmatmul.mubr.bf16.gmra.mrb[0].mxu0 %v779
  %v3629 = vpop.f32.mrb[0].mxu0
  %v3630 = vadd.f32 0.0, %v3629
  %v3631 = vpop.f32.mrb[0].mxu0
  %v3632 = vpop.f32.mrb[0].mxu0
  %v3633 = vadd.f32 0.0, %v3632
  %v3634 = vpop.f32.mrb[0].mxu0
  %3635 = vmatprep.mubr.bf16.mxu0 0
  %3636 = vmatmul.mubr.bf16.gmra.mrb[0].mxu0 %v782
  %v3637 = vpop.f32.mrb[0].mxu0
  %v3638 = vadd.f32 0.0, %v3637
  %v3639 = vpop.f32.mrb[0].mxu0
  %v3640 = vpop.f32.mrb[0].mxu0
  %v3641 = vadd.f32 0.0, %v3640
  %v3642 = vpop.f32.mrb[0].mxu0
  %3643 = vmatprep.mubr.bf16.mxu0 0
  %3644 = vmatmul.mubr.bf16.gmra.mrb[0].mxu0 %v785
  %v3645 = vpop.f32.mrb[0].mxu0
  %v3646 = vadd.f32 0.0, %v3645
  %v3647 = vpop.f32.mrb[0].mxu0
  %v3648 = vpop.f32.mrb[0].mxu0
  %v3649 = vadd.f32 0.0, %v3648
  %v3650 = vpop.f32.mrb[0].mxu0
  %3651 = vmatprep.mubr.bf16.mxu0 0
  %3652 = vmatmul.mubr.bf16.gmra.mrb[0].mxu0 %v788
  %v3653 = vpop.f32.mrb[0].mxu0
  %v3654 = vadd.f32 0.0, %v3653
  %v3655 = vpop.f32.mrb[0].mxu0
  %v3656 = vpop.f32.mrb[0].mxu0
  %v3657 = vadd.f32 0.0, %v3656
  %v3658 = vpop.f32.mrb[0].mxu0
  %3659 = vmatprep.mubr.bf16.mxu0 0
  %3660 = vmatmul.mubr.bf16.gmra.mrb[0].mxu0 %v791
  %v3661 = vpop.f32.mrb[0].mxu0
  %v3662 = vadd.f32 0.0, %v3661
  %v3663 = vpop.f32.mrb[0].mxu0
  %v3664 = vpop.f32.mrb[0].mxu0
  %v3665 = vadd.f32 0.0, %v3664
  %v3666 = vpop.f32.mrb[0].mxu0
  %3667 = vmatprep.mubr.bf16.mxu0 0
  %3668 = vmatmul.mubr.bf16.gmra.mrb[0].mxu0 %v794
  %v3669 = vpop.f32.mrb[0].mxu0
  %v3670 = vadd.f32 0.0, %v3669
  %v3671 = vpop.f32.mrb[0].mxu0
  %v3672 = vpop.f32.mrb[0].mxu0
  %v3673 = vadd.f32 0.0, %v3672
  %v3674 = vpop.f32.mrb[0].mxu0
  %3675 = vmatprep.mubr.bf16.mxu0 0
  %3676 = vmatmul.mubr.bf16.gmra.mrb[0].mxu0 %v797
  %v3677 = vpop.f32.mrb[0].mxu0
  %v3678 = vadd.f32 0.0, %v3677
  %v3679 = vpop.f32.mrb[0].mxu0
  %v3680 = vpop.f32.mrb[0].mxu0
  %v3681 = vadd.f32 0.0, %v3680
  %v3682 = vpop.f32.mrb[0].mxu0
  %3683 = vmatprep.mubr.bf16.mxu0 0
  %3684 = vmatmul.mubr.bf16.gmra.mrb[0].mxu0 %v800
  %v3685 = vpop.f32.mrb[0].mxu0
  %v3686 = vadd.f32 0.0, %v3685
  %v3687 = vpop.f32.mrb[0].mxu0
  %v3688 = vpop.f32.mrb[0].mxu0
  %v3689 = vadd.f32 0.0, %v3688
  %v3690 = vpop.f32.mrb[0].mxu0
  %3691 = vmatprep.mubr.bf16.mxu0 0
  %3692 = vmatmul.mubr.bf16.gmra.mrb[0].mxu0 %v803
  %v3693 = vpop.f32.mrb[0].mxu0
  %v3694 = vadd.f32 0.0, %v3693
  %v3695 = vpop.f32.mrb[0].mxu0
  %v3696 = vpop.f32.mrb[0].mxu0
  %v3697 = vadd.f32 0.0, %v3696
  %v3698 = vpop.f32.mrb[0].mxu0
  %3699 = vmatprep.mubr.bf16.mxu0 0
  %3700 = vmatmul.mubr.bf16.gmra.mrb[0].mxu0 %v806
  %v3701 = vpop.f32.mrb[0].mxu0
  %v3702 = vadd.f32 0.0, %v3701
  %v3703 = vpop.f32.mrb[0].mxu0
  %v3704 = vpop.f32.mrb[0].mxu0
  %v3705 = vadd.f32 0.0, %v3704
  %v3706 = vpop.f32.mrb[0].mxu0
  %3707 = vmatprep.mubr.bf16.mxu0 0
  %3708 = vmatmul.mubr.bf16.gmra.mrb[0].mxu0 %v809
  %v3709 = vpop.f32.mrb[0].mxu0
  %v3710 = vadd.f32 0.0, %v3709
  %v3711 = vpop.f32.mrb[0].mxu0
  %v3712 = vpop.f32.mrb[0].mxu0
  %v3713 = vadd.f32 0.0, %v3712
  %v3714 = vpop.f32.mrb[0].mxu0
  %3715 = vmatprep.mubr.bf16.mxu0 0
  %3716 = vmatmul.mubr.bf16.gmra.mrb[0].mxu0 %v812
  %v3717 = vpop.f32.mrb[0].mxu0
  %v3718 = vadd.f32 0.0, %v3717
  %v3719 = vpop.f32.mrb[0].mxu0
  %v3720 = vpop.f32.mrb[0].mxu0
  %v3721 = vadd.f32 0.0, %v3720
  %v3722 = vpop.f32.mrb[0].mxu0
  %3723 = vmatprep.mubr.bf16.mxu0 0
  %3724 = vmatmul.mubr.bf16.gmra.mrb[0].mxu0 %v815
  %v3725 = vpop.f32.mrb[0].mxu0
  %v3726 = vadd.f32 0.0, %v3725
  %v3727 = vpop.f32.mrb[0].mxu0
  %v3728 = vpop.f32.mrb[0].mxu0
  %v3729 = vadd.f32 0.0, %v3728
  %v3730 = vpop.f32.mrb[0].mxu0
  %3731 = vmatprep.mubr.bf16.mxu0 0
  %3732 = vmatmul.mubr.bf16.gmra.mrb[0].mxu0 %v818
  %v3733 = vpop.f32.mrb[0].mxu0
  %v3734 = vadd.f32 0.0, %v3733
  %v3735 = vpop.f32.mrb[0].mxu0
  %v3736 = vpop.f32.mrb[0].mxu0
  %v3737 = vadd.f32 0.0, %v3736
  %v3738 = vpop.f32.mrb[0].mxu0
  %3739 = vmatprep.mubr.bf16.mxu0 0
  %3740 = vmatmul.mubr.bf16.gmra.mrb[0].mxu0 %v821
  %v3741 = vpop.f32.mrb[0].mxu0
  %v3742 = vadd.f32 0.0, %v3741
  %v3743 = vpop.f32.mrb[0].mxu0
  %v3744 = vpop.f32.mrb[0].mxu0
  %v3745 = vadd.f32 0.0, %v3744
  %v3746 = vpop.f32.mrb[0].mxu0
  %3747 = vmatprep.mubr.bf16.mxu0 0
  %3748 = vmatmul.mubr.bf16.gmra.mrb[0].mxu0 %v824
  %v3749 = vpop.f32.mrb[0].mxu0
  %v3750 = vadd.f32 0.0, %v3749
  %v3751 = vpop.f32.mrb[0].mxu0
  %v3752 = vpop.f32.mrb[0].mxu0
  %v3753 = vadd.f32 0.0, %v3752
  %v3754 = vpop.f32.mrb[0].mxu0
  %3755 = vmatprep.mubr.bf16.mxu0 0
  %3756 = vmatmul.mubr.bf16.gmra.mrb[0].mxu0 %v827
  %v3757 = vpop.f32.mrb[0].mxu0
  %v3758 = vadd.f32 0.0, %v3757
  %v3759 = vpop.f32.mrb[0].mxu0
  %v3760 = vpop.f32.mrb[0].mxu0
  %v3761 = vadd.f32 0.0, %v3760
  %v3762 = vpop.f32.mrb[0].mxu0
  %3763 = vmatprep.mubr.bf16.mxu0 0
  %3764 = vmatmul.mubr.bf16.gmra.mrb[0].mxu0 %v830
  %v3765 = vpop.f32.mrb[0].mxu0
  %v3766 = vadd.f32 0.0, %v3765
  %v3767 = vpop.f32.mrb[0].mxu0
  %v3768 = vpop.f32.mrb[0].mxu0
  %v3769 = vadd.f32 0.0, %v3768
  %v3770 = vpop.f32.mrb[0].mxu0
  %3771 = vmatprep.mubr.bf16.mxu0 0
  %3772 = vmatmul.mubr.bf16.gmra.mrb[0].mxu0 %v833
  %v3773 = vpop.f32.mrb[0].mxu0
  %v3774 = vadd.f32 0.0, %v3773
  %v3775 = vpop.f32.mrb[0].mxu0
  %v3776 = vpop.f32.mrb[0].mxu0
  %v3777 = vadd.f32 0.0, %v3776
  %v3778 = vpop.f32.mrb[0].mxu0
  %3779 = vmatprep.mubr.bf16.mxu0 0
  %3780 = vmatmul.mubr.bf16.gmra.mrb[0].mxu0 %v836
  %v3781 = vpop.f32.mrb[0].mxu0
  %v3782 = vadd.f32 0.0, %v3781
  %v3783 = vpop.f32.mrb[0].mxu0
  %v3784 = vpop.f32.mrb[0].mxu0
  %v3785 = vadd.f32 0.0, %v3784
  %v3786 = vpop.f32.mrb[0].mxu0
  %3787 = vmatprep.mubr.bf16.mxu0 0
  %3788 = vmatmul.mubr.bf16.gmra.mrb[0].mxu0 %v839
  %v3789 = vpop.f32.mrb[0].mxu0
  %v3790 = vadd.f32 0.0, %v3789
  %v3791 = vpop.f32.mrb[0].mxu0
  %v3792 = vpop.f32.mrb[0].mxu0
  %v3793 = vadd.f32 0.0, %v3792
  %v3794 = vpop.f32.mrb[0].mxu0
  %3795 = vmatprep.mubr.bf16.mxu0 0
  %3796 = vmatmul.mubr.bf16.gmra.mrb[0].mxu0 %v842
  %v3797 = vpop.f32.mrb[0].mxu0
  %v3798 = vadd.f32 0.0, %v3797
  %v3799 = vpop.f32.mrb[0].mxu0
  %v3800 = vpop.f32.mrb[0].mxu0
  %v3801 = vadd.f32 0.0, %v3800
  %v3802 = vpop.f32.mrb[0].mxu0
  %3803 = vmatprep.mubr.bf16.mxu0 0
  %3804 = vmatmul.mubr.bf16.gmra.mrb[0].mxu0 %v845
  %v3805 = vpop.f32.mrb[0].mxu0
  %v3806 = vadd.f32 0.0, %v3805
  %v3807 = vpop.f32.mrb[0].mxu0
  %v3808 = vpop.f32.mrb[0].mxu0
  %v3809 = vadd.f32 0.0, %v3808
  %v3810 = vpop.f32.mrb[0].mxu0
  %3811 = vmatprep.mubr.bf16.mxu0 0
  %3812 = vmatmul.mubr.bf16.gmra.mrb[0].mxu0 %v848
  %v3813 = vpop.f32.mrb[0].mxu0
  %v3814 = vadd.f32 0.0, %v3813
  %v3815 = vpop.f32.mrb[0].mxu0
  %v3816 = vpop.f32.mrb[0].mxu0
  %v3817 = vadd.f32 0.0, %v3816
  %v3818 = vpop.f32.mrb[0].mxu0
  %3819 = vmatprep.mubr.bf16.mxu0 0
  %3820 = vmatmul.mubr.bf16.gmra.mrb[0].mxu0 %v851
  %v3821 = vpop.f32.mrb[0].mxu0
  %v3822 = vadd.f32 0.0, %v3821
  %v3823 = vpop.f32.mrb[0].mxu0
  %v3824 = vpop.f32.mrb[0].mxu0
  %v3825 = vadd.f32 0.0, %v3824
  %v3826 = vpop.f32.mrb[0].mxu0
  %3827 = vmatprep.mubr.bf16.mxu0 0
  %3828 = vmatmul.mubr.bf16.gmra.mrb[0].mxu0 %v854
  %v3829 = vpop.f32.mrb[0].mxu0
  %v3830 = vadd.f32 0.0, %v3829
  %v3831 = vpop.f32.mrb[0].mxu0
  %v3832 = vpop.f32.mrb[0].mxu0
  %v3833 = vadd.f32 0.0, %v3832
  %v3834 = vpop.f32.mrb[0].mxu0
  %3835 = vmatprep.mubr.bf16.mxu0 0
  %3836 = vmatmul.mubr.bf16.gmra.mrb[0].mxu0 %v857
  %v3837 = vpop.f32.mrb[0].mxu0
  %v3838 = vadd.f32 0.0, %v3837
  %v3839 = vpop.f32.mrb[0].mxu0
  %v3840 = vpop.f32.mrb[0].mxu0
  %v3841 = vadd.f32 0.0, %v3840
  %v3842 = vpop.f32.mrb[0].mxu0
  %3843 = vmatprep.mubr.bf16.mxu0 0
  %3844 = vmatmul.mubr.bf16.gmra.mrb[0].mxu0 %v860
  %v3845 = vpop.f32.mrb[0].mxu0
  %v3846 = vadd.f32 0.0, %v3845
  %v3847 = vpop.f32.mrb[0].mxu0
  %v3848 = vpop.f32.mrb[0].mxu0
  %v3849 = vadd.f32 0.0, %v3848
  %v3850 = vpop.f32.mrb[0].mxu0
  %3851 = vmatprep.mubr.bf16.mxu0 0
  %3852 = vmatmul.mubr.bf16.gmra.mrb[0].mxu0 %v863
  %v3853 = vpop.f32.mrb[0].mxu0
  %v3854 = vadd.f32 0.0, %v3853
  %v3855 = vpop.f32.mrb[0].mxu0
  %v3856 = vpop.f32.mrb[0].mxu0
  %v3857 = vadd.f32 0.0, %v3856
  %v3858 = vpop.f32.mrb[0].mxu0
  %3859 = vmatprep.mubr.bf16.mxu0 0
  %3860 = vmatmul.mubr.bf16.gmra.mrb[0].mxu0 %v866
  %v3861 = vpop.f32.mrb[0].mxu0
  %v3862 = vadd.f32 0.0, %v3861
  %v3863 = vpop.f32.mrb[0].mxu0
  %v3864 = vpop.f32.mrb[0].mxu0
  %v3865 = vadd.f32 0.0, %v3864
  %v3866 = vpop.f32.mrb[0].mxu0
  %3867 = vmatprep.mubr.bf16.mxu0 0
  %3868 = vmatmul.mubr.bf16.gmra.mrb[0].mxu0 %v869
  %v3869 = vpop.f32.mrb[0].mxu0
  %v3870 = vadd.f32 0.0, %v3869
  %v3871 = vpop.f32.mrb[0].mxu0
  %v3872 = vpop.f32.mrb[0].mxu0
  %v3873 = vadd.f32 0.0, %v3872
  %v3874 = vpop.f32.mrb[0].mxu0
  %3875 = vmatprep.mubr.bf16.mxu0 0
  %3876 = vmatmul.mubr.bf16.gmra.mrb[0].mxu0 %v872
  %v3877 = vpop.f32.mrb[0].mxu0
  %v3878 = vadd.f32 0.0, %v3877
  %v3879 = vpop.f32.mrb[0].mxu0
  %v3880 = vpop.f32.mrb[0].mxu0
  %v3881 = vadd.f32 0.0, %v3880
  %v3882 = vpop.f32.mrb[0].mxu0
  %3883 = vmatprep.mubr.bf16.mxu0 0
  %3884 = vmatmul.mubr.bf16.gmra.mrb[0].mxu0 %v875
  %v3885 = vpop.f32.mrb[0].mxu0
  %v3886 = vadd.f32 0.0, %v3885
  %v3887 = vpop.f32.mrb[0].mxu0
  %v3888 = vpop.f32.mrb[0].mxu0
  %v3889 = vadd.f32 0.0, %v3888
  %v3890 = vpop.f32.mrb[0].mxu0
  %3891 = vmatprep.mubr.bf16.mxu0 0
  %3892 = vmatmul.mubr.bf16.gmra.mrb[0].mxu0 %v878
  %v3893 = vpop.f32.mrb[0].mxu0
  %v3894 = vadd.f32 0.0, %v3893
  %v3895 = vpop.f32.mrb[0].mxu0
  %v3896 = vpop.f32.mrb[0].mxu0
  %v3897 = vadd.f32 0.0, %v3896
  %v3898 = vpop.f32.mrb[0].mxu0
  %3899 = vmatprep.mubr.bf16.mxu0 0
  %3900 = vmatmul.mubr.bf16.gmra.mrb[0].mxu0 %v881
  %v3901 = vpop.f32.mrb[0].mxu0
  %v3902 = vadd.f32 0.0, %v3901
  %v3903 = vpop.f32.mrb[0].mxu0
  %v3904 = vpop.f32.mrb[0].mxu0
  %v3905 = vadd.f32 0.0, %v3904
  %v3906 = vpop.f32.mrb[0].mxu0
  %3907 = vmatprep.mubr.bf16.mxu0 0
  %3908 = vmatmul.mubr.bf16.gmra.mrb[0].mxu0 %v884
  %v3909 = vpop.f32.mrb[0].mxu0
  %v3910 = vadd.f32 0.0, %v3909
  %v3911 = vpop.f32.mrb[0].mxu0
  %v3912 = vpop.f32.mrb[0].mxu0
  %v3913 = vadd.f32 0.0, %v3912
  %v3914 = vpop.f32.mrb[0].mxu0
  %3915 = vmatprep.mubr.bf16.mxu0 0
  %3916 = vmatmul.mubr.bf16.gmra.mrb[0].mxu0 %v887
  %v3917 = vpop.f32.mrb[0].mxu0
  %v3918 = vadd.f32 0.0, %v3917
  %v3919 = vpop.f32.mrb[0].mxu0
  %v3920 = vpop.f32.mrb[0].mxu0
  %v3921 = vadd.f32 0.0, %v3920
  %v3922 = vpop.f32.mrb[0].mxu0
  %3923 = vmatprep.mubr.bf16.mxu0 0
  %3924 = vmatmul.mubr.bf16.gmra.mrb[0].mxu0 %v890
  %v3925 = vpop.f32.mrb[0].mxu0
  %v3926 = vadd.f32 0.0, %v3925
  %v3927 = vpop.f32.mrb[0].mxu0
  %v3928 = vpop.f32.mrb[0].mxu0
  %v3929 = vadd.f32 0.0, %v3928
  %v3930 = vpop.f32.mrb[0].mxu0
  %3931 = vmatprep.mubr.bf16.mxu0 0
  %3932 = vmatmul.mubr.bf16.gmra.mrb[0].mxu0 %v893
  %v3933 = vpop.f32.mrb[0].mxu0
  %v3934 = vadd.f32 0.0, %v3933
  %v3935 = vpop.f32.mrb[0].mxu0
  %v3936 = vpop.f32.mrb[0].mxu0
  %v3937 = vadd.f32 0.0, %v3936
  %v3938 = vpop.f32.mrb[0].mxu0
  %3939 = vmatprep.mubr.bf16.mxu0 0
  %3940 = vmatmul.mubr.bf16.gmra.mrb[0].mxu0 %v896
  %v3941 = vpop.f32.mrb[0].mxu0
  %v3942 = vadd.f32 0.0, %v3941
  %v3943 = vpop.f32.mrb[0].mxu0
  %v3944 = vpop.f32.mrb[0].mxu0
  %v3945 = vadd.f32 0.0, %v3944
  %v3946 = vpop.f32.mrb[0].mxu0
  %3947 = vmatprep.mubr.bf16.mxu0 0
  %3948 = vmatmul.mubr.bf16.gmra.mrb[0].mxu0 %v899
  %v3949 = vpop.f32.mrb[0].mxu0
  %v3950 = vadd.f32 0.0, %v3949
  %v3951 = vpop.f32.mrb[0].mxu0
  %v3952 = vpop.f32.mrb[0].mxu0
  %v3953 = vadd.f32 0.0, %v3952
  %v3954 = vpop.f32.mrb[0].mxu0
  %3955 = vmatprep.mubr.bf16.mxu0 0
  %3956 = vmatmul.mubr.bf16.gmra.mrb[0].mxu0 %v902
  %v3957 = vpop.f32.mrb[0].mxu0
  %v3958 = vadd.f32 0.0, %v3957
  %v3959 = vpop.f32.mrb[0].mxu0
  %v3960 = vpop.f32.mrb[0].mxu0
  %v3961 = vadd.f32 0.0, %v3960
  %v3962 = vpop.f32.mrb[0].mxu0
  %3963 = vmatprep.mubr.bf16.mxu0 0
  %3964 = vmatmul.mubr.bf16.gmra.mrb[0].mxu0 %v905
  %v3965 = vpop.f32.mrb[0].mxu0
  %v3966 = vadd.f32 0.0, %v3965
  %v3967 = vpop.f32.mrb[0].mxu0
  %v3968 = vpop.f32.mrb[0].mxu0
  %v3969 = vadd.f32 0.0, %v3968
  %v3970 = vpop.f32.mrb[0].mxu0
  %3971 = vmatprep.mubr.bf16.mxu0 0
  %3972 = vmatmul.mubr.bf16.gmra.mrb[0].mxu0 %v908
  %v3973 = vpop.f32.mrb[0].mxu0
  %v3974 = vadd.f32 0.0, %v3973
  %v3975 = vpop.f32.mrb[0].mxu0
  %v3976 = vpop.f32.mrb[0].mxu0
  %v3977 = vadd.f32 0.0, %v3976
  %v3978 = vpop.f32.mrb[0].mxu0
  %3979 = vmatprep.mubr.bf16.mxu0 0
  %3980 = vmatmul.mubr.bf16.gmra.mrb[0].mxu0 %v911
  %v3981 = vpop.f32.mrb[0].mxu0
  %v3982 = vadd.f32 0.0, %v3981
  %v3983 = vpop.f32.mrb[0].mxu0
  %v3984 = vpop.f32.mrb[0].mxu0
  %v3985 = vadd.f32 0.0, %v3984
  %v3986 = vpop.f32.mrb[0].mxu0
  %3987 = vmatprep.mubr.bf16.mxu0 0
  %3988 = vmatmul.mubr.bf16.gmra.mrb[0].mxu0 %v914
  %v3989 = vpop.f32.mrb[0].mxu0
  %v3990 = vadd.f32 0.0, %v3989
  %v3991 = vpop.f32.mrb[0].mxu0
  %v3992 = vpop.f32.mrb[0].mxu0
  %v3993 = vadd.f32 0.0, %v3992
  %v3994 = vpop.f32.mrb[0].mxu0
  %3995 = vmatprep.mubr.bf16.mxu0 0
  %3996 = vmatmul.mubr.bf16.gmra.mrb[0].mxu0 %v917
  %v3997 = vpop.f32.mrb[0].mxu0
  %v3998 = vadd.f32 0.0, %v3997
  %v3999 = vpop.f32.mrb[0].mxu0
  %v4000 = vpop.f32.mrb[0].mxu0
  %v4001 = vadd.f32 0.0, %v4000
  %v4002 = vpop.f32.mrb[0].mxu0
  %4003 = vmatprep.mubr.bf16.mxu0 0
  %4004 = vmatmul.mubr.bf16.gmra.mrb[0].mxu0 %v920
  %v4005 = vpop.f32.mrb[0].mxu0
  %v4006 = vadd.f32 0.0, %v4005
  %v4007 = vpop.f32.mrb[0].mxu0
  %v4008 = vpop.f32.mrb[0].mxu0
  %v4009 = vadd.f32 0.0, %v4008
  %v4010 = vpop.f32.mrb[0].mxu0
  %4011 = vmatprep.mubr.bf16.mxu0 0
  %4012 = vmatmul.mubr.bf16.gmra.mrb[0].mxu0 %v923
  %v4013 = vpop.f32.mrb[0].mxu0
  %v4014 = vadd.f32 0.0, %v4013
  %v4015 = vpop.f32.mrb[0].mxu0
  %v4016 = vpop.f32.mrb[0].mxu0
  %v4017 = vadd.f32 0.0, %v4016
  %v4018 = vpop.f32.mrb[0].mxu0
  %4019 = vmatprep.mubr.bf16.mxu0 0
  %4020 = vmatmul.mubr.bf16.gmra.mrb[0].mxu0 %v926
  %v4021 = vpop.f32.mrb[0].mxu0
  %v4022 = vadd.f32 0.0, %v4021
  %v4023 = vpop.f32.mrb[0].mxu0
  %v4024 = vpop.f32.mrb[0].mxu0
  %v4025 = vadd.f32 0.0, %v4024
  %v4026 = vpop.f32.mrb[0].mxu0
  %4027 = vmatprep.mubr.bf16.mxu0 0
  %4028 = vmatmul.mubr.bf16.gmra.mrb[0].mxu0 %v2195
  %v4029 = vpop.f32.mrb[0].mxu0
  %v4030 = vadd.f32 0.0, %v4029
  %v4031 = vpop.f32.mrb[0].mxu0
  %v4032 = vpop.f32.mrb[0].mxu0
  %v4033 = vadd.f32 0.0, %v4032
  %v4034 = vpop.f32.mrb[0].mxu0
  %4035 = vmatprep.mubr.bf16.mxu0 0
  %4036 = vmatmul.mubr.bf16.gmra.mrb[0].mxu0 %v2198
  %v4037 = vpop.f32.mrb[0].mxu0
  %v4038 = vadd.f32 0.0, %v4037
  %v4039 = vpop.f32.mrb[0].mxu0
  %v4040 = vpop.f32.mrb[0].mxu0
  %v4041 = vadd.f32 0.0, %v4040
  %v4042 = vpop.f32.mrb[0].mxu0
  %4043 = vmatprep.mubr.bf16.mxu0 0
  %4044 = vmatmul.mubr.bf16.gmra.mrb[0].mxu0 %v2201
  %v4045 = vpop.f32.mrb[0].mxu0
  %v4046 = vadd.f32 0.0, %v4045
  %v4047 = vpop.f32.mrb[0].mxu0
  %v4048 = vpop.f32.mrb[0].mxu0
  %v4049 = vadd.f32 0.0, %v4048
  %v4050 = vpop.f32.mrb[0].mxu0
  %4051 = vmatprep.mubr.bf16.mxu0 0
  %4052 = vmatmul.mubr.bf16.gmra.mrb[0].mxu0 %v2204
  %v4053 = vpop.f32.mrb[0].mxu0
  %v4054 = vadd.f32 0.0, %v4053
  %v4055 = vpop.f32.mrb[0].mxu0
  %v4056 = vpop.f32.mrb[0].mxu0
  %v4057 = vadd.f32 0.0, %v4056
  %v4058 = vpop.f32.mrb[0].mxu0
  %4059 = vmatprep.mubr.bf16.mxu0 0
  %4060 = vmatmul.mubr.bf16.gmra.mrb[0].mxu0 %v2207
  %v4061 = vpop.f32.mrb[0].mxu0
  %v4062 = vadd.f32 0.0, %v4061
  %v4063 = vpop.f32.mrb[0].mxu0
  %v4064 = vpop.f32.mrb[0].mxu0
  %v4065 = vadd.f32 0.0, %v4064
  %v4066 = vpop.f32.mrb[0].mxu0
  %4067 = vmatprep.mubr.bf16.mxu0 0
  %4068 = vmatmul.mubr.bf16.gmra.mrb[0].mxu0 %v2210
  %v4069 = vpop.f32.mrb[0].mxu0
  %v4070 = vadd.f32 0.0, %v4069
  %v4071 = vpop.f32.mrb[0].mxu0
  %v4072 = vpop.f32.mrb[0].mxu0
  %v4073 = vadd.f32 0.0, %v4072
  %v4074 = vpop.f32.mrb[0].mxu0
  %4075 = vmatprep.mubr.bf16.mxu0 0
  %4076 = vmatmul.mubr.bf16.gmra.mrb[0].mxu0 %v3473
  %v4077 = vpop.f32.mrb[0].mxu0
  %v4078 = vadd.f32 0.0, %v4077
  %v4079 = vpop.f32.mrb[0].mxu0
  %v4080 = vpop.f32.mrb[0].mxu0
  %v4081 = vadd.f32 0.0, %v4080
  %v4082 = vpop.f32.mrb[0].mxu0
  %4083 = vdwg.mxu0
  %v4084 = vadd.f32 %v1596, %v3510
  %v4085 = vadd.f32 %v1599, %v3513
  %v4086 = vadd.f32 %v1604, %v3518
  %v4087 = vadd.f32 %v1607, %v3521
  %v4088 = vadd.f32 %v1612, %v3526
  %v4089 = vadd.f32 %v1615, %v3529
  %v4090 = vadd.f32 %v1620, %v3534
  %v4091 = vadd.f32 %v1623, %v3537
  %v4092 = vadd.f32 %v1628, %v3542
  %v4093 = vadd.f32 %v1631, %v3545
  %v4094 = vadd.f32 %v1636, %v3550
  %v4095 = vadd.f32 %v1639, %v3553
  %v4096 = vadd.f32 %v1644, %v3558
  %v4097 = vadd.f32 %v1647, %v3561
  %v4098 = vadd.f32 %v1652, %v3566
  %v4099 = vadd.f32 %v1655, %v3569
  %v4100 = vadd.f32 %v1660, %v3574
  %v4101 = vadd.f32 %v1663, %v3577
  %v4102 = vadd.f32 %v1668, %v3582
  %v4103 = vadd.f32 %v1671, %v3585
  %v4104 = vadd.f32 %v1676, %v3590
  %v4105 = vadd.f32 %v1679, %v3593
  %v4106 = vadd.f32 %v1684, %v3598
  %v4107 = vadd.f32 %v1687, %v3601
  %v4108 = vadd.f32 %v1692, %v3606
  %v4109 = vadd.f32 %v1695, %v3609
  %v4110 = vadd.f32 %v1700, %v3614
  %v4111 = vadd.f32 %v1703, %v3617
  %v4112 = vadd.f32 %v1708, %v3622
  %v4113 = vadd.f32 %v1711, %v3625
  %v4114 = vadd.f32 %v1716, %v3630
  %v4115 = vadd.f32 %v1719, %v3633
  %v4116 = vadd.f32 %v1724, %v3638
  %v4117 = vadd.f32 %v1727, %v3641
  %v4118 = vadd.f32 %v1732, %v3646
  %v4119 = vadd.f32 %v1735, %v3649
  %v4120 = vadd.f32 %v1740, %v3654
  %v4121 = vadd.f32 %v1743, %v3657
  %v4122 = vadd.f32 %v1748, %v3662
  %v4123 = vadd.f32 %v1751, %v3665
  %v4124 = vadd.f32 %v1756, %v3670
  %v4125 = vadd.f32 %v1759, %v3673
  %v4126 = vadd.f32 %v1764, %v3678
  %v4127 = vadd.f32 %v1767, %v3681
  %v4128 = vadd.f32 %v1772, %v3686
  %v4129 = vadd.f32 %v1775, %v3689
  %v4130 = vadd.f32 %v1780, %v3694
  %v4131 = vadd.f32 %v1783, %v3697
  %v4132 = vadd.f32 %v1788, %v3702
  %v4133 = vadd.f32 %v1791, %v3705
  %v4134 = vadd.f32 %v1796, %v3710
  %v4135 = vadd.f32 %v1799, %v3713
  %v4136 = vadd.f32 %v1804, %v3718
  %v4137 = vadd.f32 %v1807, %v3721
  %v4138 = vadd.f32 %v1812, %v3726
  %v4139 = vadd.f32 %v1815, %v3729
  %v4140 = vadd.f32 %v1820, %v3734
  %v4141 = vadd.f32 %v1823, %v3737
  %v4142 = vadd.f32 %v1828, %v3742
  %v4143 = vadd.f32 %v1831, %v3745
  %v4144 = vadd.f32 %v1836, %v3750
  %v4145 = vadd.f32 %v1839, %v3753
  %v4146 = vadd.f32 %v1844, %v3758
  %v4147 = vadd.f32 %v1847, %v3761
  %v4148 = vadd.f32 %v1852, %v3766
  %v4149 = vadd.f32 %v1855, %v3769
  %v4150 = vadd.f32 %v1860, %v3774
  %v4151 = vadd.f32 %v1863, %v3777
  %v4152 = vadd.f32 %v1868, %v3782
  %v4153 = vadd.f32 %v1871, %v3785
  %v4154 = vadd.f32 %v1876, %v3790
  %v4155 = vadd.f32 %v1879, %v3793
  %v4156 = vadd.f32 %v1884, %v3798
  %v4157 = vadd.f32 %v1887, %v3801
  %v4158 = vadd.f32 %v1892, %v3806
  %v4159 = vadd.f32 %v1895, %v3809
  %v4160 = vadd.f32 %v1900, %v3814
  %v4161 = vadd.f32 %v1903, %v3817
  %v4162 = vadd.f32 %v1908, %v3822
  %v4163 = vadd.f32 %v1911, %v3825
  %v4164 = vadd.f32 %v1916, %v3830
  %v4165 = vadd.f32 %v1919, %v3833
  %v4166 = vadd.f32 %v1924, %v3838
  %v4167 = vadd.f32 %v1927, %v3841
  %v4168 = vadd.f32 %v1932, %v3846
  %v4169 = vadd.f32 %v1935, %v3849
  %v4170 = vadd.f32 %v1940, %v3854
  %v4171 = vadd.f32 %v1943, %v3857
  %v4172 = vadd.f32 %v1948, %v3862
  %v4173 = vadd.f32 %v1951, %v3865
  %v4174 = vadd.f32 %v1956, %v3870
  %v4175 = vadd.f32 %v1959, %v3873
  %v4176 = vadd.f32 %v1964, %v3878
  %v4177 = vadd.f32 %v1967, %v3881
  %v4178 = vadd.f32 %v1972, %v3886
  %v4179 = vadd.f32 %v1975, %v3889
  %v4180 = vadd.f32 %v1980, %v3894
  %v4181 = vadd.f32 %v1983, %v3897
  %v4182 = vadd.f32 %v1988, %v3902
  %v4183 = vadd.f32 %v1991, %v3905
  %v4184 = vadd.f32 %v1996, %v3910
  %v4185 = vadd.f32 %v1999, %v3913
  %v4186 = vadd.f32 %v2004, %v3918
  %v4187 = vadd.f32 %v2007, %v3921
  %v4188 = vadd.f32 %v2012, %v3926
  %v4189 = vadd.f32 %v2015, %v3929
  %v4190 = vadd.f32 %v2020, %v3934
  %v4191 = vadd.f32 %v2023, %v3937
  %v4192 = vadd.f32 %v2028, %v3942
  %v4193 = vadd.f32 %v2031, %v3945
  %v4194 = vadd.f32 %v2036, %v3950
  %v4195 = vadd.f32 %v2039, %v3953
  %v4196 = vadd.f32 %v2044, %v3958
  %v4197 = vadd.f32 %v2047, %v3961
  %v4198 = vadd.f32 %v2052, %v3966
  %v4199 = vadd.f32 %v2055, %v3969
  %v4200 = vadd.f32 %v2060, %v3974
  %v4201 = vadd.f32 %v2063, %v3977
  %v4202 = vadd.f32 %v2068, %v3982
  %v4203 = vadd.f32 %v2071, %v3985
  %v4204 = vadd.f32 %v2076, %v3990
  %v4205 = vadd.f32 %v2079, %v3993
  %v4206 = vadd.f32 %v2084, %v3998
  %v4207 = vadd.f32 %v2087, %v4001
  %v4208 = vadd.f32 %v2092, %v4006
  %v4209 = vadd.f32 %v2095, %v4009
  %v4210 = vadd.f32 %v2100, %v4014
  %v4211 = vadd.f32 %v2103, %v4017
  %v4212 = vadd.f32 %v2108, %v4022
  %v4213 = vadd.f32 %v2111, %v4025
  %v4214 = vadd.f32 %v2116, %v4030
  %v4215 = vadd.f32 %v2119, %v4033
  %v4216 = vadd.f32 %v2124, %v4038
  %v4217 = vadd.f32 %v2127, %v4041
  %v4218 = vadd.f32 %v2132, %v4046
  %v4219 = vadd.f32 %v2135, %v4049
  %v4220 = vadd.f32 %v2140, %v4054
  %v4221 = vadd.f32 %v2143, %v4057
  %v4222 = vadd.f32 %v2148, %v4062
  %v4223 = vadd.f32 %v2151, %v4065
  %v4224 = vadd.f32 %v2156, %v4070
  %v4225 = vadd.f32 %v2159, %v4073
  %v4226 = vadd.f32 %v2164, %v4078
  %v4227 = vadd.f32 %v2167, %v4081
  %v4228 = vld [vmem:[%s2 + $0x78] sm:$0xf]
  %v4229 = vld [vmem:[%s2 + $0x7c] sm:$0xf]
  %v4230 = vld [vmem:[%s2 + $0x80] sm:$0xf]
  %v4231 = vld [vmem:[%s2 + $0x84] sm:$0xf]
  %v4232 = vld [vmem:[%s2 + $0x88] sm:$0xf]
  %v4233 = vld [vmem:[%s2 + $0x8c] sm:$0xf]
  %v4240 = vunpack.c.l.b16 %v4228
  %v4241 = vunpack.c.l.b16 %v4229
  %v4242 = vunpack.c.l.b16 %v4230
  %v4243 = vunpack.c.l.b16 %v4231
  %v4244 = vunpack.c.l.b16 %v4232
  %v4245 = vunpack.c.l.b16 %v4233
  %v4246 = vpack.c.b16 %v4241, %v4240
  %v4247 = vpack.c.b16 %v4243, %v4242
  %v4248 = vpack.c.b16 %v4245, %v4244
  %v4253 = vsel %vm711, %v666, 0
  %4255 = vmatprep.subr.bf16.mxu0 0
  %4256 = vmatpush1.bf16.msra.mxu0 %v4246
  %4257 = vmatprep.subr.bf16.mxu0 0
  %4258 = vmatpush1.bf16.msra.mxu0 %v4247
  %4259 = vmatprep.subr.bf16.mxu0 0
  %4260 = vmatpush1.bf16.msra.mxu0 %v4248
  %4261 = vmatprep.subr.bf16.mxu0 0
  %4262 = vmatpush1.bf16.msra.mxu0 0
  %4263 = vmatprep.subr.bf16.mxu0 0
  %4264 = vmatpush1.bf16.msra.mxu0 0
  %4265 = vmatprep.subr.bf16.mxu0 0
  %4266 = vmatpush1.bf16.msra.mxu0 0
  %4267 = vmatprep.subr.bf16.mxu0 0
  %4268 = vmatpush1.bf16.msra.mxu0 0
  %4269 = vmatprep.subr.bf16.mxu0 0
  %4270 = vmatpush1.bf16.msra.mxu0 0
  %4271 = vmatprep.subr.bf16.mxu0 0
  %4272 = vmatpush1.bf16.msra.mxu0 0
  %4273 = vmatprep.subr.bf16.mxu0 0
  %4274 = vmatpush1.bf16.msra.mxu0 0
  %4275 = vmatprep.subr.bf16.mxu0 0
  %4276 = vmatpush1.bf16.msra.mxu0 0
  %4277 = vmatprep.subr.bf16.mxu0 0
  %4278 = vmatpush1.bf16.msra.mxu0 0
  %4279 = vmatprep.subr.bf16.mxu0 0
  %4280 = vmatpush1.bf16.msra.mxu0 0
  %4281 = vmatprep.subr.bf16.mxu0 0
  %4282 = vmatpush1.bf16.msra.mxu0 0
  %4283 = vmatprep.subr.bf16.mxu0 0
  %4284 = vmatpush1.bf16.msra.mxu0 0
  %4285 = vmatprep.subr.bf16.mxu0 0
  %4286 = vmatpush1.bf16.msra.mxu0 0
  %4287 = vmatprep.mubr.bf16.mxu0 0
  %4288 = vmatmul.mubr.bf16.gmra.mrb[0].mxu0 %v737
  %v4289 = vpop.f32.mrb[0].mxu0
  %v4290 = vadd.f32 0.0, %v4289
  %v4291 = vpop.f32.mrb[0].mxu0
  %v4292 = vpop.f32.mrb[0].mxu0
  %v4293 = vadd.f32 0.0, %v4292
  %v4294 = vpop.f32.mrb[0].mxu0
  %4295 = vmatprep.mubr.bf16.mxu0 0
  %4296 = vmatmul.mubr.bf16.gmra.mrb[0].mxu0 %v740
  %v4297 = vpop.f32.mrb[0].mxu0
  %v4298 = vadd.f32 0.0, %v4297
  %v4299 = vpop.f32.mrb[0].mxu0
  %v4300 = vpop.f32.mrb[0].mxu0
  %v4301 = vadd.f32 0.0, %v4300
  %v4302 = vpop.f32.mrb[0].mxu0
  %4303 = vmatprep.mubr.bf16.mxu0 0
  %4304 = vmatmul.mubr.bf16.gmra.mrb[0].mxu0 %v743
  %v4305 = vpop.f32.mrb[0].mxu0
  %v4306 = vadd.f32 0.0, %v4305
  %v4307 = vpop.f32.mrb[0].mxu0
  %v4308 = vpop.f32.mrb[0].mxu0
  %v4309 = vadd.f32 0.0, %v4308
  %v4310 = vpop.f32.mrb[0].mxu0
  %4311 = vmatprep.mubr.bf16.mxu0 0
  %4312 = vmatmul.mubr.bf16.gmra.mrb[0].mxu0 %v746
  %v4313 = vpop.f32.mrb[0].mxu0
  %v4314 = vadd.f32 0.0, %v4313
  %v4315 = vpop.f32.mrb[0].mxu0
  %v4316 = vpop.f32.mrb[0].mxu0
  %v4317 = vadd.f32 0.0, %v4316
  %v4318 = vpop.f32.mrb[0].mxu0
  %4319 = vmatprep.mubr.bf16.mxu0 0
  %4320 = vmatmul.mubr.bf16.gmra.mrb[0].mxu0 %v749
  %v4321 = vpop.f32.mrb[0].mxu0
  %v4322 = vadd.f32 0.0, %v4321
  %v4323 = vpop.f32.mrb[0].mxu0
  %v4324 = vpop.f32.mrb[0].mxu0
  %v4325 = vadd.f32 0.0, %v4324
  %v4326 = vpop.f32.mrb[0].mxu0
  %4327 = vmatprep.mubr.bf16.mxu0 0
  %4328 = vmatmul.mubr.bf16.gmra.mrb[0].mxu0 %v752
  %v4329 = vpop.f32.mrb[0].mxu0
  %v4330 = vadd.f32 0.0, %v4329
  %v4331 = vpop.f32.mrb[0].mxu0
  %v4332 = vpop.f32.mrb[0].mxu0
  %v4333 = vadd.f32 0.0, %v4332
  %v4334 = vpop.f32.mrb[0].mxu0
  %4335 = vmatprep.mubr.bf16.mxu0 0
  %4336 = vmatmul.mubr.bf16.gmra.mrb[0].mxu0 %v755
  %v4337 = vpop.f32.mrb[0].mxu0
  %v4338 = vadd.f32 0.0, %v4337
  %v4339 = vpop.f32.mrb[0].mxu0
  %v4340 = vpop.f32.mrb[0].mxu0
  %v4341 = vadd.f32 0.0, %v4340
  %v4342 = vpop.f32.mrb[0].mxu0
  %4343 = vmatprep.mubr.bf16.mxu0 0
  %4344 = vmatmul.mubr.bf16.gmra.mrb[0].mxu0 %v758
  %v4345 = vpop.f32.mrb[0].mxu0
  %v4346 = vadd.f32 0.0, %v4345
  %v4347 = vpop.f32.mrb[0].mxu0
  %v4348 = vpop.f32.mrb[0].mxu0
  %v4349 = vadd.f32 0.0, %v4348
  %v4350 = vpop.f32.mrb[0].mxu0
  %4351 = vmatprep.mubr.bf16.mxu0 0
  %4352 = vmatmul.mubr.bf16.gmra.mrb[0].mxu0 %v761
  %v4353 = vpop.f32.mrb[0].mxu0
  %v4354 = vadd.f32 0.0, %v4353
  %v4355 = vpop.f32.mrb[0].mxu0
  %v4356 = vpop.f32.mrb[0].mxu0
  %v4357 = vadd.f32 0.0, %v4356
  %v4358 = vpop.f32.mrb[0].mxu0
  %4359 = vmatprep.mubr.bf16.mxu0 0
  %4360 = vmatmul.mubr.bf16.gmra.mrb[0].mxu0 %v764
  %v4361 = vpop.f32.mrb[0].mxu0
  %v4362 = vadd.f32 0.0, %v4361
  %v4363 = vpop.f32.mrb[0].mxu0
  %v4364 = vpop.f32.mrb[0].mxu0
  %v4365 = vadd.f32 0.0, %v4364
  %v4366 = vpop.f32.mrb[0].mxu0
  %4367 = vmatprep.mubr.bf16.mxu0 0
  %4368 = vmatmul.mubr.bf16.gmra.mrb[0].mxu0 %v767
  %v4369 = vpop.f32.mrb[0].mxu0
  %v4370 = vadd.f32 0.0, %v4369
  %v4371 = vpop.f32.mrb[0].mxu0
  %v4372 = vpop.f32.mrb[0].mxu0
  %v4373 = vadd.f32 0.0, %v4372
  %v4374 = vpop.f32.mrb[0].mxu0
  %4375 = vmatprep.mubr.bf16.mxu0 0
  %4376 = vmatmul.mubr.bf16.gmra.mrb[0].mxu0 %v770
  %v4377 = vpop.f32.mrb[0].mxu0
  %v4378 = vadd.f32 0.0, %v4377
  %v4379 = vpop.f32.mrb[0].mxu0
  %v4380 = vpop.f32.mrb[0].mxu0
  %v4381 = vadd.f32 0.0, %v4380
  %v4382 = vpop.f32.mrb[0].mxu0
  %4383 = vmatprep.mubr.bf16.mxu0 0
  %4384 = vmatmul.mubr.bf16.gmra.mrb[0].mxu0 %v773
  %v4385 = vpop.f32.mrb[0].mxu0
  %v4386 = vadd.f32 0.0, %v4385
  %v4387 = vpop.f32.mrb[0].mxu0
  %v4388 = vpop.f32.mrb[0].mxu0
  %v4389 = vadd.f32 0.0, %v4388
  %v4390 = vpop.f32.mrb[0].mxu0
  %4391 = vmatprep.mubr.bf16.mxu0 0
  %4392 = vmatmul.mubr.bf16.gmra.mrb[0].mxu0 %v776
  %v4393 = vpop.f32.mrb[0].mxu0
  %v4394 = vadd.f32 0.0, %v4393
  %v4395 = vpop.f32.mrb[0].mxu0
  %v4396 = vpop.f32.mrb[0].mxu0
  %v4397 = vadd.f32 0.0, %v4396
  %v4398 = vpop.f32.mrb[0].mxu0
  %4399 = vmatprep.mubr.bf16.mxu0 0
  %4400 = vmatmul.mubr.bf16.gmra.mrb[0].mxu0 %v779
  %v4401 = vpop.f32.mrb[0].mxu0
  %v4402 = vadd.f32 0.0, %v4401
  %v4403 = vpop.f32.mrb[0].mxu0
  %v4404 = vpop.f32.mrb[0].mxu0
  %v4405 = vadd.f32 0.0, %v4404
  %v4406 = vpop.f32.mrb[0].mxu0
  %4407 = vmatprep.mubr.bf16.mxu0 0
  %4408 = vmatmul.mubr.bf16.gmra.mrb[0].mxu0 %v782
  %v4409 = vpop.f32.mrb[0].mxu0
  %v4410 = vadd.f32 0.0, %v4409
  %v4411 = vpop.f32.mrb[0].mxu0
  %v4412 = vpop.f32.mrb[0].mxu0
  %v4413 = vadd.f32 0.0, %v4412
  %v4414 = vpop.f32.mrb[0].mxu0
  %4415 = vmatprep.mubr.bf16.mxu0 0
  %4416 = vmatmul.mubr.bf16.gmra.mrb[0].mxu0 %v785
  %v4417 = vpop.f32.mrb[0].mxu0
  %v4418 = vadd.f32 0.0, %v4417
  %v4419 = vpop.f32.mrb[0].mxu0
  %v4420 = vpop.f32.mrb[0].mxu0
  %v4421 = vadd.f32 0.0, %v4420
  %v4422 = vpop.f32.mrb[0].mxu0
  %4423 = vmatprep.mubr.bf16.mxu0 0
  %4424 = vmatmul.mubr.bf16.gmra.mrb[0].mxu0 %v788
  %v4425 = vpop.f32.mrb[0].mxu0
  %v4426 = vadd.f32 0.0, %v4425
  %v4427 = vpop.f32.mrb[0].mxu0
  %v4428 = vpop.f32.mrb[0].mxu0
  %v4429 = vadd.f32 0.0, %v4428
  %v4430 = vpop.f32.mrb[0].mxu0
  %4431 = vmatprep.mubr.bf16.mxu0 0
  %4432 = vmatmul.mubr.bf16.gmra.mrb[0].mxu0 %v791
  %v4433 = vpop.f32.mrb[0].mxu0
  %v4434 = vadd.f32 0.0, %v4433
  %v4435 = vpop.f32.mrb[0].mxu0
  %v4436 = vpop.f32.mrb[0].mxu0
  %v4437 = vadd.f32 0.0, %v4436
  %v4438 = vpop.f32.mrb[0].mxu0
  %4439 = vmatprep.mubr.bf16.mxu0 0
  %4440 = vmatmul.mubr.bf16.gmra.mrb[0].mxu0 %v794
  %v4441 = vpop.f32.mrb[0].mxu0
  %v4442 = vadd.f32 0.0, %v4441
  %v4443 = vpop.f32.mrb[0].mxu0
  %v4444 = vpop.f32.mrb[0].mxu0
  %v4445 = vadd.f32 0.0, %v4444
  %v4446 = vpop.f32.mrb[0].mxu0
  %4447 = vmatprep.mubr.bf16.mxu0 0
  %4448 = vmatmul.mubr.bf16.gmra.mrb[0].mxu0 %v797
  %v4449 = vpop.f32.mrb[0].mxu0
  %v4450 = vadd.f32 0.0, %v4449
  %v4451 = vpop.f32.mrb[0].mxu0
  %v4452 = vpop.f32.mrb[0].mxu0
  %v4453 = vadd.f32 0.0, %v4452
  %v4454 = vpop.f32.mrb[0].mxu0
  %4455 = vmatprep.mubr.bf16.mxu0 0
  %4456 = vmatmul.mubr.bf16.gmra.mrb[0].mxu0 %v800
  %v4457 = vpop.f32.mrb[0].mxu0
  %v4458 = vadd.f32 0.0, %v4457
  %v4459 = vpop.f32.mrb[0].mxu0
  %v4460 = vpop.f32.mrb[0].mxu0
  %v4461 = vadd.f32 0.0, %v4460
  %v4462 = vpop.f32.mrb[0].mxu0
  %4463 = vmatprep.mubr.bf16.mxu0 0
  %4464 = vmatmul.mubr.bf16.gmra.mrb[0].mxu0 %v803
  %v4465 = vpop.f32.mrb[0].mxu0
  %v4466 = vadd.f32 0.0, %v4465
  %v4467 = vpop.f32.mrb[0].mxu0
  %v4468 = vpop.f32.mrb[0].mxu0
  %v4469 = vadd.f32 0.0, %v4468
  %v4470 = vpop.f32.mrb[0].mxu0
  %4471 = vmatprep.mubr.bf16.mxu0 0
  %4472 = vmatmul.mubr.bf16.gmra.mrb[0].mxu0 %v806
  %v4473 = vpop.f32.mrb[0].mxu0
  %v4474 = vadd.f32 0.0, %v4473
  %v4475 = vpop.f32.mrb[0].mxu0
  %v4476 = vpop.f32.mrb[0].mxu0
  %v4477 = vadd.f32 0.0, %v4476
  %v4478 = vpop.f32.mrb[0].mxu0
  %4479 = vmatprep.mubr.bf16.mxu0 0
  %4480 = vmatmul.mubr.bf16.gmra.mrb[0].mxu0 %v809
  %v4481 = vpop.f32.mrb[0].mxu0
  %v4482 = vadd.f32 0.0, %v4481
  %v4483 = vpop.f32.mrb[0].mxu0
  %v4484 = vpop.f32.mrb[0].mxu0
  %v4485 = vadd.f32 0.0, %v4484
  %v4486 = vpop.f32.mrb[0].mxu0
  %4487 = vmatprep.mubr.bf16.mxu0 0
  %4488 = vmatmul.mubr.bf16.gmra.mrb[0].mxu0 %v812
  %v4489 = vpop.f32.mrb[0].mxu0
  %v4490 = vadd.f32 0.0, %v4489
  %v4491 = vpop.f32.mrb[0].mxu0
  %v4492 = vpop.f32.mrb[0].mxu0
  %v4493 = vadd.f32 0.0, %v4492
  %v4494 = vpop.f32.mrb[0].mxu0
  %4495 = vmatprep.mubr.bf16.mxu0 0
  %4496 = vmatmul.mubr.bf16.gmra.mrb[0].mxu0 %v815
  %v4497 = vpop.f32.mrb[0].mxu0
  %v4498 = vadd.f32 0.0, %v4497
  %v4499 = vpop.f32.mrb[0].mxu0
  %v4500 = vpop.f32.mrb[0].mxu0
  %v4501 = vadd.f32 0.0, %v4500
  %v4502 = vpop.f32.mrb[0].mxu0
  %4503 = vmatprep.mubr.bf16.mxu0 0
  %4504 = vmatmul.mubr.bf16.gmra.mrb[0].mxu0 %v818
  %v4505 = vpop.f32.mrb[0].mxu0
  %v4506 = vadd.f32 0.0, %v4505
  %v4507 = vpop.f32.mrb[0].mxu0
  %v4508 = vpop.f32.mrb[0].mxu0
  %v4509 = vadd.f32 0.0, %v4508
  %v4510 = vpop.f32.mrb[0].mxu0
  %4511 = vmatprep.mubr.bf16.mxu0 0
  %4512 = vmatmul.mubr.bf16.gmra.mrb[0].mxu0 %v821
  %v4513 = vpop.f32.mrb[0].mxu0
  %v4514 = vadd.f32 0.0, %v4513
  %v4515 = vpop.f32.mrb[0].mxu0
  %v4516 = vpop.f32.mrb[0].mxu0
  %v4517 = vadd.f32 0.0, %v4516
  %v4518 = vpop.f32.mrb[0].mxu0
  %4519 = vmatprep.mubr.bf16.mxu0 0
  %4520 = vmatmul.mubr.bf16.gmra.mrb[0].mxu0 %v824
  %v4521 = vpop.f32.mrb[0].mxu0
  %v4522 = vadd.f32 0.0, %v4521
  %v4523 = vpop.f32.mrb[0].mxu0
  %v4524 = vpop.f32.mrb[0].mxu0
  %v4525 = vadd.f32 0.0, %v4524
  %v4526 = vpop.f32.mrb[0].mxu0
  %4527 = vmatprep.mubr.bf16.mxu0 0
  %4528 = vmatmul.mubr.bf16.gmra.mrb[0].mxu0 %v827
  %v4529 = vpop.f32.mrb[0].mxu0
  %v4530 = vadd.f32 0.0, %v4529
  %v4531 = vpop.f32.mrb[0].mxu0
  %v4532 = vpop.f32.mrb[0].mxu0
  %v4533 = vadd.f32 0.0, %v4532
  %v4534 = vpop.f32.mrb[0].mxu0
  %4535 = vmatprep.mubr.bf16.mxu0 0
  %4536 = vmatmul.mubr.bf16.gmra.mrb[0].mxu0 %v830
  %v4537 = vpop.f32.mrb[0].mxu0
  %v4538 = vadd.f32 0.0, %v4537
  %v4539 = vpop.f32.mrb[0].mxu0
  %v4540 = vpop.f32.mrb[0].mxu0
  %v4541 = vadd.f32 0.0, %v4540
  %v4542 = vpop.f32.mrb[0].mxu0
  %4543 = vmatprep.mubr.bf16.mxu0 0
  %4544 = vmatmul.mubr.bf16.gmra.mrb[0].mxu0 %v833
  %v4545 = vpop.f32.mrb[0].mxu0
  %v4546 = vadd.f32 0.0, %v4545
  %v4547 = vpop.f32.mrb[0].mxu0
  %v4548 = vpop.f32.mrb[0].mxu0
  %v4549 = vadd.f32 0.0, %v4548
  %v4550 = vpop.f32.mrb[0].mxu0
  %4551 = vmatprep.mubr.bf16.mxu0 0
  %4552 = vmatmul.mubr.bf16.gmra.mrb[0].mxu0 %v836
  %v4553 = vpop.f32.mrb[0].mxu0
  %v4554 = vadd.f32 0.0, %v4553
  %v4555 = vpop.f32.mrb[0].mxu0
  %v4556 = vpop.f32.mrb[0].mxu0
  %v4557 = vadd.f32 0.0, %v4556
  %v4558 = vpop.f32.mrb[0].mxu0
  %4559 = vmatprep.mubr.bf16.mxu0 0
  %4560 = vmatmul.mubr.bf16.gmra.mrb[0].mxu0 %v839
  %v4561 = vpop.f32.mrb[0].mxu0
  %v4562 = vadd.f32 0.0, %v4561
  %v4563 = vpop.f32.mrb[0].mxu0
  %v4564 = vpop.f32.mrb[0].mxu0
  %v4565 = vadd.f32 0.0, %v4564
  %v4566 = vpop.f32.mrb[0].mxu0
  %4567 = vmatprep.mubr.bf16.mxu0 0
  %4568 = vmatmul.mubr.bf16.gmra.mrb[0].mxu0 %v842
  %v4569 = vpop.f32.mrb[0].mxu0
  %v4570 = vadd.f32 0.0, %v4569
  %v4571 = vpop.f32.mrb[0].mxu0
  %v4572 = vpop.f32.mrb[0].mxu0
  %v4573 = vadd.f32 0.0, %v4572
  %v4574 = vpop.f32.mrb[0].mxu0
  %4575 = vmatprep.mubr.bf16.mxu0 0
  %4576 = vmatmul.mubr.bf16.gmra.mrb[0].mxu0 %v845
  %v4577 = vpop.f32.mrb[0].mxu0
  %v4578 = vadd.f32 0.0, %v4577
  %v4579 = vpop.f32.mrb[0].mxu0
  %v4580 = vpop.f32.mrb[0].mxu0
  %v4581 = vadd.f32 0.0, %v4580
  %v4582 = vpop.f32.mrb[0].mxu0
  %4583 = vmatprep.mubr.bf16.mxu0 0
  %4584 = vmatmul.mubr.bf16.gmra.mrb[0].mxu0 %v848
  %v4585 = vpop.f32.mrb[0].mxu0
  %v4586 = vadd.f32 0.0, %v4585
  %v4587 = vpop.f32.mrb[0].mxu0
  %v4588 = vpop.f32.mrb[0].mxu0
  %v4589 = vadd.f32 0.0, %v4588
  %v4590 = vpop.f32.mrb[0].mxu0
  %4591 = vmatprep.mubr.bf16.mxu0 0
  %4592 = vmatmul.mubr.bf16.gmra.mrb[0].mxu0 %v851
  %v4593 = vpop.f32.mrb[0].mxu0
  %v4594 = vadd.f32 0.0, %v4593
  %v4595 = vpop.f32.mrb[0].mxu0
  %v4596 = vpop.f32.mrb[0].mxu0
  %v4597 = vadd.f32 0.0, %v4596
  %v4598 = vpop.f32.mrb[0].mxu0
  %4599 = vmatprep.mubr.bf16.mxu0 0
  %4600 = vmatmul.mubr.bf16.gmra.mrb[0].mxu0 %v854
  %v4601 = vpop.f32.mrb[0].mxu0
  %v4602 = vadd.f32 0.0, %v4601
  %v4603 = vpop.f32.mrb[0].mxu0
  %v4604 = vpop.f32.mrb[0].mxu0
  %v4605 = vadd.f32 0.0, %v4604
  %v4606 = vpop.f32.mrb[0].mxu0
  %4607 = vmatprep.mubr.bf16.mxu0 0
  %4608 = vmatmul.mubr.bf16.gmra.mrb[0].mxu0 %v857
  %v4609 = vpop.f32.mrb[0].mxu0
  %v4610 = vadd.f32 0.0, %v4609
  %v4611 = vpop.f32.mrb[0].mxu0
  %v4612 = vpop.f32.mrb[0].mxu0
  %v4613 = vadd.f32 0.0, %v4612
  %v4614 = vpop.f32.mrb[0].mxu0
  %4615 = vmatprep.mubr.bf16.mxu0 0
  %4616 = vmatmul.mubr.bf16.gmra.mrb[0].mxu0 %v860
  %v4617 = vpop.f32.mrb[0].mxu0
  %v4618 = vadd.f32 0.0, %v4617
  %v4619 = vpop.f32.mrb[0].mxu0
  %v4620 = vpop.f32.mrb[0].mxu0
  %v4621 = vadd.f32 0.0, %v4620
  %v4622 = vpop.f32.mrb[0].mxu0
  %4623 = vmatprep.mubr.bf16.mxu0 0
  %4624 = vmatmul.mubr.bf16.gmra.mrb[0].mxu0 %v863
  %v4625 = vpop.f32.mrb[0].mxu0
  %v4626 = vadd.f32 0.0, %v4625
  %v4627 = vpop.f32.mrb[0].mxu0
  %v4628 = vpop.f32.mrb[0].mxu0
  %v4629 = vadd.f32 0.0, %v4628
  %v4630 = vpop.f32.mrb[0].mxu0
  %4631 = vmatprep.mubr.bf16.mxu0 0
  %4632 = vmatmul.mubr.bf16.gmra.mrb[0].mxu0 %v866
  %v4633 = vpop.f32.mrb[0].mxu0
  %v4634 = vadd.f32 0.0, %v4633
  %v4635 = vpop.f32.mrb[0].mxu0
  %v4636 = vpop.f32.mrb[0].mxu0
  %v4637 = vadd.f32 0.0, %v4636
  %v4638 = vpop.f32.mrb[0].mxu0
  %4639 = vmatprep.mubr.bf16.mxu0 0
  %4640 = vmatmul.mubr.bf16.gmra.mrb[0].mxu0 %v869
  %v4641 = vpop.f32.mrb[0].mxu0
  %v4642 = vadd.f32 0.0, %v4641
  %v4643 = vpop.f32.mrb[0].mxu0
  %v4644 = vpop.f32.mrb[0].mxu0
  %v4645 = vadd.f32 0.0, %v4644
  %v4646 = vpop.f32.mrb[0].mxu0
  %4647 = vmatprep.mubr.bf16.mxu0 0
  %4648 = vmatmul.mubr.bf16.gmra.mrb[0].mxu0 %v872
  %v4649 = vpop.f32.mrb[0].mxu0
  %v4650 = vadd.f32 0.0, %v4649
  %v4651 = vpop.f32.mrb[0].mxu0
  %v4652 = vpop.f32.mrb[0].mxu0
  %v4653 = vadd.f32 0.0, %v4652
  %v4654 = vpop.f32.mrb[0].mxu0
  %4655 = vmatprep.mubr.bf16.mxu0 0
  %4656 = vmatmul.mubr.bf16.gmra.mrb[0].mxu0 %v875
  %v4657 = vpop.f32.mrb[0].mxu0
  %v4658 = vadd.f32 0.0, %v4657
  %v4659 = vpop.f32.mrb[0].mxu0
  %v4660 = vpop.f32.mrb[0].mxu0
  %v4661 = vadd.f32 0.0, %v4660
  %v4662 = vpop.f32.mrb[0].mxu0
  %4663 = vmatprep.mubr.bf16.mxu0 0
  %4664 = vmatmul.mubr.bf16.gmra.mrb[0].mxu0 %v878
  %v4665 = vpop.f32.mrb[0].mxu0
  %v4666 = vadd.f32 0.0, %v4665
  %v4667 = vpop.f32.mrb[0].mxu0
  %v4668 = vpop.f32.mrb[0].mxu0
  %v4669 = vadd.f32 0.0, %v4668
  %v4670 = vpop.f32.mrb[0].mxu0
  %4671 = vmatprep.mubr.bf16.mxu0 0
  %4672 = vmatmul.mubr.bf16.gmra.mrb[0].mxu0 %v881
  %v4673 = vpop.f32.mrb[0].mxu0
  %v4674 = vadd.f32 0.0, %v4673
  %v4675 = vpop.f32.mrb[0].mxu0
  %v4676 = vpop.f32.mrb[0].mxu0
  %v4677 = vadd.f32 0.0, %v4676
  %v4678 = vpop.f32.mrb[0].mxu0
  %4679 = vmatprep.mubr.bf16.mxu0 0
  %4680 = vmatmul.mubr.bf16.gmra.mrb[0].mxu0 %v884
  %v4681 = vpop.f32.mrb[0].mxu0
  %v4682 = vadd.f32 0.0, %v4681
  %v4683 = vpop.f32.mrb[0].mxu0
  %v4684 = vpop.f32.mrb[0].mxu0
  %v4685 = vadd.f32 0.0, %v4684
  %v4686 = vpop.f32.mrb[0].mxu0
  %4687 = vmatprep.mubr.bf16.mxu0 0
  %4688 = vmatmul.mubr.bf16.gmra.mrb[0].mxu0 %v887
  %v4689 = vpop.f32.mrb[0].mxu0
  %v4690 = vadd.f32 0.0, %v4689
  %v4691 = vpop.f32.mrb[0].mxu0
  %v4692 = vpop.f32.mrb[0].mxu0
  %v4693 = vadd.f32 0.0, %v4692
  %v4694 = vpop.f32.mrb[0].mxu0
  %4695 = vmatprep.mubr.bf16.mxu0 0
  %4696 = vmatmul.mubr.bf16.gmra.mrb[0].mxu0 %v890
  %v4697 = vpop.f32.mrb[0].mxu0
  %v4698 = vadd.f32 0.0, %v4697
  %v4699 = vpop.f32.mrb[0].mxu0
  %v4700 = vpop.f32.mrb[0].mxu0
  %v4701 = vadd.f32 0.0, %v4700
  %v4702 = vpop.f32.mrb[0].mxu0
  %4703 = vmatprep.mubr.bf16.mxu0 0
  %4704 = vmatmul.mubr.bf16.gmra.mrb[0].mxu0 %v893
  %v4705 = vpop.f32.mrb[0].mxu0
  %v4706 = vadd.f32 0.0, %v4705
  %v4707 = vpop.f32.mrb[0].mxu0
  %v4708 = vpop.f32.mrb[0].mxu0
  %v4709 = vadd.f32 0.0, %v4708
  %v4710 = vpop.f32.mrb[0].mxu0
  %4711 = vmatprep.mubr.bf16.mxu0 0
  %4712 = vmatmul.mubr.bf16.gmra.mrb[0].mxu0 %v896
  %v4713 = vpop.f32.mrb[0].mxu0
  %v4714 = vadd.f32 0.0, %v4713
  %v4715 = vpop.f32.mrb[0].mxu0
  %v4716 = vpop.f32.mrb[0].mxu0
  %v4717 = vadd.f32 0.0, %v4716
  %v4718 = vpop.f32.mrb[0].mxu0
  %4719 = vmatprep.mubr.bf16.mxu0 0
  %4720 = vmatmul.mubr.bf16.gmra.mrb[0].mxu0 %v899
  %v4721 = vpop.f32.mrb[0].mxu0
  %v4722 = vadd.f32 0.0, %v4721
  %v4723 = vpop.f32.mrb[0].mxu0
  %v4724 = vpop.f32.mrb[0].mxu0
  %v4725 = vadd.f32 0.0, %v4724
  %v4726 = vpop.f32.mrb[0].mxu0
  %4727 = vmatprep.mubr.bf16.mxu0 0
  %4728 = vmatmul.mubr.bf16.gmra.mrb[0].mxu0 %v902
  %v4729 = vpop.f32.mrb[0].mxu0
  %v4730 = vadd.f32 0.0, %v4729
  %v4731 = vpop.f32.mrb[0].mxu0
  %v4732 = vpop.f32.mrb[0].mxu0
  %v4733 = vadd.f32 0.0, %v4732
  %v4734 = vpop.f32.mrb[0].mxu0
  %4735 = vmatprep.mubr.bf16.mxu0 0
  %4736 = vmatmul.mubr.bf16.gmra.mrb[0].mxu0 %v905
  %v4737 = vpop.f32.mrb[0].mxu0
  %v4738 = vadd.f32 0.0, %v4737
  %v4739 = vpop.f32.mrb[0].mxu0
  %v4740 = vpop.f32.mrb[0].mxu0
  %v4741 = vadd.f32 0.0, %v4740
  %v4742 = vpop.f32.mrb[0].mxu0
  %4743 = vmatprep.mubr.bf16.mxu0 0
  %4744 = vmatmul.mubr.bf16.gmra.mrb[0].mxu0 %v908
  %v4745 = vpop.f32.mrb[0].mxu0
  %v4746 = vadd.f32 0.0, %v4745
  %v4747 = vpop.f32.mrb[0].mxu0
  %v4748 = vpop.f32.mrb[0].mxu0
  %v4749 = vadd.f32 0.0, %v4748
  %v4750 = vpop.f32.mrb[0].mxu0
  %4751 = vmatprep.mubr.bf16.mxu0 0
  %4752 = vmatmul.mubr.bf16.gmra.mrb[0].mxu0 %v911
  %v4753 = vpop.f32.mrb[0].mxu0
  %v4754 = vadd.f32 0.0, %v4753
  %v4755 = vpop.f32.mrb[0].mxu0
  %v4756 = vpop.f32.mrb[0].mxu0
  %v4757 = vadd.f32 0.0, %v4756
  %v4758 = vpop.f32.mrb[0].mxu0
  %4759 = vmatprep.mubr.bf16.mxu0 0
  %4760 = vmatmul.mubr.bf16.gmra.mrb[0].mxu0 %v914
  %v4761 = vpop.f32.mrb[0].mxu0
  %v4762 = vadd.f32 0.0, %v4761
  %v4763 = vpop.f32.mrb[0].mxu0
  %v4764 = vpop.f32.mrb[0].mxu0
  %v4765 = vadd.f32 0.0, %v4764
  %v4766 = vpop.f32.mrb[0].mxu0
  %4767 = vmatprep.mubr.bf16.mxu0 0
  %4768 = vmatmul.mubr.bf16.gmra.mrb[0].mxu0 %v917
  %v4769 = vpop.f32.mrb[0].mxu0
  %v4770 = vadd.f32 0.0, %v4769
  %v4771 = vpop.f32.mrb[0].mxu0
  %v4772 = vpop.f32.mrb[0].mxu0
  %v4773 = vadd.f32 0.0, %v4772
  %v4774 = vpop.f32.mrb[0].mxu0
  %4775 = vmatprep.mubr.bf16.mxu0 0
  %4776 = vmatmul.mubr.bf16.gmra.mrb[0].mxu0 %v920
  %v4777 = vpop.f32.mrb[0].mxu0
  %v4778 = vadd.f32 0.0, %v4777
  %v4779 = vpop.f32.mrb[0].mxu0
  %v4780 = vpop.f32.mrb[0].mxu0
  %v4781 = vadd.f32 0.0, %v4780
  %v4782 = vpop.f32.mrb[0].mxu0
  %4783 = vmatprep.mubr.bf16.mxu0 0
  %4784 = vmatmul.mubr.bf16.gmra.mrb[0].mxu0 %v923
  %v4785 = vpop.f32.mrb[0].mxu0
  %v4786 = vadd.f32 0.0, %v4785
  %v4787 = vpop.f32.mrb[0].mxu0
  %v4788 = vpop.f32.mrb[0].mxu0
  %v4789 = vadd.f32 0.0, %v4788
  %v4790 = vpop.f32.mrb[0].mxu0
  %4791 = vmatprep.mubr.bf16.mxu0 0
  %4792 = vmatmul.mubr.bf16.gmra.mrb[0].mxu0 %v926
  %v4793 = vpop.f32.mrb[0].mxu0
  %v4794 = vadd.f32 0.0, %v4793
  %v4795 = vpop.f32.mrb[0].mxu0
  %v4796 = vpop.f32.mrb[0].mxu0
  %v4797 = vadd.f32 0.0, %v4796
  %v4798 = vpop.f32.mrb[0].mxu0
  %4799 = vmatprep.mubr.bf16.mxu0 0
  %4800 = vmatmul.mubr.bf16.gmra.mrb[0].mxu0 %v2195
  %v4801 = vpop.f32.mrb[0].mxu0
  %v4802 = vadd.f32 0.0, %v4801
  %v4803 = vpop.f32.mrb[0].mxu0
  %v4804 = vpop.f32.mrb[0].mxu0
  %v4805 = vadd.f32 0.0, %v4804
  %v4806 = vpop.f32.mrb[0].mxu0
  %4807 = vmatprep.mubr.bf16.mxu0 0
  %4808 = vmatmul.mubr.bf16.gmra.mrb[0].mxu0 %v2198
  %v4809 = vpop.f32.mrb[0].mxu0
  %v4810 = vadd.f32 0.0, %v4809
  %v4811 = vpop.f32.mrb[0].mxu0
  %v4812 = vpop.f32.mrb[0].mxu0
  %v4813 = vadd.f32 0.0, %v4812
  %v4814 = vpop.f32.mrb[0].mxu0
  %4815 = vmatprep.mubr.bf16.mxu0 0
  %4816 = vmatmul.mubr.bf16.gmra.mrb[0].mxu0 %v2201
  %v4817 = vpop.f32.mrb[0].mxu0
  %v4818 = vadd.f32 0.0, %v4817
  %v4819 = vpop.f32.mrb[0].mxu0
  %v4820 = vpop.f32.mrb[0].mxu0
  %v4821 = vadd.f32 0.0, %v4820
  %v4822 = vpop.f32.mrb[0].mxu0
  %4823 = vmatprep.mubr.bf16.mxu0 0
  %4824 = vmatmul.mubr.bf16.gmra.mrb[0].mxu0 %v2204
  %v4825 = vpop.f32.mrb[0].mxu0
  %v4826 = vadd.f32 0.0, %v4825
  %v4827 = vpop.f32.mrb[0].mxu0
  %v4828 = vpop.f32.mrb[0].mxu0
  %v4829 = vadd.f32 0.0, %v4828
  %v4830 = vpop.f32.mrb[0].mxu0
  %4831 = vmatprep.mubr.bf16.mxu0 0
  %4832 = vmatmul.mubr.bf16.gmra.mrb[0].mxu0 %v2207
  %v4833 = vpop.f32.mrb[0].mxu0
  %v4834 = vadd.f32 0.0, %v4833
  %v4835 = vpop.f32.mrb[0].mxu0
  %v4836 = vpop.f32.mrb[0].mxu0
  %v4837 = vadd.f32 0.0, %v4836
  %v4838 = vpop.f32.mrb[0].mxu0
  %4839 = vmatprep.mubr.bf16.mxu0 0
  %4840 = vmatmul.mubr.bf16.gmra.mrb[0].mxu0 %v2210
  %v4841 = vpop.f32.mrb[0].mxu0
  %v4842 = vadd.f32 0.0, %v4841
  %v4843 = vpop.f32.mrb[0].mxu0
  %v4844 = vpop.f32.mrb[0].mxu0
  %v4845 = vadd.f32 0.0, %v4844
  %v4846 = vpop.f32.mrb[0].mxu0
  %4847 = vmatprep.mubr.bf16.mxu0 0
  %4848 = vmatmul.mubr.bf16.gmra.mrb[0].mxu0 %v3473
  %v4849 = vpop.f32.mrb[0].mxu0
  %v4850 = vadd.f32 0.0, %v4849
  %v4851 = vpop.f32.mrb[0].mxu0
  %v4852 = vpop.f32.mrb[0].mxu0
  %v4853 = vadd.f32 0.0, %v4852
  %v4854 = vpop.f32.mrb[0].mxu0
  %4855 = vmatprep.mubr.bf16.mxu0 0
  %4856 = vmatmul.mubr.bf16.gmra.mrb[0].mxu0 %v4253
  %v4857 = vpop.f32.mrb[0].mxu0
  %v4858 = vadd.f32 0.0, %v4857
  %v4859 = vpop.f32.mrb[0].mxu0
  %v4860 = vpop.f32.mrb[0].mxu0
  %v4861 = vadd.f32 0.0, %v4860
  %v4862 = vpop.f32.mrb[0].mxu0
  %4863 = vdwg.mxu0
  %v4864 = vadd.f32 %v2874, %v4290
  %v4865 = vadd.f32 %v2877, %v4293
  %v4866 = vadd.f32 %v2882, %v4298
  %v4867 = vadd.f32 %v2885, %v4301
  %v4868 = vadd.f32 %v2890, %v4306
  %v4869 = vadd.f32 %v2893, %v4309
  %v4870 = vadd.f32 %v2898, %v4314
  %v4871 = vadd.f32 %v2901, %v4317
  %v4872 = vadd.f32 %v2906, %v4322
  %v4873 = vadd.f32 %v2909, %v4325
  %v4874 = vadd.f32 %v2914, %v4330
  %v4875 = vadd.f32 %v2917, %v4333
  %v4876 = vadd.f32 %v2922, %v4338
  %v4877 = vadd.f32 %v2925, %v4341
  %v4878 = vadd.f32 %v2930, %v4346
  %v4879 = vadd.f32 %v2933, %v4349
  %v4880 = vadd.f32 %v2938, %v4354
  %v4881 = vadd.f32 %v2941, %v4357
  %v4882 = vadd.f32 %v2946, %v4362
  %v4883 = vadd.f32 %v2949, %v4365
  %v4884 = vadd.f32 %v2954, %v4370
  %v4885 = vadd.f32 %v2957, %v4373
  %v4886 = vadd.f32 %v2962, %v4378
  %v4887 = vadd.f32 %v2965, %v4381
  %v4888 = vadd.f32 %v2970, %v4386
  %v4889 = vadd.f32 %v2973, %v4389
  %v4890 = vadd.f32 %v2978, %v4394
  %v4891 = vadd.f32 %v2981, %v4397
  %v4892 = vadd.f32 %v2986, %v4402
  %v4893 = vadd.f32 %v2989, %v4405
  %v4894 = vadd.f32 %v2994, %v4410
  %v4895 = vadd.f32 %v2997, %v4413
  %v4896 = vadd.f32 %v3002, %v4418
  %v4897 = vadd.f32 %v3005, %v4421
  %v4898 = vadd.f32 %v3010, %v4426
  %v4899 = vadd.f32 %v3013, %v4429
  %v4900 = vadd.f32 %v3018, %v4434
  %v4901 = vadd.f32 %v3021, %v4437
  %v4902 = vadd.f32 %v3026, %v4442
  %v4903 = vadd.f32 %v3029, %v4445
  %v4904 = vadd.f32 %v3034, %v4450
  %v4905 = vadd.f32 %v3037, %v4453
  %v4906 = vadd.f32 %v3042, %v4458
  %v4907 = vadd.f32 %v3045, %v4461
  %v4908 = vadd.f32 %v3050, %v4466
  %v4909 = vadd.f32 %v3053, %v4469
  %v4910 = vadd.f32 %v3058, %v4474
  %v4911 = vadd.f32 %v3061, %v4477
  %v4912 = vadd.f32 %v3066, %v4482
  %v4913 = vadd.f32 %v3069, %v4485
  %v4914 = vadd.f32 %v3074, %v4490
  %v4915 = vadd.f32 %v3077, %v4493
  %v4916 = vadd.f32 %v3082, %v4498
  %v4917 = vadd.f32 %v3085, %v4501
  %v4918 = vadd.f32 %v3090, %v4506
  %v4919 = vadd.f32 %v3093, %v4509
  %v4920 = vadd.f32 %v3098, %v4514
  %v4921 = vadd.f32 %v3101, %v4517
  %v4922 = vadd.f32 %v3106, %v4522
  %v4923 = vadd.f32 %v3109, %v4525
  %v4924 = vadd.f32 %v3114, %v4530
  %v4925 = vadd.f32 %v3117, %v4533
  %v4926 = vadd.f32 %v3122, %v4538
  %v4927 = vadd.f32 %v3125, %v4541
  %v4928 = vadd.f32 %v3130, %v4546
  %v4929 = vadd.f32 %v3133, %v4549
  %v4930 = vadd.f32 %v3138, %v4554
  %v4931 = vadd.f32 %v3141, %v4557
  %v4932 = vadd.f32 %v3146, %v4562
  %v4933 = vadd.f32 %v3149, %v4565
  %v4934 = vadd.f32 %v3154, %v4570
  %v4935 = vadd.f32 %v3157, %v4573
  %v4936 = vadd.f32 %v3162, %v4578
  %v4937 = vadd.f32 %v3165, %v4581
  %v4938 = vadd.f32 %v3170, %v4586
  %v4939 = vadd.f32 %v3173, %v4589
  %v4940 = vadd.f32 %v3178, %v4594
  %v4941 = vadd.f32 %v3181, %v4597
  %v4942 = vadd.f32 %v3186, %v4602
  %v4943 = vadd.f32 %v3189, %v4605
  %v4944 = vadd.f32 %v3194, %v4610
  %v4945 = vadd.f32 %v3197, %v4613
  %v4946 = vadd.f32 %v3202, %v4618
  %v4947 = vadd.f32 %v3205, %v4621
  %v4948 = vadd.f32 %v3210, %v4626
  %v4949 = vadd.f32 %v3213, %v4629
  %v4950 = vadd.f32 %v3218, %v4634
  %v4951 = vadd.f32 %v3221, %v4637
  %v4952 = vadd.f32 %v3226, %v4642
  %v4953 = vadd.f32 %v3229, %v4645
  %v4954 = vadd.f32 %v3234, %v4650
  %v4955 = vadd.f32 %v3237, %v4653
  %v4956 = vadd.f32 %v3242, %v4658
  %v4957 = vadd.f32 %v3245, %v4661
  %v4958 = vadd.f32 %v3250, %v4666
  %v4959 = vadd.f32 %v3253, %v4669
  %v4960 = vadd.f32 %v3258, %v4674
  %v4961 = vadd.f32 %v3261, %v4677
  %v4962 = vadd.f32 %v3266, %v4682
  %v4963 = vadd.f32 %v3269, %v4685
  %v4964 = vadd.f32 %v3274, %v4690
  %v4965 = vadd.f32 %v3277, %v4693
  %v4966 = vadd.f32 %v3282, %v4698
  %v4967 = vadd.f32 %v3285, %v4701
  %v4968 = vadd.f32 %v3290, %v4706
  %v4969 = vadd.f32 %v3293, %v4709
  %v4970 = vadd.f32 %v3298, %v4714
  %v4971 = vadd.f32 %v3301, %v4717
  %v4972 = vadd.f32 %v3306, %v4722
  %v4973 = vadd.f32 %v3309, %v4725
  %v4974 = vadd.f32 %v3314, %v4730
  %v4975 = vadd.f32 %v3317, %v4733
  %v4976 = vadd.f32 %v3322, %v4738
  %v4977 = vadd.f32 %v3325, %v4741
  %v4978 = vadd.f32 %v3330, %v4746
  %v4979 = vadd.f32 %v3333, %v4749
  %v4980 = vadd.f32 %v3338, %v4754
  %v4981 = vadd.f32 %v3341, %v4757
  %v4982 = vadd.f32 %v3346, %v4762
  %v4983 = vadd.f32 %v3349, %v4765
  %v4984 = vadd.f32 %v3354, %v4770
  %v4985 = vadd.f32 %v3357, %v4773
  %v4986 = vadd.f32 %v3362, %v4778
  %v4987 = vadd.f32 %v3365, %v4781
  %v4988 = vadd.f32 %v3370, %v4786
  %v4989 = vadd.f32 %v3373, %v4789
  %v4990 = vadd.f32 %v3378, %v4794
  %v4991 = vadd.f32 %v3381, %v4797
  %v4992 = vadd.f32 %v3386, %v4802
  %v4993 = vadd.f32 %v3389, %v4805
  %v4994 = vadd.f32 %v3394, %v4810
  %v4995 = vadd.f32 %v3397, %v4813
  %v4996 = vadd.f32 %v3402, %v4818
  %v4997 = vadd.f32 %v3405, %v4821
  %v4998 = vadd.f32 %v3410, %v4826
  %v4999 = vadd.f32 %v3413, %v4829
  %v5000 = vadd.f32 %v3418, %v4834
  %v5001 = vadd.f32 %v3421, %v4837
  %v5002 = vadd.f32 %v3426, %v4842
  %v5003 = vadd.f32 %v3429, %v4845
  %v5004 = vadd.f32 %v3434, %v4850
  %v5005 = vadd.f32 %v3437, %v4853
  %v5006 = vadd.f32 %v3442, %v4858
  %v5007 = vadd.f32 %v3445, %v4861
  %v5008 = vld [vmem:[%s2 + $0x90] sm:$0xf]
  %v5009 = vld [vmem:[%s2 + $0x94] sm:$0xf]
  %v5010 = vld [vmem:[%s2 + $0x98] sm:$0xf]
  %v5011 = vld [vmem:[%s2 + $0x9c] sm:$0xf]
  %v5012 = vld [vmem:[%s2 + $0xa0] sm:$0xf]
  %v5013 = vld [vmem:[%s2 + $0xa4] sm:$0xf]
  %v5020 = vunpack.c.l.b16 %v5008
  %v5021 = vunpack.c.l.b16 %v5009
  %v5022 = vunpack.c.l.b16 %v5010
  %v5023 = vunpack.c.l.b16 %v5011
  %v5024 = vunpack.c.l.b16 %v5012
  %v5025 = vunpack.c.l.b16 %v5013
  %v5026 = vpack.c.b16 %v5021, %v5020
  %v5027 = vpack.c.b16 %v5023, %v5022
  %v5028 = vpack.c.b16 %v5025, %v5024
  %v5033 = vsel %vm711, %v667, 0
  %v5036 = vsel %vm711, %v668, 0
  %v5039 = vsel %vm711, %v669, 0
  %v5042 = vsel %vm711, %v670, 0
  %v5045 = vsel %vm711, %v671, 0
  %v5048 = vsel %vm711, %v672, 0
  %5050 = vmatprep.subr.bf16.mxu0 0
  %5051 = vmatpush1.bf16.msra.mxu0 %v5026
  %5052 = vmatprep.subr.bf16.mxu0 0
  %5053 = vmatpush1.bf16.msra.mxu0 %v5027
  %5054 = vmatprep.subr.bf16.mxu0 0
  %5055 = vmatpush1.bf16.msra.mxu0 %v5028
  %5056 = vmatprep.subr.bf16.mxu0 0
  %5057 = vmatpush1.bf16.msra.mxu0 0
  %5058 = vmatprep.subr.bf16.mxu0 0
  %5059 = vmatpush1.bf16.msra.mxu0 0
  %5060 = vmatprep.subr.bf16.mxu0 0
  %5061 = vmatpush1.bf16.msra.mxu0 0
  %5062 = vmatprep.subr.bf16.mxu0 0
  %5063 = vmatpush1.bf16.msra.mxu0 0
  %5064 = vmatprep.subr.bf16.mxu0 0
  %5065 = vmatpush1.bf16.msra.mxu0 0
  %5066 = vmatprep.subr.bf16.mxu0 0
  %5067 = vmatpush1.bf16.msra.mxu0 0
  %5068 = vmatprep.subr.bf16.mxu0 0
  %5069 = vmatpush1.bf16.msra.mxu0 0
  %5070 = vmatprep.subr.bf16.mxu0 0
  %5071 = vmatpush1.bf16.msra.mxu0 0
  %5072 = vmatprep.subr.bf16.mxu0 0
  %5073 = vmatpush1.bf16.msra.mxu0 0
  %5074 = vmatprep.subr.bf16.mxu0 0
  %5075 = vmatpush1.bf16.msra.mxu0 0
  %5076 = vmatprep.subr.bf16.mxu0 0
  %5077 = vmatpush1.bf16.msra.mxu0 0
  %5078 = vmatprep.subr.bf16.mxu0 0
  %5079 = vmatpush1.bf16.msra.mxu0 0
  %5080 = vmatprep.subr.bf16.mxu0 0
  %5081 = vmatpush1.bf16.msra.mxu0 0
  %5082 = vmatprep.mubr.bf16.mxu0 0
  %5083 = vmatmul.mubr.bf16.gmra.mrb[0].mxu0 %v755
  %v5084 = vpop.f32.mrb[0].mxu0
  %v5085 = vadd.f32 0.0, %v5084
  %v5086 = vpop.f32.mrb[0].mxu0
  %v5087 = vpop.f32.mrb[0].mxu0
  %v5088 = vadd.f32 0.0, %v5087
  %v5089 = vpop.f32.mrb[0].mxu0
  %5090 = vmatprep.mubr.bf16.mxu0 0
  %5091 = vmatmul.mubr.bf16.gmra.mrb[0].mxu0 %v758
  %v5092 = vpop.f32.mrb[0].mxu0
  %v5093 = vadd.f32 0.0, %v5092
  %v5094 = vpop.f32.mrb[0].mxu0
  %v5095 = vpop.f32.mrb[0].mxu0
  %v5096 = vadd.f32 0.0, %v5095
  %v5097 = vpop.f32.mrb[0].mxu0
  %5098 = vmatprep.mubr.bf16.mxu0 0
  %5099 = vmatmul.mubr.bf16.gmra.mrb[0].mxu0 %v761
  %v5100 = vpop.f32.mrb[0].mxu0
  %v5101 = vadd.f32 0.0, %v5100
  %v5102 = vpop.f32.mrb[0].mxu0
  %v5103 = vpop.f32.mrb[0].mxu0
  %v5104 = vadd.f32 0.0, %v5103
  %v5105 = vpop.f32.mrb[0].mxu0
  %5106 = vmatprep.mubr.bf16.mxu0 0
  %5107 = vmatmul.mubr.bf16.gmra.mrb[0].mxu0 %v764
  %v5108 = vpop.f32.mrb[0].mxu0
  %v5109 = vadd.f32 0.0, %v5108
  %v5110 = vpop.f32.mrb[0].mxu0
  %v5111 = vpop.f32.mrb[0].mxu0
  %v5112 = vadd.f32 0.0, %v5111
  %v5113 = vpop.f32.mrb[0].mxu0
  %5114 = vmatprep.mubr.bf16.mxu0 0
  %5115 = vmatmul.mubr.bf16.gmra.mrb[0].mxu0 %v767
  %v5116 = vpop.f32.mrb[0].mxu0
  %v5117 = vadd.f32 0.0, %v5116
  %v5118 = vpop.f32.mrb[0].mxu0
  %v5119 = vpop.f32.mrb[0].mxu0
  %v5120 = vadd.f32 0.0, %v5119
  %v5121 = vpop.f32.mrb[0].mxu0
  %5122 = vmatprep.mubr.bf16.mxu0 0
  %5123 = vmatmul.mubr.bf16.gmra.mrb[0].mxu0 %v770
  %v5124 = vpop.f32.mrb[0].mxu0
  %v5125 = vadd.f32 0.0, %v5124
  %v5126 = vpop.f32.mrb[0].mxu0
  %v5127 = vpop.f32.mrb[0].mxu0
  %v5128 = vadd.f32 0.0, %v5127
  %v5129 = vpop.f32.mrb[0].mxu0
  %5130 = vmatprep.mubr.bf16.mxu0 0
  %5131 = vmatmul.mubr.bf16.gmra.mrb[0].mxu0 %v773
  %v5132 = vpop.f32.mrb[0].mxu0
  %v5133 = vadd.f32 0.0, %v5132
  %v5134 = vpop.f32.mrb[0].mxu0
  %v5135 = vpop.f32.mrb[0].mxu0
  %v5136 = vadd.f32 0.0, %v5135
  %v5137 = vpop.f32.mrb[0].mxu0
  %5138 = vmatprep.mubr.bf16.mxu0 0
  %5139 = vmatmul.mubr.bf16.gmra.mrb[0].mxu0 %v776
  %v5140 = vpop.f32.mrb[0].mxu0
  %v5141 = vadd.f32 0.0, %v5140
  %v5142 = vpop.f32.mrb[0].mxu0
  %v5143 = vpop.f32.mrb[0].mxu0
  %v5144 = vadd.f32 0.0, %v5143
  %v5145 = vpop.f32.mrb[0].mxu0
  %5146 = vmatprep.mubr.bf16.mxu0 0
  %5147 = vmatmul.mubr.bf16.gmra.mrb[0].mxu0 %v779
  %v5148 = vpop.f32.mrb[0].mxu0
  %v5149 = vadd.f32 0.0, %v5148
  %v5150 = vpop.f32.mrb[0].mxu0
  %v5151 = vpop.f32.mrb[0].mxu0
  %v5152 = vadd.f32 0.0, %v5151
  %v5153 = vpop.f32.mrb[0].mxu0
  %5154 = vmatprep.mubr.bf16.mxu0 0
  %5155 = vmatmul.mubr.bf16.gmra.mrb[0].mxu0 %v782
  %v5156 = vpop.f32.mrb[0].mxu0
  %v5157 = vadd.f32 0.0, %v5156
  %v5158 = vpop.f32.mrb[0].mxu0
  %v5159 = vpop.f32.mrb[0].mxu0
  %v5160 = vadd.f32 0.0, %v5159
  %v5161 = vpop.f32.mrb[0].mxu0
  %5162 = vmatprep.mubr.bf16.mxu0 0
  %5163 = vmatmul.mubr.bf16.gmra.mrb[0].mxu0 %v785
  %v5164 = vpop.f32.mrb[0].mxu0
  %v5165 = vadd.f32 0.0, %v5164
  %v5166 = vpop.f32.mrb[0].mxu0
  %v5167 = vpop.f32.mrb[0].mxu0
  %v5168 = vadd.f32 0.0, %v5167
  %v5169 = vpop.f32.mrb[0].mxu0
  %5170 = vmatprep.mubr.bf16.mxu0 0
  %5171 = vmatmul.mubr.bf16.gmra.mrb[0].mxu0 %v788
  %v5172 = vpop.f32.mrb[0].mxu0
  %v5173 = vadd.f32 0.0, %v5172
  %v5174 = vpop.f32.mrb[0].mxu0
  %v5175 = vpop.f32.mrb[0].mxu0
  %v5176 = vadd.f32 0.0, %v5175
  %v5177 = vpop.f32.mrb[0].mxu0
  %5178 = vmatprep.mubr.bf16.mxu0 0
  %5179 = vmatmul.mubr.bf16.gmra.mrb[0].mxu0 %v791
  %v5180 = vpop.f32.mrb[0].mxu0
  %v5181 = vadd.f32 0.0, %v5180
  %v5182 = vpop.f32.mrb[0].mxu0
  %v5183 = vpop.f32.mrb[0].mxu0
  %v5184 = vadd.f32 0.0, %v5183
  %v5185 = vpop.f32.mrb[0].mxu0
  %5186 = vmatprep.mubr.bf16.mxu0 0
  %5187 = vmatmul.mubr.bf16.gmra.mrb[0].mxu0 %v794
  %v5188 = vpop.f32.mrb[0].mxu0
  %v5189 = vadd.f32 0.0, %v5188
  %v5190 = vpop.f32.mrb[0].mxu0
  %v5191 = vpop.f32.mrb[0].mxu0
  %v5192 = vadd.f32 0.0, %v5191
  %v5193 = vpop.f32.mrb[0].mxu0
  %5194 = vmatprep.mubr.bf16.mxu0 0
  %5195 = vmatmul.mubr.bf16.gmra.mrb[0].mxu0 %v797
  %v5196 = vpop.f32.mrb[0].mxu0
  %v5197 = vadd.f32 0.0, %v5196
  %v5198 = vpop.f32.mrb[0].mxu0
  %v5199 = vpop.f32.mrb[0].mxu0
  %v5200 = vadd.f32 0.0, %v5199
  %v5201 = vpop.f32.mrb[0].mxu0
  %5202 = vmatprep.mubr.bf16.mxu0 0
  %5203 = vmatmul.mubr.bf16.gmra.mrb[0].mxu0 %v800
  %v5204 = vpop.f32.mrb[0].mxu0
  %v5205 = vadd.f32 0.0, %v5204
  %v5206 = vpop.f32.mrb[0].mxu0
  %v5207 = vpop.f32.mrb[0].mxu0
  %v5208 = vadd.f32 0.0, %v5207
  %v5209 = vpop.f32.mrb[0].mxu0
  %5210 = vmatprep.mubr.bf16.mxu0 0
  %5211 = vmatmul.mubr.bf16.gmra.mrb[0].mxu0 %v803
  %v5212 = vpop.f32.mrb[0].mxu0
  %v5213 = vadd.f32 0.0, %v5212
  %v5214 = vpop.f32.mrb[0].mxu0
  %v5215 = vpop.f32.mrb[0].mxu0
  %v5216 = vadd.f32 0.0, %v5215
  %v5217 = vpop.f32.mrb[0].mxu0
  %5218 = vmatprep.mubr.bf16.mxu0 0
  %5219 = vmatmul.mubr.bf16.gmra.mrb[0].mxu0 %v806
  %v5220 = vpop.f32.mrb[0].mxu0
  %v5221 = vadd.f32 0.0, %v5220
  %v5222 = vpop.f32.mrb[0].mxu0
  %v5223 = vpop.f32.mrb[0].mxu0
  %v5224 = vadd.f32 0.0, %v5223
  %v5225 = vpop.f32.mrb[0].mxu0
  %5226 = vmatprep.mubr.bf16.mxu0 0
  %5227 = vmatmul.mubr.bf16.gmra.mrb[0].mxu0 %v809
  %v5228 = vpop.f32.mrb[0].mxu0
  %v5229 = vadd.f32 0.0, %v5228
  %v5230 = vpop.f32.mrb[0].mxu0
  %v5231 = vpop.f32.mrb[0].mxu0
  %v5232 = vadd.f32 0.0, %v5231
  %v5233 = vpop.f32.mrb[0].mxu0
  %5234 = vmatprep.mubr.bf16.mxu0 0
  %5235 = vmatmul.mubr.bf16.gmra.mrb[0].mxu0 %v812
  %v5236 = vpop.f32.mrb[0].mxu0
  %v5237 = vadd.f32 0.0, %v5236
  %v5238 = vpop.f32.mrb[0].mxu0
  %v5239 = vpop.f32.mrb[0].mxu0
  %v5240 = vadd.f32 0.0, %v5239
  %v5241 = vpop.f32.mrb[0].mxu0
  %5242 = vmatprep.mubr.bf16.mxu0 0
  %5243 = vmatmul.mubr.bf16.gmra.mrb[0].mxu0 %v815
  %v5244 = vpop.f32.mrb[0].mxu0
  %v5245 = vadd.f32 0.0, %v5244
  %v5246 = vpop.f32.mrb[0].mxu0
  %v5247 = vpop.f32.mrb[0].mxu0
  %v5248 = vadd.f32 0.0, %v5247
  %v5249 = vpop.f32.mrb[0].mxu0
  %5250 = vmatprep.mubr.bf16.mxu0 0
  %5251 = vmatmul.mubr.bf16.gmra.mrb[0].mxu0 %v818
  %v5252 = vpop.f32.mrb[0].mxu0
  %v5253 = vadd.f32 0.0, %v5252
  %v5254 = vpop.f32.mrb[0].mxu0
  %v5255 = vpop.f32.mrb[0].mxu0
  %v5256 = vadd.f32 0.0, %v5255
  %v5257 = vpop.f32.mrb[0].mxu0
  %5258 = vmatprep.mubr.bf16.mxu0 0
  %5259 = vmatmul.mubr.bf16.gmra.mrb[0].mxu0 %v821
  %v5260 = vpop.f32.mrb[0].mxu0
  %v5261 = vadd.f32 0.0, %v5260
  %v5262 = vpop.f32.mrb[0].mxu0
  %v5263 = vpop.f32.mrb[0].mxu0
  %v5264 = vadd.f32 0.0, %v5263
  %v5265 = vpop.f32.mrb[0].mxu0
  %5266 = vmatprep.mubr.bf16.mxu0 0
  %5267 = vmatmul.mubr.bf16.gmra.mrb[0].mxu0 %v824
  %v5268 = vpop.f32.mrb[0].mxu0
  %v5269 = vadd.f32 0.0, %v5268
  %v5270 = vpop.f32.mrb[0].mxu0
  %v5271 = vpop.f32.mrb[0].mxu0
  %v5272 = vadd.f32 0.0, %v5271
  %v5273 = vpop.f32.mrb[0].mxu0
  %5274 = vmatprep.mubr.bf16.mxu0 0
  %5275 = vmatmul.mubr.bf16.gmra.mrb[0].mxu0 %v827
  %v5276 = vpop.f32.mrb[0].mxu0
  %v5277 = vadd.f32 0.0, %v5276
  %v5278 = vpop.f32.mrb[0].mxu0
  %v5279 = vpop.f32.mrb[0].mxu0
  %v5280 = vadd.f32 0.0, %v5279
  %v5281 = vpop.f32.mrb[0].mxu0
  %5282 = vmatprep.mubr.bf16.mxu0 0
  %5283 = vmatmul.mubr.bf16.gmra.mrb[0].mxu0 %v830
  %v5284 = vpop.f32.mrb[0].mxu0
  %v5285 = vadd.f32 0.0, %v5284
  %v5286 = vpop.f32.mrb[0].mxu0
  %v5287 = vpop.f32.mrb[0].mxu0
  %v5288 = vadd.f32 0.0, %v5287
  %v5289 = vpop.f32.mrb[0].mxu0
  %5290 = vmatprep.mubr.bf16.mxu0 0
  %5291 = vmatmul.mubr.bf16.gmra.mrb[0].mxu0 %v833
  %v5292 = vpop.f32.mrb[0].mxu0
  %v5293 = vadd.f32 0.0, %v5292
  %v5294 = vpop.f32.mrb[0].mxu0
  %v5295 = vpop.f32.mrb[0].mxu0
  %v5296 = vadd.f32 0.0, %v5295
  %v5297 = vpop.f32.mrb[0].mxu0
  %5298 = vmatprep.mubr.bf16.mxu0 0
  %5299 = vmatmul.mubr.bf16.gmra.mrb[0].mxu0 %v836
  %v5300 = vpop.f32.mrb[0].mxu0
  %v5301 = vadd.f32 0.0, %v5300
  %v5302 = vpop.f32.mrb[0].mxu0
  %v5303 = vpop.f32.mrb[0].mxu0
  %v5304 = vadd.f32 0.0, %v5303
  %v5305 = vpop.f32.mrb[0].mxu0
  %5306 = vmatprep.mubr.bf16.mxu0 0
  %5307 = vmatmul.mubr.bf16.gmra.mrb[0].mxu0 %v839
  %v5308 = vpop.f32.mrb[0].mxu0
  %v5309 = vadd.f32 0.0, %v5308
  %v5310 = vpop.f32.mrb[0].mxu0
  %v5311 = vpop.f32.mrb[0].mxu0
  %v5312 = vadd.f32 0.0, %v5311
  %v5313 = vpop.f32.mrb[0].mxu0
  %5314 = vmatprep.mubr.bf16.mxu0 0
  %5315 = vmatmul.mubr.bf16.gmra.mrb[0].mxu0 %v842
  %v5316 = vpop.f32.mrb[0].mxu0
  %v5317 = vadd.f32 0.0, %v5316
  %v5318 = vpop.f32.mrb[0].mxu0
  %v5319 = vpop.f32.mrb[0].mxu0
  %v5320 = vadd.f32 0.0, %v5319
  %v5321 = vpop.f32.mrb[0].mxu0
  %5322 = vmatprep.mubr.bf16.mxu0 0
  %5323 = vmatmul.mubr.bf16.gmra.mrb[0].mxu0 %v845
  %v5324 = vpop.f32.mrb[0].mxu0
  %v5325 = vadd.f32 0.0, %v5324
  %v5326 = vpop.f32.mrb[0].mxu0
  %v5327 = vpop.f32.mrb[0].mxu0
  %v5328 = vadd.f32 0.0, %v5327
  %v5329 = vpop.f32.mrb[0].mxu0
  %5330 = vmatprep.mubr.bf16.mxu0 0
  %5331 = vmatmul.mubr.bf16.gmra.mrb[0].mxu0 %v848
  %v5332 = vpop.f32.mrb[0].mxu0
  %v5333 = vadd.f32 0.0, %v5332
  %v5334 = vpop.f32.mrb[0].mxu0
  %v5335 = vpop.f32.mrb[0].mxu0
  %v5336 = vadd.f32 0.0, %v5335
  %v5337 = vpop.f32.mrb[0].mxu0
  %5338 = vmatprep.mubr.bf16.mxu0 0
  %5339 = vmatmul.mubr.bf16.gmra.mrb[0].mxu0 %v851
  %v5340 = vpop.f32.mrb[0].mxu0
  %v5341 = vadd.f32 0.0, %v5340
  %v5342 = vpop.f32.mrb[0].mxu0
  %v5343 = vpop.f32.mrb[0].mxu0
  %v5344 = vadd.f32 0.0, %v5343
  %v5345 = vpop.f32.mrb[0].mxu0
  %5346 = vmatprep.mubr.bf16.mxu0 0
  %5347 = vmatmul.mubr.bf16.gmra.mrb[0].mxu0 %v854
  %v5348 = vpop.f32.mrb[0].mxu0
  %v5349 = vadd.f32 0.0, %v5348
  %v5350 = vpop.f32.mrb[0].mxu0
  %v5351 = vpop.f32.mrb[0].mxu0
  %v5352 = vadd.f32 0.0, %v5351
  %v5353 = vpop.f32.mrb[0].mxu0
  %5354 = vmatprep.mubr.bf16.mxu0 0
  %5355 = vmatmul.mubr.bf16.gmra.mrb[0].mxu0 %v857
  %v5356 = vpop.f32.mrb[0].mxu0
  %v5357 = vadd.f32 0.0, %v5356
  %v5358 = vpop.f32.mrb[0].mxu0
  %v5359 = vpop.f32.mrb[0].mxu0
  %v5360 = vadd.f32 0.0, %v5359
  %v5361 = vpop.f32.mrb[0].mxu0
  %5362 = vmatprep.mubr.bf16.mxu0 0
  %5363 = vmatmul.mubr.bf16.gmra.mrb[0].mxu0 %v860
  %v5364 = vpop.f32.mrb[0].mxu0
  %v5365 = vadd.f32 0.0, %v5364
  %v5366 = vpop.f32.mrb[0].mxu0
  %v5367 = vpop.f32.mrb[0].mxu0
  %v5368 = vadd.f32 0.0, %v5367
  %v5369 = vpop.f32.mrb[0].mxu0
  %5370 = vmatprep.mubr.bf16.mxu0 0
  %5371 = vmatmul.mubr.bf16.gmra.mrb[0].mxu0 %v863
  %v5372 = vpop.f32.mrb[0].mxu0
  %v5373 = vadd.f32 0.0, %v5372
  %v5374 = vpop.f32.mrb[0].mxu0
  %v5375 = vpop.f32.mrb[0].mxu0
  %v5376 = vadd.f32 0.0, %v5375
  %v5377 = vpop.f32.mrb[0].mxu0
  %5378 = vmatprep.mubr.bf16.mxu0 0
  %5379 = vmatmul.mubr.bf16.gmra.mrb[0].mxu0 %v866
  %v5380 = vpop.f32.mrb[0].mxu0
  %v5381 = vadd.f32 0.0, %v5380
  %v5382 = vpop.f32.mrb[0].mxu0
  %v5383 = vpop.f32.mrb[0].mxu0
  %v5384 = vadd.f32 0.0, %v5383
  %v5385 = vpop.f32.mrb[0].mxu0
  %5386 = vmatprep.mubr.bf16.mxu0 0
  %5387 = vmatmul.mubr.bf16.gmra.mrb[0].mxu0 %v869
  %v5388 = vpop.f32.mrb[0].mxu0
  %v5389 = vadd.f32 0.0, %v5388
  %v5390 = vpop.f32.mrb[0].mxu0
  %v5391 = vpop.f32.mrb[0].mxu0
  %v5392 = vadd.f32 0.0, %v5391
  %v5393 = vpop.f32.mrb[0].mxu0
  %5394 = vmatprep.mubr.bf16.mxu0 0
  %5395 = vmatmul.mubr.bf16.gmra.mrb[0].mxu0 %v872
  %v5396 = vpop.f32.mrb[0].mxu0
  %v5397 = vadd.f32 0.0, %v5396
  %v5398 = vpop.f32.mrb[0].mxu0
  %v5399 = vpop.f32.mrb[0].mxu0
  %v5400 = vadd.f32 0.0, %v5399
  %v5401 = vpop.f32.mrb[0].mxu0
  %5402 = vmatprep.mubr.bf16.mxu0 0
  %5403 = vmatmul.mubr.bf16.gmra.mrb[0].mxu0 %v875
  %v5404 = vpop.f32.mrb[0].mxu0
  %v5405 = vadd.f32 0.0, %v5404
  %v5406 = vpop.f32.mrb[0].mxu0
  %v5407 = vpop.f32.mrb[0].mxu0
  %v5408 = vadd.f32 0.0, %v5407
  %v5409 = vpop.f32.mrb[0].mxu0
  %5410 = vmatprep.mubr.bf16.mxu0 0
  %5411 = vmatmul.mubr.bf16.gmra.mrb[0].mxu0 %v878
  %v5412 = vpop.f32.mrb[0].mxu0
  %v5413 = vadd.f32 0.0, %v5412
  %v5414 = vpop.f32.mrb[0].mxu0
  %v5415 = vpop.f32.mrb[0].mxu0
  %v5416 = vadd.f32 0.0, %v5415
  %v5417 = vpop.f32.mrb[0].mxu0
  %5418 = vmatprep.mubr.bf16.mxu0 0
  %5419 = vmatmul.mubr.bf16.gmra.mrb[0].mxu0 %v881
  %v5420 = vpop.f32.mrb[0].mxu0
  %v5421 = vadd.f32 0.0, %v5420
  %v5422 = vpop.f32.mrb[0].mxu0
  %v5423 = vpop.f32.mrb[0].mxu0
  %v5424 = vadd.f32 0.0, %v5423
  %v5425 = vpop.f32.mrb[0].mxu0
  %5426 = vmatprep.mubr.bf16.mxu0 0
  %5427 = vmatmul.mubr.bf16.gmra.mrb[0].mxu0 %v884
  %v5428 = vpop.f32.mrb[0].mxu0
  %v5429 = vadd.f32 0.0, %v5428
  %v5430 = vpop.f32.mrb[0].mxu0
  %v5431 = vpop.f32.mrb[0].mxu0
  %v5432 = vadd.f32 0.0, %v5431
  %v5433 = vpop.f32.mrb[0].mxu0
  %5434 = vmatprep.mubr.bf16.mxu0 0
  %5435 = vmatmul.mubr.bf16.gmra.mrb[0].mxu0 %v887
  %v5436 = vpop.f32.mrb[0].mxu0
  %v5437 = vadd.f32 0.0, %v5436
  %v5438 = vpop.f32.mrb[0].mxu0
  %v5439 = vpop.f32.mrb[0].mxu0
  %v5440 = vadd.f32 0.0, %v5439
  %v5441 = vpop.f32.mrb[0].mxu0
  %5442 = vmatprep.mubr.bf16.mxu0 0
  %5443 = vmatmul.mubr.bf16.gmra.mrb[0].mxu0 %v890
  %v5444 = vpop.f32.mrb[0].mxu0
  %v5445 = vadd.f32 0.0, %v5444
  %v5446 = vpop.f32.mrb[0].mxu0
  %v5447 = vpop.f32.mrb[0].mxu0
  %v5448 = vadd.f32 0.0, %v5447
  %v5449 = vpop.f32.mrb[0].mxu0
  %5450 = vmatprep.mubr.bf16.mxu0 0
  %5451 = vmatmul.mubr.bf16.gmra.mrb[0].mxu0 %v893
  %v5452 = vpop.f32.mrb[0].mxu0
  %v5453 = vadd.f32 0.0, %v5452
  %v5454 = vpop.f32.mrb[0].mxu0
  %v5455 = vpop.f32.mrb[0].mxu0
  %v5456 = vadd.f32 0.0, %v5455
  %v5457 = vpop.f32.mrb[0].mxu0
  %5458 = vmatprep.mubr.bf16.mxu0 0
  %5459 = vmatmul.mubr.bf16.gmra.mrb[0].mxu0 %v896
  %v5460 = vpop.f32.mrb[0].mxu0
  %v5461 = vadd.f32 0.0, %v5460
  %v5462 = vpop.f32.mrb[0].mxu0
  %v5463 = vpop.f32.mrb[0].mxu0
  %v5464 = vadd.f32 0.0, %v5463
  %v5465 = vpop.f32.mrb[0].mxu0
  %5466 = vmatprep.mubr.bf16.mxu0 0
  %5467 = vmatmul.mubr.bf16.gmra.mrb[0].mxu0 %v899
  %v5468 = vpop.f32.mrb[0].mxu0
  %v5469 = vadd.f32 0.0, %v5468
  %v5470 = vpop.f32.mrb[0].mxu0
  %v5471 = vpop.f32.mrb[0].mxu0
  %v5472 = vadd.f32 0.0, %v5471
  %v5473 = vpop.f32.mrb[0].mxu0
  %5474 = vmatprep.mubr.bf16.mxu0 0
  %5475 = vmatmul.mubr.bf16.gmra.mrb[0].mxu0 %v902
  %v5476 = vpop.f32.mrb[0].mxu0
  %v5477 = vadd.f32 0.0, %v5476
  %v5478 = vpop.f32.mrb[0].mxu0
  %v5479 = vpop.f32.mrb[0].mxu0
  %v5480 = vadd.f32 0.0, %v5479
  %v5481 = vpop.f32.mrb[0].mxu0
  %5482 = vmatprep.mubr.bf16.mxu0 0
  %5483 = vmatmul.mubr.bf16.gmra.mrb[0].mxu0 %v905
  %v5484 = vpop.f32.mrb[0].mxu0
  %v5485 = vadd.f32 0.0, %v5484
  %v5486 = vpop.f32.mrb[0].mxu0
  %v5487 = vpop.f32.mrb[0].mxu0
  %v5488 = vadd.f32 0.0, %v5487
  %v5489 = vpop.f32.mrb[0].mxu0
  %5490 = vmatprep.mubr.bf16.mxu0 0
  %5491 = vmatmul.mubr.bf16.gmra.mrb[0].mxu0 %v908
  %v5492 = vpop.f32.mrb[0].mxu0
  %v5493 = vadd.f32 0.0, %v5492
  %v5494 = vpop.f32.mrb[0].mxu0
  %v5495 = vpop.f32.mrb[0].mxu0
  %v5496 = vadd.f32 0.0, %v5495
  %v5497 = vpop.f32.mrb[0].mxu0
  %5498 = vmatprep.mubr.bf16.mxu0 0
  %5499 = vmatmul.mubr.bf16.gmra.mrb[0].mxu0 %v911
  %v5500 = vpop.f32.mrb[0].mxu0
  %v5501 = vadd.f32 0.0, %v5500
  %v5502 = vpop.f32.mrb[0].mxu0
  %v5503 = vpop.f32.mrb[0].mxu0
  %v5504 = vadd.f32 0.0, %v5503
  %v5505 = vpop.f32.mrb[0].mxu0
  %5506 = vmatprep.mubr.bf16.mxu0 0
  %5507 = vmatmul.mubr.bf16.gmra.mrb[0].mxu0 %v914
  %v5508 = vpop.f32.mrb[0].mxu0
  %v5509 = vadd.f32 0.0, %v5508
  %v5510 = vpop.f32.mrb[0].mxu0
  %v5511 = vpop.f32.mrb[0].mxu0
  %v5512 = vadd.f32 0.0, %v5511
  %v5513 = vpop.f32.mrb[0].mxu0
  %5514 = vmatprep.mubr.bf16.mxu0 0
  %5515 = vmatmul.mubr.bf16.gmra.mrb[0].mxu0 %v917
  %v5516 = vpop.f32.mrb[0].mxu0
  %v5517 = vadd.f32 0.0, %v5516
  %v5518 = vpop.f32.mrb[0].mxu0
  %v5519 = vpop.f32.mrb[0].mxu0
  %v5520 = vadd.f32 0.0, %v5519
  %v5521 = vpop.f32.mrb[0].mxu0
  %5522 = vmatprep.mubr.bf16.mxu0 0
  %5523 = vmatmul.mubr.bf16.gmra.mrb[0].mxu0 %v920
  %v5524 = vpop.f32.mrb[0].mxu0
  %v5525 = vadd.f32 0.0, %v5524
  %v5526 = vpop.f32.mrb[0].mxu0
  %v5527 = vpop.f32.mrb[0].mxu0
  %v5528 = vadd.f32 0.0, %v5527
  %v5529 = vpop.f32.mrb[0].mxu0
  %5530 = vmatprep.mubr.bf16.mxu0 0
  %5531 = vmatmul.mubr.bf16.gmra.mrb[0].mxu0 %v923
  %v5532 = vpop.f32.mrb[0].mxu0
  %v5533 = vadd.f32 0.0, %v5532
  %v5534 = vpop.f32.mrb[0].mxu0
  %v5535 = vpop.f32.mrb[0].mxu0
  %v5536 = vadd.f32 0.0, %v5535
  %v5537 = vpop.f32.mrb[0].mxu0
  %5538 = vmatprep.mubr.bf16.mxu0 0
  %5539 = vmatmul.mubr.bf16.gmra.mrb[0].mxu0 %v926
  %v5540 = vpop.f32.mrb[0].mxu0
  %v5541 = vadd.f32 0.0, %v5540
  %v5542 = vpop.f32.mrb[0].mxu0
  %v5543 = vpop.f32.mrb[0].mxu0
  %v5544 = vadd.f32 0.0, %v5543
  %v5545 = vpop.f32.mrb[0].mxu0
  %5546 = vmatprep.mubr.bf16.mxu0 0
  %5547 = vmatmul.mubr.bf16.gmra.mrb[0].mxu0 %v2195
  %v5548 = vpop.f32.mrb[0].mxu0
  %v5549 = vadd.f32 0.0, %v5548
  %v5550 = vpop.f32.mrb[0].mxu0
  %v5551 = vpop.f32.mrb[0].mxu0
  %v5552 = vadd.f32 0.0, %v5551
  %v5553 = vpop.f32.mrb[0].mxu0
  %5554 = vmatprep.mubr.bf16.mxu0 0
  %5555 = vmatmul.mubr.bf16.gmra.mrb[0].mxu0 %v2198
  %v5556 = vpop.f32.mrb[0].mxu0
  %v5557 = vadd.f32 0.0, %v5556
  %v5558 = vpop.f32.mrb[0].mxu0
  %v5559 = vpop.f32.mrb[0].mxu0
  %v5560 = vadd.f32 0.0, %v5559
  %v5561 = vpop.f32.mrb[0].mxu0
  %5562 = vmatprep.mubr.bf16.mxu0 0
  %5563 = vmatmul.mubr.bf16.gmra.mrb[0].mxu0 %v2201
  %v5564 = vpop.f32.mrb[0].mxu0
  %v5565 = vadd.f32 0.0, %v5564
  %v5566 = vpop.f32.mrb[0].mxu0
  %v5567 = vpop.f32.mrb[0].mxu0
  %v5568 = vadd.f32 0.0, %v5567
  %v5569 = vpop.f32.mrb[0].mxu0
  %5570 = vmatprep.mubr.bf16.mxu0 0
  %5571 = vmatmul.mubr.bf16.gmra.mrb[0].mxu0 %v2204
  %v5572 = vpop.f32.mrb[0].mxu0
  %v5573 = vadd.f32 0.0, %v5572
  %v5574 = vpop.f32.mrb[0].mxu0
  %v5575 = vpop.f32.mrb[0].mxu0
  %v5576 = vadd.f32 0.0, %v5575
  %v5577 = vpop.f32.mrb[0].mxu0
  %5578 = vmatprep.mubr.bf16.mxu0 0
  %5579 = vmatmul.mubr.bf16.gmra.mrb[0].mxu0 %v2207
  %v5580 = vpop.f32.mrb[0].mxu0
  %v5581 = vadd.f32 0.0, %v5580
  %v5582 = vpop.f32.mrb[0].mxu0
  %v5583 = vpop.f32.mrb[0].mxu0
  %v5584 = vadd.f32 0.0, %v5583
  %v5585 = vpop.f32.mrb[0].mxu0
  %5586 = vmatprep.mubr.bf16.mxu0 0
  %5587 = vmatmul.mubr.bf16.gmra.mrb[0].mxu0 %v2210
  %v5588 = vpop.f32.mrb[0].mxu0
  %v5589 = vadd.f32 0.0, %v5588
  %v5590 = vpop.f32.mrb[0].mxu0
  %v5591 = vpop.f32.mrb[0].mxu0
  %v5592 = vadd.f32 0.0, %v5591
  %v5593 = vpop.f32.mrb[0].mxu0
  %5594 = vmatprep.mubr.bf16.mxu0 0
  %5595 = vmatmul.mubr.bf16.gmra.mrb[0].mxu0 %v3473
  %v5596 = vpop.f32.mrb[0].mxu0
  %v5597 = vadd.f32 0.0, %v5596
  %v5598 = vpop.f32.mrb[0].mxu0
  %v5599 = vpop.f32.mrb[0].mxu0
  %v5600 = vadd.f32 0.0, %v5599
  %v5601 = vpop.f32.mrb[0].mxu0
  %5602 = vmatprep.mubr.bf16.mxu0 0
  %5603 = vmatmul.mubr.bf16.gmra.mrb[0].mxu0 %v4253
  %v5604 = vpop.f32.mrb[0].mxu0
  %v5605 = vadd.f32 0.0, %v5604
  %v5606 = vpop.f32.mrb[0].mxu0
  %v5607 = vpop.f32.mrb[0].mxu0
  %v5608 = vadd.f32 0.0, %v5607
  %v5609 = vpop.f32.mrb[0].mxu0
  %5610 = vmatprep.mubr.bf16.mxu0 0
  %5611 = vmatmul.mubr.bf16.gmra.mrb[0].mxu0 %v5033
  %v5612 = vpop.f32.mrb[0].mxu0
  %v5613 = vadd.f32 0.0, %v5612
  %v5614 = vpop.f32.mrb[0].mxu0
  %v5615 = vpop.f32.mrb[0].mxu0
  %v5616 = vadd.f32 0.0, %v5615
  %v5617 = vpop.f32.mrb[0].mxu0
  %5618 = vmatprep.mubr.bf16.mxu0 0
  %5619 = vmatmul.mubr.bf16.gmra.mrb[0].mxu0 %v5036
  %v5620 = vpop.f32.mrb[0].mxu0
  %v5621 = vadd.f32 0.0, %v5620
  %v5622 = vpop.f32.mrb[0].mxu0
  %v5623 = vpop.f32.mrb[0].mxu0
  %v5624 = vadd.f32 0.0, %v5623
  %v5625 = vpop.f32.mrb[0].mxu0
  %5626 = vmatprep.mubr.bf16.mxu0 0
  %5627 = vmatmul.mubr.bf16.gmra.mrb[0].mxu0 %v5039
  %v5628 = vpop.f32.mrb[0].mxu0
  %v5629 = vadd.f32 0.0, %v5628
  %v5630 = vpop.f32.mrb[0].mxu0
  %v5631 = vpop.f32.mrb[0].mxu0
  %v5632 = vadd.f32 0.0, %v5631
  %v5633 = vpop.f32.mrb[0].mxu0
  %5634 = vmatprep.mubr.bf16.mxu0 0
  %5635 = vmatmul.mubr.bf16.gmra.mrb[0].mxu0 %v5042
  %v5636 = vpop.f32.mrb[0].mxu0
  %v5637 = vadd.f32 0.0, %v5636
  %v5638 = vpop.f32.mrb[0].mxu0
  %v5639 = vpop.f32.mrb[0].mxu0
  %v5640 = vadd.f32 0.0, %v5639
  %v5641 = vpop.f32.mrb[0].mxu0
  %5642 = vmatprep.mubr.bf16.mxu0 0
  %5643 = vmatmul.mubr.bf16.gmra.mrb[0].mxu0 %v5045
  %v5644 = vpop.f32.mrb[0].mxu0
  %v5645 = vadd.f32 0.0, %v5644
  %v5646 = vpop.f32.mrb[0].mxu0
  %v5647 = vpop.f32.mrb[0].mxu0
  %v5648 = vadd.f32 0.0, %v5647
  %v5649 = vpop.f32.mrb[0].mxu0
  %5650 = vmatprep.mubr.bf16.mxu0 0
  %5651 = vmatmul.mubr.bf16.gmra.mrb[0].mxu0 %v5048
  %v5652 = vpop.f32.mrb[0].mxu0
  %v5653 = vadd.f32 0.0, %v5652
  %v5654 = vpop.f32.mrb[0].mxu0
  %v5655 = vpop.f32.mrb[0].mxu0
  %v5656 = vadd.f32 0.0, %v5655
  %v5657 = vpop.f32.mrb[0].mxu0
  %5658 = vdwg.mxu0
  %v5659 = vadd.f32 %v4084, %v5085
  %v5660 = vadd.f32 %v4085, %v5088
  %v5661 = vadd.f32 %v4086, %v5093
  %v5662 = vadd.f32 %v4087, %v5096
  %v5663 = vadd.f32 %v4088, %v5101
  %v5664 = vadd.f32 %v4089, %v5104
  %v5665 = vadd.f32 %v4090, %v5109
  %v5666 = vadd.f32 %v4091, %v5112
  %v5667 = vadd.f32 %v4092, %v5117
  %v5668 = vadd.f32 %v4093, %v5120
  %v5669 = vadd.f32 %v4094, %v5125
  %v5670 = vadd.f32 %v4095, %v5128
  %v5671 = vadd.f32 %v4096, %v5133
  %v5672 = vadd.f32 %v4097, %v5136
  %v5673 = vadd.f32 %v4098, %v5141
  %v5674 = vadd.f32 %v4099, %v5144
  %v5675 = vadd.f32 %v4100, %v5149
  %v5676 = vadd.f32 %v4101, %v5152
  %v5677 = vadd.f32 %v4102, %v5157
  %v5678 = vadd.f32 %v4103, %v5160
  %v5679 = vadd.f32 %v4104, %v5165
  %v5680 = vadd.f32 %v4105, %v5168
  %v5681 = vadd.f32 %v4106, %v5173
  %v5682 = vadd.f32 %v4107, %v5176
  %v5683 = vadd.f32 %v4108, %v5181
  %v5684 = vadd.f32 %v4109, %v5184
  %v5685 = vadd.f32 %v4110, %v5189
  %v5686 = vadd.f32 %v4111, %v5192
  %v5687 = vadd.f32 %v4112, %v5197
  %v5688 = vadd.f32 %v4113, %v5200
  %v5689 = vadd.f32 %v4114, %v5205
  %v5690 = vadd.f32 %v4115, %v5208
  %v5691 = vadd.f32 %v4116, %v5213
  %v5692 = vadd.f32 %v4117, %v5216
  %v5693 = vadd.f32 %v4118, %v5221
  %v5694 = vadd.f32 %v4119, %v5224
  %v5695 = vadd.f32 %v4120, %v5229
  %v5696 = vadd.f32 %v4121, %v5232
  %v5697 = vadd.f32 %v4122, %v5237
  %v5698 = vadd.f32 %v4123, %v5240
  %v5699 = vadd.f32 %v4124, %v5245
  %v5700 = vadd.f32 %v4125, %v5248
  %v5701 = vadd.f32 %v4126, %v5253
  %v5702 = vadd.f32 %v4127, %v5256
  %v5703 = vadd.f32 %v4128, %v5261
  %v5704 = vadd.f32 %v4129, %v5264
  %v5705 = vadd.f32 %v4130, %v5269
  %v5706 = vadd.f32 %v4131, %v5272
  %v5707 = vadd.f32 %v4132, %v5277
  %v5708 = vadd.f32 %v4133, %v5280
  %v5709 = vadd.f32 %v4134, %v5285
  %v5710 = vadd.f32 %v4135, %v5288
  %v5711 = vadd.f32 %v4136, %v5293
  %v5712 = vadd.f32 %v4137, %v5296
  %v5713 = vadd.f32 %v4138, %v5301
  %v5714 = vadd.f32 %v4139, %v5304
  %v5715 = vadd.f32 %v4140, %v5309
  %v5716 = vadd.f32 %v4141, %v5312
  %v5717 = vadd.f32 %v4142, %v5317
  %v5718 = vadd.f32 %v4143, %v5320
  %v5719 = vadd.f32 %v4144, %v5325
  %v5720 = vadd.f32 %v4145, %v5328
  %v5721 = vadd.f32 %v4146, %v5333
  %v5722 = vadd.f32 %v4147, %v5336
  %v5723 = vadd.f32 %v4148, %v5341
  %v5724 = vadd.f32 %v4149, %v5344
  %v5725 = vadd.f32 %v4150, %v5349
  %v5726 = vadd.f32 %v4151, %v5352
  %v5727 = vadd.f32 %v4152, %v5357
  %v5728 = vadd.f32 %v4153, %v5360
  %v5729 = vadd.f32 %v4154, %v5365
  %v5730 = vadd.f32 %v4155, %v5368
  %v5731 = vadd.f32 %v4156, %v5373
  %v5732 = vadd.f32 %v4157, %v5376
  %v5733 = vadd.f32 %v4158, %v5381
  %v5734 = vadd.f32 %v4159, %v5384
  %v5735 = vadd.f32 %v4160, %v5389
  %v5736 = vadd.f32 %v4161, %v5392
  %v5737 = vadd.f32 %v4162, %v5397
  %v5738 = vadd.f32 %v4163, %v5400
  %v5739 = vadd.f32 %v4164, %v5405
  %v5740 = vadd.f32 %v4165, %v5408
  %v5741 = vadd.f32 %v4166, %v5413
  %v5742 = vadd.f32 %v4167, %v5416
  %v5743 = vadd.f32 %v4168, %v5421
  %v5744 = vadd.f32 %v4169, %v5424
  %v5745 = vadd.f32 %v4170, %v5429
  %v5746 = vadd.f32 %v4171, %v5432
  %v5747 = vadd.f32 %v4172, %v5437
  %v5748 = vadd.f32 %v4173, %v5440
  %v5749 = vadd.f32 %v4174, %v5445
  %v5750 = vadd.f32 %v4175, %v5448
  %v5751 = vadd.f32 %v4176, %v5453
  %v5752 = vadd.f32 %v4177, %v5456
  %v5753 = vadd.f32 %v4178, %v5461
  %v5754 = vadd.f32 %v4179, %v5464
  %v5755 = vadd.f32 %v4180, %v5469
  %v5756 = vadd.f32 %v4181, %v5472
  %v5757 = vadd.f32 %v4182, %v5477
  %v5758 = vadd.f32 %v4183, %v5480
  %v5759 = vadd.f32 %v4184, %v5485
  %v5760 = vadd.f32 %v4185, %v5488
  %v5761 = vadd.f32 %v4186, %v5493
  %v5762 = vadd.f32 %v4187, %v5496
  %v5763 = vadd.f32 %v4188, %v5501
  %v5764 = vadd.f32 %v4189, %v5504
  %v5765 = vadd.f32 %v4190, %v5509
  %v5766 = vadd.f32 %v4191, %v5512
  %v5767 = vadd.f32 %v4192, %v5517
  %v5768 = vadd.f32 %v4193, %v5520
  %v5769 = vadd.f32 %v4194, %v5525
  %v5770 = vadd.f32 %v4195, %v5528
  %v5771 = vadd.f32 %v4196, %v5533
  %v5772 = vadd.f32 %v4197, %v5536
  %v5773 = vadd.f32 %v4198, %v5541
  %v5774 = vadd.f32 %v4199, %v5544
  %v5775 = vadd.f32 %v4200, %v5549
  %v5776 = vadd.f32 %v4201, %v5552
  %v5777 = vadd.f32 %v4202, %v5557
  %v5778 = vadd.f32 %v4203, %v5560
  %v5779 = vadd.f32 %v4204, %v5565
  %v5780 = vadd.f32 %v4205, %v5568
  %v5781 = vadd.f32 %v4206, %v5573
  %v5782 = vadd.f32 %v4207, %v5576
  %v5783 = vadd.f32 %v4208, %v5581
  %v5784 = vadd.f32 %v4209, %v5584
  %v5785 = vadd.f32 %v4210, %v5589
  %v5786 = vadd.f32 %v4211, %v5592
  %v5787 = vadd.f32 %v4212, %v5597
  %v5788 = vadd.f32 %v4213, %v5600
  %v5789 = vadd.f32 %v4214, %v5605
  %v5790 = vadd.f32 %v4215, %v5608
  %v5791 = vadd.f32 %v4216, %v5613
  %v5792 = vadd.f32 %v4217, %v5616
  %v5793 = vadd.f32 %v4218, %v5621
  %v5794 = vadd.f32 %v4219, %v5624
  %v5795 = vadd.f32 %v4220, %v5629
  %v5796 = vadd.f32 %v4221, %v5632
  %v5797 = vadd.f32 %v4222, %v5637
  %v5798 = vadd.f32 %v4223, %v5640
  %v5799 = vadd.f32 %v4224, %v5645
  %v5800 = vadd.f32 %v4225, %v5648
  %v5801 = vadd.f32 %v4226, %v5653
  %v5802 = vadd.f32 %v4227, %v5656
  %v5803 = vld [vmem:[%s2 + $0xa8] sm:$0xf]
  %v5804 = vld [vmem:[%s2 + $0xac] sm:$0xf]
  %v5805 = vld [vmem:[%s2 + $0xb0] sm:$0xf]
  %v5806 = vld [vmem:[%s2 + $0xb4] sm:$0xf]
  %v5807 = vld [vmem:[%s2 + $0xb8] sm:$0xf]
  %v5808 = vld [vmem:[%s2 + $0xbc] sm:$0xf]
  %v5815 = vunpack.c.l.b16 %v5803
  %v5816 = vunpack.c.l.b16 %v5804
  %v5817 = vunpack.c.l.b16 %v5805
  %v5818 = vunpack.c.l.b16 %v5806
  %v5819 = vunpack.c.l.b16 %v5807
  %v5820 = vunpack.c.l.b16 %v5808
  %v5821 = vpack.c.b16 %v5816, %v5815
  %v5822 = vpack.c.b16 %v5818, %v5817
  %v5823 = vpack.c.b16 %v5820, %v5819
  %v5828 = vsel %vm711, %v673, 0
  %5830 = vmatprep.subr.bf16.mxu0 0
  %5831 = vmatpush1.bf16.msra.mxu0 %v5821
  %5832 = vmatprep.subr.bf16.mxu0 0
  %5833 = vmatpush1.bf16.msra.mxu0 %v5822
  %5834 = vmatprep.subr.bf16.mxu0 0
  %5835 = vmatpush1.bf16.msra.mxu0 %v5823
  %5836 = vmatprep.subr.bf16.mxu0 0
  %5837 = vmatpush1.bf16.msra.mxu0 0
  %5838 = vmatprep.subr.bf16.mxu0 0
  %5839 = vmatpush1.bf16.msra.mxu0 0
  %5840 = vmatprep.subr.bf16.mxu0 0
  %5841 = vmatpush1.bf16.msra.mxu0 0
  %5842 = vmatprep.subr.bf16.mxu0 0
  %5843 = vmatpush1.bf16.msra.mxu0 0
  %5844 = vmatprep.subr.bf16.mxu0 0
  %5845 = vmatpush1.bf16.msra.mxu0 0
  %5846 = vmatprep.subr.bf16.mxu0 0
  %5847 = vmatpush1.bf16.msra.mxu0 0
  %5848 = vmatprep.subr.bf16.mxu0 0
  %5849 = vmatpush1.bf16.msra.mxu0 0
  %5850 = vmatprep.subr.bf16.mxu0 0
  %5851 = vmatpush1.bf16.msra.mxu0 0
  %5852 = vmatprep.subr.bf16.mxu0 0
  %5853 = vmatpush1.bf16.msra.mxu0 0
  %5854 = vmatprep.subr.bf16.mxu0 0
  %5855 = vmatpush1.bf16.msra.mxu0 0
  %5856 = vmatprep.subr.bf16.mxu0 0
  %5857 = vmatpush1.bf16.msra.mxu0 0
  %5858 = vmatprep.subr.bf16.mxu0 0
  %5859 = vmatpush1.bf16.msra.mxu0 0
  %5860 = vmatprep.subr.bf16.mxu0 0
  %5861 = vmatpush1.bf16.msra.mxu0 0
  %5862 = vmatprep.mubr.bf16.mxu0 0
  %5863 = vmatmul.mubr.bf16.gmra.mrb[0].mxu0 %v758
  %v5864 = vpop.f32.mrb[0].mxu0
  %v5865 = vadd.f32 0.0, %v5864
  %v5866 = vpop.f32.mrb[0].mxu0
  %v5867 = vpop.f32.mrb[0].mxu0
  %v5868 = vadd.f32 0.0, %v5867
  %v5869 = vpop.f32.mrb[0].mxu0
  %5870 = vmatprep.mubr.bf16.mxu0 0
  %5871 = vmatmul.mubr.bf16.gmra.mrb[0].mxu0 %v761
  %v5872 = vpop.f32.mrb[0].mxu0
  %v5873 = vadd.f32 0.0, %v5872
  %v5874 = vpop.f32.mrb[0].mxu0
  %v5875 = vpop.f32.mrb[0].mxu0
  %v5876 = vadd.f32 0.0, %v5875
  %v5877 = vpop.f32.mrb[0].mxu0
  %5878 = vmatprep.mubr.bf16.mxu0 0
  %5879 = vmatmul.mubr.bf16.gmra.mrb[0].mxu0 %v764
  %v5880 = vpop.f32.mrb[0].mxu0
  %v5881 = vadd.f32 0.0, %v5880
  %v5882 = vpop.f32.mrb[0].mxu0
  %v5883 = vpop.f32.mrb[0].mxu0
  %v5884 = vadd.f32 0.0, %v5883
  %v5885 = vpop.f32.mrb[0].mxu0
  %5886 = vmatprep.mubr.bf16.mxu0 0
  %5887 = vmatmul.mubr.bf16.gmra.mrb[0].mxu0 %v767
  %v5888 = vpop.f32.mrb[0].mxu0
  %v5889 = vadd.f32 0.0, %v5888
  %v5890 = vpop.f32.mrb[0].mxu0
  %v5891 = vpop.f32.mrb[0].mxu0
  %v5892 = vadd.f32 0.0, %v5891
  %v5893 = vpop.f32.mrb[0].mxu0
  %5894 = vmatprep.mubr.bf16.mxu0 0
  %5895 = vmatmul.mubr.bf16.gmra.mrb[0].mxu0 %v770
  %v5896 = vpop.f32.mrb[0].mxu0
  %v5897 = vadd.f32 0.0, %v5896
  %v5898 = vpop.f32.mrb[0].mxu0
  %v5899 = vpop.f32.mrb[0].mxu0
  %v5900 = vadd.f32 0.0, %v5899
  %v5901 = vpop.f32.mrb[0].mxu0
  %5902 = vmatprep.mubr.bf16.mxu0 0
  %5903 = vmatmul.mubr.bf16.gmra.mrb[0].mxu0 %v773
  %v5904 = vpop.f32.mrb[0].mxu0
  %v5905 = vadd.f32 0.0, %v5904
  %v5906 = vpop.f32.mrb[0].mxu0
  %v5907 = vpop.f32.mrb[0].mxu0
  %v5908 = vadd.f32 0.0, %v5907
  %v5909 = vpop.f32.mrb[0].mxu0
  %5910 = vmatprep.mubr.bf16.mxu0 0
  %5911 = vmatmul.mubr.bf16.gmra.mrb[0].mxu0 %v776
  %v5912 = vpop.f32.mrb[0].mxu0
  %v5913 = vadd.f32 0.0, %v5912
  %v5914 = vpop.f32.mrb[0].mxu0
  %v5915 = vpop.f32.mrb[0].mxu0
  %v5916 = vadd.f32 0.0, %v5915
  %v5917 = vpop.f32.mrb[0].mxu0
  %5918 = vmatprep.mubr.bf16.mxu0 0
  %5919 = vmatmul.mubr.bf16.gmra.mrb[0].mxu0 %v779
  %v5920 = vpop.f32.mrb[0].mxu0
  %v5921 = vadd.f32 0.0, %v5920
  %v5922 = vpop.f32.mrb[0].mxu0
  %v5923 = vpop.f32.mrb[0].mxu0
  %v5924 = vadd.f32 0.0, %v5923
  %v5925 = vpop.f32.mrb[0].mxu0
  %5926 = vmatprep.mubr.bf16.mxu0 0
  %5927 = vmatmul.mubr.bf16.gmra.mrb[0].mxu0 %v782
  %v5928 = vpop.f32.mrb[0].mxu0
  %v5929 = vadd.f32 0.0, %v5928
  %v5930 = vpop.f32.mrb[0].mxu0
  %v5931 = vpop.f32.mrb[0].mxu0
  %v5932 = vadd.f32 0.0, %v5931
  %v5933 = vpop.f32.mrb[0].mxu0
  %5934 = vmatprep.mubr.bf16.mxu0 0
  %5935 = vmatmul.mubr.bf16.gmra.mrb[0].mxu0 %v785
  %v5936 = vpop.f32.mrb[0].mxu0
  %v5937 = vadd.f32 0.0, %v5936
  %v5938 = vpop.f32.mrb[0].mxu0
  %v5939 = vpop.f32.mrb[0].mxu0
  %v5940 = vadd.f32 0.0, %v5939
  %v5941 = vpop.f32.mrb[0].mxu0
  %5942 = vmatprep.mubr.bf16.mxu0 0
  %5943 = vmatmul.mubr.bf16.gmra.mrb[0].mxu0 %v788
  %v5944 = vpop.f32.mrb[0].mxu0
  %v5945 = vadd.f32 0.0, %v5944
  %v5946 = vpop.f32.mrb[0].mxu0
  %v5947 = vpop.f32.mrb[0].mxu0
  %v5948 = vadd.f32 0.0, %v5947
  %v5949 = vpop.f32.mrb[0].mxu0
  %5950 = vmatprep.mubr.bf16.mxu0 0
  %5951 = vmatmul.mubr.bf16.gmra.mrb[0].mxu0 %v791
  %v5952 = vpop.f32.mrb[0].mxu0
  %v5953 = vadd.f32 0.0, %v5952
  %v5954 = vpop.f32.mrb[0].mxu0
  %v5955 = vpop.f32.mrb[0].mxu0
  %v5956 = vadd.f32 0.0, %v5955
  %v5957 = vpop.f32.mrb[0].mxu0
  %5958 = vmatprep.mubr.bf16.mxu0 0
  %5959 = vmatmul.mubr.bf16.gmra.mrb[0].mxu0 %v794
  %v5960 = vpop.f32.mrb[0].mxu0
  %v5961 = vadd.f32 0.0, %v5960
  %v5962 = vpop.f32.mrb[0].mxu0
  %v5963 = vpop.f32.mrb[0].mxu0
  %v5964 = vadd.f32 0.0, %v5963
  %v5965 = vpop.f32.mrb[0].mxu0
  %5966 = vmatprep.mubr.bf16.mxu0 0
  %5967 = vmatmul.mubr.bf16.gmra.mrb[0].mxu0 %v797
  %v5968 = vpop.f32.mrb[0].mxu0
  %v5969 = vadd.f32 0.0, %v5968
  %v5970 = vpop.f32.mrb[0].mxu0
  %v5971 = vpop.f32.mrb[0].mxu0
  %v5972 = vadd.f32 0.0, %v5971
  %v5973 = vpop.f32.mrb[0].mxu0
  %5974 = vmatprep.mubr.bf16.mxu0 0
  %5975 = vmatmul.mubr.bf16.gmra.mrb[0].mxu0 %v800
  %v5976 = vpop.f32.mrb[0].mxu0
  %v5977 = vadd.f32 0.0, %v5976
  %v5978 = vpop.f32.mrb[0].mxu0
  %v5979 = vpop.f32.mrb[0].mxu0
  %v5980 = vadd.f32 0.0, %v5979
  %v5981 = vpop.f32.mrb[0].mxu0
  %5982 = vmatprep.mubr.bf16.mxu0 0
  %5983 = vmatmul.mubr.bf16.gmra.mrb[0].mxu0 %v803
  %v5984 = vpop.f32.mrb[0].mxu0
  %v5985 = vadd.f32 0.0, %v5984
  %v5986 = vpop.f32.mrb[0].mxu0
  %v5987 = vpop.f32.mrb[0].mxu0
  %v5988 = vadd.f32 0.0, %v5987
  %v5989 = vpop.f32.mrb[0].mxu0
  %5990 = vmatprep.mubr.bf16.mxu0 0
  %5991 = vmatmul.mubr.bf16.gmra.mrb[0].mxu0 %v806
  %v5992 = vpop.f32.mrb[0].mxu0
  %v5993 = vadd.f32 0.0, %v5992
  %v5994 = vpop.f32.mrb[0].mxu0
  %v5995 = vpop.f32.mrb[0].mxu0
  %v5996 = vadd.f32 0.0, %v5995
  %v5997 = vpop.f32.mrb[0].mxu0
  %5998 = vmatprep.mubr.bf16.mxu0 0
  %5999 = vmatmul.mubr.bf16.gmra.mrb[0].mxu0 %v809
  %v6000 = vpop.f32.mrb[0].mxu0
  %v6001 = vadd.f32 0.0, %v6000
  %v6002 = vpop.f32.mrb[0].mxu0
  %v6003 = vpop.f32.mrb[0].mxu0
  %v6004 = vadd.f32 0.0, %v6003
  %v6005 = vpop.f32.mrb[0].mxu0
  %6006 = vmatprep.mubr.bf16.mxu0 0
  %6007 = vmatmul.mubr.bf16.gmra.mrb[0].mxu0 %v812
  %v6008 = vpop.f32.mrb[0].mxu0
  %v6009 = vadd.f32 0.0, %v6008
  %v6010 = vpop.f32.mrb[0].mxu0
  %v6011 = vpop.f32.mrb[0].mxu0
  %v6012 = vadd.f32 0.0, %v6011
  %v6013 = vpop.f32.mrb[0].mxu0
  %6014 = vmatprep.mubr.bf16.mxu0 0
  %6015 = vmatmul.mubr.bf16.gmra.mrb[0].mxu0 %v815
  %v6016 = vpop.f32.mrb[0].mxu0
  %v6017 = vadd.f32 0.0, %v6016
  %v6018 = vpop.f32.mrb[0].mxu0
  %v6019 = vpop.f32.mrb[0].mxu0
  %v6020 = vadd.f32 0.0, %v6019
  %v6021 = vpop.f32.mrb[0].mxu0
  %6022 = vmatprep.mubr.bf16.mxu0 0
  %6023 = vmatmul.mubr.bf16.gmra.mrb[0].mxu0 %v818
  %v6024 = vpop.f32.mrb[0].mxu0
  %v6025 = vadd.f32 0.0, %v6024
  %v6026 = vpop.f32.mrb[0].mxu0
  %v6027 = vpop.f32.mrb[0].mxu0
  %v6028 = vadd.f32 0.0, %v6027
  %v6029 = vpop.f32.mrb[0].mxu0
  %6030 = vmatprep.mubr.bf16.mxu0 0
  %6031 = vmatmul.mubr.bf16.gmra.mrb[0].mxu0 %v821
  %v6032 = vpop.f32.mrb[0].mxu0
  %v6033 = vadd.f32 0.0, %v6032
  %v6034 = vpop.f32.mrb[0].mxu0
  %v6035 = vpop.f32.mrb[0].mxu0
  %v6036 = vadd.f32 0.0, %v6035
  %v6037 = vpop.f32.mrb[0].mxu0
  %6038 = vmatprep.mubr.bf16.mxu0 0
  %6039 = vmatmul.mubr.bf16.gmra.mrb[0].mxu0 %v824
  %v6040 = vpop.f32.mrb[0].mxu0
  %v6041 = vadd.f32 0.0, %v6040
  %v6042 = vpop.f32.mrb[0].mxu0
  %v6043 = vpop.f32.mrb[0].mxu0
  %v6044 = vadd.f32 0.0, %v6043
  %v6045 = vpop.f32.mrb[0].mxu0
  %6046 = vmatprep.mubr.bf16.mxu0 0
  %6047 = vmatmul.mubr.bf16.gmra.mrb[0].mxu0 %v827
  %v6048 = vpop.f32.mrb[0].mxu0
  %v6049 = vadd.f32 0.0, %v6048
  %v6050 = vpop.f32.mrb[0].mxu0
  %v6051 = vpop.f32.mrb[0].mxu0
  %v6052 = vadd.f32 0.0, %v6051
  %v6053 = vpop.f32.mrb[0].mxu0
  %6054 = vmatprep.mubr.bf16.mxu0 0
  %6055 = vmatmul.mubr.bf16.gmra.mrb[0].mxu0 %v830
  %v6056 = vpop.f32.mrb[0].mxu0
  %v6057 = vadd.f32 0.0, %v6056
  %v6058 = vpop.f32.mrb[0].mxu0
  %v6059 = vpop.f32.mrb[0].mxu0
  %v6060 = vadd.f32 0.0, %v6059
  %v6061 = vpop.f32.mrb[0].mxu0
  %6062 = vmatprep.mubr.bf16.mxu0 0
  %6063 = vmatmul.mubr.bf16.gmra.mrb[0].mxu0 %v833
  %v6064 = vpop.f32.mrb[0].mxu0
  %v6065 = vadd.f32 0.0, %v6064
  %v6066 = vpop.f32.mrb[0].mxu0
  %v6067 = vpop.f32.mrb[0].mxu0
  %v6068 = vadd.f32 0.0, %v6067
  %v6069 = vpop.f32.mrb[0].mxu0
  %6070 = vmatprep.mubr.bf16.mxu0 0
  %6071 = vmatmul.mubr.bf16.gmra.mrb[0].mxu0 %v836
  %v6072 = vpop.f32.mrb[0].mxu0
  %v6073 = vadd.f32 0.0, %v6072
  %v6074 = vpop.f32.mrb[0].mxu0
  %v6075 = vpop.f32.mrb[0].mxu0
  %v6076 = vadd.f32 0.0, %v6075
  %v6077 = vpop.f32.mrb[0].mxu0
  %6078 = vmatprep.mubr.bf16.mxu0 0
  %6079 = vmatmul.mubr.bf16.gmra.mrb[0].mxu0 %v839
  %v6080 = vpop.f32.mrb[0].mxu0
  %v6081 = vadd.f32 0.0, %v6080
  %v6082 = vpop.f32.mrb[0].mxu0
  %v6083 = vpop.f32.mrb[0].mxu0
  %v6084 = vadd.f32 0.0, %v6083
  %v6085 = vpop.f32.mrb[0].mxu0
  %6086 = vmatprep.mubr.bf16.mxu0 0
  %6087 = vmatmul.mubr.bf16.gmra.mrb[0].mxu0 %v842
  %v6088 = vpop.f32.mrb[0].mxu0
  %v6089 = vadd.f32 0.0, %v6088
  %v6090 = vpop.f32.mrb[0].mxu0
  %v6091 = vpop.f32.mrb[0].mxu0
  %v6092 = vadd.f32 0.0, %v6091
  %v6093 = vpop.f32.mrb[0].mxu0
  %6094 = vmatprep.mubr.bf16.mxu0 0
  %6095 = vmatmul.mubr.bf16.gmra.mrb[0].mxu0 %v845
  %v6096 = vpop.f32.mrb[0].mxu0
  %v6097 = vadd.f32 0.0, %v6096
  %v6098 = vpop.f32.mrb[0].mxu0
  %v6099 = vpop.f32.mrb[0].mxu0
  %v6100 = vadd.f32 0.0, %v6099
  %v6101 = vpop.f32.mrb[0].mxu0
  %6102 = vmatprep.mubr.bf16.mxu0 0
  %6103 = vmatmul.mubr.bf16.gmra.mrb[0].mxu0 %v848
  %v6104 = vpop.f32.mrb[0].mxu0
  %v6105 = vadd.f32 0.0, %v6104
  %v6106 = vpop.f32.mrb[0].mxu0
  %v6107 = vpop.f32.mrb[0].mxu0
  %v6108 = vadd.f32 0.0, %v6107
  %v6109 = vpop.f32.mrb[0].mxu0
  %6110 = vmatprep.mubr.bf16.mxu0 0
  %6111 = vmatmul.mubr.bf16.gmra.mrb[0].mxu0 %v851
  %v6112 = vpop.f32.mrb[0].mxu0
  %v6113 = vadd.f32 0.0, %v6112
  %v6114 = vpop.f32.mrb[0].mxu0
  %v6115 = vpop.f32.mrb[0].mxu0
  %v6116 = vadd.f32 0.0, %v6115
  %v6117 = vpop.f32.mrb[0].mxu0
  %6118 = vmatprep.mubr.bf16.mxu0 0
  %6119 = vmatmul.mubr.bf16.gmra.mrb[0].mxu0 %v854
  %v6120 = vpop.f32.mrb[0].mxu0
  %v6121 = vadd.f32 0.0, %v6120
  %v6122 = vpop.f32.mrb[0].mxu0
  %v6123 = vpop.f32.mrb[0].mxu0
  %v6124 = vadd.f32 0.0, %v6123
  %v6125 = vpop.f32.mrb[0].mxu0
  %6126 = vmatprep.mubr.bf16.mxu0 0
  %6127 = vmatmul.mubr.bf16.gmra.mrb[0].mxu0 %v857
  %v6128 = vpop.f32.mrb[0].mxu0
  %v6129 = vadd.f32 0.0, %v6128
  %v6130 = vpop.f32.mrb[0].mxu0
  %v6131 = vpop.f32.mrb[0].mxu0
  %v6132 = vadd.f32 0.0, %v6131
  %v6133 = vpop.f32.mrb[0].mxu0
  %6134 = vmatprep.mubr.bf16.mxu0 0
  %6135 = vmatmul.mubr.bf16.gmra.mrb[0].mxu0 %v860
  %v6136 = vpop.f32.mrb[0].mxu0
  %v6137 = vadd.f32 0.0, %v6136
  %v6138 = vpop.f32.mrb[0].mxu0
  %v6139 = vpop.f32.mrb[0].mxu0
  %v6140 = vadd.f32 0.0, %v6139
  %v6141 = vpop.f32.mrb[0].mxu0
  %6142 = vmatprep.mubr.bf16.mxu0 0
  %6143 = vmatmul.mubr.bf16.gmra.mrb[0].mxu0 %v863
  %v6144 = vpop.f32.mrb[0].mxu0
  %v6145 = vadd.f32 0.0, %v6144
  %v6146 = vpop.f32.mrb[0].mxu0
  %v6147 = vpop.f32.mrb[0].mxu0
  %v6148 = vadd.f32 0.0, %v6147
  %v6149 = vpop.f32.mrb[0].mxu0
  %6150 = vmatprep.mubr.bf16.mxu0 0
  %6151 = vmatmul.mubr.bf16.gmra.mrb[0].mxu0 %v866
  %v6152 = vpop.f32.mrb[0].mxu0
  %v6153 = vadd.f32 0.0, %v6152
  %v6154 = vpop.f32.mrb[0].mxu0
  %v6155 = vpop.f32.mrb[0].mxu0
  %v6156 = vadd.f32 0.0, %v6155
  %v6157 = vpop.f32.mrb[0].mxu0
  %6158 = vmatprep.mubr.bf16.mxu0 0
  %6159 = vmatmul.mubr.bf16.gmra.mrb[0].mxu0 %v869
  %v6160 = vpop.f32.mrb[0].mxu0
  %v6161 = vadd.f32 0.0, %v6160
  %v6162 = vpop.f32.mrb[0].mxu0
  %v6163 = vpop.f32.mrb[0].mxu0
  %v6164 = vadd.f32 0.0, %v6163
  %v6165 = vpop.f32.mrb[0].mxu0
  %6166 = vmatprep.mubr.bf16.mxu0 0
  %6167 = vmatmul.mubr.bf16.gmra.mrb[0].mxu0 %v872
  %v6168 = vpop.f32.mrb[0].mxu0
  %v6169 = vadd.f32 0.0, %v6168
  %v6170 = vpop.f32.mrb[0].mxu0
  %v6171 = vpop.f32.mrb[0].mxu0
  %v6172 = vadd.f32 0.0, %v6171
  %v6173 = vpop.f32.mrb[0].mxu0
  %6174 = vmatprep.mubr.bf16.mxu0 0
  %6175 = vmatmul.mubr.bf16.gmra.mrb[0].mxu0 %v875
  %v6176 = vpop.f32.mrb[0].mxu0
  %v6177 = vadd.f32 0.0, %v6176
  %v6178 = vpop.f32.mrb[0].mxu0
  %v6179 = vpop.f32.mrb[0].mxu0
  %v6180 = vadd.f32 0.0, %v6179
  %v6181 = vpop.f32.mrb[0].mxu0
  %6182 = vmatprep.mubr.bf16.mxu0 0
  %6183 = vmatmul.mubr.bf16.gmra.mrb[0].mxu0 %v878
  %v6184 = vpop.f32.mrb[0].mxu0
  %v6185 = vadd.f32 0.0, %v6184
  %v6186 = vpop.f32.mrb[0].mxu0
  %v6187 = vpop.f32.mrb[0].mxu0
  %v6188 = vadd.f32 0.0, %v6187
  %v6189 = vpop.f32.mrb[0].mxu0
  %6190 = vmatprep.mubr.bf16.mxu0 0
  %6191 = vmatmul.mubr.bf16.gmra.mrb[0].mxu0 %v881
  %v6192 = vpop.f32.mrb[0].mxu0
  %v6193 = vadd.f32 0.0, %v6192
  %v6194 = vpop.f32.mrb[0].mxu0
  %v6195 = vpop.f32.mrb[0].mxu0
  %v6196 = vadd.f32 0.0, %v6195
  %v6197 = vpop.f32.mrb[0].mxu0
  %6198 = vmatprep.mubr.bf16.mxu0 0
  %6199 = vmatmul.mubr.bf16.gmra.mrb[0].mxu0 %v884
  %v6200 = vpop.f32.mrb[0].mxu0
  %v6201 = vadd.f32 0.0, %v6200
  %v6202 = vpop.f32.mrb[0].mxu0
  %v6203 = vpop.f32.mrb[0].mxu0
  %v6204 = vadd.f32 0.0, %v6203
  %v6205 = vpop.f32.mrb[0].mxu0
  %6206 = vmatprep.mubr.bf16.mxu0 0
  %6207 = vmatmul.mubr.bf16.gmra.mrb[0].mxu0 %v887
  %v6208 = vpop.f32.mrb[0].mxu0
  %v6209 = vadd.f32 0.0, %v6208
  %v6210 = vpop.f32.mrb[0].mxu0
  %v6211 = vpop.f32.mrb[0].mxu0
  %v6212 = vadd.f32 0.0, %v6211
  %v6213 = vpop.f32.mrb[0].mxu0
  %6214 = vmatprep.mubr.bf16.mxu0 0
  %6215 = vmatmul.mubr.bf16.gmra.mrb[0].mxu0 %v890
  %v6216 = vpop.f32.mrb[0].mxu0
  %v6217 = vadd.f32 0.0, %v6216
  %v6218 = vpop.f32.mrb[0].mxu0
  %v6219 = vpop.f32.mrb[0].mxu0
  %v6220 = vadd.f32 0.0, %v6219
  %v6221 = vpop.f32.mrb[0].mxu0
  %6222 = vmatprep.mubr.bf16.mxu0 0
  %6223 = vmatmul.mubr.bf16.gmra.mrb[0].mxu0 %v893
  %v6224 = vpop.f32.mrb[0].mxu0
  %v6225 = vadd.f32 0.0, %v6224
  %v6226 = vpop.f32.mrb[0].mxu0
  %v6227 = vpop.f32.mrb[0].mxu0
  %v6228 = vadd.f32 0.0, %v6227
  %v6229 = vpop.f32.mrb[0].mxu0
  %6230 = vmatprep.mubr.bf16.mxu0 0
  %6231 = vmatmul.mubr.bf16.gmra.mrb[0].mxu0 %v896
  %v6232 = vpop.f32.mrb[0].mxu0
  %v6233 = vadd.f32 0.0, %v6232
  %v6234 = vpop.f32.mrb[0].mxu0
  %v6235 = vpop.f32.mrb[0].mxu0
  %v6236 = vadd.f32 0.0, %v6235
  %v6237 = vpop.f32.mrb[0].mxu0
  %6238 = vmatprep.mubr.bf16.mxu0 0
  %6239 = vmatmul.mubr.bf16.gmra.mrb[0].mxu0 %v899
  %v6240 = vpop.f32.mrb[0].mxu0
  %v6241 = vadd.f32 0.0, %v6240
  %v6242 = vpop.f32.mrb[0].mxu0
  %v6243 = vpop.f32.mrb[0].mxu0
  %v6244 = vadd.f32 0.0, %v6243
  %v6245 = vpop.f32.mrb[0].mxu0
  %6246 = vmatprep.mubr.bf16.mxu0 0
  %6247 = vmatmul.mubr.bf16.gmra.mrb[0].mxu0 %v902
  %v6248 = vpop.f32.mrb[0].mxu0
  %v6249 = vadd.f32 0.0, %v6248
  %v6250 = vpop.f32.mrb[0].mxu0
  %v6251 = vpop.f32.mrb[0].mxu0
  %v6252 = vadd.f32 0.0, %v6251
  %v6253 = vpop.f32.mrb[0].mxu0
  %6254 = vmatprep.mubr.bf16.mxu0 0
  %6255 = vmatmul.mubr.bf16.gmra.mrb[0].mxu0 %v905
  %v6256 = vpop.f32.mrb[0].mxu0
  %v6257 = vadd.f32 0.0, %v6256
  %v6258 = vpop.f32.mrb[0].mxu0
  %v6259 = vpop.f32.mrb[0].mxu0
  %v6260 = vadd.f32 0.0, %v6259
  %v6261 = vpop.f32.mrb[0].mxu0
  %6262 = vmatprep.mubr.bf16.mxu0 0
  %6263 = vmatmul.mubr.bf16.gmra.mrb[0].mxu0 %v908
  %v6264 = vpop.f32.mrb[0].mxu0
  %v6265 = vadd.f32 0.0, %v6264
  %v6266 = vpop.f32.mrb[0].mxu0
  %v6267 = vpop.f32.mrb[0].mxu0
  %v6268 = vadd.f32 0.0, %v6267
  %v6269 = vpop.f32.mrb[0].mxu0
  %6270 = vmatprep.mubr.bf16.mxu0 0
  %6271 = vmatmul.mubr.bf16.gmra.mrb[0].mxu0 %v911
  %v6272 = vpop.f32.mrb[0].mxu0
  %v6273 = vadd.f32 0.0, %v6272
  %v6274 = vpop.f32.mrb[0].mxu0
  %v6275 = vpop.f32.mrb[0].mxu0
  %v6276 = vadd.f32 0.0, %v6275
  %v6277 = vpop.f32.mrb[0].mxu0
  %6278 = vmatprep.mubr.bf16.mxu0 0
  %6279 = vmatmul.mubr.bf16.gmra.mrb[0].mxu0 %v914
  %v6280 = vpop.f32.mrb[0].mxu0
  %v6281 = vadd.f32 0.0, %v6280
  %v6282 = vpop.f32.mrb[0].mxu0
  %v6283 = vpop.f32.mrb[0].mxu0
  %v6284 = vadd.f32 0.0, %v6283
  %v6285 = vpop.f32.mrb[0].mxu0
  %6286 = vmatprep.mubr.bf16.mxu0 0
  %6287 = vmatmul.mubr.bf16.gmra.mrb[0].mxu0 %v917
  %v6288 = vpop.f32.mrb[0].mxu0
  %v6289 = vadd.f32 0.0, %v6288
  %v6290 = vpop.f32.mrb[0].mxu0
  %v6291 = vpop.f32.mrb[0].mxu0
  %v6292 = vadd.f32 0.0, %v6291
  %v6293 = vpop.f32.mrb[0].mxu0
  %6294 = vmatprep.mubr.bf16.mxu0 0
  %6295 = vmatmul.mubr.bf16.gmra.mrb[0].mxu0 %v920
  %v6296 = vpop.f32.mrb[0].mxu0
  %v6297 = vadd.f32 0.0, %v6296
  %v6298 = vpop.f32.mrb[0].mxu0
  %v6299 = vpop.f32.mrb[0].mxu0
  %v6300 = vadd.f32 0.0, %v6299
  %v6301 = vpop.f32.mrb[0].mxu0
  %6302 = vmatprep.mubr.bf16.mxu0 0
  %6303 = vmatmul.mubr.bf16.gmra.mrb[0].mxu0 %v923
  %v6304 = vpop.f32.mrb[0].mxu0
  %v6305 = vadd.f32 0.0, %v6304
  %v6306 = vpop.f32.mrb[0].mxu0
  %v6307 = vpop.f32.mrb[0].mxu0
  %v6308 = vadd.f32 0.0, %v6307
  %v6309 = vpop.f32.mrb[0].mxu0
  %6310 = vmatprep.mubr.bf16.mxu0 0
  %6311 = vmatmul.mubr.bf16.gmra.mrb[0].mxu0 %v926
  %v6312 = vpop.f32.mrb[0].mxu0
  %v6313 = vadd.f32 0.0, %v6312
  %v6314 = vpop.f32.mrb[0].mxu0
  %v6315 = vpop.f32.mrb[0].mxu0
  %v6316 = vadd.f32 0.0, %v6315
  %v6317 = vpop.f32.mrb[0].mxu0
  %6318 = vmatprep.mubr.bf16.mxu0 0
  %6319 = vmatmul.mubr.bf16.gmra.mrb[0].mxu0 %v2195
  %v6320 = vpop.f32.mrb[0].mxu0
  %v6321 = vadd.f32 0.0, %v6320
  %v6322 = vpop.f32.mrb[0].mxu0
  %v6323 = vpop.f32.mrb[0].mxu0
  %v6324 = vadd.f32 0.0, %v6323
  %v6325 = vpop.f32.mrb[0].mxu0
  %6326 = vmatprep.mubr.bf16.mxu0 0
  %6327 = vmatmul.mubr.bf16.gmra.mrb[0].mxu0 %v2198
  %v6328 = vpop.f32.mrb[0].mxu0
  %v6329 = vadd.f32 0.0, %v6328
  %v6330 = vpop.f32.mrb[0].mxu0
  %v6331 = vpop.f32.mrb[0].mxu0
  %v6332 = vadd.f32 0.0, %v6331
  %v6333 = vpop.f32.mrb[0].mxu0
  %6334 = vmatprep.mubr.bf16.mxu0 0
  %6335 = vmatmul.mubr.bf16.gmra.mrb[0].mxu0 %v2201
  %v6336 = vpop.f32.mrb[0].mxu0
  %v6337 = vadd.f32 0.0, %v6336
  %v6338 = vpop.f32.mrb[0].mxu0
  %v6339 = vpop.f32.mrb[0].mxu0
  %v6340 = vadd.f32 0.0, %v6339
  %v6341 = vpop.f32.mrb[0].mxu0
  %6342 = vmatprep.mubr.bf16.mxu0 0
  %6343 = vmatmul.mubr.bf16.gmra.mrb[0].mxu0 %v2204
  %v6344 = vpop.f32.mrb[0].mxu0
  %v6345 = vadd.f32 0.0, %v6344
  %v6346 = vpop.f32.mrb[0].mxu0
  %v6347 = vpop.f32.mrb[0].mxu0
  %v6348 = vadd.f32 0.0, %v6347
  %v6349 = vpop.f32.mrb[0].mxu0
  %6350 = vmatprep.mubr.bf16.mxu0 0
  %6351 = vmatmul.mubr.bf16.gmra.mrb[0].mxu0 %v2207
  %v6352 = vpop.f32.mrb[0].mxu0
  %v6353 = vadd.f32 0.0, %v6352
  %v6354 = vpop.f32.mrb[0].mxu0
  %v6355 = vpop.f32.mrb[0].mxu0
  %v6356 = vadd.f32 0.0, %v6355
  %v6357 = vpop.f32.mrb[0].mxu0
  %6358 = vmatprep.mubr.bf16.mxu0 0
  %6359 = vmatmul.mubr.bf16.gmra.mrb[0].mxu0 %v2210
  %v6360 = vpop.f32.mrb[0].mxu0
  %v6361 = vadd.f32 0.0, %v6360
  %v6362 = vpop.f32.mrb[0].mxu0
  %v6363 = vpop.f32.mrb[0].mxu0
  %v6364 = vadd.f32 0.0, %v6363
  %v6365 = vpop.f32.mrb[0].mxu0
  %6366 = vmatprep.mubr.bf16.mxu0 0
  %6367 = vmatmul.mubr.bf16.gmra.mrb[0].mxu0 %v3473
  %v6368 = vpop.f32.mrb[0].mxu0
  %v6369 = vadd.f32 0.0, %v6368
  %v6370 = vpop.f32.mrb[0].mxu0
  %v6371 = vpop.f32.mrb[0].mxu0
  %v6372 = vadd.f32 0.0, %v6371
  %v6373 = vpop.f32.mrb[0].mxu0
  %6374 = vmatprep.mubr.bf16.mxu0 0
  %6375 = vmatmul.mubr.bf16.gmra.mrb[0].mxu0 %v4253
  %v6376 = vpop.f32.mrb[0].mxu0
  %v6377 = vadd.f32 0.0, %v6376
  %v6378 = vpop.f32.mrb[0].mxu0
  %v6379 = vpop.f32.mrb[0].mxu0
  %v6380 = vadd.f32 0.0, %v6379
  %v6381 = vpop.f32.mrb[0].mxu0
  %6382 = vmatprep.mubr.bf16.mxu0 0
  %6383 = vmatmul.mubr.bf16.gmra.mrb[0].mxu0 %v5033
  %v6384 = vpop.f32.mrb[0].mxu0
  %v6385 = vadd.f32 0.0, %v6384
  %v6386 = vpop.f32.mrb[0].mxu0
  %v6387 = vpop.f32.mrb[0].mxu0
  %v6388 = vadd.f32 0.0, %v6387
  %v6389 = vpop.f32.mrb[0].mxu0
  %6390 = vmatprep.mubr.bf16.mxu0 0
  %6391 = vmatmul.mubr.bf16.gmra.mrb[0].mxu0 %v5036
  %v6392 = vpop.f32.mrb[0].mxu0
  %v6393 = vadd.f32 0.0, %v6392
  %v6394 = vpop.f32.mrb[0].mxu0
  %v6395 = vpop.f32.mrb[0].mxu0
  %v6396 = vadd.f32 0.0, %v6395
  %v6397 = vpop.f32.mrb[0].mxu0
  %6398 = vmatprep.mubr.bf16.mxu0 0
  %6399 = vmatmul.mubr.bf16.gmra.mrb[0].mxu0 %v5039
  %v6400 = vpop.f32.mrb[0].mxu0
  %v6401 = vadd.f32 0.0, %v6400
  %v6402 = vpop.f32.mrb[0].mxu0
  %v6403 = vpop.f32.mrb[0].mxu0
  %v6404 = vadd.f32 0.0, %v6403
  %v6405 = vpop.f32.mrb[0].mxu0
  %6406 = vmatprep.mubr.bf16.mxu0 0
  %6407 = vmatmul.mubr.bf16.gmra.mrb[0].mxu0 %v5042
  %v6408 = vpop.f32.mrb[0].mxu0
  %v6409 = vadd.f32 0.0, %v6408
  %v6410 = vpop.f32.mrb[0].mxu0
  %v6411 = vpop.f32.mrb[0].mxu0
  %v6412 = vadd.f32 0.0, %v6411
  %v6413 = vpop.f32.mrb[0].mxu0
  %6414 = vmatprep.mubr.bf16.mxu0 0
  %6415 = vmatmul.mubr.bf16.gmra.mrb[0].mxu0 %v5045
  %v6416 = vpop.f32.mrb[0].mxu0
  %v6417 = vadd.f32 0.0, %v6416
  %v6418 = vpop.f32.mrb[0].mxu0
  %v6419 = vpop.f32.mrb[0].mxu0
  %v6420 = vadd.f32 0.0, %v6419
  %v6421 = vpop.f32.mrb[0].mxu0
  %6422 = vmatprep.mubr.bf16.mxu0 0
  %6423 = vmatmul.mubr.bf16.gmra.mrb[0].mxu0 %v5048
  %v6424 = vpop.f32.mrb[0].mxu0
  %v6425 = vadd.f32 0.0, %v6424
  %v6426 = vpop.f32.mrb[0].mxu0
  %v6427 = vpop.f32.mrb[0].mxu0
  %v6428 = vadd.f32 0.0, %v6427
  %v6429 = vpop.f32.mrb[0].mxu0
  %6430 = vmatprep.mubr.bf16.mxu0 0
  %6431 = vmatmul.mubr.bf16.gmra.mrb[0].mxu0 %v5828
  %v6432 = vpop.f32.mrb[0].mxu0
  %v6433 = vadd.f32 0.0, %v6432
  %v6434 = vpop.f32.mrb[0].mxu0
  %v6435 = vpop.f32.mrb[0].mxu0
  %v6436 = vadd.f32 0.0, %v6435
  %v6437 = vpop.f32.mrb[0].mxu0
  %6438 = vdwg.mxu0
  %v6439 = vadd.f32 %v4864, %v5865
  %v6440 = vadd.f32 %v4865, %v5868
  %v6441 = vadd.f32 %v4866, %v5873
  %v6442 = vadd.f32 %v4867, %v5876
  %v6443 = vadd.f32 %v4868, %v5881
  %v6444 = vadd.f32 %v4869, %v5884
  %v6445 = vadd.f32 %v4870, %v5889
  %v6446 = vadd.f32 %v4871, %v5892
  %v6447 = vadd.f32 %v4872, %v5897
  %v6448 = vadd.f32 %v4873, %v5900
  %v6449 = vadd.f32 %v4874, %v5905
  %v6450 = vadd.f32 %v4875, %v5908
  %v6451 = vadd.f32 %v4876, %v5913
  %v6452 = vadd.f32 %v4877, %v5916
  %v6453 = vadd.f32 %v4878, %v5921
  %v6454 = vadd.f32 %v4879, %v5924
  %v6455 = vadd.f32 %v4880, %v5929
  %v6456 = vadd.f32 %v4881, %v5932
  %v6457 = vadd.f32 %v4882, %v5937
  %v6458 = vadd.f32 %v4883, %v5940
  %v6459 = vadd.f32 %v4884, %v5945
  %v6460 = vadd.f32 %v4885, %v5948
  %v6461 = vadd.f32 %v4886, %v5953
  %v6462 = vadd.f32 %v4887, %v5956
  %v6463 = vadd.f32 %v4888, %v5961
  %v6464 = vadd.f32 %v4889, %v5964
  %v6465 = vadd.f32 %v4890, %v5969
  %v6466 = vadd.f32 %v4891, %v5972
  %v6467 = vadd.f32 %v4892, %v5977
  %v6468 = vadd.f32 %v4893, %v5980
  %v6469 = vadd.f32 %v4894, %v5985
  %v6470 = vadd.f32 %v4895, %v5988
  %v6471 = vadd.f32 %v4896, %v5993
  %v6472 = vadd.f32 %v4897, %v5996
  %v6473 = vadd.f32 %v4898, %v6001
  %v6474 = vadd.f32 %v4899, %v6004
  %v6475 = vadd.f32 %v4900, %v6009
  %v6476 = vadd.f32 %v4901, %v6012
  %v6477 = vadd.f32 %v4902, %v6017
  %v6478 = vadd.f32 %v4903, %v6020
  %v6479 = vadd.f32 %v4904, %v6025
  %v6480 = vadd.f32 %v4905, %v6028
  %v6481 = vadd.f32 %v4906, %v6033
  %v6482 = vadd.f32 %v4907, %v6036
  %v6483 = vadd.f32 %v4908, %v6041
  %v6484 = vadd.f32 %v4909, %v6044
  %v6485 = vadd.f32 %v4910, %v6049
  %v6486 = vadd.f32 %v4911, %v6052
  %v6487 = vadd.f32 %v4912, %v6057
  %v6488 = vadd.f32 %v4913, %v6060
  %v6489 = vadd.f32 %v4914, %v6065
  %v6490 = vadd.f32 %v4915, %v6068
  %v6491 = vadd.f32 %v4916, %v6073
  %v6492 = vadd.f32 %v4917, %v6076
  %v6493 = vadd.f32 %v4918, %v6081
  %v6494 = vadd.f32 %v4919, %v6084
  %v6495 = vadd.f32 %v4920, %v6089
  %v6496 = vadd.f32 %v4921, %v6092
  %v6497 = vadd.f32 %v4922, %v6097
  %v6498 = vadd.f32 %v4923, %v6100
  %v6499 = vadd.f32 %v4924, %v6105
  %v6500 = vadd.f32 %v4925, %v6108
  %v6501 = vadd.f32 %v4926, %v6113
  %v6502 = vadd.f32 %v4927, %v6116
  %v6503 = vadd.f32 %v4928, %v6121
  %v6504 = vadd.f32 %v4929, %v6124
  %v6505 = vadd.f32 %v4930, %v6129
  %v6506 = vadd.f32 %v4931, %v6132
  %v6507 = vadd.f32 %v4932, %v6137
  %v6508 = vadd.f32 %v4933, %v6140
  %v6509 = vadd.f32 %v4934, %v6145
  %v6510 = vadd.f32 %v4935, %v6148
  %v6511 = vadd.f32 %v4936, %v6153
  %v6512 = vadd.f32 %v4937, %v6156
  %v6513 = vadd.f32 %v4938, %v6161
  %v6514 = vadd.f32 %v4939, %v6164
  %v6515 = vadd.f32 %v4940, %v6169
  %v6516 = vadd.f32 %v4941, %v6172
  %v6517 = vadd.f32 %v4942, %v6177
  %v6518 = vadd.f32 %v4943, %v6180
  %v6519 = vadd.f32 %v4944, %v6185
  %v6520 = vadd.f32 %v4945, %v6188
  %v6521 = vadd.f32 %v4946, %v6193
  %v6522 = vadd.f32 %v4947, %v6196
  %v6523 = vadd.f32 %v4948, %v6201
  %v6524 = vadd.f32 %v4949, %v6204
  %v6525 = vadd.f32 %v4950, %v6209
  %v6526 = vadd.f32 %v4951, %v6212
  %v6527 = vadd.f32 %v4952, %v6217
  %v6528 = vadd.f32 %v4953, %v6220
  %v6529 = vadd.f32 %v4954, %v6225
  %v6530 = vadd.f32 %v4955, %v6228
  %v6531 = vadd.f32 %v4956, %v6233
  %v6532 = vadd.f32 %v4957, %v6236
  %v6533 = vadd.f32 %v4958, %v6241
  %v6534 = vadd.f32 %v4959, %v6244
  %v6535 = vadd.f32 %v4960, %v6249
  %v6536 = vadd.f32 %v4961, %v6252
  %v6537 = vadd.f32 %v4962, %v6257
  %v6538 = vadd.f32 %v4963, %v6260
  %v6539 = vadd.f32 %v4964, %v6265
  %v6540 = vadd.f32 %v4965, %v6268
  %v6541 = vadd.f32 %v4966, %v6273
  %v6542 = vadd.f32 %v4967, %v6276
  %v6543 = vadd.f32 %v4968, %v6281
  %v6544 = vadd.f32 %v4969, %v6284
  %v6545 = vadd.f32 %v4970, %v6289
  %v6546 = vadd.f32 %v4971, %v6292
  %v6547 = vadd.f32 %v4972, %v6297
  %v6548 = vadd.f32 %v4973, %v6300
  %v6549 = vadd.f32 %v4974, %v6305
  %v6550 = vadd.f32 %v4975, %v6308
  %v6551 = vadd.f32 %v4976, %v6313
  %v6552 = vadd.f32 %v4977, %v6316
  %v6553 = vadd.f32 %v4978, %v6321
  %v6554 = vadd.f32 %v4979, %v6324
  %v6555 = vadd.f32 %v4980, %v6329
  %v6556 = vadd.f32 %v4981, %v6332
  %v6557 = vadd.f32 %v4982, %v6337
  %v6558 = vadd.f32 %v4983, %v6340
  %v6559 = vadd.f32 %v4984, %v6345
  %v6560 = vadd.f32 %v4985, %v6348
  %v6561 = vadd.f32 %v4986, %v6353
  %v6562 = vadd.f32 %v4987, %v6356
  %v6563 = vadd.f32 %v4988, %v6361
  %v6564 = vadd.f32 %v4989, %v6364
  %v6565 = vadd.f32 %v4990, %v6369
  %v6566 = vadd.f32 %v4991, %v6372
  %v6567 = vadd.f32 %v4992, %v6377
  %v6568 = vadd.f32 %v4993, %v6380
  %v6569 = vadd.f32 %v4994, %v6385
  %v6570 = vadd.f32 %v4995, %v6388
  %v6571 = vadd.f32 %v4996, %v6393
  %v6572 = vadd.f32 %v4997, %v6396
  %v6573 = vadd.f32 %v4998, %v6401
  %v6574 = vadd.f32 %v4999, %v6404
  %v6575 = vadd.f32 %v5000, %v6409
  %v6576 = vadd.f32 %v5001, %v6412
  %v6577 = vadd.f32 %v5002, %v6417
  %v6578 = vadd.f32 %v5003, %v6420
  %v6579 = vadd.f32 %v5004, %v6425
  %v6580 = vadd.f32 %v5005, %v6428
  %v6581 = vadd.f32 %v5006, %v6433
  %v6582 = vadd.f32 %v5007, %v6436
  %v6583 = vld [vmem:[%s2 + $0xc0] sm:$0xf]
  %v6584 = vld [vmem:[%s2 + $0xc4] sm:$0xf]
  %v6585 = vld [vmem:[%s2 + $0xc8] sm:$0xf]
  %v6586 = vld [vmem:[%s2 + $0xcc] sm:$0xf]
  %v6587 = vld [vmem:[%s2 + $0xd0] sm:$0xf]
  %v6588 = vld [vmem:[%s2 + $0xd4] sm:$0xf]
  %v6595 = vunpack.c.l.b16 %v6583
  %v6596 = vunpack.c.l.b16 %v6584
  %v6597 = vunpack.c.l.b16 %v6585
  %v6598 = vunpack.c.l.b16 %v6586
  %v6599 = vunpack.c.l.b16 %v6587
  %v6600 = vunpack.c.l.b16 %v6588
  %v6601 = vpack.c.b16 %v6596, %v6595
  %v6602 = vpack.c.b16 %v6598, %v6597
  %v6603 = vpack.c.b16 %v6600, %v6599
  %v6608 = vsel %vm711, %v674, 0
  %6610 = vmatprep.subr.bf16.mxu0 0
  %6611 = vmatpush1.bf16.msra.mxu0 %v6601
  %6612 = vmatprep.subr.bf16.mxu0 0
  %6613 = vmatpush1.bf16.msra.mxu0 %v6602
  %6614 = vmatprep.subr.bf16.mxu0 0
  %6615 = vmatpush1.bf16.msra.mxu0 %v6603
  %6616 = vmatprep.subr.bf16.mxu0 0
  %6617 = vmatpush1.bf16.msra.mxu0 0
  %6618 = vmatprep.subr.bf16.mxu0 0
  %6619 = vmatpush1.bf16.msra.mxu0 0
  %6620 = vmatprep.subr.bf16.mxu0 0
  %6621 = vmatpush1.bf16.msra.mxu0 0
  %6622 = vmatprep.subr.bf16.mxu0 0
  %6623 = vmatpush1.bf16.msra.mxu0 0
  %6624 = vmatprep.subr.bf16.mxu0 0
  %6625 = vmatpush1.bf16.msra.mxu0 0
  %6626 = vmatprep.subr.bf16.mxu0 0
  %6627 = vmatpush1.bf16.msra.mxu0 0
  %6628 = vmatprep.subr.bf16.mxu0 0
  %6629 = vmatpush1.bf16.msra.mxu0 0
  %6630 = vmatprep.subr.bf16.mxu0 0
  %6631 = vmatpush1.bf16.msra.mxu0 0
  %6632 = vmatprep.subr.bf16.mxu0 0
  %6633 = vmatpush1.bf16.msra.mxu0 0
  %6634 = vmatprep.subr.bf16.mxu0 0
  %6635 = vmatpush1.bf16.msra.mxu0 0
  %6636 = vmatprep.subr.bf16.mxu0 0
  %6637 = vmatpush1.bf16.msra.mxu0 0
  %6638 = vmatprep.subr.bf16.mxu0 0
  %6639 = vmatpush1.bf16.msra.mxu0 0
  %6640 = vmatprep.subr.bf16.mxu0 0
  %6641 = vmatpush1.bf16.msra.mxu0 0
  %6642 = vmatprep.mubr.bf16.mxu0 0
  %6643 = vmatmul.mubr.bf16.gmra.mrb[0].mxu0 %v761
  %v6644 = vpop.f32.mrb[0].mxu0
  %v6645 = vadd.f32 0.0, %v6644
  %v6646 = vpop.f32.mrb[0].mxu0
  %v6647 = vpop.f32.mrb[0].mxu0
  %v6648 = vadd.f32 0.0, %v6647
  %v6649 = vpop.f32.mrb[0].mxu0
  %6650 = vmatprep.mubr.bf16.mxu0 0
  %6651 = vmatmul.mubr.bf16.gmra.mrb[0].mxu0 %v764
  %v6652 = vpop.f32.mrb[0].mxu0
  %v6653 = vadd.f32 0.0, %v6652
  %v6654 = vpop.f32.mrb[0].mxu0
  %v6655 = vpop.f32.mrb[0].mxu0
  %v6656 = vadd.f32 0.0, %v6655
  %v6657 = vpop.f32.mrb[0].mxu0
  %6658 = vmatprep.mubr.bf16.mxu0 0
  %6659 = vmatmul.mubr.bf16.gmra.mrb[0].mxu0 %v767
  %v6660 = vpop.f32.mrb[0].mxu0
  %v6661 = vadd.f32 0.0, %v6660
  %v6662 = vpop.f32.mrb[0].mxu0
  %v6663 = vpop.f32.mrb[0].mxu0
  %v6664 = vadd.f32 0.0, %v6663
  %v6665 = vpop.f32.mrb[0].mxu0
  %6666 = vmatprep.mubr.bf16.mxu0 0
  %6667 = vmatmul.mubr.bf16.gmra.mrb[0].mxu0 %v770
  %v6668 = vpop.f32.mrb[0].mxu0
  %v6669 = vadd.f32 0.0, %v6668
  %v6670 = vpop.f32.mrb[0].mxu0
  %v6671 = vpop.f32.mrb[0].mxu0
  %v6672 = vadd.f32 0.0, %v6671
  %v6673 = vpop.f32.mrb[0].mxu0
  %6674 = vmatprep.mubr.bf16.mxu0 0
  %6675 = vmatmul.mubr.bf16.gmra.mrb[0].mxu0 %v773
  %v6676 = vpop.f32.mrb[0].mxu0
  %v6677 = vadd.f32 0.0, %v6676
  %v6678 = vpop.f32.mrb[0].mxu0
  %v6679 = vpop.f32.mrb[0].mxu0
  %v6680 = vadd.f32 0.0, %v6679
  %v6681 = vpop.f32.mrb[0].mxu0
  %6682 = vmatprep.mubr.bf16.mxu0 0
  %6683 = vmatmul.mubr.bf16.gmra.mrb[0].mxu0 %v776
  %v6684 = vpop.f32.mrb[0].mxu0
  %v6685 = vadd.f32 0.0, %v6684
  %v6686 = vpop.f32.mrb[0].mxu0
  %v6687 = vpop.f32.mrb[0].mxu0
  %v6688 = vadd.f32 0.0, %v6687
  %v6689 = vpop.f32.mrb[0].mxu0
  %6690 = vmatprep.mubr.bf16.mxu0 0
  %6691 = vmatmul.mubr.bf16.gmra.mrb[0].mxu0 %v779
  %v6692 = vpop.f32.mrb[0].mxu0
  %v6693 = vadd.f32 0.0, %v6692
  %v6694 = vpop.f32.mrb[0].mxu0
  %v6695 = vpop.f32.mrb[0].mxu0
  %v6696 = vadd.f32 0.0, %v6695
  %v6697 = vpop.f32.mrb[0].mxu0
  %6698 = vmatprep.mubr.bf16.mxu0 0
  %6699 = vmatmul.mubr.bf16.gmra.mrb[0].mxu0 %v782
  %v6700 = vpop.f32.mrb[0].mxu0
  %v6701 = vadd.f32 0.0, %v6700
  %v6702 = vpop.f32.mrb[0].mxu0
  %v6703 = vpop.f32.mrb[0].mxu0
  %v6704 = vadd.f32 0.0, %v6703
  %v6705 = vpop.f32.mrb[0].mxu0
  %6706 = vmatprep.mubr.bf16.mxu0 0
  %6707 = vmatmul.mubr.bf16.gmra.mrb[0].mxu0 %v785
  %v6708 = vpop.f32.mrb[0].mxu0
  %v6709 = vadd.f32 0.0, %v6708
  %v6710 = vpop.f32.mrb[0].mxu0
  %v6711 = vpop.f32.mrb[0].mxu0
  %v6712 = vadd.f32 0.0, %v6711
  %v6713 = vpop.f32.mrb[0].mxu0
  %6714 = vmatprep.mubr.bf16.mxu0 0
  %6715 = vmatmul.mubr.bf16.gmra.mrb[0].mxu0 %v788
  %v6716 = vpop.f32.mrb[0].mxu0
  %v6717 = vadd.f32 0.0, %v6716
  %v6718 = vpop.f32.mrb[0].mxu0
  %v6719 = vpop.f32.mrb[0].mxu0
  %v6720 = vadd.f32 0.0, %v6719
  %v6721 = vpop.f32.mrb[0].mxu0
  %6722 = vmatprep.mubr.bf16.mxu0 0
  %6723 = vmatmul.mubr.bf16.gmra.mrb[0].mxu0 %v791
  %v6724 = vpop.f32.mrb[0].mxu0
  %v6725 = vadd.f32 0.0, %v6724
  %v6726 = vpop.f32.mrb[0].mxu0
  %v6727 = vpop.f32.mrb[0].mxu0
  %v6728 = vadd.f32 0.0, %v6727
  %v6729 = vpop.f32.mrb[0].mxu0
  %6730 = vmatprep.mubr.bf16.mxu0 0
  %6731 = vmatmul.mubr.bf16.gmra.mrb[0].mxu0 %v794
  %v6732 = vpop.f32.mrb[0].mxu0
  %v6733 = vadd.f32 0.0, %v6732
  %v6734 = vpop.f32.mrb[0].mxu0
  %v6735 = vpop.f32.mrb[0].mxu0
  %v6736 = vadd.f32 0.0, %v6735
  %v6737 = vpop.f32.mrb[0].mxu0
  %6738 = vmatprep.mubr.bf16.mxu0 0
  %6739 = vmatmul.mubr.bf16.gmra.mrb[0].mxu0 %v797
  %v6740 = vpop.f32.mrb[0].mxu0
  %v6741 = vadd.f32 0.0, %v6740
  %v6742 = vpop.f32.mrb[0].mxu0
  %v6743 = vpop.f32.mrb[0].mxu0
  %v6744 = vadd.f32 0.0, %v6743
  %v6745 = vpop.f32.mrb[0].mxu0
  %6746 = vmatprep.mubr.bf16.mxu0 0
  %6747 = vmatmul.mubr.bf16.gmra.mrb[0].mxu0 %v800
  %v6748 = vpop.f32.mrb[0].mxu0
  %v6749 = vadd.f32 0.0, %v6748
  %v6750 = vpop.f32.mrb[0].mxu0
  %v6751 = vpop.f32.mrb[0].mxu0
  %v6752 = vadd.f32 0.0, %v6751
  %v6753 = vpop.f32.mrb[0].mxu0
  %6754 = vmatprep.mubr.bf16.mxu0 0
  %6755 = vmatmul.mubr.bf16.gmra.mrb[0].mxu0 %v803
  %v6756 = vpop.f32.mrb[0].mxu0
  %v6757 = vadd.f32 0.0, %v6756
  %v6758 = vpop.f32.mrb[0].mxu0
  %v6759 = vpop.f32.mrb[0].mxu0
  %v6760 = vadd.f32 0.0, %v6759
  %v6761 = vpop.f32.mrb[0].mxu0
  %6762 = vmatprep.mubr.bf16.mxu0 0
  %6763 = vmatmul.mubr.bf16.gmra.mrb[0].mxu0 %v806
  %v6764 = vpop.f32.mrb[0].mxu0
  %v6765 = vadd.f32 0.0, %v6764
  %v6766 = vpop.f32.mrb[0].mxu0
  %v6767 = vpop.f32.mrb[0].mxu0
  %v6768 = vadd.f32 0.0, %v6767
  %v6769 = vpop.f32.mrb[0].mxu0
  %6770 = vmatprep.mubr.bf16.mxu0 0
  %6771 = vmatmul.mubr.bf16.gmra.mrb[0].mxu0 %v809
  %v6772 = vpop.f32.mrb[0].mxu0
  %v6773 = vadd.f32 0.0, %v6772
  %v6774 = vpop.f32.mrb[0].mxu0
  %v6775 = vpop.f32.mrb[0].mxu0
  %v6776 = vadd.f32 0.0, %v6775
  %v6777 = vpop.f32.mrb[0].mxu0
  %6778 = vmatprep.mubr.bf16.mxu0 0
  %6779 = vmatmul.mubr.bf16.gmra.mrb[0].mxu0 %v812
  %v6780 = vpop.f32.mrb[0].mxu0
  %v6781 = vadd.f32 0.0, %v6780
  %v6782 = vpop.f32.mrb[0].mxu0
  %v6783 = vpop.f32.mrb[0].mxu0
  %v6784 = vadd.f32 0.0, %v6783
  %v6785 = vpop.f32.mrb[0].mxu0
  %6786 = vmatprep.mubr.bf16.mxu0 0
  %6787 = vmatmul.mubr.bf16.gmra.mrb[0].mxu0 %v815
  %v6788 = vpop.f32.mrb[0].mxu0
  %v6789 = vadd.f32 0.0, %v6788
  %v6790 = vpop.f32.mrb[0].mxu0
  %v6791 = vpop.f32.mrb[0].mxu0
  %v6792 = vadd.f32 0.0, %v6791
  %v6793 = vpop.f32.mrb[0].mxu0
  %6794 = vmatprep.mubr.bf16.mxu0 0
  %6795 = vmatmul.mubr.bf16.gmra.mrb[0].mxu0 %v818
  %v6796 = vpop.f32.mrb[0].mxu0
  %v6797 = vadd.f32 0.0, %v6796
  %v6798 = vpop.f32.mrb[0].mxu0
  %v6799 = vpop.f32.mrb[0].mxu0
  %v6800 = vadd.f32 0.0, %v6799
  %v6801 = vpop.f32.mrb[0].mxu0
  %6802 = vmatprep.mubr.bf16.mxu0 0
  %6803 = vmatmul.mubr.bf16.gmra.mrb[0].mxu0 %v821
  %v6804 = vpop.f32.mrb[0].mxu0
  %v6805 = vadd.f32 0.0, %v6804
  %v6806 = vpop.f32.mrb[0].mxu0
  %v6807 = vpop.f32.mrb[0].mxu0
  %v6808 = vadd.f32 0.0, %v6807
  %v6809 = vpop.f32.mrb[0].mxu0
  %6810 = vmatprep.mubr.bf16.mxu0 0
  %6811 = vmatmul.mubr.bf16.gmra.mrb[0].mxu0 %v824
  %v6812 = vpop.f32.mrb[0].mxu0
  %v6813 = vadd.f32 0.0, %v6812
  %v6814 = vpop.f32.mrb[0].mxu0
  %v6815 = vpop.f32.mrb[0].mxu0
  %v6816 = vadd.f32 0.0, %v6815
  %v6817 = vpop.f32.mrb[0].mxu0
  %6818 = vmatprep.mubr.bf16.mxu0 0
  %6819 = vmatmul.mubr.bf16.gmra.mrb[0].mxu0 %v827
  %v6820 = vpop.f32.mrb[0].mxu0
  %v6821 = vadd.f32 0.0, %v6820
  %v6822 = vpop.f32.mrb[0].mxu0
  %v6823 = vpop.f32.mrb[0].mxu0
  %v6824 = vadd.f32 0.0, %v6823
  %v6825 = vpop.f32.mrb[0].mxu0
  %6826 = vmatprep.mubr.bf16.mxu0 0
  %6827 = vmatmul.mubr.bf16.gmra.mrb[0].mxu0 %v830
  %v6828 = vpop.f32.mrb[0].mxu0
  %v6829 = vadd.f32 0.0, %v6828
  %v6830 = vpop.f32.mrb[0].mxu0
  %v6831 = vpop.f32.mrb[0].mxu0
  %v6832 = vadd.f32 0.0, %v6831
  %v6833 = vpop.f32.mrb[0].mxu0
  %6834 = vmatprep.mubr.bf16.mxu0 0
  %6835 = vmatmul.mubr.bf16.gmra.mrb[0].mxu0 %v833
  %v6836 = vpop.f32.mrb[0].mxu0
  %v6837 = vadd.f32 0.0, %v6836
  %v6838 = vpop.f32.mrb[0].mxu0
  %v6839 = vpop.f32.mrb[0].mxu0
  %v6840 = vadd.f32 0.0, %v6839
  %v6841 = vpop.f32.mrb[0].mxu0
  %6842 = vmatprep.mubr.bf16.mxu0 0
  %6843 = vmatmul.mubr.bf16.gmra.mrb[0].mxu0 %v836
  %v6844 = vpop.f32.mrb[0].mxu0
  %v6845 = vadd.f32 0.0, %v6844
  %v6846 = vpop.f32.mrb[0].mxu0
  %v6847 = vpop.f32.mrb[0].mxu0
  %v6848 = vadd.f32 0.0, %v6847
  %v6849 = vpop.f32.mrb[0].mxu0
  %6850 = vmatprep.mubr.bf16.mxu0 0
  %6851 = vmatmul.mubr.bf16.gmra.mrb[0].mxu0 %v839
  %v6852 = vpop.f32.mrb[0].mxu0
  %v6853 = vadd.f32 0.0, %v6852
  %v6854 = vpop.f32.mrb[0].mxu0
  %v6855 = vpop.f32.mrb[0].mxu0
  %v6856 = vadd.f32 0.0, %v6855
  %v6857 = vpop.f32.mrb[0].mxu0
  %6858 = vmatprep.mubr.bf16.mxu0 0
  %6859 = vmatmul.mubr.bf16.gmra.mrb[0].mxu0 %v842
  %v6860 = vpop.f32.mrb[0].mxu0
  %v6861 = vadd.f32 0.0, %v6860
  %v6862 = vpop.f32.mrb[0].mxu0
  %v6863 = vpop.f32.mrb[0].mxu0
  %v6864 = vadd.f32 0.0, %v6863
  %v6865 = vpop.f32.mrb[0].mxu0
  %6866 = vmatprep.mubr.bf16.mxu0 0
  %6867 = vmatmul.mubr.bf16.gmra.mrb[0].mxu0 %v845
  %v6868 = vpop.f32.mrb[0].mxu0
  %v6869 = vadd.f32 0.0, %v6868
  %v6870 = vpop.f32.mrb[0].mxu0
  %v6871 = vpop.f32.mrb[0].mxu0
  %v6872 = vadd.f32 0.0, %v6871
  %v6873 = vpop.f32.mrb[0].mxu0
  %6874 = vmatprep.mubr.bf16.mxu0 0
  %6875 = vmatmul.mubr.bf16.gmra.mrb[0].mxu0 %v848
  %v6876 = vpop.f32.mrb[0].mxu0
  %v6877 = vadd.f32 0.0, %v6876
  %v6878 = vpop.f32.mrb[0].mxu0
  %v6879 = vpop.f32.mrb[0].mxu0
  %v6880 = vadd.f32 0.0, %v6879
  %v6881 = vpop.f32.mrb[0].mxu0
  %6882 = vmatprep.mubr.bf16.mxu0 0
  %6883 = vmatmul.mubr.bf16.gmra.mrb[0].mxu0 %v851
  %v6884 = vpop.f32.mrb[0].mxu0
  %v6885 = vadd.f32 0.0, %v6884
  %v6886 = vpop.f32.mrb[0].mxu0
  %v6887 = vpop.f32.mrb[0].mxu0
  %v6888 = vadd.f32 0.0, %v6887
  %v6889 = vpop.f32.mrb[0].mxu0
  %6890 = vmatprep.mubr.bf16.mxu0 0
  %6891 = vmatmul.mubr.bf16.gmra.mrb[0].mxu0 %v854
  %v6892 = vpop.f32.mrb[0].mxu0
  %v6893 = vadd.f32 0.0, %v6892
  %v6894 = vpop.f32.mrb[0].mxu0
  %v6895 = vpop.f32.mrb[0].mxu0
  %v6896 = vadd.f32 0.0, %v6895
  %v6897 = vpop.f32.mrb[0].mxu0
  %6898 = vmatprep.mubr.bf16.mxu0 0
  %6899 = vmatmul.mubr.bf16.gmra.mrb[0].mxu0 %v857
  %v6900 = vpop.f32.mrb[0].mxu0
  %v6901 = vadd.f32 0.0, %v6900
  %v6902 = vpop.f32.mrb[0].mxu0
  %v6903 = vpop.f32.mrb[0].mxu0
  %v6904 = vadd.f32 0.0, %v6903
  %v6905 = vpop.f32.mrb[0].mxu0
  %6906 = vmatprep.mubr.bf16.mxu0 0
  %6907 = vmatmul.mubr.bf16.gmra.mrb[0].mxu0 %v860
  %v6908 = vpop.f32.mrb[0].mxu0
  %v6909 = vadd.f32 0.0, %v6908
  %v6910 = vpop.f32.mrb[0].mxu0
  %v6911 = vpop.f32.mrb[0].mxu0
  %v6912 = vadd.f32 0.0, %v6911
  %v6913 = vpop.f32.mrb[0].mxu0
  %6914 = vmatprep.mubr.bf16.mxu0 0
  %6915 = vmatmul.mubr.bf16.gmra.mrb[0].mxu0 %v863
  %v6916 = vpop.f32.mrb[0].mxu0
  %v6917 = vadd.f32 0.0, %v6916
  %v6918 = vpop.f32.mrb[0].mxu0
  %v6919 = vpop.f32.mrb[0].mxu0
  %v6920 = vadd.f32 0.0, %v6919
  %v6921 = vpop.f32.mrb[0].mxu0
  %6922 = vmatprep.mubr.bf16.mxu0 0
  %6923 = vmatmul.mubr.bf16.gmra.mrb[0].mxu0 %v866
  %v6924 = vpop.f32.mrb[0].mxu0
  %v6925 = vadd.f32 0.0, %v6924
  %v6926 = vpop.f32.mrb[0].mxu0
  %v6927 = vpop.f32.mrb[0].mxu0
  %v6928 = vadd.f32 0.0, %v6927
  %v6929 = vpop.f32.mrb[0].mxu0
  %6930 = vmatprep.mubr.bf16.mxu0 0
  %6931 = vmatmul.mubr.bf16.gmra.mrb[0].mxu0 %v869
  %v6932 = vpop.f32.mrb[0].mxu0
  %v6933 = vadd.f32 0.0, %v6932
  %v6934 = vpop.f32.mrb[0].mxu0
  %v6935 = vpop.f32.mrb[0].mxu0
  %v6936 = vadd.f32 0.0, %v6935
  %v6937 = vpop.f32.mrb[0].mxu0
  %6938 = vmatprep.mubr.bf16.mxu0 0
  %6939 = vmatmul.mubr.bf16.gmra.mrb[0].mxu0 %v872
  %v6940 = vpop.f32.mrb[0].mxu0
  %v6941 = vadd.f32 0.0, %v6940
  %v6942 = vpop.f32.mrb[0].mxu0
  %v6943 = vpop.f32.mrb[0].mxu0
  %v6944 = vadd.f32 0.0, %v6943
  %v6945 = vpop.f32.mrb[0].mxu0
  %6946 = vmatprep.mubr.bf16.mxu0 0
  %6947 = vmatmul.mubr.bf16.gmra.mrb[0].mxu0 %v875
  %v6948 = vpop.f32.mrb[0].mxu0
  %v6949 = vadd.f32 0.0, %v6948
  %v6950 = vpop.f32.mrb[0].mxu0
  %v6951 = vpop.f32.mrb[0].mxu0
  %v6952 = vadd.f32 0.0, %v6951
  %v6953 = vpop.f32.mrb[0].mxu0
  %6954 = vmatprep.mubr.bf16.mxu0 0
  %6955 = vmatmul.mubr.bf16.gmra.mrb[0].mxu0 %v878
  %v6956 = vpop.f32.mrb[0].mxu0
  %v6957 = vadd.f32 0.0, %v6956
  %v6958 = vpop.f32.mrb[0].mxu0
  %v6959 = vpop.f32.mrb[0].mxu0
  %v6960 = vadd.f32 0.0, %v6959
  %v6961 = vpop.f32.mrb[0].mxu0
  %6962 = vmatprep.mubr.bf16.mxu0 0
  %6963 = vmatmul.mubr.bf16.gmra.mrb[0].mxu0 %v881
  %v6964 = vpop.f32.mrb[0].mxu0
  %v6965 = vadd.f32 0.0, %v6964
  %v6966 = vpop.f32.mrb[0].mxu0
  %v6967 = vpop.f32.mrb[0].mxu0
  %v6968 = vadd.f32 0.0, %v6967
  %v6969 = vpop.f32.mrb[0].mxu0
  %6970 = vmatprep.mubr.bf16.mxu0 0
  %6971 = vmatmul.mubr.bf16.gmra.mrb[0].mxu0 %v884
  %v6972 = vpop.f32.mrb[0].mxu0
  %v6973 = vadd.f32 0.0, %v6972
  %v6974 = vpop.f32.mrb[0].mxu0
  %v6975 = vpop.f32.mrb[0].mxu0
  %v6976 = vadd.f32 0.0, %v6975
  %v6977 = vpop.f32.mrb[0].mxu0
  %6978 = vmatprep.mubr.bf16.mxu0 0
  %6979 = vmatmul.mubr.bf16.gmra.mrb[0].mxu0 %v887
  %v6980 = vpop.f32.mrb[0].mxu0
  %v6981 = vadd.f32 0.0, %v6980
  %v6982 = vpop.f32.mrb[0].mxu0
  %v6983 = vpop.f32.mrb[0].mxu0
  %v6984 = vadd.f32 0.0, %v6983
  %v6985 = vpop.f32.mrb[0].mxu0
  %6986 = vmatprep.mubr.bf16.mxu0 0
  %6987 = vmatmul.mubr.bf16.gmra.mrb[0].mxu0 %v890
  %v6988 = vpop.f32.mrb[0].mxu0
  %v6989 = vadd.f32 0.0, %v6988
  %v6990 = vpop.f32.mrb[0].mxu0
  %v6991 = vpop.f32.mrb[0].mxu0
  %v6992 = vadd.f32 0.0, %v6991
  %v6993 = vpop.f32.mrb[0].mxu0
  %6994 = vmatprep.mubr.bf16.mxu0 0
  %6995 = vmatmul.mubr.bf16.gmra.mrb[0].mxu0 %v893
  %v6996 = vpop.f32.mrb[0].mxu0
  %v6997 = vadd.f32 0.0, %v6996
  %v6998 = vpop.f32.mrb[0].mxu0
  %v6999 = vpop.f32.mrb[0].mxu0
  %v7000 = vadd.f32 0.0, %v6999
  %v7001 = vpop.f32.mrb[0].mxu0
  %7002 = vmatprep.mubr.bf16.mxu0 0
  %7003 = vmatmul.mubr.bf16.gmra.mrb[0].mxu0 %v896
  %v7004 = vpop.f32.mrb[0].mxu0
  %v7005 = vadd.f32 0.0, %v7004
  %v7006 = vpop.f32.mrb[0].mxu0
  %v7007 = vpop.f32.mrb[0].mxu0
  %v7008 = vadd.f32 0.0, %v7007
  %v7009 = vpop.f32.mrb[0].mxu0
  %7010 = vmatprep.mubr.bf16.mxu0 0
  %7011 = vmatmul.mubr.bf16.gmra.mrb[0].mxu0 %v899
  %v7012 = vpop.f32.mrb[0].mxu0
  %v7013 = vadd.f32 0.0, %v7012
  %v7014 = vpop.f32.mrb[0].mxu0
  %v7015 = vpop.f32.mrb[0].mxu0
  %v7016 = vadd.f32 0.0, %v7015
  %v7017 = vpop.f32.mrb[0].mxu0
  %7018 = vmatprep.mubr.bf16.mxu0 0
  %7019 = vmatmul.mubr.bf16.gmra.mrb[0].mxu0 %v902
  %v7020 = vpop.f32.mrb[0].mxu0
  %v7021 = vadd.f32 0.0, %v7020
  %v7022 = vpop.f32.mrb[0].mxu0
  %v7023 = vpop.f32.mrb[0].mxu0
  %v7024 = vadd.f32 0.0, %v7023
  %v7025 = vpop.f32.mrb[0].mxu0
  %7026 = vmatprep.mubr.bf16.mxu0 0
  %7027 = vmatmul.mubr.bf16.gmra.mrb[0].mxu0 %v905
  %v7028 = vpop.f32.mrb[0].mxu0
  %v7029 = vadd.f32 0.0, %v7028
  %v7030 = vpop.f32.mrb[0].mxu0
  %v7031 = vpop.f32.mrb[0].mxu0
  %v7032 = vadd.f32 0.0, %v7031
  %v7033 = vpop.f32.mrb[0].mxu0
  %7034 = vmatprep.mubr.bf16.mxu0 0
  %7035 = vmatmul.mubr.bf16.gmra.mrb[0].mxu0 %v908
  %v7036 = vpop.f32.mrb[0].mxu0
  %v7037 = vadd.f32 0.0, %v7036
  %v7038 = vpop.f32.mrb[0].mxu0
  %v7039 = vpop.f32.mrb[0].mxu0
  %v7040 = vadd.f32 0.0, %v7039
  %v7041 = vpop.f32.mrb[0].mxu0
  %7042 = vmatprep.mubr.bf16.mxu0 0
  %7043 = vmatmul.mubr.bf16.gmra.mrb[0].mxu0 %v911
  %v7044 = vpop.f32.mrb[0].mxu0
  %v7045 = vadd.f32 0.0, %v7044
  %v7046 = vpop.f32.mrb[0].mxu0
  %v7047 = vpop.f32.mrb[0].mxu0
  %v7048 = vadd.f32 0.0, %v7047
  %v7049 = vpop.f32.mrb[0].mxu0
  %7050 = vmatprep.mubr.bf16.mxu0 0
  %7051 = vmatmul.mubr.bf16.gmra.mrb[0].mxu0 %v914
  %v7052 = vpop.f32.mrb[0].mxu0
  %v7053 = vadd.f32 0.0, %v7052
  %v7054 = vpop.f32.mrb[0].mxu0
  %v7055 = vpop.f32.mrb[0].mxu0
  %v7056 = vadd.f32 0.0, %v7055
  %v7057 = vpop.f32.mrb[0].mxu0
  %7058 = vmatprep.mubr.bf16.mxu0 0
  %7059 = vmatmul.mubr.bf16.gmra.mrb[0].mxu0 %v917
  %v7060 = vpop.f32.mrb[0].mxu0
  %v7061 = vadd.f32 0.0, %v7060
  %v7062 = vpop.f32.mrb[0].mxu0
  %v7063 = vpop.f32.mrb[0].mxu0
  %v7064 = vadd.f32 0.0, %v7063
  %v7065 = vpop.f32.mrb[0].mxu0
  %7066 = vmatprep.mubr.bf16.mxu0 0
  %7067 = vmatmul.mubr.bf16.gmra.mrb[0].mxu0 %v920
  %v7068 = vpop.f32.mrb[0].mxu0
  %v7069 = vadd.f32 0.0, %v7068
  %v7070 = vpop.f32.mrb[0].mxu0
  %v7071 = vpop.f32.mrb[0].mxu0
  %v7072 = vadd.f32 0.0, %v7071
  %v7073 = vpop.f32.mrb[0].mxu0
  %7074 = vmatprep.mubr.bf16.mxu0 0
  %7075 = vmatmul.mubr.bf16.gmra.mrb[0].mxu0 %v923
  %v7076 = vpop.f32.mrb[0].mxu0
  %v7077 = vadd.f32 0.0, %v7076
  %v7078 = vpop.f32.mrb[0].mxu0
  %v7079 = vpop.f32.mrb[0].mxu0
  %v7080 = vadd.f32 0.0, %v7079
  %v7081 = vpop.f32.mrb[0].mxu0
  %7082 = vmatprep.mubr.bf16.mxu0 0
  %7083 = vmatmul.mubr.bf16.gmra.mrb[0].mxu0 %v926
  %v7084 = vpop.f32.mrb[0].mxu0
  %v7085 = vadd.f32 0.0, %v7084
  %v7086 = vpop.f32.mrb[0].mxu0
  %v7087 = vpop.f32.mrb[0].mxu0
  %v7088 = vadd.f32 0.0, %v7087
  %v7089 = vpop.f32.mrb[0].mxu0
  %7090 = vmatprep.mubr.bf16.mxu0 0
  %7091 = vmatmul.mubr.bf16.gmra.mrb[0].mxu0 %v2195
  %v7092 = vpop.f32.mrb[0].mxu0
  %v7093 = vadd.f32 0.0, %v7092
  %v7094 = vpop.f32.mrb[0].mxu0
  %v7095 = vpop.f32.mrb[0].mxu0
  %v7096 = vadd.f32 0.0, %v7095
  %v7097 = vpop.f32.mrb[0].mxu0
  %7098 = vmatprep.mubr.bf16.mxu0 0
  %7099 = vmatmul.mubr.bf16.gmra.mrb[0].mxu0 %v2198
  %v7100 = vpop.f32.mrb[0].mxu0
  %v7101 = vadd.f32 0.0, %v7100
  %v7102 = vpop.f32.mrb[0].mxu0
  %v7103 = vpop.f32.mrb[0].mxu0
  %v7104 = vadd.f32 0.0, %v7103
  %v7105 = vpop.f32.mrb[0].mxu0
  %7106 = vmatprep.mubr.bf16.mxu0 0
  %7107 = vmatmul.mubr.bf16.gmra.mrb[0].mxu0 %v2201
  %v7108 = vpop.f32.mrb[0].mxu0
  %v7109 = vadd.f32 0.0, %v7108
  %v7110 = vpop.f32.mrb[0].mxu0
  %v7111 = vpop.f32.mrb[0].mxu0
  %v7112 = vadd.f32 0.0, %v7111
  %v7113 = vpop.f32.mrb[0].mxu0
  %7114 = vmatprep.mubr.bf16.mxu0 0
  %7115 = vmatmul.mubr.bf16.gmra.mrb[0].mxu0 %v2204
  %v7116 = vpop.f32.mrb[0].mxu0
  %v7117 = vadd.f32 0.0, %v7116
  %v7118 = vpop.f32.mrb[0].mxu0
  %v7119 = vpop.f32.mrb[0].mxu0
  %v7120 = vadd.f32 0.0, %v7119
  %v7121 = vpop.f32.mrb[0].mxu0
  %7122 = vmatprep.mubr.bf16.mxu0 0
  %7123 = vmatmul.mubr.bf16.gmra.mrb[0].mxu0 %v2207
  %v7124 = vpop.f32.mrb[0].mxu0
  %v7125 = vadd.f32 0.0, %v7124
  %v7126 = vpop.f32.mrb[0].mxu0
  %v7127 = vpop.f32.mrb[0].mxu0
  %v7128 = vadd.f32 0.0, %v7127
  %v7129 = vpop.f32.mrb[0].mxu0
  %7130 = vmatprep.mubr.bf16.mxu0 0
  %7131 = vmatmul.mubr.bf16.gmra.mrb[0].mxu0 %v2210
  %v7132 = vpop.f32.mrb[0].mxu0
  %v7133 = vadd.f32 0.0, %v7132
  %v7134 = vpop.f32.mrb[0].mxu0
  %v7135 = vpop.f32.mrb[0].mxu0
  %v7136 = vadd.f32 0.0, %v7135
  %v7137 = vpop.f32.mrb[0].mxu0
  %7138 = vmatprep.mubr.bf16.mxu0 0
  %7139 = vmatmul.mubr.bf16.gmra.mrb[0].mxu0 %v3473
  %v7140 = vpop.f32.mrb[0].mxu0
  %v7141 = vadd.f32 0.0, %v7140
  %v7142 = vpop.f32.mrb[0].mxu0
  %v7143 = vpop.f32.mrb[0].mxu0
  %v7144 = vadd.f32 0.0, %v7143
  %v7145 = vpop.f32.mrb[0].mxu0
  %7146 = vmatprep.mubr.bf16.mxu0 0
  %7147 = vmatmul.mubr.bf16.gmra.mrb[0].mxu0 %v4253
  %v7148 = vpop.f32.mrb[0].mxu0
  %v7149 = vadd.f32 0.0, %v7148
  %v7150 = vpop.f32.mrb[0].mxu0
  %v7151 = vpop.f32.mrb[0].mxu0
  %v7152 = vadd.f32 0.0, %v7151
  %v7153 = vpop.f32.mrb[0].mxu0
  %7154 = vmatprep.mubr.bf16.mxu0 0
  %7155 = vmatmul.mubr.bf16.gmra.mrb[0].mxu0 %v5033
  %v7156 = vpop.f32.mrb[0].mxu0
  %v7157 = vadd.f32 0.0, %v7156
  %v7158 = vpop.f32.mrb[0].mxu0
  %v7159 = vpop.f32.mrb[0].mxu0
  %v7160 = vadd.f32 0.0, %v7159
  %v7161 = vpop.f32.mrb[0].mxu0
  %7162 = vmatprep.mubr.bf16.mxu0 0
  %7163 = vmatmul.mubr.bf16.gmra.mrb[0].mxu0 %v5036
  %v7164 = vpop.f32.mrb[0].mxu0
  %v7165 = vadd.f32 0.0, %v7164
  %v7166 = vpop.f32.mrb[0].mxu0
  %v7167 = vpop.f32.mrb[0].mxu0
  %v7168 = vadd.f32 0.0, %v7167
  %v7169 = vpop.f32.mrb[0].mxu0
  %7170 = vmatprep.mubr.bf16.mxu0 0
  %7171 = vmatmul.mubr.bf16.gmra.mrb[0].mxu0 %v5039
  %v7172 = vpop.f32.mrb[0].mxu0
  %v7173 = vadd.f32 0.0, %v7172
  %v7174 = vpop.f32.mrb[0].mxu0
  %v7175 = vpop.f32.mrb[0].mxu0
  %v7176 = vadd.f32 0.0, %v7175
  %v7177 = vpop.f32.mrb[0].mxu0
  %7178 = vmatprep.mubr.bf16.mxu0 0
  %7179 = vmatmul.mubr.bf16.gmra.mrb[0].mxu0 %v5042
  %v7180 = vpop.f32.mrb[0].mxu0
  %v7181 = vadd.f32 0.0, %v7180
  %v7182 = vpop.f32.mrb[0].mxu0
  %v7183 = vpop.f32.mrb[0].mxu0
  %v7184 = vadd.f32 0.0, %v7183
  %v7185 = vpop.f32.mrb[0].mxu0
  %7186 = vmatprep.mubr.bf16.mxu0 0
  %7187 = vmatmul.mubr.bf16.gmra.mrb[0].mxu0 %v5045
  %v7188 = vpop.f32.mrb[0].mxu0
  %v7189 = vadd.f32 0.0, %v7188
  %v7190 = vpop.f32.mrb[0].mxu0
  %v7191 = vpop.f32.mrb[0].mxu0
  %v7192 = vadd.f32 0.0, %v7191
  %v7193 = vpop.f32.mrb[0].mxu0
  %7194 = vmatprep.mubr.bf16.mxu0 0
  %7195 = vmatmul.mubr.bf16.gmra.mrb[0].mxu0 %v5048
  %v7196 = vpop.f32.mrb[0].mxu0
  %v7197 = vadd.f32 0.0, %v7196
  %v7198 = vpop.f32.mrb[0].mxu0
  %v7199 = vpop.f32.mrb[0].mxu0
  %v7200 = vadd.f32 0.0, %v7199
  %v7201 = vpop.f32.mrb[0].mxu0
  %7202 = vmatprep.mubr.bf16.mxu0 0
  %7203 = vmatmul.mubr.bf16.gmra.mrb[0].mxu0 %v5828
  %v7204 = vpop.f32.mrb[0].mxu0
  %v7205 = vadd.f32 0.0, %v7204
  %v7206 = vpop.f32.mrb[0].mxu0
  %v7207 = vpop.f32.mrb[0].mxu0
  %v7208 = vadd.f32 0.0, %v7207
  %v7209 = vpop.f32.mrb[0].mxu0
  %7210 = vmatprep.mubr.bf16.mxu0 0
  %7211 = vmatmul.mubr.bf16.gmra.mrb[0].mxu0 %v6608
  %v7212 = vpop.f32.mrb[0].mxu0
  %v7213 = vadd.f32 0.0, %v7212
  %v7214 = vpop.f32.mrb[0].mxu0
  %v7215 = vpop.f32.mrb[0].mxu0
  %v7216 = vadd.f32 0.0, %v7215
  %v7217 = vpop.f32.mrb[0].mxu0
  %7218 = vdwg.mxu0
  %v7219 = vadd.f32 %v5659, %v6645
  %v7220 = vadd.f32 %v5660, %v6648
  %v7221 = vadd.f32 %v5661, %v6653
  %v7222 = vadd.f32 %v5662, %v6656
  %v7223 = vadd.f32 %v5663, %v6661
  %v7224 = vadd.f32 %v5664, %v6664
  %v7225 = vadd.f32 %v5665, %v6669
  %v7226 = vadd.f32 %v5666, %v6672
  %v7227 = vadd.f32 %v5667, %v6677
  %v7228 = vadd.f32 %v5668, %v6680
  %v7229 = vadd.f32 %v5669, %v6685
  %v7230 = vadd.f32 %v5670, %v6688
  %v7231 = vadd.f32 %v5671, %v6693
  %v7232 = vadd.f32 %v5672, %v6696
  %v7233 = vadd.f32 %v5673, %v6701
  %v7234 = vadd.f32 %v5674, %v6704
  %v7235 = vadd.f32 %v5675, %v6709
  %v7236 = vadd.f32 %v5676, %v6712
  %v7237 = vadd.f32 %v5677, %v6717
  %v7238 = vadd.f32 %v5678, %v6720
  %v7239 = vadd.f32 %v5679, %v6725
  %v7240 = vadd.f32 %v5680, %v6728
  %v7241 = vadd.f32 %v5681, %v6733
  %v7242 = vadd.f32 %v5682, %v6736
  %v7243 = vadd.f32 %v5683, %v6741
  %v7244 = vadd.f32 %v5684, %v6744
  %v7245 = vadd.f32 %v5685, %v6749
  %v7246 = vadd.f32 %v5686, %v6752
  %v7247 = vadd.f32 %v5687, %v6757
  %v7248 = vadd.f32 %v5688, %v6760
  %v7249 = vadd.f32 %v5689, %v6765
  %v7250 = vadd.f32 %v5690, %v6768
  %v7251 = vadd.f32 %v5691, %v6773
  %v7252 = vadd.f32 %v5692, %v6776
  %v7253 = vadd.f32 %v5693, %v6781
  %v7254 = vadd.f32 %v5694, %v6784
  %v7255 = vadd.f32 %v5695, %v6789
  %v7256 = vadd.f32 %v5696, %v6792
  %v7257 = vadd.f32 %v5697, %v6797
  %v7258 = vadd.f32 %v5698, %v6800
  %v7259 = vadd.f32 %v5699, %v6805
  %v7260 = vadd.f32 %v5700, %v6808
  %v7261 = vadd.f32 %v5701, %v6813
  %v7262 = vadd.f32 %v5702, %v6816
  %v7263 = vadd.f32 %v5703, %v6821
  %v7264 = vadd.f32 %v5704, %v6824
  %v7265 = vadd.f32 %v5705, %v6829
  %v7266 = vadd.f32 %v5706, %v6832
  %v7267 = vadd.f32 %v5707, %v6837
  %v7268 = vadd.f32 %v5708, %v6840
  %v7269 = vadd.f32 %v5709, %v6845
  %v7270 = vadd.f32 %v5710, %v6848
  %v7271 = vadd.f32 %v5711, %v6853
  %v7272 = vadd.f32 %v5712, %v6856
  %v7273 = vadd.f32 %v5713, %v6861
  %v7274 = vadd.f32 %v5714, %v6864
  %v7275 = vadd.f32 %v5715, %v6869
  %v7276 = vadd.f32 %v5716, %v6872
  %v7277 = vadd.f32 %v5717, %v6877
  %v7278 = vadd.f32 %v5718, %v6880
  %v7279 = vadd.f32 %v5719, %v6885
  %v7280 = vadd.f32 %v5720, %v6888
  %v7281 = vadd.f32 %v5721, %v6893
  %v7282 = vadd.f32 %v5722, %v6896
  %v7283 = vadd.f32 %v5723, %v6901
  %v7284 = vadd.f32 %v5724, %v6904
  %v7285 = vadd.f32 %v5725, %v6909
  %v7286 = vadd.f32 %v5726, %v6912
  %v7287 = vadd.f32 %v5727, %v6917
  %v7288 = vadd.f32 %v5728, %v6920
  %v7289 = vadd.f32 %v5729, %v6925
  %v7290 = vadd.f32 %v5730, %v6928
  %v7291 = vadd.f32 %v5731, %v6933
  %v7292 = vadd.f32 %v5732, %v6936
  %v7293 = vadd.f32 %v5733, %v6941
  %v7294 = vadd.f32 %v5734, %v6944
  %v7295 = vadd.f32 %v5735, %v6949
  %v7296 = vadd.f32 %v5736, %v6952
  %v7297 = vadd.f32 %v5737, %v6957
  %v7298 = vadd.f32 %v5738, %v6960
  %v7299 = vadd.f32 %v5739, %v6965
  %v7300 = vadd.f32 %v5740, %v6968
  %v7301 = vadd.f32 %v5741, %v6973
  %v7302 = vadd.f32 %v5742, %v6976
  %v7303 = vadd.f32 %v5743, %v6981
  %v7304 = vadd.f32 %v5744, %v6984
  %v7305 = vadd.f32 %v5745, %v6989
  %v7306 = vadd.f32 %v5746, %v6992
  %v7307 = vadd.f32 %v5747, %v6997
  %v7308 = vadd.f32 %v5748, %v7000
  %v7309 = vadd.f32 %v5749, %v7005
  %v7310 = vadd.f32 %v5750, %v7008
  %v7311 = vadd.f32 %v5751, %v7013
  %v7312 = vadd.f32 %v5752, %v7016
  %v7313 = vadd.f32 %v5753, %v7021
  %v7314 = vadd.f32 %v5754, %v7024
  %v7315 = vadd.f32 %v5755, %v7029
  %v7316 = vadd.f32 %v5756, %v7032
  %v7317 = vadd.f32 %v5757, %v7037
  %v7318 = vadd.f32 %v5758, %v7040
  %v7319 = vadd.f32 %v5759, %v7045
  %v7320 = vadd.f32 %v5760, %v7048
  %v7321 = vadd.f32 %v5761, %v7053
  %v7322 = vadd.f32 %v5762, %v7056
  %v7323 = vadd.f32 %v5763, %v7061
  %v7324 = vadd.f32 %v5764, %v7064
  %v7325 = vadd.f32 %v5765, %v7069
  %v7326 = vadd.f32 %v5766, %v7072
  %v7327 = vadd.f32 %v5767, %v7077
  %v7328 = vadd.f32 %v5768, %v7080
  %v7329 = vadd.f32 %v5769, %v7085
  %v7330 = vadd.f32 %v5770, %v7088
  %v7331 = vadd.f32 %v5771, %v7093
  %v7332 = vadd.f32 %v5772, %v7096
  %v7333 = vadd.f32 %v5773, %v7101
  %v7334 = vadd.f32 %v5774, %v7104
  %v7335 = vadd.f32 %v5775, %v7109
  %v7336 = vadd.f32 %v5776, %v7112
  %v7337 = vadd.f32 %v5777, %v7117
  %v7338 = vadd.f32 %v5778, %v7120
  %v7339 = vadd.f32 %v5779, %v7125
  %v7340 = vadd.f32 %v5780, %v7128
  %v7341 = vadd.f32 %v5781, %v7133
  %v7342 = vadd.f32 %v5782, %v7136
  %v7343 = vadd.f32 %v5783, %v7141
  %v7344 = vadd.f32 %v5784, %v7144
  %v7345 = vadd.f32 %v5785, %v7149
  %v7346 = vadd.f32 %v5786, %v7152
  %v7347 = vadd.f32 %v5787, %v7157
  %v7348 = vadd.f32 %v5788, %v7160
  %v7349 = vadd.f32 %v5789, %v7165
  %v7350 = vadd.f32 %v5790, %v7168
  %v7351 = vadd.f32 %v5791, %v7173
  %v7352 = vadd.f32 %v5792, %v7176
  %v7353 = vadd.f32 %v5793, %v7181
  %v7354 = vadd.f32 %v5794, %v7184
  %v7355 = vadd.f32 %v5795, %v7189
  %v7356 = vadd.f32 %v5796, %v7192
  %v7357 = vadd.f32 %v5797, %v7197
  %v7358 = vadd.f32 %v5798, %v7200
  %v7359 = vadd.f32 %v5799, %v7205
  %v7360 = vadd.f32 %v5800, %v7208
  %v7361 = vadd.f32 %v5801, %v7213
  %v7362 = vadd.f32 %v5802, %v7216
  %v7363 = vadd.f32 %v7219, %v6439
  %v7364 = vadd.f32 %v7220, %v6440
  %v7365 = vadd.f32 %v7221, %v6441
  %v7366 = vadd.f32 %v7222, %v6442
  %v7367 = vadd.f32 %v7223, %v6443
  %v7368 = vadd.f32 %v7224, %v6444
  %v7369 = vadd.f32 %v7225, %v6445
  %v7370 = vadd.f32 %v7226, %v6446
  %v7371 = vadd.f32 %v7227, %v6447
  %v7372 = vadd.f32 %v7228, %v6448
  %v7373 = vadd.f32 %v7229, %v6449
  %v7374 = vadd.f32 %v7230, %v6450
  %v7375 = vadd.f32 %v7231, %v6451
  %v7376 = vadd.f32 %v7232, %v6452
  %v7377 = vadd.f32 %v7233, %v6453
  %v7378 = vadd.f32 %v7234, %v6454
  %v7379 = vadd.f32 %v7235, %v6455
  %v7380 = vadd.f32 %v7236, %v6456
  %v7381 = vadd.f32 %v7237, %v6457
  %v7382 = vadd.f32 %v7238, %v6458
  %v7383 = vadd.f32 %v7239, %v6459
  %v7384 = vadd.f32 %v7240, %v6460
  %v7385 = vadd.f32 %v7241, %v6461
  %v7386 = vadd.f32 %v7242, %v6462
  %v7387 = vadd.f32 %v7243, %v6463
  %v7388 = vadd.f32 %v7244, %v6464
  %v7389 = vadd.f32 %v7245, %v6465
  %v7390 = vadd.f32 %v7246, %v6466
  %v7391 = vadd.f32 %v7247, %v6467
  %v7392 = vadd.f32 %v7248, %v6468
  %v7393 = vadd.f32 %v7249, %v6469
  %v7394 = vadd.f32 %v7250, %v6470
  %v7395 = vadd.f32 %v7251, %v6471
  %v7396 = vadd.f32 %v7252, %v6472
  %v7397 = vadd.f32 %v7253, %v6473
  %v7398 = vadd.f32 %v7254, %v6474
  %v7399 = vadd.f32 %v7255, %v6475
  %v7400 = vadd.f32 %v7256, %v6476
  %v7401 = vadd.f32 %v7257, %v6477
  %v7402 = vadd.f32 %v7258, %v6478
  %v7403 = vadd.f32 %v7259, %v6479
  %v7404 = vadd.f32 %v7260, %v6480
  %v7405 = vadd.f32 %v7261, %v6481
  %v7406 = vadd.f32 %v7262, %v6482
  %v7407 = vadd.f32 %v7263, %v6483
  %v7408 = vadd.f32 %v7264, %v6484
  %v7409 = vadd.f32 %v7265, %v6485
  %v7410 = vadd.f32 %v7266, %v6486
  %v7411 = vadd.f32 %v7267, %v6487
  %v7412 = vadd.f32 %v7268, %v6488
  %v7413 = vadd.f32 %v7269, %v6489
  %v7414 = vadd.f32 %v7270, %v6490
  %v7415 = vadd.f32 %v7271, %v6491
  %v7416 = vadd.f32 %v7272, %v6492
  %v7417 = vadd.f32 %v7273, %v6493
  %v7418 = vadd.f32 %v7274, %v6494
  %v7419 = vadd.f32 %v7275, %v6495
  %v7420 = vadd.f32 %v7276, %v6496
  %v7421 = vadd.f32 %v7277, %v6497
  %v7422 = vadd.f32 %v7278, %v6498
  %v7423 = vadd.f32 %v7279, %v6499
  %v7424 = vadd.f32 %v7280, %v6500
  %v7425 = vadd.f32 %v7281, %v6501
  %v7426 = vadd.f32 %v7282, %v6502
  %v7427 = vadd.f32 %v7283, %v6503
  %v7428 = vadd.f32 %v7284, %v6504
  %v7429 = vadd.f32 %v7285, %v6505
  %v7430 = vadd.f32 %v7286, %v6506
  %v7431 = vadd.f32 %v7287, %v6507
  %v7432 = vadd.f32 %v7288, %v6508
  %v7433 = vadd.f32 %v7289, %v6509
  %v7434 = vadd.f32 %v7290, %v6510
  %v7435 = vadd.f32 %v7291, %v6511
  %v7436 = vadd.f32 %v7292, %v6512
  %v7437 = vadd.f32 %v7293, %v6513
  %v7438 = vadd.f32 %v7294, %v6514
  %v7439 = vadd.f32 %v7295, %v6515
  %v7440 = vadd.f32 %v7296, %v6516
  %v7441 = vadd.f32 %v7297, %v6517
  %v7442 = vadd.f32 %v7298, %v6518
  %v7443 = vadd.f32 %v7299, %v6519
  %v7444 = vadd.f32 %v7300, %v6520
  %v7445 = vadd.f32 %v7301, %v6521
  %v7446 = vadd.f32 %v7302, %v6522
  %v7447 = vadd.f32 %v7303, %v6523
  %v7448 = vadd.f32 %v7304, %v6524
  %v7449 = vadd.f32 %v7305, %v6525
  %v7450 = vadd.f32 %v7306, %v6526
  %v7451 = vadd.f32 %v7307, %v6527
  %v7452 = vadd.f32 %v7308, %v6528
  %v7453 = vadd.f32 %v7309, %v6529
  %v7454 = vadd.f32 %v7310, %v6530
  %v7455 = vadd.f32 %v7311, %v6531
  %v7456 = vadd.f32 %v7312, %v6532
  %v7457 = vadd.f32 %v7313, %v6533
  %v7458 = vadd.f32 %v7314, %v6534
  %v7459 = vadd.f32 %v7315, %v6535
  %v7460 = vadd.f32 %v7316, %v6536
  %v7461 = vadd.f32 %v7317, %v6537
  %v7462 = vadd.f32 %v7318, %v6538
  %v7463 = vadd.f32 %v7319, %v6539
  %v7464 = vadd.f32 %v7320, %v6540
  %v7465 = vadd.f32 %v7321, %v6541
  %v7466 = vadd.f32 %v7322, %v6542
  %v7467 = vadd.f32 %v7323, %v6543
  %v7468 = vadd.f32 %v7324, %v6544
  %v7469 = vadd.f32 %v7325, %v6545
  %v7470 = vadd.f32 %v7326, %v6546
  %v7471 = vadd.f32 %v7327, %v6547
  %v7472 = vadd.f32 %v7328, %v6548
  %v7473 = vadd.f32 %v7329, %v6549
  %v7474 = vadd.f32 %v7330, %v6550
  %v7475 = vadd.f32 %v7331, %v6551
  %v7476 = vadd.f32 %v7332, %v6552
  %v7477 = vadd.f32 %v7333, %v6553
  %v7478 = vadd.f32 %v7334, %v6554
  %v7479 = vadd.f32 %v7335, %v6555
  %v7480 = vadd.f32 %v7336, %v6556
  %v7481 = vadd.f32 %v7337, %v6557
  %v7482 = vadd.f32 %v7338, %v6558
  %v7483 = vadd.f32 %v7339, %v6559
  %v7484 = vadd.f32 %v7340, %v6560
  %v7485 = vadd.f32 %v7341, %v6561
  %v7486 = vadd.f32 %v7342, %v6562
  %v7487 = vadd.f32 %v7343, %v6563
  %v7488 = vadd.f32 %v7344, %v6564
  %v7489 = vadd.f32 %v7345, %v6565
  %v7490 = vadd.f32 %v7346, %v6566
  %v7491 = vadd.f32 %v7347, %v6567
  %v7492 = vadd.f32 %v7348, %v6568
  %v7493 = vadd.f32 %v7349, %v6569
  %v7494 = vadd.f32 %v7350, %v6570
  %v7495 = vadd.f32 %v7351, %v6571
  %v7496 = vadd.f32 %v7352, %v6572
  %v7497 = vadd.f32 %v7353, %v6573
  %v7498 = vadd.f32 %v7354, %v6574
  %v7499 = vadd.f32 %v7355, %v6575
  %v7500 = vadd.f32 %v7356, %v6576
  %v7501 = vadd.f32 %v7357, %v6577
  %v7502 = vadd.f32 %v7358, %v6578
  %v7503 = vadd.f32 %v7359, %v6579
  %v7504 = vadd.f32 %v7360, %v6580
  %v7505 = vadd.f32 %v7361, %v6581
  %v7506 = vadd.f32 %v7362, %v6582
  %v7507 = vld [vmem:[%s3] sm:$0x1]
  %v7509 = vlaneseq
  %v7510 = vshrl.u32 %v7509, 7
  %v7511 = vsub.s32 0, %v7510
  %v7512 = vrot.slane %v7507, %v7511
  %v7514 = vadd.f32 %v7363, %v7512
  %v7515 = vadd.f32 %v7364, %v7512
  %v7516 = vadd.f32 %v7365, %v7512
  %v7517 = vadd.f32 %v7366, %v7512
  %v7518 = vadd.f32 %v7367, %v7512
  %v7519 = vadd.f32 %v7368, %v7512
  %v7520 = vadd.f32 %v7369, %v7512
  %v7521 = vadd.f32 %v7370, %v7512
  %v7522 = vadd.f32 %v7371, %v7512
  %v7523 = vadd.f32 %v7372, %v7512
  %v7524 = vadd.f32 %v7373, %v7512
  %v7525 = vadd.f32 %v7374, %v7512
  %v7526 = vadd.f32 %v7375, %v7512
  %v7527 = vadd.f32 %v7376, %v7512
  %v7528 = vadd.f32 %v7377, %v7512
  %v7529 = vadd.f32 %v7378, %v7512
  %v7530 = vadd.f32 %v7379, %v7512
  %v7531 = vadd.f32 %v7380, %v7512
  %v7532 = vadd.f32 %v7381, %v7512
  %v7533 = vadd.f32 %v7382, %v7512
  %v7534 = vadd.f32 %v7383, %v7512
  %v7535 = vadd.f32 %v7384, %v7512
  %v7536 = vadd.f32 %v7385, %v7512
  %v7537 = vadd.f32 %v7386, %v7512
  %v7538 = vadd.f32 %v7387, %v7512
  %v7539 = vadd.f32 %v7388, %v7512
  %v7540 = vadd.f32 %v7389, %v7512
  %v7541 = vadd.f32 %v7390, %v7512
  %v7542 = vadd.f32 %v7391, %v7512
  %v7543 = vadd.f32 %v7392, %v7512
  %v7544 = vadd.f32 %v7393, %v7512
  %v7545 = vadd.f32 %v7394, %v7512
  %v7546 = vadd.f32 %v7395, %v7512
  %v7547 = vadd.f32 %v7396, %v7512
  %v7548 = vadd.f32 %v7397, %v7512
  %v7549 = vadd.f32 %v7398, %v7512
  %v7550 = vadd.f32 %v7399, %v7512
  %v7551 = vadd.f32 %v7400, %v7512
  %v7552 = vadd.f32 %v7401, %v7512
  %v7553 = vadd.f32 %v7402, %v7512
  %v7554 = vadd.f32 %v7403, %v7512
  %v7555 = vadd.f32 %v7404, %v7512
  %v7556 = vadd.f32 %v7405, %v7512
  %v7557 = vadd.f32 %v7406, %v7512
  %v7558 = vadd.f32 %v7407, %v7512
  %v7559 = vadd.f32 %v7408, %v7512
  %v7560 = vadd.f32 %v7409, %v7512
  %v7561 = vadd.f32 %v7410, %v7512
  %v7562 = vadd.f32 %v7411, %v7512
  %v7563 = vadd.f32 %v7412, %v7512
  %v7564 = vadd.f32 %v7413, %v7512
  %v7565 = vadd.f32 %v7414, %v7512
  %v7566 = vadd.f32 %v7415, %v7512
  %v7567 = vadd.f32 %v7416, %v7512
  %v7568 = vadd.f32 %v7417, %v7512
  %v7569 = vadd.f32 %v7418, %v7512
  %v7570 = vadd.f32 %v7419, %v7512
  %v7571 = vadd.f32 %v7420, %v7512
  %v7572 = vadd.f32 %v7421, %v7512
  %v7573 = vadd.f32 %v7422, %v7512
  %v7574 = vadd.f32 %v7423, %v7512
  %v7575 = vadd.f32 %v7424, %v7512
  %v7576 = vadd.f32 %v7425, %v7512
  %v7577 = vadd.f32 %v7426, %v7512
  %v7578 = vadd.f32 %v7427, %v7512
  %v7579 = vadd.f32 %v7428, %v7512
  %v7580 = vadd.f32 %v7429, %v7512
  %v7581 = vadd.f32 %v7430, %v7512
  %v7582 = vadd.f32 %v7431, %v7512
  %v7583 = vadd.f32 %v7432, %v7512
  %v7584 = vadd.f32 %v7433, %v7512
  %v7585 = vadd.f32 %v7434, %v7512
  %v7586 = vadd.f32 %v7435, %v7512
  %v7587 = vadd.f32 %v7436, %v7512
  %v7588 = vadd.f32 %v7437, %v7512
  %v7589 = vadd.f32 %v7438, %v7512
  %v7590 = vadd.f32 %v7439, %v7512
  %v7591 = vadd.f32 %v7440, %v7512
  %v7592 = vadd.f32 %v7441, %v7512
  %v7593 = vadd.f32 %v7442, %v7512
  %v7594 = vadd.f32 %v7443, %v7512
  %v7595 = vadd.f32 %v7444, %v7512
  %v7596 = vadd.f32 %v7445, %v7512
  %v7597 = vadd.f32 %v7446, %v7512
  %v7598 = vadd.f32 %v7447, %v7512
  %v7599 = vadd.f32 %v7448, %v7512
  %v7600 = vadd.f32 %v7449, %v7512
  %v7601 = vadd.f32 %v7450, %v7512
  %v7602 = vadd.f32 %v7451, %v7512
  %v7603 = vadd.f32 %v7452, %v7512
  %v7604 = vadd.f32 %v7453, %v7512
  %v7605 = vadd.f32 %v7454, %v7512
  %v7606 = vadd.f32 %v7455, %v7512
  %v7607 = vadd.f32 %v7456, %v7512
  %v7608 = vadd.f32 %v7457, %v7512
  %v7609 = vadd.f32 %v7458, %v7512
  %v7610 = vadd.f32 %v7459, %v7512
  %v7611 = vadd.f32 %v7460, %v7512
  %v7612 = vadd.f32 %v7461, %v7512
  %v7613 = vadd.f32 %v7462, %v7512
  %v7614 = vadd.f32 %v7463, %v7512
  %v7615 = vadd.f32 %v7464, %v7512
  %v7616 = vadd.f32 %v7465, %v7512
  %v7617 = vadd.f32 %v7466, %v7512
  %v7618 = vadd.f32 %v7467, %v7512
  %v7619 = vadd.f32 %v7468, %v7512
  %v7620 = vadd.f32 %v7469, %v7512
  %v7621 = vadd.f32 %v7470, %v7512
  %v7622 = vadd.f32 %v7471, %v7512
  %v7623 = vadd.f32 %v7472, %v7512
  %v7624 = vadd.f32 %v7473, %v7512
  %v7625 = vadd.f32 %v7474, %v7512
  %v7626 = vadd.f32 %v7475, %v7512
  %v7627 = vadd.f32 %v7476, %v7512
  %v7628 = vadd.f32 %v7477, %v7512
  %v7629 = vadd.f32 %v7478, %v7512
  %v7630 = vadd.f32 %v7479, %v7512
  %v7631 = vadd.f32 %v7480, %v7512
  %v7632 = vadd.f32 %v7481, %v7512
  %v7633 = vadd.f32 %v7482, %v7512
  %v7634 = vadd.f32 %v7483, %v7512
  %v7635 = vadd.f32 %v7484, %v7512
  %v7636 = vadd.f32 %v7485, %v7512
  %v7637 = vadd.f32 %v7486, %v7512
  %v7638 = vadd.f32 %v7487, %v7512
  %v7639 = vadd.f32 %v7488, %v7512
  %v7640 = vadd.f32 %v7489, %v7512
  %v7641 = vadd.f32 %v7490, %v7512
  %v7642 = vadd.f32 %v7491, %v7512
  %v7643 = vadd.f32 %v7492, %v7512
  %v7644 = vadd.f32 %v7493, %v7512
  %v7645 = vadd.f32 %v7494, %v7512
  %v7646 = vadd.f32 %v7495, %v7512
  %v7647 = vadd.f32 %v7496, %v7512
  %v7648 = vadd.f32 %v7497, %v7512
  %v7649 = vadd.f32 %v7498, %v7512
  %v7650 = vadd.f32 %v7499, %v7512
  %v7651 = vadd.f32 %v7500, %v7512
  %v7652 = vadd.f32 %v7501, %v7512
  %v7653 = vadd.f32 %v7502, %v7512
  %v7654 = vadd.f32 %v7503, %v7512
  %v7655 = vadd.f32 %v7504, %v7512
  %v7656 = vadd.f32 %v7505, %v7512
  %v7657 = vadd.f32 %v7506, %v7512
  %v7658 = vpack.c.bf16 %v7515, %v7514
  %v7659 = vpack.c.bf16 %v7517, %v7516
  %v7660 = vpack.c.bf16 %v7519, %v7518
  %v7661 = vpack.c.bf16 %v7521, %v7520
  %v7662 = vpack.c.bf16 %v7523, %v7522
  %v7663 = vpack.c.bf16 %v7525, %v7524
  %v7664 = vpack.c.bf16 %v7527, %v7526
  %v7665 = vpack.c.bf16 %v7529, %v7528
  %v7666 = vpack.c.bf16 %v7531, %v7530
  %v7667 = vpack.c.bf16 %v7533, %v7532
  %v7668 = vpack.c.bf16 %v7535, %v7534
  %v7669 = vpack.c.bf16 %v7537, %v7536
  %v7670 = vpack.c.bf16 %v7539, %v7538
  %v7671 = vpack.c.bf16 %v7541, %v7540
  %v7672 = vpack.c.bf16 %v7543, %v7542
  %v7673 = vpack.c.bf16 %v7545, %v7544
  %v7674 = vpack.c.bf16 %v7547, %v7546
  %v7675 = vpack.c.bf16 %v7549, %v7548
  %v7676 = vpack.c.bf16 %v7551, %v7550
  %v7677 = vpack.c.bf16 %v7553, %v7552
  %v7678 = vpack.c.bf16 %v7555, %v7554
  %v7679 = vpack.c.bf16 %v7557, %v7556
  %v7680 = vpack.c.bf16 %v7559, %v7558
  %v7681 = vpack.c.bf16 %v7561, %v7560
  %v7682 = vpack.c.bf16 %v7563, %v7562
  %v7683 = vpack.c.bf16 %v7565, %v7564
  %v7684 = vpack.c.bf16 %v7567, %v7566
  %v7685 = vpack.c.bf16 %v7569, %v7568
  %v7686 = vpack.c.bf16 %v7571, %v7570
  %v7687 = vpack.c.bf16 %v7573, %v7572
  %v7688 = vpack.c.bf16 %v7575, %v7574
  %v7689 = vpack.c.bf16 %v7577, %v7576
  %v7690 = vpack.c.bf16 %v7579, %v7578
  %v7691 = vpack.c.bf16 %v7581, %v7580
  %v7692 = vpack.c.bf16 %v7583, %v7582
  %v7693 = vpack.c.bf16 %v7585, %v7584
  %v7694 = vpack.c.bf16 %v7587, %v7586
  %v7695 = vpack.c.bf16 %v7589, %v7588
  %v7696 = vpack.c.bf16 %v7591, %v7590
  %v7697 = vpack.c.bf16 %v7593, %v7592
  %v7698 = vpack.c.bf16 %v7595, %v7594
  %v7699 = vpack.c.bf16 %v7597, %v7596
  %v7700 = vpack.c.bf16 %v7599, %v7598
  %v7701 = vpack.c.bf16 %v7601, %v7600
  %v7702 = vpack.c.bf16 %v7603, %v7602
  %v7703 = vpack.c.bf16 %v7605, %v7604
  %v7704 = vpack.c.bf16 %v7607, %v7606
  %v7705 = vpack.c.bf16 %v7609, %v7608
  %v7706 = vpack.c.bf16 %v7611, %v7610
  %v7707 = vpack.c.bf16 %v7613, %v7612
  %v7708 = vpack.c.bf16 %v7615, %v7614
  %v7709 = vpack.c.bf16 %v7617, %v7616
  %v7710 = vpack.c.bf16 %v7619, %v7618
  %v7711 = vpack.c.bf16 %v7621, %v7620
  %v7712 = vpack.c.bf16 %v7623, %v7622
  %v7713 = vpack.c.bf16 %v7625, %v7624
  %v7714 = vpack.c.bf16 %v7627, %v7626
  %v7715 = vpack.c.bf16 %v7629, %v7628
  %v7716 = vpack.c.bf16 %v7631, %v7630
  %v7717 = vpack.c.bf16 %v7633, %v7632
  %v7718 = vpack.c.bf16 %v7635, %v7634
  %v7719 = vpack.c.bf16 %v7637, %v7636
  %v7720 = vpack.c.bf16 %v7639, %v7638
  %v7721 = vpack.c.bf16 %v7641, %v7640
  %v7722 = vpack.c.bf16 %v7643, %v7642
  %v7723 = vpack.c.bf16 %v7645, %v7644
  %v7724 = vpack.c.bf16 %v7647, %v7646
  %v7725 = vpack.c.bf16 %v7649, %v7648
  %v7726 = vpack.c.bf16 %v7651, %v7650
  %v7727 = vpack.c.bf16 %v7653, %v7652
  %v7728 = vpack.c.bf16 %v7655, %v7654
  %v7729 = vpack.c.bf16 %v7657, %v7656
  %v7802 = vunpack.c.l.b16 %v7658
  %v7803 = vunpack.c.h.b16 %v7658
  %v7804 = vunpack.c.l.b16 %v7659
  %v7805 = vunpack.c.h.b16 %v7659
  %v7806 = vunpack.c.l.b16 %v7660
  %v7807 = vunpack.c.h.b16 %v7660
  %v7808 = vunpack.c.l.b16 %v7661
  %v7809 = vunpack.c.h.b16 %v7661
  %v7810 = vunpack.c.l.b16 %v7662
  %v7811 = vunpack.c.h.b16 %v7662
  %v7812 = vunpack.c.l.b16 %v7663
  %v7813 = vunpack.c.h.b16 %v7663
  %v7814 = vunpack.c.l.b16 %v7664
  %v7815 = vunpack.c.h.b16 %v7664
  %v7816 = vunpack.c.l.b16 %v7665
  %v7817 = vunpack.c.h.b16 %v7665
  %v7818 = vunpack.c.l.b16 %v7666
  %v7819 = vunpack.c.h.b16 %v7666
  %v7820 = vunpack.c.l.b16 %v7667
  %v7821 = vunpack.c.h.b16 %v7667
  %v7822 = vunpack.c.l.b16 %v7668
  %v7823 = vunpack.c.h.b16 %v7668
  %v7824 = vunpack.c.l.b16 %v7669
  %v7825 = vunpack.c.h.b16 %v7669
  %v7826 = vunpack.c.l.b16 %v7670
  %v7827 = vunpack.c.h.b16 %v7670
  %v7828 = vunpack.c.l.b16 %v7671
  %v7829 = vunpack.c.h.b16 %v7671
  %v7830 = vunpack.c.l.b16 %v7672
  %v7831 = vunpack.c.h.b16 %v7672
  %v7832 = vunpack.c.l.b16 %v7673
  %v7833 = vunpack.c.h.b16 %v7673
  %v7834 = vunpack.c.l.b16 %v7674
  %v7835 = vunpack.c.h.b16 %v7674
  %v7836 = vunpack.c.l.b16 %v7675
  %v7837 = vunpack.c.h.b16 %v7675
  %v7838 = vunpack.c.l.b16 %v7676
  %v7839 = vunpack.c.h.b16 %v7676
  %v7840 = vunpack.c.l.b16 %v7677
  %v7841 = vunpack.c.h.b16 %v7677
  %v7842 = vunpack.c.l.b16 %v7678
  %v7843 = vunpack.c.h.b16 %v7678
  %v7844 = vunpack.c.l.b16 %v7679
  %v7845 = vunpack.c.h.b16 %v7679
  %v7846 = vunpack.c.l.b16 %v7680
  %v7847 = vunpack.c.h.b16 %v7680
  %v7848 = vunpack.c.l.b16 %v7681
  %v7849 = vunpack.c.h.b16 %v7681
  %v7850 = vunpack.c.l.b16 %v7682
  %v7851 = vunpack.c.h.b16 %v7682
  %v7852 = vunpack.c.l.b16 %v7683
  %v7853 = vunpack.c.h.b16 %v7683
  %v7854 = vunpack.c.l.b16 %v7684
  %v7855 = vunpack.c.h.b16 %v7684
  %v7856 = vunpack.c.l.b16 %v7685
  %v7857 = vunpack.c.h.b16 %v7685
  %v7858 = vunpack.c.l.b16 %v7686
  %v7859 = vunpack.c.h.b16 %v7686
  %v7860 = vunpack.c.l.b16 %v7687
  %v7861 = vunpack.c.h.b16 %v7687
  %v7862 = vunpack.c.l.b16 %v7688
  %v7863 = vunpack.c.h.b16 %v7688
  %v7864 = vunpack.c.l.b16 %v7689
  %v7865 = vunpack.c.h.b16 %v7689
  %v7866 = vunpack.c.l.b16 %v7690
  %v7867 = vunpack.c.h.b16 %v7690
  %v7868 = vunpack.c.l.b16 %v7691
  %v7869 = vunpack.c.h.b16 %v7691
  %v7870 = vunpack.c.l.b16 %v7692
  %v7871 = vunpack.c.h.b16 %v7692
  %v7872 = vunpack.c.l.b16 %v7693
  %v7873 = vunpack.c.h.b16 %v7693
  %v7874 = vunpack.c.l.b16 %v7694
  %v7875 = vunpack.c.h.b16 %v7694
  %v7876 = vunpack.c.l.b16 %v7695
  %v7877 = vunpack.c.h.b16 %v7695
  %v7878 = vunpack.c.l.b16 %v7696
  %v7879 = vunpack.c.h.b16 %v7696
  %v7880 = vunpack.c.l.b16 %v7697
  %v7881 = vunpack.c.h.b16 %v7697
  %v7882 = vunpack.c.l.b16 %v7698
  %v7883 = vunpack.c.h.b16 %v7698
  %v7884 = vunpack.c.l.b16 %v7699
  %v7885 = vunpack.c.h.b16 %v7699
  %v7886 = vunpack.c.l.b16 %v7700
  %v7887 = vunpack.c.h.b16 %v7700
  %v7888 = vunpack.c.l.b16 %v7701
  %v7889 = vunpack.c.h.b16 %v7701
  %v7890 = vunpack.c.l.b16 %v7702
  %v7891 = vunpack.c.h.b16 %v7702
  %v7892 = vunpack.c.l.b16 %v7703
  %v7893 = vunpack.c.h.b16 %v7703
  %v7894 = vunpack.c.l.b16 %v7704
  %v7895 = vunpack.c.h.b16 %v7704
  %v7896 = vunpack.c.l.b16 %v7705
  %v7897 = vunpack.c.h.b16 %v7705
  %v7898 = vunpack.c.l.b16 %v7706
  %v7899 = vunpack.c.h.b16 %v7706
  %v7900 = vunpack.c.l.b16 %v7707
  %v7901 = vunpack.c.h.b16 %v7707
  %v7902 = vunpack.c.l.b16 %v7708
  %v7903 = vunpack.c.h.b16 %v7708
  %v7904 = vunpack.c.l.b16 %v7709
  %v7905 = vunpack.c.h.b16 %v7709
  %v7906 = vunpack.c.l.b16 %v7710
  %v7907 = vunpack.c.h.b16 %v7710
  %v7908 = vunpack.c.l.b16 %v7711
  %v7909 = vunpack.c.h.b16 %v7711
  %v7910 = vunpack.c.l.b16 %v7712
  %v7911 = vunpack.c.h.b16 %v7712
  %v7912 = vunpack.c.l.b16 %v7713
  %v7913 = vunpack.c.h.b16 %v7713
  %v7914 = vunpack.c.l.b16 %v7714
  %v7915 = vunpack.c.h.b16 %v7714
  %v7916 = vunpack.c.l.b16 %v7715
  %v7917 = vunpack.c.h.b16 %v7715
  %v7918 = vunpack.c.l.b16 %v7716
  %v7919 = vunpack.c.h.b16 %v7716
  %v7920 = vunpack.c.l.b16 %v7717
  %v7921 = vunpack.c.h.b16 %v7717
  %v7922 = vunpack.c.l.b16 %v7718
  %v7923 = vunpack.c.h.b16 %v7718
  %v7924 = vunpack.c.l.b16 %v7719
  %v7925 = vunpack.c.h.b16 %v7719
  %v7926 = vunpack.c.l.b16 %v7720
  %v7927 = vunpack.c.h.b16 %v7720
  %v7928 = vunpack.c.l.b16 %v7721
  %v7929 = vunpack.c.h.b16 %v7721
  %v7930 = vunpack.c.l.b16 %v7722
  %v7931 = vunpack.c.h.b16 %v7722
  %v7932 = vunpack.c.l.b16 %v7723
  %v7933 = vunpack.c.h.b16 %v7723
  %v7934 = vunpack.c.l.b16 %v7724
  %v7935 = vunpack.c.h.b16 %v7724
  %v7936 = vunpack.c.l.b16 %v7725
  %v7937 = vunpack.c.h.b16 %v7725
  %v7938 = vunpack.c.l.b16 %v7726
  %v7939 = vunpack.c.h.b16 %v7726
  %v7940 = vunpack.c.l.b16 %v7727
  %v7941 = vunpack.c.h.b16 %v7727
  %v7942 = vunpack.c.l.b16 %v7728
  %v7943 = vunpack.c.h.b16 %v7728
  %v7944 = vunpack.c.l.b16 %v7729
  %v7945 = vunpack.c.h.b16 %v7729
  %v7946 = vpack.c.b16 %v7802, %v7802
  %v7947 = vpack.c.b16 %v7803, %v7803
  %v7948 = vpack.c.b16 %v7804, %v7804
  %v7949 = vpack.c.b16 %v7805, %v7805
  %v7950 = vpack.c.b16 %v7806, %v7806
  %v7951 = vpack.c.b16 %v7807, %v7807
  %v7952 = vpack.c.b16 %v7808, %v7808
  %v7953 = vpack.c.b16 %v7809, %v7809
  %v7954 = vpack.c.b16 %v7810, %v7810
  %v7955 = vpack.c.b16 %v7811, %v7811
  %v7956 = vpack.c.b16 %v7812, %v7812
  %v7957 = vpack.c.b16 %v7813, %v7813
  %v7958 = vpack.c.b16 %v7814, %v7814
  %v7959 = vpack.c.b16 %v7815, %v7815
  %v7960 = vpack.c.b16 %v7816, %v7816
  %v7961 = vpack.c.b16 %v7817, %v7817
  %v7962 = vpack.c.b16 %v7818, %v7818
  %v7963 = vpack.c.b16 %v7819, %v7819
  %v7964 = vpack.c.b16 %v7820, %v7820
  %v7965 = vpack.c.b16 %v7821, %v7821
  %v7966 = vpack.c.b16 %v7822, %v7822
  %v7967 = vpack.c.b16 %v7823, %v7823
  %v7968 = vpack.c.b16 %v7824, %v7824
  %v7969 = vpack.c.b16 %v7825, %v7825
  %v7970 = vpack.c.b16 %v7826, %v7826
  %v7971 = vpack.c.b16 %v7827, %v7827
  %v7972 = vpack.c.b16 %v7828, %v7828
  %v7973 = vpack.c.b16 %v7829, %v7829
  %v7974 = vpack.c.b16 %v7830, %v7830
  %v7975 = vpack.c.b16 %v7831, %v7831
  %v7976 = vpack.c.b16 %v7832, %v7832
  %v7977 = vpack.c.b16 %v7833, %v7833
  %v7978 = vpack.c.b16 %v7834, %v7834
  %v7979 = vpack.c.b16 %v7835, %v7835
  %v7980 = vpack.c.b16 %v7836, %v7836
  %v7981 = vpack.c.b16 %v7837, %v7837
  %v7982 = vpack.c.b16 %v7838, %v7838
  %v7983 = vpack.c.b16 %v7839, %v7839
  %v7984 = vpack.c.b16 %v7840, %v7840
  %v7985 = vpack.c.b16 %v7841, %v7841
  %v7986 = vpack.c.b16 %v7842, %v7842
  %v7987 = vpack.c.b16 %v7843, %v7843
  %v7988 = vpack.c.b16 %v7844, %v7844
  %v7989 = vpack.c.b16 %v7845, %v7845
  %v7990 = vpack.c.b16 %v7846, %v7846
  %v7991 = vpack.c.b16 %v7847, %v7847
  %v7992 = vpack.c.b16 %v7848, %v7848
  %v7993 = vpack.c.b16 %v7849, %v7849
  %v7994 = vpack.c.b16 %v7850, %v7850
  %v7995 = vpack.c.b16 %v7851, %v7851
  %v7996 = vpack.c.b16 %v7852, %v7852
  %v7997 = vpack.c.b16 %v7853, %v7853
  %v7998 = vpack.c.b16 %v7854, %v7854
  %v7999 = vpack.c.b16 %v7855, %v7855
  %v8000 = vpack.c.b16 %v7856, %v7856
  %v8001 = vpack.c.b16 %v7857, %v7857
  %v8002 = vpack.c.b16 %v7858, %v7858
  %v8003 = vpack.c.b16 %v7859, %v7859
  %v8004 = vpack.c.b16 %v7860, %v7860
  %v8005 = vpack.c.b16 %v7861, %v7861
  %v8006 = vpack.c.b16 %v7862, %v7862
  %v8007 = vpack.c.b16 %v7863, %v7863
  %v8008 = vpack.c.b16 %v7864, %v7864
  %v8009 = vpack.c.b16 %v7865, %v7865
  %v8010 = vpack.c.b16 %v7866, %v7866
  %v8011 = vpack.c.b16 %v7867, %v7867
  %v8012 = vpack.c.b16 %v7868, %v7868
  %v8013 = vpack.c.b16 %v7869, %v7869
  %v8014 = vpack.c.b16 %v7870, %v7870
  %v8015 = vpack.c.b16 %v7871, %v7871
  %v8016 = vpack.c.b16 %v7872, %v7872
  %v8017 = vpack.c.b16 %v7873, %v7873
  %v8018 = vpack.c.b16 %v7874, %v7874
  %v8019 = vpack.c.b16 %v7875, %v7875
  %v8020 = vpack.c.b16 %v7876, %v7876
  %v8021 = vpack.c.b16 %v7877, %v7877
  %v8022 = vpack.c.b16 %v7878, %v7878
  %v8023 = vpack.c.b16 %v7879, %v7879
  %v8024 = vpack.c.b16 %v7880, %v7880
  %v8025 = vpack.c.b16 %v7881, %v7881
  %v8026 = vpack.c.b16 %v7882, %v7882
  %v8027 = vpack.c.b16 %v7883, %v7883
  %v8028 = vpack.c.b16 %v7884, %v7884
  %v8029 = vpack.c.b16 %v7885, %v7885
  %v8030 = vpack.c.b16 %v7886, %v7886
  %v8031 = vpack.c.b16 %v7887, %v7887
  %v8032 = vpack.c.b16 %v7888, %v7888
  %v8033 = vpack.c.b16 %v7889, %v7889
  %v8034 = vpack.c.b16 %v7890, %v7890
  %v8035 = vpack.c.b16 %v7891, %v7891
  %v8036 = vpack.c.b16 %v7892, %v7892
  %v8037 = vpack.c.b16 %v7893, %v7893
  %v8038 = vpack.c.b16 %v7894, %v7894
  %v8039 = vpack.c.b16 %v7895, %v7895
  %v8040 = vpack.c.b16 %v7896, %v7896
  %v8041 = vpack.c.b16 %v7897, %v7897
  %v8042 = vpack.c.b16 %v7898, %v7898
  %v8043 = vpack.c.b16 %v7899, %v7899
  %v8044 = vpack.c.b16 %v7900, %v7900
  %v8045 = vpack.c.b16 %v7901, %v7901
  %v8046 = vpack.c.b16 %v7902, %v7902
  %v8047 = vpack.c.b16 %v7903, %v7903
  %v8048 = vpack.c.b16 %v7904, %v7904
  %v8049 = vpack.c.b16 %v7905, %v7905
  %v8050 = vpack.c.b16 %v7906, %v7906
  %v8051 = vpack.c.b16 %v7907, %v7907
  %v8052 = vpack.c.b16 %v7908, %v7908
  %v8053 = vpack.c.b16 %v7909, %v7909
  %v8054 = vpack.c.b16 %v7910, %v7910
  %v8055 = vpack.c.b16 %v7911, %v7911
  %v8056 = vpack.c.b16 %v7912, %v7912
  %v8057 = vpack.c.b16 %v7913, %v7913
  %v8058 = vpack.c.b16 %v7914, %v7914
  %v8059 = vpack.c.b16 %v7915, %v7915
  %v8060 = vpack.c.b16 %v7916, %v7916
  %v8061 = vpack.c.b16 %v7917, %v7917
  %v8062 = vpack.c.b16 %v7918, %v7918
  %v8063 = vpack.c.b16 %v7919, %v7919
  %v8064 = vpack.c.b16 %v7920, %v7920
  %v8065 = vpack.c.b16 %v7921, %v7921
  %v8066 = vpack.c.b16 %v7922, %v7922
  %v8067 = vpack.c.b16 %v7923, %v7923
  %v8068 = vpack.c.b16 %v7924, %v7924
  %v8069 = vpack.c.b16 %v7925, %v7925
  %v8070 = vpack.c.b16 %v7926, %v7926
  %v8071 = vpack.c.b16 %v7927, %v7927
  %v8072 = vpack.c.b16 %v7928, %v7928
  %v8073 = vpack.c.b16 %v7929, %v7929
  %v8074 = vpack.c.b16 %v7930, %v7930
  %v8075 = vpack.c.b16 %v7931, %v7931
  %v8076 = vpack.c.b16 %v7932, %v7932
  %v8077 = vpack.c.b16 %v7933, %v7933
  %v8078 = vpack.c.b16 %v7934, %v7934
  %v8079 = vpack.c.b16 %v7935, %v7935
  %v8080 = vpack.c.b16 %v7936, %v7936
  %v8081 = vpack.c.b16 %v7937, %v7937
  %v8082 = vpack.c.b16 %v7938, %v7938
  %v8083 = vpack.c.b16 %v7939, %v7939
  %v8084 = vpack.c.b16 %v7940, %v7940
  %v8085 = vpack.c.b16 %v7941, %v7941
  %v8086 = vpack.c.b16 %v7942, %v7942
  %v8087 = vpack.c.b16 %v7943, %v7943
  %v8088 = vpack.c.b16 %v7944, %v7944
  %v8089 = vpack.c.b16 %v7945, %v7945
  %vm8234 = vcmask 257024
  %8235 = vst.msk [vmem:[%s4] sm:$0xf] %vm8234, %v7946
  %8236 = vst.msk [vmem:[%s4 + $0x4] sm:$0xf] %vm8234, %v7947
  %8237 = vst.msk [vmem:[%s4 + $0x8] sm:$0xf] %vm8234, %v7948
  %8238 = vst.msk [vmem:[%s4 + $0xc] sm:$0xf] %vm8234, %v7949
  %8239 = vst.msk [vmem:[%s4 + $0x10] sm:$0xf] %vm8234, %v7950
  %8240 = vst.msk [vmem:[%s4 + $0x14] sm:$0xf] %vm8234, %v7951
  %8241 = vst.msk [vmem:[%s4 + $0x18] sm:$0xf] %vm8234, %v7952
  %8242 = vst.msk [vmem:[%s4 + $0x1c] sm:$0xf] %vm8234, %v7953
  %8243 = vst.msk [vmem:[%s4 + $0x20] sm:$0xf] %vm8234, %v7954
  %8244 = vst.msk [vmem:[%s4 + $0x24] sm:$0xf] %vm8234, %v7955
  %8245 = vst.msk [vmem:[%s4 + $0x28] sm:$0xf] %vm8234, %v7956
  %8246 = vst.msk [vmem:[%s4 + $0x2c] sm:$0xf] %vm8234, %v7957
  %8247 = vst.msk [vmem:[%s4 + $0x30] sm:$0xf] %vm8234, %v7958
  %8248 = vst.msk [vmem:[%s4 + $0x34] sm:$0xf] %vm8234, %v7959
  %8249 = vst.msk [vmem:[%s4 + $0x38] sm:$0xf] %vm8234, %v7960
  %8250 = vst.msk [vmem:[%s4 + $0x3c] sm:$0xf] %vm8234, %v7961
  %8251 = vst.msk [vmem:[%s4 + $0x40] sm:$0xf] %vm8234, %v7962
  %8252 = vst.msk [vmem:[%s4 + $0x44] sm:$0xf] %vm8234, %v7963
  %8253 = vst.msk [vmem:[%s4 + $0x48] sm:$0xf] %vm8234, %v7964
  %8254 = vst.msk [vmem:[%s4 + $0x4c] sm:$0xf] %vm8234, %v7965
  %8255 = vst.msk [vmem:[%s4 + $0x50] sm:$0xf] %vm8234, %v7966
  %8256 = vst.msk [vmem:[%s4 + $0x54] sm:$0xf] %vm8234, %v7967
  %8257 = vst.msk [vmem:[%s4 + $0x58] sm:$0xf] %vm8234, %v7968
  %8258 = vst.msk [vmem:[%s4 + $0x5c] sm:$0xf] %vm8234, %v7969
  %8259 = vst.msk [vmem:[%s4 + $0x60] sm:$0xf] %vm8234, %v7970
  %8260 = vst.msk [vmem:[%s4 + $0x64] sm:$0xf] %vm8234, %v7971
  %8261 = vst.msk [vmem:[%s4 + $0x68] sm:$0xf] %vm8234, %v7972
  %8262 = vst.msk [vmem:[%s4 + $0x6c] sm:$0xf] %vm8234, %v7973
  %8263 = vst.msk [vmem:[%s4 + $0x70] sm:$0xf] %vm8234, %v7974
  %8264 = vst.msk [vmem:[%s4 + $0x74] sm:$0xf] %vm8234, %v7975
  %8265 = vst.msk [vmem:[%s4 + $0x78] sm:$0xf] %vm8234, %v7976
  %8266 = vst.msk [vmem:[%s4 + $0x7c] sm:$0xf] %vm8234, %v7977
  %8267 = vst.msk [vmem:[%s4 + $0x80] sm:$0xf] %vm8234, %v7978
  %8268 = vst.msk [vmem:[%s4 + $0x84] sm:$0xf] %vm8234, %v7979
  %8269 = vst.msk [vmem:[%s4 + $0x88] sm:$0xf] %vm8234, %v7980
  %8270 = vst.msk [vmem:[%s4 + $0x8c] sm:$0xf] %vm8234, %v7981
  %8271 = vst.msk [vmem:[%s4 + $0x90] sm:$0xf] %vm8234, %v7982
  %8272 = vst.msk [vmem:[%s4 + $0x94] sm:$0xf] %vm8234, %v7983
  %8273 = vst.msk [vmem:[%s4 + $0x98] sm:$0xf] %vm8234, %v7984
  %8274 = vst.msk [vmem:[%s4 + $0x9c] sm:$0xf] %vm8234, %v7985
  %8275 = vst.msk [vmem:[%s4 + $0xa0] sm:$0xf] %vm8234, %v7986
  %8276 = vst.msk [vmem:[%s4 + $0xa4] sm:$0xf] %vm8234, %v7987
  %8277 = vst.msk [vmem:[%s4 + $0xa8] sm:$0xf] %vm8234, %v7988
  %8278 = vst.msk [vmem:[%s4 + $0xac] sm:$0xf] %vm8234, %v7989
  %8279 = vst.msk [vmem:[%s4 + $0xb0] sm:$0xf] %vm8234, %v7990
  %8280 = vst.msk [vmem:[%s4 + $0xb4] sm:$0xf] %vm8234, %v7991
  %8281 = vst.msk [vmem:[%s4 + $0xb8] sm:$0xf] %vm8234, %v7992
  %8282 = vst.msk [vmem:[%s4 + $0xbc] sm:$0xf] %vm8234, %v7993
  %8283 = vst.msk [vmem:[%s4 + $0xc0] sm:$0xf] %vm8234, %v7994
  %8284 = vst.msk [vmem:[%s4 + $0xc4] sm:$0xf] %vm8234, %v7995
  %8285 = vst.msk [vmem:[%s4 + $0xc8] sm:$0xf] %vm8234, %v7996
  %8286 = vst.msk [vmem:[%s4 + $0xcc] sm:$0xf] %vm8234, %v7997
  %8287 = vst.msk [vmem:[%s4 + $0xd0] sm:$0xf] %vm8234, %v7998
  %8288 = vst.msk [vmem:[%s4 + $0xd4] sm:$0xf] %vm8234, %v7999
  %8289 = vst.msk [vmem:[%s4 + $0xd8] sm:$0xf] %vm8234, %v8000
  %8290 = vst.msk [vmem:[%s4 + $0xdc] sm:$0xf] %vm8234, %v8001
  %8291 = vst.msk [vmem:[%s4 + $0xe0] sm:$0xf] %vm8234, %v8002
  %8292 = vst.msk [vmem:[%s4 + $0xe4] sm:$0xf] %vm8234, %v8003
  %8293 = vst.msk [vmem:[%s4 + $0xe8] sm:$0xf] %vm8234, %v8004
  %8294 = vst.msk [vmem:[%s4 + $0xec] sm:$0xf] %vm8234, %v8005
  %8295 = vst.msk [vmem:[%s4 + $0xf0] sm:$0xf] %vm8234, %v8006
  %8296 = vst.msk [vmem:[%s4 + $0xf4] sm:$0xf] %vm8234, %v8007
  %8297 = vst.msk [vmem:[%s4 + $0xf8] sm:$0xf] %vm8234, %v8008
  %8298 = vst.msk [vmem:[%s4 + $0xfc] sm:$0xf] %vm8234, %v8009
  %8299 = vst.msk [vmem:[%s4 + $0x100] sm:$0xf] %vm8234, %v8010
  %8300 = vst.msk [vmem:[%s4 + $0x104] sm:$0xf] %vm8234, %v8011
  %8301 = vst.msk [vmem:[%s4 + $0x108] sm:$0xf] %vm8234, %v8012
  %8302 = vst.msk [vmem:[%s4 + $0x10c] sm:$0xf] %vm8234, %v8013
  %8303 = vst.msk [vmem:[%s4 + $0x110] sm:$0xf] %vm8234, %v8014
  %8304 = vst.msk [vmem:[%s4 + $0x114] sm:$0xf] %vm8234, %v8015
  %8305 = vst.msk [vmem:[%s4 + $0x118] sm:$0xf] %vm8234, %v8016
  %8306 = vst.msk [vmem:[%s4 + $0x11c] sm:$0xf] %vm8234, %v8017
  %8307 = vst.msk [vmem:[%s4 + $0x120] sm:$0xf] %vm8234, %v8018
  %8308 = vst.msk [vmem:[%s4 + $0x124] sm:$0xf] %vm8234, %v8019
  %8309 = vst.msk [vmem:[%s4 + $0x128] sm:$0xf] %vm8234, %v8020
  %8310 = vst.msk [vmem:[%s4 + $0x12c] sm:$0xf] %vm8234, %v8021
  %8311 = vst.msk [vmem:[%s4 + $0x130] sm:$0xf] %vm8234, %v8022
  %8312 = vst.msk [vmem:[%s4 + $0x134] sm:$0xf] %vm8234, %v8023
  %8313 = vst.msk [vmem:[%s4 + $0x138] sm:$0xf] %vm8234, %v8024
  %8314 = vst.msk [vmem:[%s4 + $0x13c] sm:$0xf] %vm8234, %v8025
  %8315 = vst.msk [vmem:[%s4 + $0x140] sm:$0xf] %vm8234, %v8026
  %8316 = vst.msk [vmem:[%s4 + $0x144] sm:$0xf] %vm8234, %v8027
  %8317 = vst.msk [vmem:[%s4 + $0x148] sm:$0xf] %vm8234, %v8028
  %8318 = vst.msk [vmem:[%s4 + $0x14c] sm:$0xf] %vm8234, %v8029
  %8319 = vst.msk [vmem:[%s4 + $0x150] sm:$0xf] %vm8234, %v8030
  %8320 = vst.msk [vmem:[%s4 + $0x154] sm:$0xf] %vm8234, %v8031
  %8321 = vst.msk [vmem:[%s4 + $0x158] sm:$0xf] %vm8234, %v8032
  %8322 = vst.msk [vmem:[%s4 + $0x15c] sm:$0xf] %vm8234, %v8033
  %8323 = vst.msk [vmem:[%s4 + $0x160] sm:$0xf] %vm8234, %v8034
  %8324 = vst.msk [vmem:[%s4 + $0x164] sm:$0xf] %vm8234, %v8035
  %8325 = vst.msk [vmem:[%s4 + $0x168] sm:$0xf] %vm8234, %v8036
  %8326 = vst.msk [vmem:[%s4 + $0x16c] sm:$0xf] %vm8234, %v8037
  %8327 = vst.msk [vmem:[%s4 + $0x170] sm:$0xf] %vm8234, %v8038
  %8328 = vst.msk [vmem:[%s4 + $0x174] sm:$0xf] %vm8234, %v8039
  %8329 = vst.msk [vmem:[%s4 + $0x178] sm:$0xf] %vm8234, %v8040
  %8330 = vst.msk [vmem:[%s4 + $0x17c] sm:$0xf] %vm8234, %v8041
  %8331 = vst.msk [vmem:[%s4 + $0x180] sm:$0xf] %vm8234, %v8042
  %8332 = vst.msk [vmem:[%s4 + $0x184] sm:$0xf] %vm8234, %v8043
  %8333 = vst.msk [vmem:[%s4 + $0x188] sm:$0xf] %vm8234, %v8044
  %8334 = vst.msk [vmem:[%s4 + $0x18c] sm:$0xf] %vm8234, %v8045
  %8335 = vst.msk [vmem:[%s4 + $0x190] sm:$0xf] %vm8234, %v8046
  %8336 = vst.msk [vmem:[%s4 + $0x194] sm:$0xf] %vm8234, %v8047
  %8337 = vst.msk [vmem:[%s4 + $0x198] sm:$0xf] %vm8234, %v8048
  %8338 = vst.msk [vmem:[%s4 + $0x19c] sm:$0xf] %vm8234, %v8049
  %8339 = vst.msk [vmem:[%s4 + $0x1a0] sm:$0xf] %vm8234, %v8050
  %8340 = vst.msk [vmem:[%s4 + $0x1a4] sm:$0xf] %vm8234, %v8051
  %8341 = vst.msk [vmem:[%s4 + $0x1a8] sm:$0xf] %vm8234, %v8052
  %8342 = vst.msk [vmem:[%s4 + $0x1ac] sm:$0xf] %vm8234, %v8053
  %8343 = vst.msk [vmem:[%s4 + $0x1b0] sm:$0xf] %vm8234, %v8054
  %8344 = vst.msk [vmem:[%s4 + $0x1b4] sm:$0xf] %vm8234, %v8055
  %8345 = vst.msk [vmem:[%s4 + $0x1b8] sm:$0xf] %vm8234, %v8056
  %8346 = vst.msk [vmem:[%s4 + $0x1bc] sm:$0xf] %vm8234, %v8057
  %8347 = vst.msk [vmem:[%s4 + $0x1c0] sm:$0xf] %vm8234, %v8058
  %8348 = vst.msk [vmem:[%s4 + $0x1c4] sm:$0xf] %vm8234, %v8059
  %8349 = vst.msk [vmem:[%s4 + $0x1c8] sm:$0xf] %vm8234, %v8060
  %8350 = vst.msk [vmem:[%s4 + $0x1cc] sm:$0xf] %vm8234, %v8061
  %8351 = vst.msk [vmem:[%s4 + $0x1d0] sm:$0xf] %vm8234, %v8062
  %8352 = vst.msk [vmem:[%s4 + $0x1d4] sm:$0xf] %vm8234, %v8063
  %8353 = vst.msk [vmem:[%s4 + $0x1d8] sm:$0xf] %vm8234, %v8064
  %8354 = vst.msk [vmem:[%s4 + $0x1dc] sm:$0xf] %vm8234, %v8065
  %8355 = vst.msk [vmem:[%s4 + $0x1e0] sm:$0xf] %vm8234, %v8066
  %8356 = vst.msk [vmem:[%s4 + $0x1e4] sm:$0xf] %vm8234, %v8067
  %8357 = vst.msk [vmem:[%s4 + $0x1e8] sm:$0xf] %vm8234, %v8068
  %8358 = vst.msk [vmem:[%s4 + $0x1ec] sm:$0xf] %vm8234, %v8069
  %8359 = vst.msk [vmem:[%s4 + $0x1f0] sm:$0xf] %vm8234, %v8070
  %8360 = vst.msk [vmem:[%s4 + $0x1f4] sm:$0xf] %vm8234, %v8071
  %8361 = vst.msk [vmem:[%s4 + $0x1f8] sm:$0xf] %vm8234, %v8072
  %8362 = vst.msk [vmem:[%s4 + $0x1fc] sm:$0xf] %vm8234, %v8073
  %8363 = vst.msk [vmem:[%s4 + $0x200] sm:$0xf] %vm8234, %v8074
  %8364 = vst.msk [vmem:[%s4 + $0x204] sm:$0xf] %vm8234, %v8075
  %8365 = vst.msk [vmem:[%s4 + $0x208] sm:$0xf] %vm8234, %v8076
  %8366 = vst.msk [vmem:[%s4 + $0x20c] sm:$0xf] %vm8234, %v8077
  %8367 = vst.msk [vmem:[%s4 + $0x210] sm:$0xf] %vm8234, %v8078
  %8368 = vst.msk [vmem:[%s4 + $0x214] sm:$0xf] %vm8234, %v8079
  %8369 = vst.msk [vmem:[%s4 + $0x218] sm:$0xf] %vm8234, %v8080
  %8370 = vst.msk [vmem:[%s4 + $0x21c] sm:$0xf] %vm8234, %v8081
  %8371 = vst.msk [vmem:[%s4 + $0x220] sm:$0xf] %vm8234, %v8082
  %8372 = vst.msk [vmem:[%s4 + $0x224] sm:$0xf] %vm8234, %v8083
  %8373 = vst.msk [vmem:[%s4 + $0x228] sm:$0xf] %vm8234, %v8084
  %8374 = vst.msk [vmem:[%s4 + $0x22c] sm:$0xf] %vm8234, %v8085
  %8375 = vst.msk [vmem:[%s4 + $0x230] sm:$0xf] %vm8234, %v8086
  %8376 = vst.msk [vmem:[%s4 + $0x234] sm:$0xf] %vm8234, %v8087
  %8377 = vst.msk [vmem:[%s4 + $0x238] sm:$0xf] %vm8234, %v8088
  %8378 = vst.msk [vmem:[%s4 + $0x23c] sm:$0xf] %vm8234, %v8089
  // Predicated region
  $region18: #{_lambda_.1} parent=0 // pred_check
    _
  $region19: #{_lambda_.1} parent=0 // pred_check_branch
    %8380 = sbr.rel (0) target = $region21
  $region20: #{_lambda_.1} parent=0 // pred_region
    _
  $region21: #{_lambda_.1} parent=0 // pred_fallthru
    _
  // Predicated region
  $region22: #{_lambda_.1} parent=0 // pred_check
    _
  $region23: #{_lambda_.1} parent=0 // pred_check_branch
    %8382 = sbr.rel (0) target = $region25
  $region24: #{_lambda_.1} parent=0 // pred_region
    _
  $region25: #{_lambda_.1} parent=0 // pred_fallthru
    _

</llo_original>
